<compile_context>
chip_gen: v7x
topology: tpu7x:2x2x1
jax: 0.10.0
libtpu: 0.0.40
codegen_flags: <defaults>
</compile_context>

<pallas_src>
import functools

import jax
import jax.numpy as jnp
from jax import lax
from jax.experimental import pallas as pl
from jax.experimental.pallas import tpu as pltpu

# ---- hyperparameters from the PyTorch module ----
BLOCK_SIZE = 8                    # block_size
N_EMBD = 32                       # n_embd
N_HEAD = 4
HEAD_SIZE = N_EMBD // N_HEAD      # 8
N_LAYER = 3                       # three Block()s in self.blocks
VOCAB_SIZE = 65                   # `text` is not in the spec; fixed small char vocab
VOCAB_PAD = 128                   # vocab padded to a lane-dense multiple of 128
LN_EPS = 1e-5                     # torch nn.LayerNorm default
NEG_INF = -1e30                   # large finite negative (robust vs -inf + max-sub)
TARGET_ROWS = 512                 # rows (batch*seq) per grid step


def _layernorm(x, gamma, beta):
    """LayerNorm over the last axis. x: (R, C); gamma/beta: (1, C)."""
    mean = jnp.mean(x, axis=-1, keepdims=True)
    xc = x - mean
    var = jnp.mean(xc * xc, axis=-1, keepdims=True)
    return xc * lax.rsqrt(var + LN_EPS) * gamma + beta


def _softmax_last(logits):
    """Numerically-stable softmax over the last axis (exact divide for parity)."""
    m = jnp.max(logits, axis=-1, keepdims=True)
    e = jnp.exp(logits - m)
    return e / jnp.sum(e, axis=-1, keepdims=True)


def bigram_kernel(idx_ref, tok_ref, pos_ref,
                  ln1g_ref, ln1b_ref, wqkv_ref, bqkv_ref, wpr_ref, bpr_ref,
                  ln2g_ref, ln2b_ref, wf1_ref, bf1_ref, wf2_ref, bf2_ref,
                  lnfg_ref, lnfb_ref, wlm_ref, blm_ref, o_ref,
                  *, nb, seq):
    """One grid step = nb sequences (nb*seq rows merged on the sublane axis)."""
    C = N_EMBD
    R = nb * seq
    f32 = jnp.float32
    scale = float(C) ** -0.5      # NB: torch code scales by n_embd, not head_size

    # ---- token embedding: gather expressed as a lane-dense one-hot matmul ----
    ids = idx_ref[...]                                                   # (R, 1) int32
    vocab_iota = lax.broadcasted_iota(jnp.int32, (R, VOCAB_PAD), 1)
    tok_onehot = (ids == vocab_iota).astype(f32)                         # (R, Vp)
    x = jnp.dot(tok_onehot, tok_ref[...], preferred_element_type=f32)    # (R, C)

    # ---- position embedding: plain broadcast add (works for any T <= BLOCK_SIZE) ----
    pos = pos_ref[0:seq, :]                                              # (T, C) static
    x = (x.reshape(nb, seq, C) + pos[None, :, :]).reshape(R, C)

    # ---- additive causal bias, built once: (T, T) ----
    rt = lax.broadcasted_iota(jnp.int32, (seq, seq), 0)
    ct = lax.broadcasted_iota(jnp.int32, (seq, seq), 1)
    mask_bias = jnp.where(ct <= rt, 0.0, NEG_INF).astype(f32)            # (T, T)

    for l in range(N_LAYER):                                             # static unroll
        # ---- self-attention sub-block: x = x + proj(MHA(LN1(x))) ----
        h = _layernorm(x, ln1g_ref[l], ln1b_ref[l])
        qkv = jnp.dot(h, wqkv_ref[l], preferred_element_type=f32) + bqkv_ref[l]  # (R, 3C)
        q = qkv[:, 0 * C:1 * C] * scale        # fold score scale into q (one VPU mul)
        k = qkv[:, 1 * C:2 * C]
        v = qkv[:, 2 * C:3 * C]
        q3 = q.reshape(nb, seq, C)
        k3 = k.reshape(nb, seq, C)
        v3 = v.reshape(nb, seq, C)

        heads = []
        for hd in range(N_HEAD):                                         # static unroll
            lo = hd * HEAD_SIZE
            hi = lo + HEAD_SIZE
            s = jnp.einsum('bqd,bkd->bqk', q3[:, :, lo:hi], k3[:, :, lo:hi],
                           preferred_element_type=f32)                   # (nb, T, T)
            p = _softmax_last(s + mask_bias[None, :, :])
            heads.append(jnp.einsum('bqk,bkd->bqd', p, v3[:, :, lo:hi],
                                    preferred_element_type=f32))         # (nb, T, hs)
        cat = jnp.concatenate(heads, axis=-1).reshape(R, C)              # (R, C)
        x = x + jnp.dot(cat, wpr_ref[l], preferred_element_type=f32) + bpr_ref[l]

        # ---- feed-forward sub-block: x = x + W2 @ relu(W1 @ LN2(x)) ----
        h2 = _layernorm(x, ln2g_ref[l], ln2b_ref[l])
        h2 = jnp.dot(h2, wf1_ref[l], preferred_element_type=f32) + bf1_ref[l]    # (R, 4C)
        h2 = jnp.maximum(h2, 0.0)
        x = x + jnp.dot(h2, wf2_ref[l], preferred_element_type=f32) + bf2_ref[l]

    # ---- final LayerNorm + lm_head (padded, lane-dense output) ----
    x = _layernorm(x, lnfg_ref[...], lnfb_ref[...])
    logits = jnp.dot(x, wlm_ref[...], preferred_element_type=f32) + blm_ref[...]
    o_ref[...] = logits.astype(o_ref.dtype)


def _pick_batch_tile(batch, seq, target_rows=TARGET_ROWS):
    """Largest divisor of `batch` whose row count stays <= target_rows."""
    nb = max(1, min(batch, target_rows // max(seq, 1)))
    while batch % nb:
        nb -= 1
    return nb


def _const_index_map(ndim):
    return lambda i: (0,) * ndim


@jax.jit
def bigram_forward(idx, params):
    """idx: (B, T) int32 token ids. Returns logits (B, T, VOCAB_SIZE) float32."""
    B, T = idx.shape
    NB = _pick_batch_tile(B, T)
    R = NB * T
    kernel = functools.partial(bigram_kernel, nb=NB, seq=T)

    weights = (
        params["tok_emb"], params["pos_emb"],
        params["ln1_g"], params["ln1_b"],
        params["w_qkv"], params["b_qkv"],
        params["w_proj"], params["b_proj"],
        params["ln2_g"], params["ln2_b"],
        params["w_fc1"], params["b_fc1"],
        params["w_fc2"], params["b_fc2"],
        params["lnf_g"], params["lnf_b"],
        params["w_lm"], params["b_lm"],
    )

    # Activations stream per batch tile; every weight gets a constant index_map so it is
    # DMA'd once and stays VMEM-resident across grid steps (<100 KB total).
    in_specs = [pl.BlockSpec((R, 1), lambda i: (i, 0))] + [
        pl.BlockSpec(w.shape, _const_index_map(w.ndim)) for w in weights
    ]
    out_spec = pl.BlockSpec((R, VOCAB_PAD), lambda i: (i, 0))

    logits_pad = pl.pallas_call(
        kernel,
        out_shape=jax.ShapeDtypeStruct((B * T, VOCAB_PAD), jnp.float32),
        grid=(B // NB,),
        in_specs=in_specs,
        out_specs=out_spec,
        compiler_params=pltpu.CompilerParams(
            dimension_semantics=("parallel",)),     # shards batch tiles across v7x's 2 TCs
    )(idx.reshape(B * T, 1).astype(jnp.int32), *weights)
    return logits_pad.reshape(B, T, VOCAB_PAD)[:, :, :VOCAB_SIZE]


def reference_bigram(idx, params):
    """Pure-JAX forward matching the PyTorch BigramModel semantics."""
    B, T = idx.shape
    C = N_EMBD
    x = params["tok_emb"][idx] + params["pos_emb"][:T][None]             # (B, T, C)
    tril = jnp.tril(jnp.ones((T, T), dtype=bool))
    scale = float(C) ** -0.5

    def ln(v, g, b):
        m = v.mean(-1, keepdims=True)
        var = ((v - m) ** 2).mean(-1, keepdims=True)
        return (v - m) / jnp.sqrt(var + LN_EPS) * g + b

    for l in range(N_LAYER):
        h = ln(x, params["ln1_g"][l, 0], params["ln1_b"][l, 0])
        qkv = h @ params["w_qkv"][l] + params["b_qkv"][l, 0]
        q, k, v = qkv[..., :C], qkv[..., C:2 * C], qkv[..., 2 * C:]
        outs = []
        for hd in range(N_HEAD):
            lo, hi = hd * HEAD_SIZE, (hd + 1) * HEAD_SIZE
            wei = jnp.einsum("btd,bsd->bts", q[..., lo:hi], k[..., lo:hi]) * scale
            wei = jnp.where(tril[None], wei, -jnp.inf)
            wei = jax.nn.softmax(wei, axis=-1)
            outs.append(jnp.einsum("bts,bsd->btd", wei, v[..., lo:hi]))
        cat = jnp.concatenate(outs, axis=-1)
        x = x + cat @ params["w_proj"][l] + params["b_proj"][l, 0]
        h2 = ln(x, params["ln2_g"][l, 0], params["ln2_b"][l, 0])
        h2 = jax.nn.relu(h2 @ params["w_fc1"][l] + params["b_fc1"][l, 0])
        x = x + h2 @ params["w_fc2"][l] + params["b_fc2"][l, 0]
    x = ln(x, params["lnf_g"][0], params["lnf_b"][0])
    return x @ params["w_lm"][:, :VOCAB_SIZE] + params["b_lm"][0, :VOCAB_SIZE]


def init_params(key):
    """Deterministic synthetic parameters (shapes mirror the PyTorch module).

    Linear weights are stored (in, out) — transposed relative to torch — so y = x @ W + b.
    Per-head q/k/v Linears are fused into one (C, 3C) weight per layer (heads occupy
    contiguous column ranges). Vocab-sized tensors are zero-padded to VOCAB_PAD lanes."""
    C, L = N_EMBD, N_LAYER
    ks = jax.random.split(key, 12)

    def unif(k, shape, fan_in):
        s = 1.0 / float(fan_in) ** 0.5
        return jax.random.uniform(k, shape, jnp.float32, -s, s)

    tok = jax.random.normal(ks[0], (VOCAB_PAD, C), jnp.float32)
    tok = tok.at[VOCAB_SIZE:].set(0.0)            # padded vocab rows are never selected
    w_lm = unif(ks[10], (C, VOCAB_PAD), C).at[:, VOCAB_SIZE:].set(0.0)
    b_lm = unif(ks[11], (1, VOCAB_PAD), C).at[:, VOCAB_SIZE:].set(0.0)
    return {
        "tok_emb": tok,
        "pos_emb": jax.random.normal(ks[1], (BLOCK_SIZE, C), jnp.float32),
        "ln1_g": jnp.ones((L, 1, C), jnp.float32),
        "ln1_b": jnp.zeros((L, 1, C), jnp.float32),
        "w_qkv": unif(ks[2], (L, C, 3 * C), C),
        "b_qkv": unif(ks[3], (L, 1, 3 * C), C),
        "w_proj": unif(ks[4], (L, C, C), C),
        "b_proj": unif(ks[5], (L, 1, C), C),
        "ln2_g": jnp.ones((L, 1, C), jnp.float32),
        "ln2_b": jnp.zeros((L, 1, C), jnp.float32),
        "w_fc1": unif(ks[6], (L, C, 4 * C), C),
        "b_fc1": unif(ks[7], (L, 1, 4 * C), C),
        "w_fc2": unif(ks[8], (L, 4 * C, C), 4 * C),
        "b_fc2": unif(ks[9], (L, 1, C), 4 * C),
        "lnf_g": jnp.ones((1, C), jnp.float32),
        "lnf_b": jnp.zeros((1, C), jnp.float32),
        "w_lm": w_lm,
        "b_lm": b_lm,
    }


if __name__ == "__main__":
    key = jax.random.PRNGKey(0)
    k_param, k_idx = jax.random.split(key)

    params = init_params(k_param)
    B, T = 2, BLOCK_SIZE                                    # (2, 8) token ids
    idx = jax.random.randint(k_idx, (B, T), 0, VOCAB_SIZE, dtype=jnp.int32)

    logits = bigram_forward(idx, params)
    logits = jax.block_until_ready(logits)

    ref = reference_bigram(idx, params)
    assert logits.shape == (B, T, VOCAB_SIZE)
    max_err = float(jnp.max(jnp.abs(logits - ref)))
    assert jnp.allclose(logits, ref, atol=1e-2, rtol=1e-2), (
        f"mismatch vs reference (max abs err {max_err:.3e})")

    # TODO(synk): cross-entropy loss (targets path) and generate() sampling are
    # host-side / training-time logic, not part of this forward kernel.

    print("KERNEL_OK")
</pallas_src>

<mosaic_0001>
module attributes {stable_mosaic.version = 11 : i64} {
  func.func @bigram_kernel(%arg0: i32, %arg1: memref<16x1xi32, #tpu.memory_space<vmem>>, %arg2: memref<128x32xf32, #tpu.memory_space<vmem>>, %arg3: memref<8x32xf32, #tpu.memory_space<vmem>>, %arg4: memref<3x1x32xf32, #tpu.memory_space<vmem>>, %arg5: memref<3x1x32xf32, #tpu.memory_space<vmem>>, %arg6: memref<3x32x96xf32, #tpu.memory_space<vmem>>, %arg7: memref<3x1x96xf32, #tpu.memory_space<vmem>>, %arg8: memref<3x32x32xf32, #tpu.memory_space<vmem>>, %arg9: memref<3x1x32xf32, #tpu.memory_space<vmem>>, %arg10: memref<3x1x32xf32, #tpu.memory_space<vmem>>, %arg11: memref<3x1x32xf32, #tpu.memory_space<vmem>>, %arg12: memref<3x32x128xf32, #tpu.memory_space<vmem>>, %arg13: memref<3x1x128xf32, #tpu.memory_space<vmem>>, %arg14: memref<3x128x32xf32, #tpu.memory_space<vmem>>, %arg15: memref<3x1x32xf32, #tpu.memory_space<vmem>>, %arg16: memref<1x32xf32, #tpu.memory_space<vmem>>, %arg17: memref<1x32xf32, #tpu.memory_space<vmem>>, %arg18: memref<32x128xf32, #tpu.memory_space<vmem>>, %arg19: memref<1x128xf32, #tpu.memory_space<vmem>>, %arg20: memref<16x128xf32, #tpu.memory_space<vmem>>) attributes {dimension_semantics = [#tpu.dimension_semantics<parallel>], iteration_bounds = array<i64: 1>, scalar_prefetch = 0 : i64, scratch_operands = 0 : i64, tpu.core_type = #tpu.core_type<tc>, window_params = [{transform_indices = @transform_0, window_bounds = array<i64: 16, 1>}, {pipeline_mode = #tpu.pipeline_mode<synchronous>, transform_indices = @transform_1, window_bounds = array<i64: 128, 32>}, {pipeline_mode = #tpu.pipeline_mode<synchronous>, transform_indices = @transform_2, window_bounds = array<i64: 8, 32>}, {pipeline_mode = #tpu.pipeline_mode<synchronous>, transform_indices = @transform_3, window_bounds = array<i64: 3, 1, 32>}, {pipeline_mode = #tpu.pipeline_mode<synchronous>, transform_indices = @transform_4, window_bounds = array<i64: 3, 1, 32>}, {pipeline_mode = #tpu.pipeline_mode<synchronous>, transform_indices = @transform_5, window_bounds = array<i64: 3, 32, 96>}, {pipeline_mode = #tpu.pipeline_mode<synchronous>, transform_indices = @transform_6, window_bounds = array<i64: 3, 1, 96>}, {pipeline_mode = #tpu.pipeline_mode<synchronous>, transform_indices = @transform_7, window_bounds = array<i64: 3, 32, 32>}, {pipeline_mode = #tpu.pipeline_mode<synchronous>, transform_indices = @transform_8, window_bounds = array<i64: 3, 1, 32>}, {pipeline_mode = #tpu.pipeline_mode<synchronous>, transform_indices = @transform_9, window_bounds = array<i64: 3, 1, 32>}, {pipeline_mode = #tpu.pipeline_mode<synchronous>, transform_indices = @transform_10, window_bounds = array<i64: 3, 1, 32>}, {pipeline_mode = #tpu.pipeline_mode<synchronous>, transform_indices = @transform_11, window_bounds = array<i64: 3, 32, 128>}, {pipeline_mode = #tpu.pipeline_mode<synchronous>, transform_indices = @transform_12, window_bounds = array<i64: 3, 1, 128>}, {pipeline_mode = #tpu.pipeline_mode<synchronous>, transform_indices = @transform_13, window_bounds = array<i64: 3, 128, 32>}, {pipeline_mode = #tpu.pipeline_mode<synchronous>, transform_indices = @transform_14, window_bounds = array<i64: 3, 1, 32>}, {pipeline_mode = #tpu.pipeline_mode<synchronous>, transform_indices = @transform_15, window_bounds = array<i64: 1, 32>}, {pipeline_mode = #tpu.pipeline_mode<synchronous>, transform_indices = @transform_16, window_bounds = array<i64: 1, 32>}, {pipeline_mode = #tpu.pipeline_mode<synchronous>, transform_indices = @transform_17, window_bounds = array<i64: 32, 128>}, {pipeline_mode = #tpu.pipeline_mode<synchronous>, transform_indices = @transform_18, window_bounds = array<i64: 1, 128>}, {transform_indices = @transform_19, window_bounds = array<i64: 16, 128>}]} {
    %c0 = arith.constant 0 : index
    %c0_0 = arith.constant 0 : index
    %0 = vector.load %arg1[%c0, %c0_0] : memref<16x1xi32, #tpu.memory_space<vmem>>, vector<16x1xi32>
    %1 = tpu.iota {dimensions = array<i32: 1>} : vector<16x128xi32>
    %2 = vector.broadcast %0 : vector<16x1xi32> to vector<16x128xi32>
    %3 = arith.cmpi eq, %2, %1 : vector<16x128xi32>
    %4 = arith.extui %3 : vector<16x128xi1> to vector<16x128xi32>
    %5 = arith.sitofp %4 : vector<16x128xi32> to vector<16x128xf32>
    %c0_1 = arith.constant 0 : index
    %c0_2 = arith.constant 0 : index
    %6 = vector.load %arg2[%c0_1, %c0_2] : memref<128x32xf32, #tpu.memory_space<vmem>>, vector<128x32xf32>
    %cst = arith.constant dense<0.000000e+00> : vector<16x32xf32>
    %7 = tpu.matmul %5, %6, %cst {dimension_numbers = #tpu.dot_dimension_numbers<[1], [0], [0], [1], [0, 0, 1, 1], [], []>} : vector<16x128xf32>, vector<128x32xf32>, vector<16x32xf32> -> vector<16x32xf32>
    %c0_3 = arith.constant 0 : index
    %c0_4 = arith.constant 0 : index
    %8 = vector.load %arg3[%c0_3, %c0_4] : memref<8x32xf32, #tpu.memory_space<vmem>>, vector<8x32xf32>
    %9 = vector.shape_cast %7 : vector<16x32xf32> to vector<2x8x32xf32>
    %10 = vector.shape_cast %8 : vector<8x32xf32> to vector<1x8x32xf32>
    %11 = vector.broadcast %10 : vector<1x8x32xf32> to vector<2x8x32xf32>
    %12 = arith.addf %9, %11 : vector<2x8x32xf32>
    %13 = vector.shape_cast %12 : vector<2x8x32xf32> to vector<16x32xf32>
    %14 = tpu.iota {dimensions = array<i32: 0>} : vector<8x8xi32>
    %15 = tpu.iota {dimensions = array<i32: 1>} : vector<8x8xi32>
    %16 = arith.cmpi sle, %15, %14 : vector<8x8xi32>
    %cst_5 = arith.constant 0.000000e+00 : f32
    %cst_6 = arith.constant -1.000000e+30 : f32
    %17 = vector.broadcast %cst_5 : f32 to vector<8x8xf32>
    %18 = vector.broadcast %cst_6 : f32 to vector<8x8xf32>
    %19 = arith.select %16, %17, %18 : vector<8x8xi1>, vector<8x8xf32>
    %c0_7 = arith.constant 0 : index
    %c0_8 = arith.constant 0 : index
    %c0_9 = arith.constant 0 : index
    %20 = vector.load %arg4[%c0_7, %c0_8, %c0_9] : memref<3x1x32xf32, #tpu.memory_space<vmem>>, vector<1x1x32xf32>
    %21 = vector.shape_cast %20 : vector<1x1x32xf32> to vector<1x32xf32>
    %c0_10 = arith.constant 0 : index
    %c0_11 = arith.constant 0 : index
    %c0_12 = arith.constant 0 : index
    %22 = vector.load %arg5[%c0_10, %c0_11, %c0_12] : memref<3x1x32xf32, #tpu.memory_space<vmem>>, vector<1x1x32xf32>
    %23 = vector.shape_cast %22 : vector<1x1x32xf32> to vector<1x32xf32>
    %cst_13 = arith.constant dense<0.000000e+00> : vector<16xf32>
    %24 = vector.multi_reduction <add>, %13, %cst_13 [1] : vector<16x32xf32> to vector<16xf32>
    %25 = vector.shape_cast %24 : vector<16xf32> to vector<16x1xf32>
    %cst_14 = arith.constant 3.200000e+01 : f32
    %26 = vector.broadcast %cst_14 : f32 to vector<16x1xf32>
    %27 = arith.divf %25, %26 : vector<16x1xf32>
    %28 = vector.broadcast %27 : vector<16x1xf32> to vector<16x32xf32>
    %29 = arith.subf %13, %28 : vector<16x32xf32>
    %30 = arith.mulf %29, %29 : vector<16x32xf32>
    %cst_15 = arith.constant dense<0.000000e+00> : vector<16xf32>
    %31 = vector.multi_reduction <add>, %30, %cst_15 [1] : vector<16x32xf32> to vector<16xf32>
    %32 = vector.shape_cast %31 : vector<16xf32> to vector<16x1xf32>
    %cst_16 = arith.constant 3.200000e+01 : f32
    %33 = vector.broadcast %cst_16 : f32 to vector<16x1xf32>
    %34 = arith.divf %32, %33 : vector<16x1xf32>
    %cst_17 = arith.constant 9.99999974E-6 : f32
    %35 = vector.broadcast %cst_17 : f32 to vector<16x1xf32>
    %36 = arith.addf %34, %35 : vector<16x1xf32>
    %37 = math.rsqrt %36 : vector<16x1xf32>
    %38 = vector.broadcast %37 : vector<16x1xf32> to vector<16x32xf32>
    %39 = arith.mulf %29, %38 : vector<16x32xf32>
    %40 = vector.broadcast %21 : vector<1x32xf32> to vector<16x32xf32>
    %41 = arith.mulf %39, %40 : vector<16x32xf32>
    %42 = vector.broadcast %23 : vector<1x32xf32> to vector<16x32xf32>
    %43 = arith.addf %41, %42 : vector<16x32xf32>
    %c0_18 = arith.constant 0 : index
    %c0_19 = arith.constant 0 : index
    %c0_20 = arith.constant 0 : index
    %44 = vector.load %arg6[%c0_18, %c0_19, %c0_20] : memref<3x32x96xf32, #tpu.memory_space<vmem>>, vector<1x32x96xf32>
    %45 = vector.shape_cast %44 : vector<1x32x96xf32> to vector<32x96xf32>
    %cst_21 = arith.constant dense<0.000000e+00> : vector<16x96xf32>
    %46 = tpu.matmul %43, %45, %cst_21 {dimension_numbers = #tpu.dot_dimension_numbers<[1], [0], [0], [1], [0, 0, 1, 1], [], []>} : vector<16x32xf32>, vector<32x96xf32>, vector<16x96xf32> -> vector<16x96xf32>
    %c0_22 = arith.constant 0 : index
    %c0_23 = arith.constant 0 : index
    %c0_24 = arith.constant 0 : index
    %47 = vector.load %arg7[%c0_22, %c0_23, %c0_24] : memref<3x1x96xf32, #tpu.memory_space<vmem>>, vector<1x1x96xf32>
    %48 = vector.shape_cast %47 : vector<1x1x96xf32> to vector<1x96xf32>
    %49 = vector.broadcast %48 : vector<1x96xf32> to vector<16x96xf32>
    %50 = arith.addf %46, %49 : vector<16x96xf32>
    %51 = vector.extract_strided_slice %50 {offsets = [0, 0], sizes = [16, 32], strides = [1, 1]} : vector<16x96xf32> to vector<16x32xf32>
    %cst_25 = arith.constant 0.176776692 : f32
    %52 = vector.broadcast %cst_25 : f32 to vector<16x32xf32>
    %53 = arith.mulf %51, %52 : vector<16x32xf32>
    %54 = vector.extract_strided_slice %50 {offsets = [0, 32], sizes = [16, 32], strides = [1, 1]} : vector<16x96xf32> to vector<16x32xf32>
    %55 = vector.extract_strided_slice %50 {offsets = [0, 64], sizes = [16, 32], strides = [1, 1]} : vector<16x96xf32> to vector<16x32xf32>
    %56 = vector.shape_cast %53 : vector<16x32xf32> to vector<2x8x32xf32>
    %57 = vector.shape_cast %54 : vector<16x32xf32> to vector<2x8x32xf32>
    %58 = vector.shape_cast %55 : vector<16x32xf32> to vector<2x8x32xf32>
    %59 = vector.extract_strided_slice %56 {offsets = [0, 0, 0], sizes = [2, 8, 8], strides = [1, 1, 1]} : vector<2x8x32xf32> to vector<2x8x8xf32>
    %60 = vector.extract_strided_slice %57 {offsets = [0, 0, 0], sizes = [2, 8, 8], strides = [1, 1, 1]} : vector<2x8x32xf32> to vector<2x8x8xf32>
    "tpu.trace_start"() <{level = 10 : i32, message = "bqd,bkd->bqk"}> : () -> ()
    %cst_26 = arith.constant dense<0.000000e+00> : vector<2x8x8xf32>
    %61 = tpu.matmul %59, %60, %cst_26 {dimension_numbers = #tpu.dot_dimension_numbers<[2], [2], [1], [1], [0, 0, 0, 1, 1, 1], [0], [0]>} : vector<2x8x8xf32>, vector<2x8x8xf32>, vector<2x8x8xf32> -> vector<2x8x8xf32>
    "tpu.trace_stop"() : () -> ()
    %62 = vector.shape_cast %19 : vector<8x8xf32> to vector<1x8x8xf32>
    %63 = vector.broadcast %62 : vector<1x8x8xf32> to vector<2x8x8xf32>
    %64 = arith.addf %61, %63 : vector<2x8x8xf32>
    %cst_27 = arith.constant dense<0xFF800000> : vector<2x8xf32>
    %65 = vector.multi_reduction <maximumf>, %64, %cst_27 [2] : vector<2x8x8xf32> to vector<2x8xf32>
    %66 = vector.shape_cast %65 : vector<2x8xf32> to vector<2x8x1xf32>
    %67 = vector.broadcast %66 : vector<2x8x1xf32> to vector<2x8x8xf32>
    %68 = arith.subf %64, %67 : vector<2x8x8xf32>
    %69 = math.exp %68 : vector<2x8x8xf32>
    %cst_28 = arith.constant dense<0.000000e+00> : vector<2x8xf32>
    %70 = vector.multi_reduction <add>, %69, %cst_28 [2] : vector<2x8x8xf32> to vector<2x8xf32>
    %71 = vector.shape_cast %70 : vector<2x8xf32> to vector<2x8x1xf32>
    %72 = vector.broadcast %71 : vector<2x8x1xf32> to vector<2x8x8xf32>
    %73 = arith.divf %69, %72 : vector<2x8x8xf32>
    %74 = vector.extract_strided_slice %58 {offsets = [0, 0, 0], sizes = [2, 8, 8], strides = [1, 1, 1]} : vector<2x8x32xf32> to vector<2x8x8xf32>
    "tpu.trace_start"() <{level = 10 : i32, message = "bqk,bkd->bqd"}> : () -> ()
    %cst_29 = arith.constant dense<0.000000e+00> : vector<2x8x8xf32>
    %75 = tpu.matmul %73, %74, %cst_29 {dimension_numbers = #tpu.dot_dimension_numbers<[2], [1], [1], [2], [0, 0, 0, 1, 1, 2], [0], [0]>} : vector<2x8x8xf32>, vector<2x8x8xf32>, vector<2x8x8xf32> -> vector<2x8x8xf32>
    "tpu.trace_stop"() : () -> ()
    %76 = vector.extract_strided_slice %56 {offsets = [0, 0, 8], sizes = [2, 8, 8], strides = [1, 1, 1]} : vector<2x8x32xf32> to vector<2x8x8xf32>
    %77 = vector.extract_strided_slice %57 {offsets = [0, 0, 8], sizes = [2, 8, 8], strides = [1, 1, 1]} : vector<2x8x32xf32> to vector<2x8x8xf32>
    "tpu.trace_start"() <{level = 10 : i32, message = "bqd,bkd->bqk"}> : () -> ()
    %cst_30 = arith.constant dense<0.000000e+00> : vector<2x8x8xf32>
    %78 = tpu.matmul %76, %77, %cst_30 {dimension_numbers = #tpu.dot_dimension_numbers<[2], [2], [1], [1], [0, 0, 0, 1, 1, 1], [0], [0]>} : vector<2x8x8xf32>, vector<2x8x8xf32>, vector<2x8x8xf32> -> vector<2x8x8xf32>
    "tpu.trace_stop"() : () -> ()
    %79 = vector.shape_cast %19 : vector<8x8xf32> to vector<1x8x8xf32>
    %80 = vector.broadcast %79 : vector<1x8x8xf32> to vector<2x8x8xf32>
    %81 = arith.addf %78, %80 : vector<2x8x8xf32>
    %cst_31 = arith.constant dense<0xFF800000> : vector<2x8xf32>
    %82 = vector.multi_reduction <maximumf>, %81, %cst_31 [2] : vector<2x8x8xf32> to vector<2x8xf32>
    %83 = vector.shape_cast %82 : vector<2x8xf32> to vector<2x8x1xf32>
    %84 = vector.broadcast %83 : vector<2x8x1xf32> to vector<2x8x8xf32>
    %85 = arith.subf %81, %84 : vector<2x8x8xf32>
    %86 = math.exp %85 : vector<2x8x8xf32>
    %cst_32 = arith.constant dense<0.000000e+00> : vector<2x8xf32>
    %87 = vector.multi_reduction <add>, %86, %cst_32 [2] : vector<2x8x8xf32> to vector<2x8xf32>
    %88 = vector.shape_cast %87 : vector<2x8xf32> to vector<2x8x1xf32>
    %89 = vector.broadcast %88 : vector<2x8x1xf32> to vector<2x8x8xf32>
    %90 = arith.divf %86, %89 : vector<2x8x8xf32>
    %91 = vector.extract_strided_slice %58 {offsets = [0, 0, 8], sizes = [2, 8, 8], strides = [1, 1, 1]} : vector<2x8x32xf32> to vector<2x8x8xf32>
    "tpu.trace_start"() <{level = 10 : i32, message = "bqk,bkd->bqd"}> : () -> ()
    %cst_33 = arith.constant dense<0.000000e+00> : vector<2x8x8xf32>
    %92 = tpu.matmul %90, %91, %cst_33 {dimension_numbers = #tpu.dot_dimension_numbers<[2], [1], [1], [2], [0, 0, 0, 1, 1, 2], [0], [0]>} : vector<2x8x8xf32>, vector<2x8x8xf32>, vector<2x8x8xf32> -> vector<2x8x8xf32>
    "tpu.trace_stop"() : () -> ()
    %93 = vector.extract_strided_slice %56 {offsets = [0, 0, 16], sizes = [2, 8, 8], strides = [1, 1, 1]} : vector<2x8x32xf32> to vector<2x8x8xf32>
    %94 = vector.extract_strided_slice %57 {offsets = [0, 0, 16], sizes = [2, 8, 8], strides = [1, 1, 1]} : vector<2x8x32xf32> to vector<2x8x8xf32>
    "tpu.trace_start"() <{level = 10 : i32, message = "bqd,bkd->bqk"}> : () -> ()
    %cst_34 = arith.constant dense<0.000000e+00> : vector<2x8x8xf32>
    %95 = tpu.matmul %93, %94, %cst_34 {dimension_numbers = #tpu.dot_dimension_numbers<[2], [2], [1], [1], [0, 0, 0, 1, 1, 1], [0], [0]>} : vector<2x8x8xf32>, vector<2x8x8xf32>, vector<2x8x8xf32> -> vector<2x8x8xf32>
    "tpu.trace_stop"() : () -> ()
    %96 = vector.shape_cast %19 : vector<8x8xf32> to vector<1x8x8xf32>
    %97 = vector.broadcast %96 : vector<1x8x8xf32> to vector<2x8x8xf32>
    %98 = arith.addf %95, %97 : vector<2x8x8xf32>
    %cst_35 = arith.constant dense<0xFF800000> : vector<2x8xf32>
    %99 = vector.multi_reduction <maximumf>, %98, %cst_35 [2] : vector<2x8x8xf32> to vector<2x8xf32>
    %100 = vector.shape_cast %99 : vector<2x8xf32> to vector<2x8x1xf32>
    %101 = vector.broadcast %100 : vector<2x8x1xf32> to vector<2x8x8xf32>
    %102 = arith.subf %98, %101 : vector<2x8x8xf32>
    %103 = math.exp %102 : vector<2x8x8xf32>
    %cst_36 = arith.constant dense<0.000000e+00> : vector<2x8xf32>
    %104 = vector.multi_reduction <add>, %103, %cst_36 [2] : vector<2x8x8xf32> to vector<2x8xf32>
    %105 = vector.shape_cast %104 : vector<2x8xf32> to vector<2x8x1xf32>
    %106 = vector.broadcast %105 : vector<2x8x1xf32> to vector<2x8x8xf32>
    %107 = arith.divf %103, %106 : vector<2x8x8xf32>
    %108 = vector.extract_strided_slice %58 {offsets = [0, 0, 16], sizes = [2, 8, 8], strides = [1, 1, 1]} : vector<2x8x32xf32> to vector<2x8x8xf32>
    "tpu.trace_start"() <{level = 10 : i32, message = "bqk,bkd->bqd"}> : () -> ()
    %cst_37 = arith.constant dense<0.000000e+00> : vector<2x8x8xf32>
    %109 = tpu.matmul %107, %108, %cst_37 {dimension_numbers = #tpu.dot_dimension_numbers<[2], [1], [1], [2], [0, 0, 0, 1, 1, 2], [0], [0]>} : vector<2x8x8xf32>, vector<2x8x8xf32>, vector<2x8x8xf32> -> vector<2x8x8xf32>
    "tpu.trace_stop"() : () -> ()
    %110 = vector.extract_strided_slice %56 {offsets = [0, 0, 24], sizes = [2, 8, 8], strides = [1, 1, 1]} : vector<2x8x32xf32> to vector<2x8x8xf32>
    %111 = vector.extract_strided_slice %57 {offsets = [0, 0, 24], sizes = [2, 8, 8], strides = [1, 1, 1]} : vector<2x8x32xf32> to vector<2x8x8xf32>
    "tpu.trace_start"() <{level = 10 : i32, message = "bqd,bkd->bqk"}> : () -> ()
    %cst_38 = arith.constant dense<0.000000e+00> : vector<2x8x8xf32>
    %112 = tpu.matmul %110, %111, %cst_38 {dimension_numbers = #tpu.dot_dimension_numbers<[2], [2], [1], [1], [0, 0, 0, 1, 1, 1], [0], [0]>} : vector<2x8x8xf32>, vector<2x8x8xf32>, vector<2x8x8xf32> -> vector<2x8x8xf32>
    "tpu.trace_stop"() : () -> ()
    %113 = vector.shape_cast %19 : vector<8x8xf32> to vector<1x8x8xf32>
    %114 = vector.broadcast %113 : vector<1x8x8xf32> to vector<2x8x8xf32>
    %115 = arith.addf %112, %114 : vector<2x8x8xf32>
    %cst_39 = arith.constant dense<0xFF800000> : vector<2x8xf32>
    %116 = vector.multi_reduction <maximumf>, %115, %cst_39 [2] : vector<2x8x8xf32> to vector<2x8xf32>
    %117 = vector.shape_cast %116 : vector<2x8xf32> to vector<2x8x1xf32>
    %118 = vector.broadcast %117 : vector<2x8x1xf32> to vector<2x8x8xf32>
    %119 = arith.subf %115, %118 : vector<2x8x8xf32>
    %120 = math.exp %119 : vector<2x8x8xf32>
    %cst_40 = arith.constant dense<0.000000e+00> : vector<2x8xf32>
    %121 = vector.multi_reduction <add>, %120, %cst_40 [2] : vector<2x8x8xf32> to vector<2x8xf32>
    %122 = vector.shape_cast %121 : vector<2x8xf32> to vector<2x8x1xf32>
    %123 = vector.broadcast %122 : vector<2x8x1xf32> to vector<2x8x8xf32>
    %124 = arith.divf %120, %123 : vector<2x8x8xf32>
    %125 = vector.extract_strided_slice %58 {offsets = [0, 0, 24], sizes = [2, 8, 8], strides = [1, 1, 1]} : vector<2x8x32xf32> to vector<2x8x8xf32>
    "tpu.trace_start"() <{level = 10 : i32, message = "bqk,bkd->bqd"}> : () -> ()
    %cst_41 = arith.constant dense<0.000000e+00> : vector<2x8x8xf32>
    %126 = tpu.matmul %124, %125, %cst_41 {dimension_numbers = #tpu.dot_dimension_numbers<[2], [1], [1], [2], [0, 0, 0, 1, 1, 2], [0], [0]>} : vector<2x8x8xf32>, vector<2x8x8xf32>, vector<2x8x8xf32> -> vector<2x8x8xf32>
    "tpu.trace_stop"() : () -> ()
    %127 = tpu.concatenate %75, %92, %109, %126 in 2 : vector<2x8x8xf32>, vector<2x8x8xf32>, vector<2x8x8xf32>, vector<2x8x8xf32> -> vector<2x8x32xf32>
    %128 = vector.shape_cast %127 : vector<2x8x32xf32> to vector<16x32xf32>
    %c0_42 = arith.constant 0 : index
    %c0_43 = arith.constant 0 : index
    %c0_44 = arith.constant 0 : index
    %129 = vector.load %arg8[%c0_42, %c0_43, %c0_44] : memref<3x32x32xf32, #tpu.memory_space<vmem>>, vector<1x32x32xf32>
    %130 = vector.shape_cast %129 : vector<1x32x32xf32> to vector<32x32xf32>
    %cst_45 = arith.constant dense<0.000000e+00> : vector<16x32xf32>
    %131 = tpu.matmul %128, %130, %cst_45 {dimension_numbers = #tpu.dot_dimension_numbers<[1], [0], [0], [1], [0, 0, 1, 1], [], []>} : vector<16x32xf32>, vector<32x32xf32>, vector<16x32xf32> -> vector<16x32xf32>
    %132 = arith.addf %13, %131 : vector<16x32xf32>
    %c0_46 = arith.constant 0 : index
    %c0_47 = arith.constant 0 : index
    %c0_48 = arith.constant 0 : index
    %133 = vector.load %arg9[%c0_46, %c0_47, %c0_48] : memref<3x1x32xf32, #tpu.memory_space<vmem>>, vector<1x1x32xf32>
    %134 = vector.shape_cast %133 : vector<1x1x32xf32> to vector<1x32xf32>
    %135 = vector.broadcast %134 : vector<1x32xf32> to vector<16x32xf32>
    %136 = arith.addf %132, %135 : vector<16x32xf32>
    %c0_49 = arith.constant 0 : index
    %c0_50 = arith.constant 0 : index
    %c0_51 = arith.constant 0 : index
    %137 = vector.load %arg10[%c0_49, %c0_50, %c0_51] : memref<3x1x32xf32, #tpu.memory_space<vmem>>, vector<1x1x32xf32>
    %138 = vector.shape_cast %137 : vector<1x1x32xf32> to vector<1x32xf32>
    %c0_52 = arith.constant 0 : index
    %c0_53 = arith.constant 0 : index
    %c0_54 = arith.constant 0 : index
    %139 = vector.load %arg11[%c0_52, %c0_53, %c0_54] : memref<3x1x32xf32, #tpu.memory_space<vmem>>, vector<1x1x32xf32>
    %140 = vector.shape_cast %139 : vector<1x1x32xf32> to vector<1x32xf32>
    %cst_55 = arith.constant dense<0.000000e+00> : vector<16xf32>
    %141 = vector.multi_reduction <add>, %136, %cst_55 [1] : vector<16x32xf32> to vector<16xf32>
    %142 = vector.shape_cast %141 : vector<16xf32> to vector<16x1xf32>
    %cst_56 = arith.constant 3.200000e+01 : f32
    %143 = vector.broadcast %cst_56 : f32 to vector<16x1xf32>
    %144 = arith.divf %142, %143 : vector<16x1xf32>
    %145 = vector.broadcast %144 : vector<16x1xf32> to vector<16x32xf32>
    %146 = arith.subf %136, %145 : vector<16x32xf32>
    %147 = arith.mulf %146, %146 : vector<16x32xf32>
    %cst_57 = arith.constant dense<0.000000e+00> : vector<16xf32>
    %148 = vector.multi_reduction <add>, %147, %cst_57 [1] : vector<16x32xf32> to vector<16xf32>
    %149 = vector.shape_cast %148 : vector<16xf32> to vector<16x1xf32>
    %cst_58 = arith.constant 3.200000e+01 : f32
    %150 = vector.broadcast %cst_58 : f32 to vector<16x1xf32>
    %151 = arith.divf %149, %150 : vector<16x1xf32>
    %cst_59 = arith.constant 9.99999974E-6 : f32
    %152 = vector.broadcast %cst_59 : f32 to vector<16x1xf32>
    %153 = arith.addf %151, %152 : vector<16x1xf32>
    %154 = math.rsqrt %153 : vector<16x1xf32>
    %155 = vector.broadcast %154 : vector<16x1xf32> to vector<16x32xf32>
    %156 = arith.mulf %146, %155 : vector<16x32xf32>
    %157 = vector.broadcast %138 : vector<1x32xf32> to vector<16x32xf32>
    %158 = arith.mulf %156, %157 : vector<16x32xf32>
    %159 = vector.broadcast %140 : vector<1x32xf32> to vector<16x32xf32>
    %160 = arith.addf %158, %159 : vector<16x32xf32>
    %c0_60 = arith.constant 0 : index
    %c0_61 = arith.constant 0 : index
    %c0_62 = arith.constant 0 : index
    %161 = vector.load %arg12[%c0_60, %c0_61, %c0_62] : memref<3x32x128xf32, #tpu.memory_space<vmem>>, vector<1x32x128xf32>
    %162 = vector.shape_cast %161 : vector<1x32x128xf32> to vector<32x128xf32>
    %cst_63 = arith.constant dense<0.000000e+00> : vector<16x128xf32>
    %163 = tpu.matmul %160, %162, %cst_63 {dimension_numbers = #tpu.dot_dimension_numbers<[1], [0], [0], [1], [0, 0, 1, 1], [], []>} : vector<16x32xf32>, vector<32x128xf32>, vector<16x128xf32> -> vector<16x128xf32>
    %c0_64 = arith.constant 0 : index
    %c0_65 = arith.constant 0 : index
    %c0_66 = arith.constant 0 : index
    %164 = vector.load %arg13[%c0_64, %c0_65, %c0_66] : memref<3x1x128xf32, #tpu.memory_space<vmem>>, vector<1x1x128xf32>
    %165 = vector.shape_cast %164 : vector<1x1x128xf32> to vector<1x128xf32>
    %166 = vector.broadcast %165 : vector<1x128xf32> to vector<16x128xf32>
    %167 = arith.addf %163, %166 : vector<16x128xf32>
    %cst_67 = arith.constant 0.000000e+00 : f32
    %168 = vector.broadcast %cst_67 : f32 to vector<16x128xf32>
    %169 = arith.maximumf %167, %168 : vector<16x128xf32>
    %c0_68 = arith.constant 0 : index
    %c0_69 = arith.constant 0 : index
    %c0_70 = arith.constant 0 : index
    %170 = vector.load %arg14[%c0_68, %c0_69, %c0_70] : memref<3x128x32xf32, #tpu.memory_space<vmem>>, vector<1x128x32xf32>
    %171 = vector.shape_cast %170 : vector<1x128x32xf32> to vector<128x32xf32>
    %cst_71 = arith.constant dense<0.000000e+00> : vector<16x32xf32>
    %172 = tpu.matmul %169, %171, %cst_71 {dimension_numbers = #tpu.dot_dimension_numbers<[1], [0], [0], [1], [0, 0, 1, 1], [], []>} : vector<16x128xf32>, vector<128x32xf32>, vector<16x32xf32> -> vector<16x32xf32>
    %173 = arith.addf %136, %172 : vector<16x32xf32>
    %c0_72 = arith.constant 0 : index
    %c0_73 = arith.constant 0 : index
    %c0_74 = arith.constant 0 : index
    %174 = vector.load %arg15[%c0_72, %c0_73, %c0_74] : memref<3x1x32xf32, #tpu.memory_space<vmem>>, vector<1x1x32xf32>
    %175 = vector.shape_cast %174 : vector<1x1x32xf32> to vector<1x32xf32>
    %176 = vector.broadcast %175 : vector<1x32xf32> to vector<16x32xf32>
    %177 = arith.addf %173, %176 : vector<16x32xf32>
    %c1 = arith.constant 1 : index
    %c0_75 = arith.constant 0 : index
    %c0_76 = arith.constant 0 : index
    %178 = vector.load %arg4[%c1, %c0_75, %c0_76] : memref<3x1x32xf32, #tpu.memory_space<vmem>>, vector<1x1x32xf32>
    %179 = vector.shape_cast %178 : vector<1x1x32xf32> to vector<1x32xf32>
    %c1_77 = arith.constant 1 : index
    %c0_78 = arith.constant 0 : index
    %c0_79 = arith.constant 0 : index
    %180 = vector.load %arg5[%c1_77, %c0_78, %c0_79] : memref<3x1x32xf32, #tpu.memory_space<vmem>>, vector<1x1x32xf32>
    %181 = vector.shape_cast %180 : vector<1x1x32xf32> to vector<1x32xf32>
    %cst_80 = arith.constant dense<0.000000e+00> : vector<16xf32>
    %182 = vector.multi_reduction <add>, %177, %cst_80 [1] : vector<16x32xf32> to vector<16xf32>
    %183 = vector.shape_cast %182 : vector<16xf32> to vector<16x1xf32>
    %cst_81 = arith.constant 3.200000e+01 : f32
    %184 = vector.broadcast %cst_81 : f32 to vector<16x1xf32>
    %185 = arith.divf %183, %184 : vector<16x1xf32>
    %186 = vector.broadcast %185 : vector<16x1xf32> to vector<16x32xf32>
    %187 = arith.subf %177, %186 : vector<16x32xf32>
    %188 = arith.mulf %187, %187 : vector<16x32xf32>
    %cst_82 = arith.constant dense<0.000000e+00> : vector<16xf32>
    %189 = vector.multi_reduction <add>, %188, %cst_82 [1] : vector<16x32xf32> to vector<16xf32>
    %190 = vector.shape_cast %189 : vector<16xf32> to vector<16x1xf32>
    %cst_83 = arith.constant 3.200000e+01 : f32
    %191 = vector.broadcast %cst_83 : f32 to vector<16x1xf32>
    %192 = arith.divf %190, %191 : vector<16x1xf32>
    %cst_84 = arith.constant 9.99999974E-6 : f32
    %193 = vector.broadcast %cst_84 : f32 to vector<16x1xf32>
    %194 = arith.addf %192, %193 : vector<16x1xf32>
    %195 = math.rsqrt %194 : vector<16x1xf32>
    %196 = vector.broadcast %195 : vector<16x1xf32> to vector<16x32xf32>
    %197 = arith.mulf %187, %196 : vector<16x32xf32>
    %198 = vector.broadcast %179 : vector<1x32xf32> to vector<16x32xf32>
    %199 = arith.mulf %197, %198 : vector<16x32xf32>
    %200 = vector.broadcast %181 : vector<1x32xf32> to vector<16x32xf32>
    %201 = arith.addf %199, %200 : vector<16x32xf32>
    %c1_85 = arith.constant 1 : index
    %c0_86 = arith.constant 0 : index
    %c0_87 = arith.constant 0 : index
    %202 = vector.load %arg6[%c1_85, %c0_86, %c0_87] : memref<3x32x96xf32, #tpu.memory_space<vmem>>, vector<1x32x96xf32>
    %203 = vector.shape_cast %202 : vector<1x32x96xf32> to vector<32x96xf32>
    %cst_88 = arith.constant dense<0.000000e+00> : vector<16x96xf32>
    %204 = tpu.matmul %201, %203, %cst_88 {dimension_numbers = #tpu.dot_dimension_numbers<[1], [0], [0], [1], [0, 0, 1, 1], [], []>} : vector<16x32xf32>, vector<32x96xf32>, vector<16x96xf32> -> vector<16x96xf32>
    %c1_89 = arith.constant 1 : index
    %c0_90 = arith.constant 0 : index
    %c0_91 = arith.constant 0 : index
    %205 = vector.load %arg7[%c1_89, %c0_90, %c0_91] : memref<3x1x96xf32, #tpu.memory_space<vmem>>, vector<1x1x96xf32>
    %206 = vector.shape_cast %205 : vector<1x1x96xf32> to vector<1x96xf32>
    %207 = vector.broadcast %206 : vector<1x96xf32> to vector<16x96xf32>
    %208 = arith.addf %204, %207 : vector<16x96xf32>
    %209 = vector.extract_strided_slice %208 {offsets = [0, 0], sizes = [16, 32], strides = [1, 1]} : vector<16x96xf32> to vector<16x32xf32>
    %cst_92 = arith.constant 0.176776692 : f32
    %210 = vector.broadcast %cst_92 : f32 to vector<16x32xf32>
    %211 = arith.mulf %209, %210 : vector<16x32xf32>
    %212 = vector.extract_strided_slice %208 {offsets = [0, 32], sizes = [16, 32], strides = [1, 1]} : vector<16x96xf32> to vector<16x32xf32>
    %213 = vector.extract_strided_slice %208 {offsets = [0, 64], sizes = [16, 32], strides = [1, 1]} : vector<16x96xf32> to vector<16x32xf32>
    %214 = vector.shape_cast %211 : vector<16x32xf32> to vector<2x8x32xf32>
    %215 = vector.shape_cast %212 : vector<16x32xf32> to vector<2x8x32xf32>
    %216 = vector.shape_cast %213 : vector<16x32xf32> to vector<2x8x32xf32>
    %217 = vector.extract_strided_slice %214 {offsets = [0, 0, 0], sizes = [2, 8, 8], strides = [1, 1, 1]} : vector<2x8x32xf32> to vector<2x8x8xf32>
    %218 = vector.extract_strided_slice %215 {offsets = [0, 0, 0], sizes = [2, 8, 8], strides = [1, 1, 1]} : vector<2x8x32xf32> to vector<2x8x8xf32>
    "tpu.trace_start"() <{level = 10 : i32, message = "bqd,bkd->bqk"}> : () -> ()
    %cst_93 = arith.constant dense<0.000000e+00> : vector<2x8x8xf32>
    %219 = tpu.matmul %217, %218, %cst_93 {dimension_numbers = #tpu.dot_dimension_numbers<[2], [2], [1], [1], [0, 0, 0, 1, 1, 1], [0], [0]>} : vector<2x8x8xf32>, vector<2x8x8xf32>, vector<2x8x8xf32> -> vector<2x8x8xf32>
    "tpu.trace_stop"() : () -> ()
    %220 = vector.shape_cast %19 : vector<8x8xf32> to vector<1x8x8xf32>
    %221 = vector.broadcast %220 : vector<1x8x8xf32> to vector<2x8x8xf32>
    %222 = arith.addf %219, %221 : vector<2x8x8xf32>
    %cst_94 = arith.constant dense<0xFF800000> : vector<2x8xf32>
    %223 = vector.multi_reduction <maximumf>, %222, %cst_94 [2] : vector<2x8x8xf32> to vector<2x8xf32>
    %224 = vector.shape_cast %223 : vector<2x8xf32> to vector<2x8x1xf32>
    %225 = vector.broadcast %224 : vector<2x8x1xf32> to vector<2x8x8xf32>
    %226 = arith.subf %222, %225 : vector<2x8x8xf32>
    %227 = math.exp %226 : vector<2x8x8xf32>
    %cst_95 = arith.constant dense<0.000000e+00> : vector<2x8xf32>
    %228 = vector.multi_reduction <add>, %227, %cst_95 [2] : vector<2x8x8xf32> to vector<2x8xf32>
    %229 = vector.shape_cast %228 : vector<2x8xf32> to vector<2x8x1xf32>
    %230 = vector.broadcast %229 : vector<2x8x1xf32> to vector<2x8x8xf32>
    %231 = arith.divf %227, %230 : vector<2x8x8xf32>
    %232 = vector.extract_strided_slice %216 {offsets = [0, 0, 0], sizes = [2, 8, 8], strides = [1, 1, 1]} : vector<2x8x32xf32> to vector<2x8x8xf32>
    "tpu.trace_start"() <{level = 10 : i32, message = "bqk,bkd->bqd"}> : () -> ()
    %cst_96 = arith.constant dense<0.000000e+00> : vector<2x8x8xf32>
    %233 = tpu.matmul %231, %232, %cst_96 {dimension_numbers = #tpu.dot_dimension_numbers<[2], [1], [1], [2], [0, 0, 0, 1, 1, 2], [0], [0]>} : vector<2x8x8xf32>, vector<2x8x8xf32>, vector<2x8x8xf32> -> vector<2x8x8xf32>
    "tpu.trace_stop"() : () -> ()
    %234 = vector.extract_strided_slice %214 {offsets = [0, 0, 8], sizes = [2, 8, 8], strides = [1, 1, 1]} : vector<2x8x32xf32> to vector<2x8x8xf32>
    %235 = vector.extract_strided_slice %215 {offsets = [0, 0, 8], sizes = [2, 8, 8], strides = [1, 1, 1]} : vector<2x8x32xf32> to vector<2x8x8xf32>
    "tpu.trace_start"() <{level = 10 : i32, message = "bqd,bkd->bqk"}> : () -> ()
    %cst_97 = arith.constant dense<0.000000e+00> : vector<2x8x8xf32>
    %236 = tpu.matmul %234, %235, %cst_97 {dimension_numbers = #tpu.dot_dimension_numbers<[2], [2], [1], [1], [0, 0, 0, 1, 1, 1], [0], [0]>} : vector<2x8x8xf32>, vector<2x8x8xf32>, vector<2x8x8xf32> -> vector<2x8x8xf32>
    "tpu.trace_stop"() : () -> ()
    %237 = vector.shape_cast %19 : vector<8x8xf32> to vector<1x8x8xf32>
    %238 = vector.broadcast %237 : vector<1x8x8xf32> to vector<2x8x8xf32>
    %239 = arith.addf %236, %238 : vector<2x8x8xf32>
    %cst_98 = arith.constant dense<0xFF800000> : vector<2x8xf32>
    %240 = vector.multi_reduction <maximumf>, %239, %cst_98 [2] : vector<2x8x8xf32> to vector<2x8xf32>
    %241 = vector.shape_cast %240 : vector<2x8xf32> to vector<2x8x1xf32>
    %242 = vector.broadcast %241 : vector<2x8x1xf32> to vector<2x8x8xf32>
    %243 = arith.subf %239, %242 : vector<2x8x8xf32>
    %244 = math.exp %243 : vector<2x8x8xf32>
    %cst_99 = arith.constant dense<0.000000e+00> : vector<2x8xf32>
    %245 = vector.multi_reduction <add>, %244, %cst_99 [2] : vector<2x8x8xf32> to vector<2x8xf32>
    %246 = vector.shape_cast %245 : vector<2x8xf32> to vector<2x8x1xf32>
    %247 = vector.broadcast %246 : vector<2x8x1xf32> to vector<2x8x8xf32>
    %248 = arith.divf %244, %247 : vector<2x8x8xf32>
    %249 = vector.extract_strided_slice %216 {offsets = [0, 0, 8], sizes = [2, 8, 8], strides = [1, 1, 1]} : vector<2x8x32xf32> to vector<2x8x8xf32>
    "tpu.trace_start"() <{level = 10 : i32, message = "bqk,bkd->bqd"}> : () -> ()
    %cst_100 = arith.constant dense<0.000000e+00> : vector<2x8x8xf32>
    %250 = tpu.matmul %248, %249, %cst_100 {dimension_numbers = #tpu.dot_dimension_numbers<[2], [1], [1], [2], [0, 0, 0, 1, 1, 2], [0], [0]>} : vector<2x8x8xf32>, vector<2x8x8xf32>, vector<2x8x8xf32> -> vector<2x8x8xf32>
    "tpu.trace_stop"() : () -> ()
    %251 = vector.extract_strided_slice %214 {offsets = [0, 0, 16], sizes = [2, 8, 8], strides = [1, 1, 1]} : vector<2x8x32xf32> to vector<2x8x8xf32>
    %252 = vector.extract_strided_slice %215 {offsets = [0, 0, 16], sizes = [2, 8, 8], strides = [1, 1, 1]} : vector<2x8x32xf32> to vector<2x8x8xf32>
    "tpu.trace_start"() <{level = 10 : i32, message = "bqd,bkd->bqk"}> : () -> ()
    %cst_101 = arith.constant dense<0.000000e+00> : vector<2x8x8xf32>
    %253 = tpu.matmul %251, %252, %cst_101 {dimension_numbers = #tpu.dot_dimension_numbers<[2], [2], [1], [1], [0, 0, 0, 1, 1, 1], [0], [0]>} : vector<2x8x8xf32>, vector<2x8x8xf32>, vector<2x8x8xf32> -> vector<2x8x8xf32>
    "tpu.trace_stop"() : () -> ()
    %254 = vector.shape_cast %19 : vector<8x8xf32> to vector<1x8x8xf32>
    %255 = vector.broadcast %254 : vector<1x8x8xf32> to vector<2x8x8xf32>
    %256 = arith.addf %253, %255 : vector<2x8x8xf32>
    %cst_102 = arith.constant dense<0xFF800000> : vector<2x8xf32>
    %257 = vector.multi_reduction <maximumf>, %256, %cst_102 [2] : vector<2x8x8xf32> to vector<2x8xf32>
    %258 = vector.shape_cast %257 : vector<2x8xf32> to vector<2x8x1xf32>
    %259 = vector.broadcast %258 : vector<2x8x1xf32> to vector<2x8x8xf32>
    %260 = arith.subf %256, %259 : vector<2x8x8xf32>
    %261 = math.exp %260 : vector<2x8x8xf32>
    %cst_103 = arith.constant dense<0.000000e+00> : vector<2x8xf32>
    %262 = vector.multi_reduction <add>, %261, %cst_103 [2] : vector<2x8x8xf32> to vector<2x8xf32>
    %263 = vector.shape_cast %262 : vector<2x8xf32> to vector<2x8x1xf32>
    %264 = vector.broadcast %263 : vector<2x8x1xf32> to vector<2x8x8xf32>
    %265 = arith.divf %261, %264 : vector<2x8x8xf32>
    %266 = vector.extract_strided_slice %216 {offsets = [0, 0, 16], sizes = [2, 8, 8], strides = [1, 1, 1]} : vector<2x8x32xf32> to vector<2x8x8xf32>
    "tpu.trace_start"() <{level = 10 : i32, message = "bqk,bkd->bqd"}> : () -> ()
    %cst_104 = arith.constant dense<0.000000e+00> : vector<2x8x8xf32>
    %267 = tpu.matmul %265, %266, %cst_104 {dimension_numbers = #tpu.dot_dimension_numbers<[2], [1], [1], [2], [0, 0, 0, 1, 1, 2], [0], [0]>} : vector<2x8x8xf32>, vector<2x8x8xf32>, vector<2x8x8xf32> -> vector<2x8x8xf32>
    "tpu.trace_stop"() : () -> ()
    %268 = vector.extract_strided_slice %214 {offsets = [0, 0, 24], sizes = [2, 8, 8], strides = [1, 1, 1]} : vector<2x8x32xf32> to vector<2x8x8xf32>
    %269 = vector.extract_strided_slice %215 {offsets = [0, 0, 24], sizes = [2, 8, 8], strides = [1, 1, 1]} : vector<2x8x32xf32> to vector<2x8x8xf32>
    "tpu.trace_start"() <{level = 10 : i32, message = "bqd,bkd->bqk"}> : () -> ()
    %cst_105 = arith.constant dense<0.000000e+00> : vector<2x8x8xf32>
    %270 = tpu.matmul %268, %269, %cst_105 {dimension_numbers = #tpu.dot_dimension_numbers<[2], [2], [1], [1], [0, 0, 0, 1, 1, 1], [0], [0]>} : vector<2x8x8xf32>, vector<2x8x8xf32>, vector<2x8x8xf32> -> vector<2x8x8xf32>
    "tpu.trace_stop"() : () -> ()
    %271 = vector.shape_cast %19 : vector<8x8xf32> to vector<1x8x8xf32>
    %272 = vector.broadcast %271 : vector<1x8x8xf32> to vector<2x8x8xf32>
    %273 = arith.addf %270, %272 : vector<2x8x8xf32>
    %cst_106 = arith.constant dense<0xFF800000> : vector<2x8xf32>
    %274 = vector.multi_reduction <maximumf>, %273, %cst_106 [2] : vector<2x8x8xf32> to vector<2x8xf32>
    %275 = vector.shape_cast %274 : vector<2x8xf32> to vector<2x8x1xf32>
    %276 = vector.broadcast %275 : vector<2x8x1xf32> to vector<2x8x8xf32>
    %277 = arith.subf %273, %276 : vector<2x8x8xf32>
    %278 = math.exp %277 : vector<2x8x8xf32>
    %cst_107 = arith.constant dense<0.000000e+00> : vector<2x8xf32>
    %279 = vector.multi_reduction <add>, %278, %cst_107 [2] : vector<2x8x8xf32> to vector<2x8xf32>
    %280 = vector.shape_cast %279 : vector<2x8xf32> to vector<2x8x1xf32>
    %281 = vector.broadcast %280 : vector<2x8x1xf32> to vector<2x8x8xf32>
    %282 = arith.divf %278, %281 : vector<2x8x8xf32>
    %283 = vector.extract_strided_slice %216 {offsets = [0, 0, 24], sizes = [2, 8, 8], strides = [1, 1, 1]} : vector<2x8x32xf32> to vector<2x8x8xf32>
    "tpu.trace_start"() <{level = 10 : i32, message = "bqk,bkd->bqd"}> : () -> ()
    %cst_108 = arith.constant dense<0.000000e+00> : vector<2x8x8xf32>
    %284 = tpu.matmul %282, %283, %cst_108 {dimension_numbers = #tpu.dot_dimension_numbers<[2], [1], [1], [2], [0, 0, 0, 1, 1, 2], [0], [0]>} : vector<2x8x8xf32>, vector<2x8x8xf32>, vector<2x8x8xf32> -> vector<2x8x8xf32>
    "tpu.trace_stop"() : () -> ()
    %285 = tpu.concatenate %233, %250, %267, %284 in 2 : vector<2x8x8xf32>, vector<2x8x8xf32>, vector<2x8x8xf32>, vector<2x8x8xf32> -> vector<2x8x32xf32>
    %286 = vector.shape_cast %285 : vector<2x8x32xf32> to vector<16x32xf32>
    %c1_109 = arith.constant 1 : index
    %c0_110 = arith.constant 0 : index
    %c0_111 = arith.constant 0 : index
    %287 = vector.load %arg8[%c1_109, %c0_110, %c0_111] : memref<3x32x32xf32, #tpu.memory_space<vmem>>, vector<1x32x32xf32>
    %288 = vector.shape_cast %287 : vector<1x32x32xf32> to vector<32x32xf32>
    %cst_112 = arith.constant dense<0.000000e+00> : vector<16x32xf32>
    %289 = tpu.matmul %286, %288, %cst_112 {dimension_numbers = #tpu.dot_dimension_numbers<[1], [0], [0], [1], [0, 0, 1, 1], [], []>} : vector<16x32xf32>, vector<32x32xf32>, vector<16x32xf32> -> vector<16x32xf32>
    %290 = arith.addf %177, %289 : vector<16x32xf32>
    %c1_113 = arith.constant 1 : index
    %c0_114 = arith.constant 0 : index
    %c0_115 = arith.constant 0 : index
    %291 = vector.load %arg9[%c1_113, %c0_114, %c0_115] : memref<3x1x32xf32, #tpu.memory_space<vmem>>, vector<1x1x32xf32>
    %292 = vector.shape_cast %291 : vector<1x1x32xf32> to vector<1x32xf32>
    %293 = vector.broadcast %292 : vector<1x32xf32> to vector<16x32xf32>
    %294 = arith.addf %290, %293 : vector<16x32xf32>
    %c1_116 = arith.constant 1 : index
    %c0_117 = arith.constant 0 : index
    %c0_118 = arith.constant 0 : index
    %295 = vector.load %arg10[%c1_116, %c0_117, %c0_118] : memref<3x1x32xf32, #tpu.memory_space<vmem>>, vector<1x1x32xf32>
    %296 = vector.shape_cast %295 : vector<1x1x32xf32> to vector<1x32xf32>
    %c1_119 = arith.constant 1 : index
    %c0_120 = arith.constant 0 : index
    %c0_121 = arith.constant 0 : index
    %297 = vector.load %arg11[%c1_119, %c0_120, %c0_121] : memref<3x1x32xf32, #tpu.memory_space<vmem>>, vector<1x1x32xf32>
    %298 = vector.shape_cast %297 : vector<1x1x32xf32> to vector<1x32xf32>
    %cst_122 = arith.constant dense<0.000000e+00> : vector<16xf32>
    %299 = vector.multi_reduction <add>, %294, %cst_122 [1] : vector<16x32xf32> to vector<16xf32>
    %300 = vector.shape_cast %299 : vector<16xf32> to vector<16x1xf32>
    %cst_123 = arith.constant 3.200000e+01 : f32
    %301 = vector.broadcast %cst_123 : f32 to vector<16x1xf32>
    %302 = arith.divf %300, %301 : vector<16x1xf32>
    %303 = vector.broadcast %302 : vector<16x1xf32> to vector<16x32xf32>
    %304 = arith.subf %294, %303 : vector<16x32xf32>
    %305 = arith.mulf %304, %304 : vector<16x32xf32>
    %cst_124 = arith.constant dense<0.000000e+00> : vector<16xf32>
    %306 = vector.multi_reduction <add>, %305, %cst_124 [1] : vector<16x32xf32> to vector<16xf32>
    %307 = vector.shape_cast %306 : vector<16xf32> to vector<16x1xf32>
    %cst_125 = arith.constant 3.200000e+01 : f32
    %308 = vector.broadcast %cst_125 : f32 to vector<16x1xf32>
    %309 = arith.divf %307, %308 : vector<16x1xf32>
    %cst_126 = arith.constant 9.99999974E-6 : f32
    %310 = vector.broadcast %cst_126 : f32 to vector<16x1xf32>
    %311 = arith.addf %309, %310 : vector<16x1xf32>
    %312 = math.rsqrt %311 : vector<16x1xf32>
    %313 = vector.broadcast %312 : vector<16x1xf32> to vector<16x32xf32>
    %314 = arith.mulf %304, %313 : vector<16x32xf32>
    %315 = vector.broadcast %296 : vector<1x32xf32> to vector<16x32xf32>
    %316 = arith.mulf %314, %315 : vector<16x32xf32>
    %317 = vector.broadcast %298 : vector<1x32xf32> to vector<16x32xf32>
    %318 = arith.addf %316, %317 : vector<16x32xf32>
    %c1_127 = arith.constant 1 : index
    %c0_128 = arith.constant 0 : index
    %c0_129 = arith.constant 0 : index
    %319 = vector.load %arg12[%c1_127, %c0_128, %c0_129] : memref<3x32x128xf32, #tpu.memory_space<vmem>>, vector<1x32x128xf32>
    %320 = vector.shape_cast %319 : vector<1x32x128xf32> to vector<32x128xf32>
    %cst_130 = arith.constant dense<0.000000e+00> : vector<16x128xf32>
    %321 = tpu.matmul %318, %320, %cst_130 {dimension_numbers = #tpu.dot_dimension_numbers<[1], [0], [0], [1], [0, 0, 1, 1], [], []>} : vector<16x32xf32>, vector<32x128xf32>, vector<16x128xf32> -> vector<16x128xf32>
    %c1_131 = arith.constant 1 : index
    %c0_132 = arith.constant 0 : index
    %c0_133 = arith.constant 0 : index
    %322 = vector.load %arg13[%c1_131, %c0_132, %c0_133] : memref<3x1x128xf32, #tpu.memory_space<vmem>>, vector<1x1x128xf32>
    %323 = vector.shape_cast %322 : vector<1x1x128xf32> to vector<1x128xf32>
    %324 = vector.broadcast %323 : vector<1x128xf32> to vector<16x128xf32>
    %325 = arith.addf %321, %324 : vector<16x128xf32>
    %cst_134 = arith.constant 0.000000e+00 : f32
    %326 = vector.broadcast %cst_134 : f32 to vector<16x128xf32>
    %327 = arith.maximumf %325, %326 : vector<16x128xf32>
    %c1_135 = arith.constant 1 : index
    %c0_136 = arith.constant 0 : index
    %c0_137 = arith.constant 0 : index
    %328 = vector.load %arg14[%c1_135, %c0_136, %c0_137] : memref<3x128x32xf32, #tpu.memory_space<vmem>>, vector<1x128x32xf32>
    %329 = vector.shape_cast %328 : vector<1x128x32xf32> to vector<128x32xf32>
    %cst_138 = arith.constant dense<0.000000e+00> : vector<16x32xf32>
    %330 = tpu.matmul %327, %329, %cst_138 {dimension_numbers = #tpu.dot_dimension_numbers<[1], [0], [0], [1], [0, 0, 1, 1], [], []>} : vector<16x128xf32>, vector<128x32xf32>, vector<16x32xf32> -> vector<16x32xf32>
    %331 = arith.addf %294, %330 : vector<16x32xf32>
    %c1_139 = arith.constant 1 : index
    %c0_140 = arith.constant 0 : index
    %c0_141 = arith.constant 0 : index
    %332 = vector.load %arg15[%c1_139, %c0_140, %c0_141] : memref<3x1x32xf32, #tpu.memory_space<vmem>>, vector<1x1x32xf32>
    %333 = vector.shape_cast %332 : vector<1x1x32xf32> to vector<1x32xf32>
    %334 = vector.broadcast %333 : vector<1x32xf32> to vector<16x32xf32>
    %335 = arith.addf %331, %334 : vector<16x32xf32>
    %c2 = arith.constant 2 : index
    %c0_142 = arith.constant 0 : index
    %c0_143 = arith.constant 0 : index
    %336 = vector.load %arg4[%c2, %c0_142, %c0_143] : memref<3x1x32xf32, #tpu.memory_space<vmem>>, vector<1x1x32xf32>
    %337 = vector.shape_cast %336 : vector<1x1x32xf32> to vector<1x32xf32>
    %c2_144 = arith.constant 2 : index
    %c0_145 = arith.constant 0 : index
    %c0_146 = arith.constant 0 : index
    %338 = vector.load %arg5[%c2_144, %c0_145, %c0_146] : memref<3x1x32xf32, #tpu.memory_space<vmem>>, vector<1x1x32xf32>
    %339 = vector.shape_cast %338 : vector<1x1x32xf32> to vector<1x32xf32>
    %cst_147 = arith.constant dense<0.000000e+00> : vector<16xf32>
    %340 = vector.multi_reduction <add>, %335, %cst_147 [1] : vector<16x32xf32> to vector<16xf32>
    %341 = vector.shape_cast %340 : vector<16xf32> to vector<16x1xf32>
    %cst_148 = arith.constant 3.200000e+01 : f32
    %342 = vector.broadcast %cst_148 : f32 to vector<16x1xf32>
    %343 = arith.divf %341, %342 : vector<16x1xf32>
    %344 = vector.broadcast %343 : vector<16x1xf32> to vector<16x32xf32>
    %345 = arith.subf %335, %344 : vector<16x32xf32>
    %346 = arith.mulf %345, %345 : vector<16x32xf32>
    %cst_149 = arith.constant dense<0.000000e+00> : vector<16xf32>
    %347 = vector.multi_reduction <add>, %346, %cst_149 [1] : vector<16x32xf32> to vector<16xf32>
    %348 = vector.shape_cast %347 : vector<16xf32> to vector<16x1xf32>
    %cst_150 = arith.constant 3.200000e+01 : f32
    %349 = vector.broadcast %cst_150 : f32 to vector<16x1xf32>
    %350 = arith.divf %348, %349 : vector<16x1xf32>
    %cst_151 = arith.constant 9.99999974E-6 : f32
    %351 = vector.broadcast %cst_151 : f32 to vector<16x1xf32>
    %352 = arith.addf %350, %351 : vector<16x1xf32>
    %353 = math.rsqrt %352 : vector<16x1xf32>
    %354 = vector.broadcast %353 : vector<16x1xf32> to vector<16x32xf32>
    %355 = arith.mulf %345, %354 : vector<16x32xf32>
    %356 = vector.broadcast %337 : vector<1x32xf32> to vector<16x32xf32>
    %357 = arith.mulf %355, %356 : vector<16x32xf32>
    %358 = vector.broadcast %339 : vector<1x32xf32> to vector<16x32xf32>
    %359 = arith.addf %357, %358 : vector<16x32xf32>
    %c2_152 = arith.constant 2 : index
    %c0_153 = arith.constant 0 : index
    %c0_154 = arith.constant 0 : index
    %360 = vector.load %arg6[%c2_152, %c0_153, %c0_154] : memref<3x32x96xf32, #tpu.memory_space<vmem>>, vector<1x32x96xf32>
    %361 = vector.shape_cast %360 : vector<1x32x96xf32> to vector<32x96xf32>
    %cst_155 = arith.constant dense<0.000000e+00> : vector<16x96xf32>
    %362 = tpu.matmul %359, %361, %cst_155 {dimension_numbers = #tpu.dot_dimension_numbers<[1], [0], [0], [1], [0, 0, 1, 1], [], []>} : vector<16x32xf32>, vector<32x96xf32>, vector<16x96xf32> -> vector<16x96xf32>
    %c2_156 = arith.constant 2 : index
    %c0_157 = arith.constant 0 : index
    %c0_158 = arith.constant 0 : index
    %363 = vector.load %arg7[%c2_156, %c0_157, %c0_158] : memref<3x1x96xf32, #tpu.memory_space<vmem>>, vector<1x1x96xf32>
    %364 = vector.shape_cast %363 : vector<1x1x96xf32> to vector<1x96xf32>
    %365 = vector.broadcast %364 : vector<1x96xf32> to vector<16x96xf32>
    %366 = arith.addf %362, %365 : vector<16x96xf32>
    %367 = vector.extract_strided_slice %366 {offsets = [0, 0], sizes = [16, 32], strides = [1, 1]} : vector<16x96xf32> to vector<16x32xf32>
    %cst_159 = arith.constant 0.176776692 : f32
    %368 = vector.broadcast %cst_159 : f32 to vector<16x32xf32>
    %369 = arith.mulf %367, %368 : vector<16x32xf32>
    %370 = vector.extract_strided_slice %366 {offsets = [0, 32], sizes = [16, 32], strides = [1, 1]} : vector<16x96xf32> to vector<16x32xf32>
    %371 = vector.extract_strided_slice %366 {offsets = [0, 64], sizes = [16, 32], strides = [1, 1]} : vector<16x96xf32> to vector<16x32xf32>
    %372 = vector.shape_cast %369 : vector<16x32xf32> to vector<2x8x32xf32>
    %373 = vector.shape_cast %370 : vector<16x32xf32> to vector<2x8x32xf32>
    %374 = vector.shape_cast %371 : vector<16x32xf32> to vector<2x8x32xf32>
    %375 = vector.extract_strided_slice %372 {offsets = [0, 0, 0], sizes = [2, 8, 8], strides = [1, 1, 1]} : vector<2x8x32xf32> to vector<2x8x8xf32>
    %376 = vector.extract_strided_slice %373 {offsets = [0, 0, 0], sizes = [2, 8, 8], strides = [1, 1, 1]} : vector<2x8x32xf32> to vector<2x8x8xf32>
    "tpu.trace_start"() <{level = 10 : i32, message = "bqd,bkd->bqk"}> : () -> ()
    %cst_160 = arith.constant dense<0.000000e+00> : vector<2x8x8xf32>
    %377 = tpu.matmul %375, %376, %cst_160 {dimension_numbers = #tpu.dot_dimension_numbers<[2], [2], [1], [1], [0, 0, 0, 1, 1, 1], [0], [0]>} : vector<2x8x8xf32>, vector<2x8x8xf32>, vector<2x8x8xf32> -> vector<2x8x8xf32>
    "tpu.trace_stop"() : () -> ()
    %378 = vector.shape_cast %19 : vector<8x8xf32> to vector<1x8x8xf32>
    %379 = vector.broadcast %378 : vector<1x8x8xf32> to vector<2x8x8xf32>
    %380 = arith.addf %377, %379 : vector<2x8x8xf32>
    %cst_161 = arith.constant dense<0xFF800000> : vector<2x8xf32>
    %381 = vector.multi_reduction <maximumf>, %380, %cst_161 [2] : vector<2x8x8xf32> to vector<2x8xf32>
    %382 = vector.shape_cast %381 : vector<2x8xf32> to vector<2x8x1xf32>
    %383 = vector.broadcast %382 : vector<2x8x1xf32> to vector<2x8x8xf32>
    %384 = arith.subf %380, %383 : vector<2x8x8xf32>
    %385 = math.exp %384 : vector<2x8x8xf32>
    %cst_162 = arith.constant dense<0.000000e+00> : vector<2x8xf32>
    %386 = vector.multi_reduction <add>, %385, %cst_162 [2] : vector<2x8x8xf32> to vector<2x8xf32>
    %387 = vector.shape_cast %386 : vector<2x8xf32> to vector<2x8x1xf32>
    %388 = vector.broadcast %387 : vector<2x8x1xf32> to vector<2x8x8xf32>
    %389 = arith.divf %385, %388 : vector<2x8x8xf32>
    %390 = vector.extract_strided_slice %374 {offsets = [0, 0, 0], sizes = [2, 8, 8], strides = [1, 1, 1]} : vector<2x8x32xf32> to vector<2x8x8xf32>
    "tpu.trace_start"() <{level = 10 : i32, message = "bqk,bkd->bqd"}> : () -> ()
    %cst_163 = arith.constant dense<0.000000e+00> : vector<2x8x8xf32>
    %391 = tpu.matmul %389, %390, %cst_163 {dimension_numbers = #tpu.dot_dimension_numbers<[2], [1], [1], [2], [0, 0, 0, 1, 1, 2], [0], [0]>} : vector<2x8x8xf32>, vector<2x8x8xf32>, vector<2x8x8xf32> -> vector<2x8x8xf32>
    "tpu.trace_stop"() : () -> ()
    %392 = vector.extract_strided_slice %372 {offsets = [0, 0, 8], sizes = [2, 8, 8], strides = [1, 1, 1]} : vector<2x8x32xf32> to vector<2x8x8xf32>
    %393 = vector.extract_strided_slice %373 {offsets = [0, 0, 8], sizes = [2, 8, 8], strides = [1, 1, 1]} : vector<2x8x32xf32> to vector<2x8x8xf32>
    "tpu.trace_start"() <{level = 10 : i32, message = "bqd,bkd->bqk"}> : () -> ()
    %cst_164 = arith.constant dense<0.000000e+00> : vector<2x8x8xf32>
    %394 = tpu.matmul %392, %393, %cst_164 {dimension_numbers = #tpu.dot_dimension_numbers<[2], [2], [1], [1], [0, 0, 0, 1, 1, 1], [0], [0]>} : vector<2x8x8xf32>, vector<2x8x8xf32>, vector<2x8x8xf32> -> vector<2x8x8xf32>
    "tpu.trace_stop"() : () -> ()
    %395 = vector.shape_cast %19 : vector<8x8xf32> to vector<1x8x8xf32>
    %396 = vector.broadcast %395 : vector<1x8x8xf32> to vector<2x8x8xf32>
    %397 = arith.addf %394, %396 : vector<2x8x8xf32>
    %cst_165 = arith.constant dense<0xFF800000> : vector<2x8xf32>
    %398 = vector.multi_reduction <maximumf>, %397, %cst_165 [2] : vector<2x8x8xf32> to vector<2x8xf32>
    %399 = vector.shape_cast %398 : vector<2x8xf32> to vector<2x8x1xf32>
    %400 = vector.broadcast %399 : vector<2x8x1xf32> to vector<2x8x8xf32>
    %401 = arith.subf %397, %400 : vector<2x8x8xf32>
    %402 = math.exp %401 : vector<2x8x8xf32>
    %cst_166 = arith.constant dense<0.000000e+00> : vector<2x8xf32>
    %403 = vector.multi_reduction <add>, %402, %cst_166 [2] : vector<2x8x8xf32> to vector<2x8xf32>
    %404 = vector.shape_cast %403 : vector<2x8xf32> to vector<2x8x1xf32>
    %405 = vector.broadcast %404 : vector<2x8x1xf32> to vector<2x8x8xf32>
    %406 = arith.divf %402, %405 : vector<2x8x8xf32>
    %407 = vector.extract_strided_slice %374 {offsets = [0, 0, 8], sizes = [2, 8, 8], strides = [1, 1, 1]} : vector<2x8x32xf32> to vector<2x8x8xf32>
    "tpu.trace_start"() <{level = 10 : i32, message = "bqk,bkd->bqd"}> : () -> ()
    %cst_167 = arith.constant dense<0.000000e+00> : vector<2x8x8xf32>
    %408 = tpu.matmul %406, %407, %cst_167 {dimension_numbers = #tpu.dot_dimension_numbers<[2], [1], [1], [2], [0, 0, 0, 1, 1, 2], [0], [0]>} : vector<2x8x8xf32>, vector<2x8x8xf32>, vector<2x8x8xf32> -> vector<2x8x8xf32>
    "tpu.trace_stop"() : () -> ()
    %409 = vector.extract_strided_slice %372 {offsets = [0, 0, 16], sizes = [2, 8, 8], strides = [1, 1, 1]} : vector<2x8x32xf32> to vector<2x8x8xf32>
    %410 = vector.extract_strided_slice %373 {offsets = [0, 0, 16], sizes = [2, 8, 8], strides = [1, 1, 1]} : vector<2x8x32xf32> to vector<2x8x8xf32>
    "tpu.trace_start"() <{level = 10 : i32, message = "bqd,bkd->bqk"}> : () -> ()
    %cst_168 = arith.constant dense<0.000000e+00> : vector<2x8x8xf32>
    %411 = tpu.matmul %409, %410, %cst_168 {dimension_numbers = #tpu.dot_dimension_numbers<[2], [2], [1], [1], [0, 0, 0, 1, 1, 1], [0], [0]>} : vector<2x8x8xf32>, vector<2x8x8xf32>, vector<2x8x8xf32> -> vector<2x8x8xf32>
    "tpu.trace_stop"() : () -> ()
    %412 = vector.shape_cast %19 : vector<8x8xf32> to vector<1x8x8xf32>
    %413 = vector.broadcast %412 : vector<1x8x8xf32> to vector<2x8x8xf32>
    %414 = arith.addf %411, %413 : vector<2x8x8xf32>
    %cst_169 = arith.constant dense<0xFF800000> : vector<2x8xf32>
    %415 = vector.multi_reduction <maximumf>, %414, %cst_169 [2] : vector<2x8x8xf32> to vector<2x8xf32>
    %416 = vector.shape_cast %415 : vector<2x8xf32> to vector<2x8x1xf32>
    %417 = vector.broadcast %416 : vector<2x8x1xf32> to vector<2x8x8xf32>
    %418 = arith.subf %414, %417 : vector<2x8x8xf32>
    %419 = math.exp %418 : vector<2x8x8xf32>
    %cst_170 = arith.constant dense<0.000000e+00> : vector<2x8xf32>
    %420 = vector.multi_reduction <add>, %419, %cst_170 [2] : vector<2x8x8xf32> to vector<2x8xf32>
    %421 = vector.shape_cast %420 : vector<2x8xf32> to vector<2x8x1xf32>
    %422 = vector.broadcast %421 : vector<2x8x1xf32> to vector<2x8x8xf32>
    %423 = arith.divf %419, %422 : vector<2x8x8xf32>
    %424 = vector.extract_strided_slice %374 {offsets = [0, 0, 16], sizes = [2, 8, 8], strides = [1, 1, 1]} : vector<2x8x32xf32> to vector<2x8x8xf32>
    "tpu.trace_start"() <{level = 10 : i32, message = "bqk,bkd->bqd"}> : () -> ()
    %cst_171 = arith.constant dense<0.000000e+00> : vector<2x8x8xf32>
    %425 = tpu.matmul %423, %424, %cst_171 {dimension_numbers = #tpu.dot_dimension_numbers<[2], [1], [1], [2], [0, 0, 0, 1, 1, 2], [0], [0]>} : vector<2x8x8xf32>, vector<2x8x8xf32>, vector<2x8x8xf32> -> vector<2x8x8xf32>
    "tpu.trace_stop"() : () -> ()
    %426 = vector.extract_strided_slice %372 {offsets = [0, 0, 24], sizes = [2, 8, 8], strides = [1, 1, 1]} : vector<2x8x32xf32> to vector<2x8x8xf32>
    %427 = vector.extract_strided_slice %373 {offsets = [0, 0, 24], sizes = [2, 8, 8], strides = [1, 1, 1]} : vector<2x8x32xf32> to vector<2x8x8xf32>
    "tpu.trace_start"() <{level = 10 : i32, message = "bqd,bkd->bqk"}> : () -> ()
    %cst_172 = arith.constant dense<0.000000e+00> : vector<2x8x8xf32>
    %428 = tpu.matmul %426, %427, %cst_172 {dimension_numbers = #tpu.dot_dimension_numbers<[2], [2], [1], [1], [0, 0, 0, 1, 1, 1], [0], [0]>} : vector<2x8x8xf32>, vector<2x8x8xf32>, vector<2x8x8xf32> -> vector<2x8x8xf32>
    "tpu.trace_stop"() : () -> ()
    %429 = vector.shape_cast %19 : vector<8x8xf32> to vector<1x8x8xf32>
    %430 = vector.broadcast %429 : vector<1x8x8xf32> to vector<2x8x8xf32>
    %431 = arith.addf %428, %430 : vector<2x8x8xf32>
    %cst_173 = arith.constant dense<0xFF800000> : vector<2x8xf32>
    %432 = vector.multi_reduction <maximumf>, %431, %cst_173 [2] : vector<2x8x8xf32> to vector<2x8xf32>
    %433 = vector.shape_cast %432 : vector<2x8xf32> to vector<2x8x1xf32>
    %434 = vector.broadcast %433 : vector<2x8x1xf32> to vector<2x8x8xf32>
    %435 = arith.subf %431, %434 : vector<2x8x8xf32>
    %436 = math.exp %435 : vector<2x8x8xf32>
    %cst_174 = arith.constant dense<0.000000e+00> : vector<2x8xf32>
    %437 = vector.multi_reduction <add>, %436, %cst_174 [2] : vector<2x8x8xf32> to vector<2x8xf32>
    %438 = vector.shape_cast %437 : vector<2x8xf32> to vector<2x8x1xf32>
    %439 = vector.broadcast %438 : vector<2x8x1xf32> to vector<2x8x8xf32>
    %440 = arith.divf %436, %439 : vector<2x8x8xf32>
    %441 = vector.extract_strided_slice %374 {offsets = [0, 0, 24], sizes = [2, 8, 8], strides = [1, 1, 1]} : vector<2x8x32xf32> to vector<2x8x8xf32>
    "tpu.trace_start"() <{level = 10 : i32, message = "bqk,bkd->bqd"}> : () -> ()
    %cst_175 = arith.constant dense<0.000000e+00> : vector<2x8x8xf32>
    %442 = tpu.matmul %440, %441, %cst_175 {dimension_numbers = #tpu.dot_dimension_numbers<[2], [1], [1], [2], [0, 0, 0, 1, 1, 2], [0], [0]>} : vector<2x8x8xf32>, vector<2x8x8xf32>, vector<2x8x8xf32> -> vector<2x8x8xf32>
    "tpu.trace_stop"() : () -> ()
    %443 = tpu.concatenate %391, %408, %425, %442 in 2 : vector<2x8x8xf32>, vector<2x8x8xf32>, vector<2x8x8xf32>, vector<2x8x8xf32> -> vector<2x8x32xf32>
    %444 = vector.shape_cast %443 : vector<2x8x32xf32> to vector<16x32xf32>
    %c2_176 = arith.constant 2 : index
    %c0_177 = arith.constant 0 : index
    %c0_178 = arith.constant 0 : index
    %445 = vector.load %arg8[%c2_176, %c0_177, %c0_178] : memref<3x32x32xf32, #tpu.memory_space<vmem>>, vector<1x32x32xf32>
    %446 = vector.shape_cast %445 : vector<1x32x32xf32> to vector<32x32xf32>
    %cst_179 = arith.constant dense<0.000000e+00> : vector<16x32xf32>
    %447 = tpu.matmul %444, %446, %cst_179 {dimension_numbers = #tpu.dot_dimension_numbers<[1], [0], [0], [1], [0, 0, 1, 1], [], []>} : vector<16x32xf32>, vector<32x32xf32>, vector<16x32xf32> -> vector<16x32xf32>
    %448 = arith.addf %335, %447 : vector<16x32xf32>
    %c2_180 = arith.constant 2 : index
    %c0_181 = arith.constant 0 : index
    %c0_182 = arith.constant 0 : index
    %449 = vector.load %arg9[%c2_180, %c0_181, %c0_182] : memref<3x1x32xf32, #tpu.memory_space<vmem>>, vector<1x1x32xf32>
    %450 = vector.shape_cast %449 : vector<1x1x32xf32> to vector<1x32xf32>
    %451 = vector.broadcast %450 : vector<1x32xf32> to vector<16x32xf32>
    %452 = arith.addf %448, %451 : vector<16x32xf32>
    %c2_183 = arith.constant 2 : index
    %c0_184 = arith.constant 0 : index
    %c0_185 = arith.constant 0 : index
    %453 = vector.load %arg10[%c2_183, %c0_184, %c0_185] : memref<3x1x32xf32, #tpu.memory_space<vmem>>, vector<1x1x32xf32>
    %454 = vector.shape_cast %453 : vector<1x1x32xf32> to vector<1x32xf32>
    %c2_186 = arith.constant 2 : index
    %c0_187 = arith.constant 0 : index
    %c0_188 = arith.constant 0 : index
    %455 = vector.load %arg11[%c2_186, %c0_187, %c0_188] : memref<3x1x32xf32, #tpu.memory_space<vmem>>, vector<1x1x32xf32>
    %456 = vector.shape_cast %455 : vector<1x1x32xf32> to vector<1x32xf32>
    %cst_189 = arith.constant dense<0.000000e+00> : vector<16xf32>
    %457 = vector.multi_reduction <add>, %452, %cst_189 [1] : vector<16x32xf32> to vector<16xf32>
    %458 = vector.shape_cast %457 : vector<16xf32> to vector<16x1xf32>
    %cst_190 = arith.constant 3.200000e+01 : f32
    %459 = vector.broadcast %cst_190 : f32 to vector<16x1xf32>
    %460 = arith.divf %458, %459 : vector<16x1xf32>
    %461 = vector.broadcast %460 : vector<16x1xf32> to vector<16x32xf32>
    %462 = arith.subf %452, %461 : vector<16x32xf32>
    %463 = arith.mulf %462, %462 : vector<16x32xf32>
    %cst_191 = arith.constant dense<0.000000e+00> : vector<16xf32>
    %464 = vector.multi_reduction <add>, %463, %cst_191 [1] : vector<16x32xf32> to vector<16xf32>
    %465 = vector.shape_cast %464 : vector<16xf32> to vector<16x1xf32>
    %cst_192 = arith.constant 3.200000e+01 : f32
    %466 = vector.broadcast %cst_192 : f32 to vector<16x1xf32>
    %467 = arith.divf %465, %466 : vector<16x1xf32>
    %cst_193 = arith.constant 9.99999974E-6 : f32
    %468 = vector.broadcast %cst_193 : f32 to vector<16x1xf32>
    %469 = arith.addf %467, %468 : vector<16x1xf32>
    %470 = math.rsqrt %469 : vector<16x1xf32>
    %471 = vector.broadcast %470 : vector<16x1xf32> to vector<16x32xf32>
    %472 = arith.mulf %462, %471 : vector<16x32xf32>
    %473 = vector.broadcast %454 : vector<1x32xf32> to vector<16x32xf32>
    %474 = arith.mulf %472, %473 : vector<16x32xf32>
    %475 = vector.broadcast %456 : vector<1x32xf32> to vector<16x32xf32>
    %476 = arith.addf %474, %475 : vector<16x32xf32>
    %c2_194 = arith.constant 2 : index
    %c0_195 = arith.constant 0 : index
    %c0_196 = arith.constant 0 : index
    %477 = vector.load %arg12[%c2_194, %c0_195, %c0_196] : memref<3x32x128xf32, #tpu.memory_space<vmem>>, vector<1x32x128xf32>
    %478 = vector.shape_cast %477 : vector<1x32x128xf32> to vector<32x128xf32>
    %cst_197 = arith.constant dense<0.000000e+00> : vector<16x128xf32>
    %479 = tpu.matmul %476, %478, %cst_197 {dimension_numbers = #tpu.dot_dimension_numbers<[1], [0], [0], [1], [0, 0, 1, 1], [], []>} : vector<16x32xf32>, vector<32x128xf32>, vector<16x128xf32> -> vector<16x128xf32>
    %c2_198 = arith.constant 2 : index
    %c0_199 = arith.constant 0 : index
    %c0_200 = arith.constant 0 : index
    %480 = vector.load %arg13[%c2_198, %c0_199, %c0_200] : memref<3x1x128xf32, #tpu.memory_space<vmem>>, vector<1x1x128xf32>
    %481 = vector.shape_cast %480 : vector<1x1x128xf32> to vector<1x128xf32>
    %482 = vector.broadcast %481 : vector<1x128xf32> to vector<16x128xf32>
    %483 = arith.addf %479, %482 : vector<16x128xf32>
    %cst_201 = arith.constant 0.000000e+00 : f32
    %484 = vector.broadcast %cst_201 : f32 to vector<16x128xf32>
    %485 = arith.maximumf %483, %484 : vector<16x128xf32>
    %c2_202 = arith.constant 2 : index
    %c0_203 = arith.constant 0 : index
    %c0_204 = arith.constant 0 : index
    %486 = vector.load %arg14[%c2_202, %c0_203, %c0_204] : memref<3x128x32xf32, #tpu.memory_space<vmem>>, vector<1x128x32xf32>
    %487 = vector.shape_cast %486 : vector<1x128x32xf32> to vector<128x32xf32>
    %cst_205 = arith.constant dense<0.000000e+00> : vector<16x32xf32>
    %488 = tpu.matmul %485, %487, %cst_205 {dimension_numbers = #tpu.dot_dimension_numbers<[1], [0], [0], [1], [0, 0, 1, 1], [], []>} : vector<16x128xf32>, vector<128x32xf32>, vector<16x32xf32> -> vector<16x32xf32>
    %489 = arith.addf %452, %488 : vector<16x32xf32>
    %c2_206 = arith.constant 2 : index
    %c0_207 = arith.constant 0 : index
    %c0_208 = arith.constant 0 : index
    %490 = vector.load %arg15[%c2_206, %c0_207, %c0_208] : memref<3x1x32xf32, #tpu.memory_space<vmem>>, vector<1x1x32xf32>
    %491 = vector.shape_cast %490 : vector<1x1x32xf32> to vector<1x32xf32>
    %492 = vector.broadcast %491 : vector<1x32xf32> to vector<16x32xf32>
    %493 = arith.addf %489, %492 : vector<16x32xf32>
    %c0_209 = arith.constant 0 : index
    %c0_210 = arith.constant 0 : index
    %494 = vector.load %arg16[%c0_209, %c0_210] : memref<1x32xf32, #tpu.memory_space<vmem>>, vector<1x32xf32>
    %c0_211 = arith.constant 0 : index
    %c0_212 = arith.constant 0 : index
    %495 = vector.load %arg17[%c0_211, %c0_212] : memref<1x32xf32, #tpu.memory_space<vmem>>, vector<1x32xf32>
    %cst_213 = arith.constant dense<0.000000e+00> : vector<16xf32>
    %496 = vector.multi_reduction <add>, %493, %cst_213 [1] : vector<16x32xf32> to vector<16xf32>
    %497 = vector.shape_cast %496 : vector<16xf32> to vector<16x1xf32>
    %cst_214 = arith.constant 3.200000e+01 : f32
    %498 = vector.broadcast %cst_214 : f32 to vector<16x1xf32>
    %499 = arith.divf %497, %498 : vector<16x1xf32>
    %500 = vector.broadcast %499 : vector<16x1xf32> to vector<16x32xf32>
    %501 = arith.subf %493, %500 : vector<16x32xf32>
    %502 = arith.mulf %501, %501 : vector<16x32xf32>
    %cst_215 = arith.constant dense<0.000000e+00> : vector<16xf32>
    %503 = vector.multi_reduction <add>, %502, %cst_215 [1] : vector<16x32xf32> to vector<16xf32>
    %504 = vector.shape_cast %503 : vector<16xf32> to vector<16x1xf32>
    %cst_216 = arith.constant 3.200000e+01 : f32
    %505 = vector.broadcast %cst_216 : f32 to vector<16x1xf32>
    %506 = arith.divf %504, %505 : vector<16x1xf32>
    %cst_217 = arith.constant 9.99999974E-6 : f32
    %507 = vector.broadcast %cst_217 : f32 to vector<16x1xf32>
    %508 = arith.addf %506, %507 : vector<16x1xf32>
    %509 = math.rsqrt %508 : vector<16x1xf32>
    %510 = vector.broadcast %509 : vector<16x1xf32> to vector<16x32xf32>
    %511 = arith.mulf %501, %510 : vector<16x32xf32>
    %512 = vector.broadcast %494 : vector<1x32xf32> to vector<16x32xf32>
    %513 = arith.mulf %511, %512 : vector<16x32xf32>
    %514 = vector.broadcast %495 : vector<1x32xf32> to vector<16x32xf32>
    %515 = arith.addf %513, %514 : vector<16x32xf32>
    %c0_218 = arith.constant 0 : index
    %c0_219 = arith.constant 0 : index
    %516 = vector.load %arg18[%c0_218, %c0_219] : memref<32x128xf32, #tpu.memory_space<vmem>>, vector<32x128xf32>
    %cst_220 = arith.constant dense<0.000000e+00> : vector<16x128xf32>
    %517 = tpu.matmul %515, %516, %cst_220 {dimension_numbers = #tpu.dot_dimension_numbers<[1], [0], [0], [1], [0, 0, 1, 1], [], []>} : vector<16x32xf32>, vector<32x128xf32>, vector<16x128xf32> -> vector<16x128xf32>
    %c0_221 = arith.constant 0 : index
    %c0_222 = arith.constant 0 : index
    %518 = vector.load %arg19[%c0_221, %c0_222] : memref<1x128xf32, #tpu.memory_space<vmem>>, vector<1x128xf32>
    %519 = vector.broadcast %518 : vector<1x128xf32> to vector<16x128xf32>
    %520 = arith.addf %517, %519 : vector<16x128xf32>
    %c0_223 = arith.constant 0 : index
    %c0_224 = arith.constant 0 : index
    %521 = vector.load %arg20[%c0_223, %c0_224] : memref<16x128xf32, #tpu.memory_space<vmem>>, vector<16x128xf32>
    tpu.vector_store %arg20[%c0_223, %c0_224], %520 {strides = array<i32>} : memref<16x128xf32, #tpu.memory_space<vmem>>, vector<16x128xf32>,
    return
  }
  func.func @transform_0(%arg0: i32) -> (i32, i32) {
    %c0_i32 = arith.constant 0 : i32
    %c0_i32_0 = arith.constant 0 : i32
    return %arg0, %c0_i32 : i32, i32
  }
  func.func @transform_1(%arg0: i32) -> (i32, i32) {
    %c0_i32 = arith.constant 0 : i32
    %c0_i32_0 = arith.constant 0 : i32
    %c0_i32_1 = arith.constant 0 : i32
    return %c0_i32, %c0_i32_0 : i32, i32
  }
  func.func @transform_2(%arg0: i32) -> (i32, i32) {
    %c0_i32 = arith.constant 0 : i32
    %c0_i32_0 = arith.constant 0 : i32
    %c0_i32_1 = arith.constant 0 : i32
    return %c0_i32, %c0_i32_0 : i32, i32
  }
  func.func @transform_3(%arg0: i32) -> (i32, i32, i32) {
    %c0_i32 = arith.constant 0 : i32
    %c0_i32_0 = arith.constant 0 : i32
    %c0_i32_1 = arith.constant 0 : i32
    %c0_i32_2 = arith.constant 0 : i32
    return %c0_i32, %c0_i32_0, %c0_i32_1 : i32, i32, i32
  }
  func.func @transform_4(%arg0: i32) -> (i32, i32, i32) {
    %c0_i32 = arith.constant 0 : i32
    %c0_i32_0 = arith.constant 0 : i32
    %c0_i32_1 = arith.constant 0 : i32
    %c0_i32_2 = arith.constant 0 : i32
    return %c0_i32, %c0_i32_0, %c0_i32_1 : i32, i32, i32
  }
  func.func @transform_5(%arg0: i32) -> (i32, i32, i32) {
    %c0_i32 = arith.constant 0 : i32
    %c0_i32_0 = arith.constant 0 : i32
    %c0_i32_1 = arith.constant 0 : i32
    %c0_i32_2 = arith.constant 0 : i32
    return %c0_i32, %c0_i32_0, %c0_i32_1 : i32, i32, i32
  }
  func.func @transform_6(%arg0: i32) -> (i32, i32, i32) {
    %c0_i32 = arith.constant 0 : i32
    %c0_i32_0 = arith.constant 0 : i32
    %c0_i32_1 = arith.constant 0 : i32
    %c0_i32_2 = arith.constant 0 : i32
    return %c0_i32, %c0_i32_0, %c0_i32_1 : i32, i32, i32
  }
  func.func @transform_7(%arg0: i32) -> (i32, i32, i32) {
    %c0_i32 = arith.constant 0 : i32
    %c0_i32_0 = arith.constant 0 : i32
    %c0_i32_1 = arith.constant 0 : i32
    %c0_i32_2 = arith.constant 0 : i32
    return %c0_i32, %c0_i32_0, %c0_i32_1 : i32, i32, i32
  }
  func.func @transform_8(%arg0: i32) -> (i32, i32, i32) {
    %c0_i32 = arith.constant 0 : i32
    %c0_i32_0 = arith.constant 0 : i32
    %c0_i32_1 = arith.constant 0 : i32
    %c0_i32_2 = arith.constant 0 : i32
    return %c0_i32, %c0_i32_0, %c0_i32_1 : i32, i32, i32
  }
  func.func @transform_9(%arg0: i32) -> (i32, i32, i32) {
    %c0_i32 = arith.constant 0 : i32
    %c0_i32_0 = arith.constant 0 : i32
    %c0_i32_1 = arith.constant 0 : i32
    %c0_i32_2 = arith.constant 0 : i32
    return %c0_i32, %c0_i32_0, %c0_i32_1 : i32, i32, i32
  }
  func.func @transform_10(%arg0: i32) -> (i32, i32, i32) {
    %c0_i32 = arith.constant 0 : i32
    %c0_i32_0 = arith.constant 0 : i32
    %c0_i32_1 = arith.constant 0 : i32
    %c0_i32_2 = arith.constant 0 : i32
    return %c0_i32, %c0_i32_0, %c0_i32_1 : i32, i32, i32
  }
  func.func @transform_11(%arg0: i32) -> (i32, i32, i32) {
    %c0_i32 = arith.constant 0 : i32
    %c0_i32_0 = arith.constant 0 : i32
    %c0_i32_1 = arith.constant 0 : i32
    %c0_i32_2 = arith.constant 0 : i32
    return %c0_i32, %c0_i32_0, %c0_i32_1 : i32, i32, i32
  }
  func.func @transform_12(%arg0: i32) -> (i32, i32, i32) {
    %c0_i32 = arith.constant 0 : i32
    %c0_i32_0 = arith.constant 0 : i32
    %c0_i32_1 = arith.constant 0 : i32
    %c0_i32_2 = arith.constant 0 : i32
    return %c0_i32, %c0_i32_0, %c0_i32_1 : i32, i32, i32
  }
  func.func @transform_13(%arg0: i32) -> (i32, i32, i32) {
    %c0_i32 = arith.constant 0 : i32
    %c0_i32_0 = arith.constant 0 : i32
    %c0_i32_1 = arith.constant 0 : i32
    %c0_i32_2 = arith.constant 0 : i32
    return %c0_i32, %c0_i32_0, %c0_i32_1 : i32, i32, i32
  }
  func.func @transform_14(%arg0: i32) -> (i32, i32, i32) {
    %c0_i32 = arith.constant 0 : i32
    %c0_i32_0 = arith.constant 0 : i32
    %c0_i32_1 = arith.constant 0 : i32
    %c0_i32_2 = arith.constant 0 : i32
    return %c0_i32, %c0_i32_0, %c0_i32_1 : i32, i32, i32
  }
  func.func @transform_15(%arg0: i32) -> (i32, i32) {
    %c0_i32 = arith.constant 0 : i32
    %c0_i32_0 = arith.constant 0 : i32
    %c0_i32_1 = arith.constant 0 : i32
    return %c0_i32, %c0_i32_0 : i32, i32
  }
  func.func @transform_16(%arg0: i32) -> (i32, i32) {
    %c0_i32 = arith.constant 0 : i32
    %c0_i32_0 = arith.constant 0 : i32
    %c0_i32_1 = arith.constant 0 : i32
    return %c0_i32, %c0_i32_0 : i32, i32
  }
  func.func @transform_17(%arg0: i32) -> (i32, i32) {
    %c0_i32 = arith.constant 0 : i32
    %c0_i32_0 = arith.constant 0 : i32
    %c0_i32_1 = arith.constant 0 : i32
    return %c0_i32, %c0_i32_0 : i32, i32
  }
  func.func @transform_18(%arg0: i32) -> (i32, i32) {
    %c0_i32 = arith.constant 0 : i32
    %c0_i32_0 = arith.constant 0 : i32
    %c0_i32_1 = arith.constant 0 : i32
    return %c0_i32, %c0_i32_0 : i32, i32
  }
  func.func @transform_19(%arg0: i32) -> (i32, i32) {
    %c0_i32 = arith.constant 0 : i32
    %c0_i32_0 = arith.constant 0 : i32
    return %arg0, %c0_i32 : i32, i32
  }
}

</mosaic_0001>

<llo_original>
// kernel: bigram_forward.1
$region0: #{bigram_forward.1}
  #allocation0 [shape = 'u32[]', space=smem, size = 0x4, offset = 0x4, fixed_abs, tag = 'smem constant byte address 0x4 - core index']
  #allocation1 [shape = 'u32[144,128]{1,0:T(1,128)}', space=vmem, size = 0x12000, scoped, tag = 'internal scratch']
  %s0 = inlined_call_operand.vmem [shape: s32[16,1], index: 0, kind: input, shape index: {}]
  %s1 = inlined_call_operand.vmem [shape: f32[128,32], index: 1, kind: input, shape index: {}]
  %s2 = inlined_call_operand.vmem [shape: f32[8,32], index: 2, kind: input, shape index: {}]
  %s3 = inlined_call_operand.vmem [shape: f32[3,1,32], index: 3, kind: input, shape index: {}]
  %s4 = inlined_call_operand.vmem [shape: f32[3,1,32], index: 4, kind: input, shape index: {}]
  %s5 = inlined_call_operand.vmem [shape: f32[3,32,96], index: 5, kind: input, shape index: {}]
  %s6 = inlined_call_operand.vmem [shape: f32[3,1,96], index: 6, kind: input, shape index: {}]
  %s7 = inlined_call_operand.vmem [shape: f32[3,32,32], index: 7, kind: input, shape index: {}]
  %s8 = inlined_call_operand.vmem [shape: f32[3,1,32], index: 8, kind: input, shape index: {}]
  %s9 = inlined_call_operand.vmem [shape: f32[3,1,32], index: 9, kind: input, shape index: {}]
  %s10 = inlined_call_operand.vmem [shape: f32[3,1,32], index: 10, kind: input, shape index: {}]
  %s11 = inlined_call_operand.vmem [shape: f32[3,32,128], index: 11, kind: input, shape index: {}]
  %s12 = inlined_call_operand.vmem [shape: f32[3,1,128], index: 12, kind: input, shape index: {}]
  %s13 = inlined_call_operand.vmem [shape: f32[3,128,32], index: 13, kind: input, shape index: {}]
  %s14 = inlined_call_operand.vmem [shape: f32[3,1,32], index: 14, kind: input, shape index: {}]
  %s15 = inlined_call_operand.vmem [shape: f32[1,32], index: 15, kind: input, shape index: {}]
  %s16 = inlined_call_operand.vmem [shape: f32[1,32], index: 16, kind: input, shape index: {}]
  %s17 = inlined_call_operand.vmem [shape: f32[32,128], index: 17, kind: input, shape index: {}]
  %s18 = inlined_call_operand.vmem [shape: f32[1,128], index: 18, kind: input, shape index: {}]
  %s19 = inlined_call_operand.hbm [shape: f32[16,128], index: 19, kind: output, shape index: {}]
  %s20 = sld [smem:[#allocation0]]
  $region86: #{bigram_forward.1} parent=0
    _
  %s22 = ssub.s32 1, %s20
  %s23 = scalar_select 0, %s22, %s20
  $region1: #{bigram_forward.1} parent=0
    #allocation2 [shape = 'u8[8192]{0}', space=vmem, size = 0x2000, scoped, tag = 'output window, operand 0, single buffered']
    #allocation3 [shape = 's32[1]{0}', space=sflag, size = 0x4, scoped, tag = 'scoped memory for bigram_forward.1']
    %24 = vsyncpa [#allocation3], 0
    // Predicated region
    $region2: #{bigram_forward.1} parent=1 // pred_check
      _
    $region3: #{bigram_forward.1} parent=1 // pred_check_branch
      %26 = sbr.rel (0) target = $region5
    $region4: #{bigram_forward.1} parent=1 // pred_region
      _
    $region5: #{bigram_forward.1} parent=1 // pred_fallthru
      _
    // Predicated region
    $region6: #{bigram_forward.1} parent=1 // pred_check
      _
    $region7: #{bigram_forward.1} parent=1 // pred_check_branch
      %28 = sbr.rel (0) target = $region9
    $region8: #{bigram_forward.1} parent=1 // pred_region
      _
    $region9: #{bigram_forward.1} parent=1 // pred_fallthru
      _
    // Predicated region
    $region10: #{bigram_forward.1} parent=1 // pred_check
      _
    $region11: #{bigram_forward.1} parent=1 // pred_check_branch
      %30 = sbr.rel (0) target = $region13
    $region12: #{bigram_forward.1} parent=1 // pred_region
      _
    $region13: #{bigram_forward.1} parent=1 // pred_fallthru
      _
    // Predicated region
    $region14: #{bigram_forward.1} parent=1 // pred_check
      _
    $region15: #{bigram_forward.1} parent=1 // pred_check_branch
      %32 = sbr.rel (0) target = $region17
    $region16: #{bigram_forward.1} parent=1 // pred_region
      _
    $region17: #{bigram_forward.1} parent=1 // pred_fallthru
      _
    // Predicated region
    $region18: #{bigram_forward.1} parent=1 // pred_check
      _
    $region19: #{bigram_forward.1} parent=1 // pred_check_branch
      %34 = sbr.rel (0) target = $region21
    $region20: #{bigram_forward.1} parent=1 // pred_region
      _
    $region21: #{bigram_forward.1} parent=1 // pred_fallthru
      _
    // Predicated region
    $region22: #{bigram_forward.1} parent=1 // pred_check
      _
    $region23: #{bigram_forward.1} parent=1 // pred_check_branch
      %36 = sbr.rel (0) target = $region25
    $region24: #{bigram_forward.1} parent=1 // pred_region
      _
    $region25: #{bigram_forward.1} parent=1 // pred_fallthru
      _
    // Predicated region
    $region26: #{bigram_forward.1} parent=1 // pred_check
      _
    $region27: #{bigram_forward.1} parent=1 // pred_check_branch
      %38 = sbr.rel (0) target = $region29
    $region28: #{bigram_forward.1} parent=1 // pred_region
      _
    $region29: #{bigram_forward.1} parent=1 // pred_fallthru
      _
    // Predicated region
    $region30: #{bigram_forward.1} parent=1 // pred_check
      _
    $region31: #{bigram_forward.1} parent=1 // pred_check_branch
      %40 = sbr.rel (0) target = $region33
    $region32: #{bigram_forward.1} parent=1 // pred_region
      _
    $region33: #{bigram_forward.1} parent=1 // pred_fallthru
      _
    // Predicated region
    $region34: #{bigram_forward.1} parent=1 // pred_check
      _
    $region35: #{bigram_forward.1} parent=1 // pred_check_branch
      %42 = sbr.rel (0) target = $region37
    $region36: #{bigram_forward.1} parent=1 // pred_region
      _
    $region37: #{bigram_forward.1} parent=1 // pred_fallthru
      _
    // Predicated region
    $region38: #{bigram_forward.1} parent=1 // pred_check
      _
    $region39: #{bigram_forward.1} parent=1 // pred_check_branch
      %44 = sbr.rel (0) target = $region41
    $region40: #{bigram_forward.1} parent=1 // pred_region
      _
    $region41: #{bigram_forward.1} parent=1 // pred_fallthru
      _
    // Predicated region
    $region42: #{bigram_forward.1} parent=1 // pred_check
      _
    $region43: #{bigram_forward.1} parent=1 // pred_check_branch
      %46 = sbr.rel (0) target = $region45
    $region44: #{bigram_forward.1} parent=1 // pred_region
      _
    $region45: #{bigram_forward.1} parent=1 // pred_fallthru
      _
    // Predicated region
    $region46: #{bigram_forward.1} parent=1 // pred_check
      _
    $region47: #{bigram_forward.1} parent=1 // pred_check_branch
      %48 = sbr.rel (0) target = $region49
    $region48: #{bigram_forward.1} parent=1 // pred_region
      _
    $region49: #{bigram_forward.1} parent=1 // pred_fallthru
      _
    // Predicated region
    $region50: #{bigram_forward.1} parent=1 // pred_check
      _
    $region51: #{bigram_forward.1} parent=1 // pred_check_branch
      %50 = sbr.rel (0) target = $region53
    $region52: #{bigram_forward.1} parent=1 // pred_region
      _
    $region53: #{bigram_forward.1} parent=1 // pred_fallthru
      _
    // Predicated region
    $region54: #{bigram_forward.1} parent=1 // pred_check
      _
    $region55: #{bigram_forward.1} parent=1 // pred_check_branch
      %52 = sbr.rel (0) target = $region57
    $region56: #{bigram_forward.1} parent=1 // pred_region
      _
    $region57: #{bigram_forward.1} parent=1 // pred_fallthru
      _
    // Predicated region
    $region58: #{bigram_forward.1} parent=1 // pred_check
      _
    $region59: #{bigram_forward.1} parent=1 // pred_check_branch
      %54 = sbr.rel (0) target = $region61
    $region60: #{bigram_forward.1} parent=1 // pred_region
      _
    $region61: #{bigram_forward.1} parent=1 // pred_fallthru
      _
    // Predicated region
    $region62: #{bigram_forward.1} parent=1 // pred_check
      _
    $region63: #{bigram_forward.1} parent=1 // pred_check_branch
      %56 = sbr.rel (0) target = $region65
    $region64: #{bigram_forward.1} parent=1 // pred_region
      _
    $region65: #{bigram_forward.1} parent=1 // pred_fallthru
      _
    // Predicated region
    $region66: #{bigram_forward.1} parent=1 // pred_check
      _
    $region67: #{bigram_forward.1} parent=1 // pred_check_branch
      %58 = sbr.rel (0) target = $region69
    $region68: #{bigram_forward.1} parent=1 // pred_region
      _
    $region69: #{bigram_forward.1} parent=1 // pred_fallthru
      _
    // Predicated region
    $region70: #{bigram_forward.1} parent=1 // pred_check
      _
    $region71: #{bigram_forward.1} parent=1 // pred_check_branch
      %60 = sbr.rel (0) target = $region73
    $region72: #{bigram_forward.1} parent=1 // pred_region
      _
    $region73: #{bigram_forward.1} parent=1 // pred_fallthru
      _
    // Predicated region
    $region74: #{bigram_forward.1} parent=1 // pred_check
      _
    $region75: #{bigram_forward.1} parent=1 // pred_check_branch
      %62 = sbr.rel (0) target = $region77
    $region76: #{bigram_forward.1} parent=1 // pred_region
      _
    $region77: #{bigram_forward.1} parent=1 // pred_fallthru
      _
    %v63 = vld [vmem:[%s0] sm:$0xff]
    %v64 = vld [vmem:[%s0 + $0x8] sm:$0xff]
    %v65 = vlaneseq
    %v66 = vand.u32 %v65, 127
    %67 = vset.pattern.permute.xlu0 0
    %68 = vperm.xlu0 %67, %v63
    %v69 = vpop.permute.xlu0 %68
    %70 = vset.pattern.permute.xlu0 0
    %71 = vperm.xlu0 %70, %v64
    %v72 = vpop.permute.xlu0 %71
    %vm73 = vcmp.eq.s32.totalorder %v69, %v66
    %vm74 = vcmp.eq.s32.totalorder %v72, %v66
    %v75 = vsel %vm73, 1, 0
    %v76 = vsel %vm74, 1, 0
    %v77 = vcvt.s32.f32 %v75
    %v78 = vcvt.s32.f32 %v76
    %v79 = vld [vmem:[%s1] sm:$0xff]
    %v80 = vld [vmem:[%s1 + $0x8] sm:$0xff]
    %v81 = vld [vmem:[%s1 + $0x10] sm:$0xff]
    %v82 = vld [vmem:[%s1 + $0x18] sm:$0xff]
    %v83 = vld [vmem:[%s1 + $0x20] sm:$0xff]
    %v84 = vld [vmem:[%s1 + $0x28] sm:$0xff]
    %v85 = vld [vmem:[%s1 + $0x30] sm:$0xff]
    %v86 = vld [vmem:[%s1 + $0x38] sm:$0xff]
    %v87 = vld [vmem:[%s1 + $0x40] sm:$0xff]
    %v88 = vld [vmem:[%s1 + $0x48] sm:$0xff]
    %v89 = vld [vmem:[%s1 + $0x50] sm:$0xff]
    %v90 = vld [vmem:[%s1 + $0x58] sm:$0xff]
    %v91 = vld [vmem:[%s1 + $0x60] sm:$0xff]
    %v92 = vld [vmem:[%s1 + $0x68] sm:$0xff]
    %v93 = vld [vmem:[%s1 + $0x70] sm:$0xff]
    %v94 = vld [vmem:[%s1 + $0x78] sm:$0xff]
    %95 = vmatprep.subr.mxu0 0.0
    %96 = vmatpush1.msra.mxu0 %v79
    %97 = vmatprep.subr.mxu0 0.0
    %98 = vmatpush1.msra.mxu0 %v80
    %99 = vmatprep.subr.mxu0 0.0
    %100 = vmatpush1.msra.mxu0 %v81
    %101 = vmatprep.subr.mxu0 0.0
    %102 = vmatpush1.msra.mxu0 %v82
    %103 = vmatprep.subr.mxu0 0.0
    %104 = vmatpush1.msra.mxu0 %v83
    %105 = vmatprep.subr.mxu0 0.0
    %106 = vmatpush1.msra.mxu0 %v84
    %107 = vmatprep.subr.mxu0 0.0
    %108 = vmatpush1.msra.mxu0 %v85
    %109 = vmatprep.subr.mxu0 0.0
    %110 = vmatpush1.msra.mxu0 %v86
    %111 = vmatprep.subr.mxu0 0.0
    %112 = vmatpush1.msra.mxu0 %v87
    %113 = vmatprep.subr.mxu0 0.0
    %114 = vmatpush1.msra.mxu0 %v88
    %115 = vmatprep.subr.mxu0 0.0
    %116 = vmatpush1.msra.mxu0 %v89
    %117 = vmatprep.subr.mxu0 0.0
    %118 = vmatpush1.msra.mxu0 %v90
    %119 = vmatprep.subr.mxu0 0.0
    %120 = vmatpush1.msra.mxu0 %v91
    %121 = vmatprep.subr.mxu0 0.0
    %122 = vmatpush1.msra.mxu0 %v92
    %123 = vmatprep.subr.mxu0 0.0
    %124 = vmatpush1.msra.mxu0 %v93
    %125 = vmatprep.subr.mxu0 0.0
    %126 = vmatpush1.msra.mxu0 %v94
    %127 = vmatprep.subr.mxu0 0.0
    %128 = vmatpush1.msra.mxu0 0.0
    %129 = vmatprep.subr.mxu0 0.0
    %130 = vmatpush1.msra.mxu0 0.0
    %131 = vmatprep.subr.mxu0 0.0
    %132 = vmatpush1.msra.mxu0 0.0
    %133 = vmatprep.subr.mxu0 0.0
    %134 = vmatpush1.msra.mxu0 0.0
    %135 = vmatprep.subr.mxu0 0.0
    %136 = vmatpush1.msra.mxu0 0.0
    %137 = vmatprep.subr.mxu0 0.0
    %138 = vmatpush1.msra.mxu0 0.0
    %139 = vmatprep.subr.mxu0 0.0
    %140 = vmatpush1.msra.mxu0 0.0
    %141 = vmatprep.subr.mxu0 0.0
    %142 = vmatpush1.msra.mxu0 0.0
    %143 = vmatprep.subr.mxu0 0.0
    %144 = vmatpush1.msra.mxu0 0.0
    %145 = vmatprep.subr.mxu0 0.0
    %146 = vmatpush1.msra.mxu0 0.0
    %147 = vmatprep.subr.mxu0 0.0
    %148 = vmatpush1.msra.mxu0 0.0
    %149 = vmatprep.subr.mxu0 0.0
    %150 = vmatpush1.msra.mxu0 0.0
    %151 = vmatprep.subr.mxu0 0.0
    %152 = vmatpush1.msra.mxu0 0.0
    %153 = vmatprep.subr.mxu0 0.0
    %154 = vmatpush1.msra.mxu0 0.0
    %155 = vmatprep.subr.mxu0 0.0
    %156 = vmatpush1.msra.mxu0 0.0
    %157 = vmatprep.subr.mxu0 0.0
    %158 = vmatpush1.msra.mxu0 0.0
    %159 = vmatprep.mubr.f32.mxu0 0.0
    %160 = vmatmul.mubr.f32.gmra.mrb[0].mxu0 %v77
    %v161 = vpop.f32.mrb[0].mxu0
    %v162 = vadd.f32 0.0, %v161
    %v163 = vpop.f32.mrb[0].mxu0
    %164 = vmatprep.mubr.f32.mxu0 0.0
    %165 = vmatmul.mubr.f32.gmra.mrb[0].mxu0 %v78
    %v166 = vpop.f32.mrb[0].mxu0
    %v167 = vadd.f32 0.0, %v166
    %v168 = vpop.f32.mrb[0].mxu0
    %169 = vdwg.mxu0
    %v170 = vld [vmem:[%s2] sm:$0xff]
    %v171 = vadd.f32 %v162, %v170
    %v172 = vadd.f32 %v167, %v170
    %v173 = vlaneseq
    %v174 = vshrl.u32 %v173, 7
    %vm175 = vcmp.le.s32.totalorder %v66, %v174
    %v176 = vsel %vm175, 0.0, -1e+30
    %v177 = vld [vmem:[%s3] sm:$0x1]
    %v178 = vld [vmem:[%s4] sm:$0x1]
    %vm179 = vcmask 261120
    %v180 = vsel %vm179, %v171, 0.0
    %181 = vadd.xlane.f32.xlu0 %v180
    %v182 = vpop.xlane.xlu0 %181
    %v183 = vsel %vm179, %v172, 0.0
    %184 = vadd.xlane.f32.xlu0 %v183
    %v185 = vpop.xlane.xlu0 %184
    %v186 = vrcp.pop 32.0
    %v187 = vmul.f32 %v182, %v186
    %v188 = vmul.f32 %v185, %v186
    %v189 = vsub.f32 %v171, %v187
    %v190 = vsub.f32 %v172, %v188
    %v191 = vmul.f32 %v189, %v189
    %v192 = vmul.f32 %v190, %v190
    %v193 = vsel %vm179, %v191, 0.0
    %194 = vadd.xlane.f32.xlu0 %v193
    %v195 = vpop.xlane.xlu0 %194
    %v196 = vsel %vm179, %v192, 0.0
    %197 = vadd.xlane.f32.xlu0 %v196
    %v198 = vpop.xlane.xlu0 %197
    %v199 = vmul.f32 %v195, %v186
    %v200 = vmul.f32 %v198, %v186
    %v201 = vadd.f32 %v199, 1e-05
    %v202 = vadd.f32 %v200, 1e-05
    %v203 = vrsqrt.pop %v201
    %v204 = vrsqrt.pop %v202
    %v205 = vmul.f32 %v189, %v203
    %v206 = vmul.f32 %v190, %v204
    %v208 = vlaneseq
    %v209 = vshrl.u32 %v208, 7
    %v210 = vsub.s32 0, %v209
    %v211 = vrot.slane %v177, %v210
    %v213 = vmul.f32 %v205, %v211
    %v214 = vmul.f32 %v206, %v211
    %v216 = vlaneseq
    %v217 = vshrl.u32 %v216, 7
    %v218 = vsub.s32 0, %v217
    %v219 = vrot.slane %v178, %v218
    %v221 = vadd.f32 %v213, %v219
    %v222 = vadd.f32 %v214, %v219
    %v223 = vld [vmem:[%s5] sm:$0xff]
    %v224 = vld [vmem:[%s5 + $0x8] sm:$0xff]
    %v225 = vld [vmem:[%s5 + $0x10] sm:$0xff]
    %v226 = vld [vmem:[%s5 + $0x18] sm:$0xff]
    %v227 = vld [vmem:[%s6] sm:$0x1]
    %v229 = vlaneseq
    %v230 = vshrl.u32 %v229, 7
    %v231 = vsub.s32 0, %v230
    %v232 = vrot.slane %v227, %v231
    %v235 = vsel %vm179, %v221, 0
    %v238 = vsel %vm179, %v222, 0
    %240 = vmatprep.subr.mxu0 0.0
    %241 = vmatpush1.msra.mxu0 %v223
    %242 = vmatprep.subr.mxu0 0.0
    %243 = vmatpush1.msra.mxu0 %v224
    %244 = vmatprep.subr.mxu0 0.0
    %245 = vmatpush1.msra.mxu0 %v225
    %246 = vmatprep.subr.mxu0 0.0
    %247 = vmatpush1.msra.mxu0 %v226
    %248 = vmatprep.subr.mxu0 0.0
    %249 = vmatpush1.msra.mxu0 0.0
    %250 = vmatprep.subr.mxu0 0.0
    %251 = vmatpush1.msra.mxu0 0.0
    %252 = vmatprep.subr.mxu0 0.0
    %253 = vmatpush1.msra.mxu0 0.0
    %254 = vmatprep.subr.mxu0 0.0
    %255 = vmatpush1.msra.mxu0 0.0
    %256 = vmatprep.subr.mxu0 0.0
    %257 = vmatpush1.msra.mxu0 0.0
    %258 = vmatprep.subr.mxu0 0.0
    %259 = vmatpush1.msra.mxu0 0.0
    %260 = vmatprep.subr.mxu0 0.0
    %261 = vmatpush1.msra.mxu0 0.0
    %262 = vmatprep.subr.mxu0 0.0
    %263 = vmatpush1.msra.mxu0 0.0
    %264 = vmatprep.subr.mxu0 0.0
    %265 = vmatpush1.msra.mxu0 0.0
    %266 = vmatprep.subr.mxu0 0.0
    %267 = vmatpush1.msra.mxu0 0.0
    %268 = vmatprep.subr.mxu0 0.0
    %269 = vmatpush1.msra.mxu0 0.0
    %270 = vmatprep.subr.mxu0 0.0
    %271 = vmatpush1.msra.mxu0 0.0
    %272 = vmatprep.subr.mxu0 0.0
    %273 = vmatpush1.msra.mxu0 0.0
    %274 = vmatprep.subr.mxu0 0.0
    %275 = vmatpush1.msra.mxu0 0.0
    %276 = vmatprep.subr.mxu0 0.0
    %277 = vmatpush1.msra.mxu0 0.0
    %278 = vmatprep.subr.mxu0 0.0
    %279 = vmatpush1.msra.mxu0 0.0
    %280 = vmatprep.subr.mxu0 0.0
    %281 = vmatpush1.msra.mxu0 0.0
    %282 = vmatprep.subr.mxu0 0.0
    %283 = vmatpush1.msra.mxu0 0.0
    %284 = vmatprep.subr.mxu0 0.0
    %285 = vmatpush1.msra.mxu0 0.0
    %286 = vmatprep.subr.mxu0 0.0
    %287 = vmatpush1.msra.mxu0 0.0
    %288 = vmatprep.subr.mxu0 0.0
    %289 = vmatpush1.msra.mxu0 0.0
    %290 = vmatprep.subr.mxu0 0.0
    %291 = vmatpush1.msra.mxu0 0.0
    %292 = vmatprep.subr.mxu0 0.0
    %293 = vmatpush1.msra.mxu0 0.0
    %294 = vmatprep.subr.mxu0 0.0
    %295 = vmatpush1.msra.mxu0 0.0
    %296 = vmatprep.subr.mxu0 0.0
    %297 = vmatpush1.msra.mxu0 0.0
    %298 = vmatprep.subr.mxu0 0.0
    %299 = vmatpush1.msra.mxu0 0.0
    %300 = vmatprep.subr.mxu0 0.0
    %301 = vmatpush1.msra.mxu0 0.0
    %302 = vmatprep.subr.mxu0 0.0
    %303 = vmatpush1.msra.mxu0 0.0
    %304 = vmatprep.mubr.f32.mxu0 0.0
    %305 = vmatmul.mubr.f32.gmra.mrb[0].mxu0 %v235
    %v306 = vpop.f32.mrb[0].mxu0
    %v307 = vadd.f32 %v232, %v306
    %v308 = vpop.f32.mrb[0].mxu0
    %309 = vmatprep.mubr.f32.mxu0 0.0
    %310 = vmatmul.mubr.f32.gmra.mrb[0].mxu0 %v238
    %v311 = vpop.f32.mrb[0].mxu0
    %v312 = vadd.f32 %v232, %v311
    %v313 = vpop.f32.mrb[0].mxu0
    %314 = vdwg.mxu0
    %v315 = vmul.f32 %v307, 0.17677669
    %v316 = vmul.f32 %v312, 0.17677669
    %318 = vrot.lane.b32.xlu0 %v307, 96
    %v319 = vpop.permute.xlu0 %318
    %vm320 = vcmask 64512
    %v322 = vsel %vm320, %v315, 0
    %v324 = vsel %vm320, %v319, 0
    %326 = vmatprep.subr.mxu0 0.0
    %327 = vmatpush1.xpose.msra.mxu0 %v324
    %328 = vmatprep.subr.mxu0 0.0
    %329 = vmatpush1.xpose.msra.mxu0 0.0
    %330 = vmatprep.subr.mxu0 0.0
    %331 = vmatpush1.xpose.msra.mxu0 0.0
    %332 = vmatprep.subr.mxu0 0.0
    %333 = vmatpush1.xpose.msra.mxu0 0.0
    %334 = vmatprep.subr.mxu0 0.0
    %335 = vmatpush1.xpose.msra.mxu0 0.0
    %336 = vmatprep.subr.mxu0 0.0
    %337 = vmatpush1.xpose.msra.mxu0 0.0
    %338 = vmatprep.subr.mxu0 0.0
    %339 = vmatpush1.xpose.msra.mxu0 0.0
    %340 = vmatprep.subr.mxu0 0.0
    %341 = vmatpush1.xpose.msra.mxu0 0.0
    %342 = vmatprep.subr.mxu0 0.0
    %343 = vmatpush1.xpose.msra.mxu0 0.0
    %344 = vmatprep.subr.mxu0 0.0
    %345 = vmatpush1.xpose.msra.mxu0 0.0
    %346 = vmatprep.subr.mxu0 0.0
    %347 = vmatpush1.xpose.msra.mxu0 0.0
    %348 = vmatprep.subr.mxu0 0.0
    %349 = vmatpush1.xpose.msra.mxu0 0.0
    %350 = vmatprep.subr.mxu0 0.0
    %351 = vmatpush1.xpose.msra.mxu0 0.0
    %352 = vmatprep.subr.mxu0 0.0
    %353 = vmatpush1.xpose.msra.mxu0 0.0
    %354 = vmatprep.subr.mxu0 0.0
    %355 = vmatpush1.xpose.msra.mxu0 0.0
    %356 = vmatprep.subr.mxu0 0.0
    %357 = vmatpush1.xpose.msra.mxu0 0.0
    %358 = vmatprep.subr.mxu0 0.0
    %359 = vmatpush1.xpose.msra.mxu0 0.0
    %360 = vmatprep.subr.mxu0 0.0
    %361 = vmatpush1.xpose.msra.mxu0 0.0
    %362 = vmatprep.subr.mxu0 0.0
    %363 = vmatpush1.xpose.msra.mxu0 0.0
    %364 = vmatprep.subr.mxu0 0.0
    %365 = vmatpush1.xpose.msra.mxu0 0.0
    %366 = vmatprep.subr.mxu0 0.0
    %367 = vmatpush1.xpose.msra.mxu0 0.0
    %368 = vmatprep.subr.mxu0 0.0
    %369 = vmatpush1.xpose.msra.mxu0 0.0
    %370 = vmatprep.subr.mxu0 0.0
    %371 = vmatpush1.xpose.msra.mxu0 0.0
    %372 = vmatprep.subr.mxu0 0.0
    %373 = vmatpush1.xpose.msra.mxu0 0.0
    %374 = vmatprep.subr.mxu0 0.0
    %375 = vmatpush1.xpose.msra.mxu0 0.0
    %376 = vmatprep.subr.mxu0 0.0
    %377 = vmatpush1.xpose.msra.mxu0 0.0
    %378 = vmatprep.subr.mxu0 0.0
    %379 = vmatpush1.xpose.msra.mxu0 0.0
    %380 = vmatprep.subr.mxu0 0.0
    %381 = vmatpush1.xpose.msra.mxu0 0.0
    %382 = vmatprep.subr.mxu0 0.0
    %383 = vmatpush1.xpose.msra.mxu0 0.0
    %384 = vmatprep.subr.mxu0 0.0
    %385 = vmatpush1.xpose.msra.mxu0 0.0
    %386 = vmatprep.subr.mxu0 0.0
    %387 = vmatpush1.xpose.msra.mxu0 0.0
    %388 = vmatprep.subr.mxu0 0.0
    %389 = vmatpush1.xpose.msra.mxu0 0.0
    %390 = vmatprep.mubr.f32.mxu0 0.0
    %391 = vmatmul.mubr.f32.gmra.mrb[0].mxu0 %v322
    %v392 = vpop.f32.mrb[0].mxu0
    %v393 = vadd.f32 %v176, %v392
    %v394 = vpop.f32.mrb[0].mxu0
    %395 = vdwg.mxu0
    %397 = vrot.lane.b32.xlu0 %v312, 96
    %v398 = vpop.permute.xlu0 %397
    %v400 = vsel %vm320, %v316, 0
    %v402 = vsel %vm320, %v398, 0
    %404 = vmatprep.subr.mxu0 0.0
    %405 = vmatpush1.xpose.msra.mxu0 %v402
    %406 = vmatprep.subr.mxu0 0.0
    %407 = vmatpush1.xpose.msra.mxu0 0.0
    %408 = vmatprep.subr.mxu0 0.0
    %409 = vmatpush1.xpose.msra.mxu0 0.0
    %410 = vmatprep.subr.mxu0 0.0
    %411 = vmatpush1.xpose.msra.mxu0 0.0
    %412 = vmatprep.subr.mxu0 0.0
    %413 = vmatpush1.xpose.msra.mxu0 0.0
    %414 = vmatprep.subr.mxu0 0.0
    %415 = vmatpush1.xpose.msra.mxu0 0.0
    %416 = vmatprep.subr.mxu0 0.0
    %417 = vmatpush1.xpose.msra.mxu0 0.0
    %418 = vmatprep.subr.mxu0 0.0
    %419 = vmatpush1.xpose.msra.mxu0 0.0
    %420 = vmatprep.subr.mxu0 0.0
    %421 = vmatpush1.xpose.msra.mxu0 0.0
    %422 = vmatprep.subr.mxu0 0.0
    %423 = vmatpush1.xpose.msra.mxu0 0.0
    %424 = vmatprep.subr.mxu0 0.0
    %425 = vmatpush1.xpose.msra.mxu0 0.0
    %426 = vmatprep.subr.mxu0 0.0
    %427 = vmatpush1.xpose.msra.mxu0 0.0
    %428 = vmatprep.subr.mxu0 0.0
    %429 = vmatpush1.xpose.msra.mxu0 0.0
    %430 = vmatprep.subr.mxu0 0.0
    %431 = vmatpush1.xpose.msra.mxu0 0.0
    %432 = vmatprep.subr.mxu0 0.0
    %433 = vmatpush1.xpose.msra.mxu0 0.0
    %434 = vmatprep.subr.mxu0 0.0
    %435 = vmatpush1.xpose.msra.mxu0 0.0
    %436 = vmatprep.subr.mxu0 0.0
    %437 = vmatpush1.xpose.msra.mxu0 0.0
    %438 = vmatprep.subr.mxu0 0.0
    %439 = vmatpush1.xpose.msra.mxu0 0.0
    %440 = vmatprep.subr.mxu0 0.0
    %441 = vmatpush1.xpose.msra.mxu0 0.0
    %442 = vmatprep.subr.mxu0 0.0
    %443 = vmatpush1.xpose.msra.mxu0 0.0
    %444 = vmatprep.subr.mxu0 0.0
    %445 = vmatpush1.xpose.msra.mxu0 0.0
    %446 = vmatprep.subr.mxu0 0.0
    %447 = vmatpush1.xpose.msra.mxu0 0.0
    %448 = vmatprep.subr.mxu0 0.0
    %449 = vmatpush1.xpose.msra.mxu0 0.0
    %450 = vmatprep.subr.mxu0 0.0
    %451 = vmatpush1.xpose.msra.mxu0 0.0
    %452 = vmatprep.subr.mxu0 0.0
    %453 = vmatpush1.xpose.msra.mxu0 0.0
    %454 = vmatprep.subr.mxu0 0.0
    %455 = vmatpush1.xpose.msra.mxu0 0.0
    %456 = vmatprep.subr.mxu0 0.0
    %457 = vmatpush1.xpose.msra.mxu0 0.0
    %458 = vmatprep.subr.mxu0 0.0
    %459 = vmatpush1.xpose.msra.mxu0 0.0
    %460 = vmatprep.subr.mxu0 0.0
    %461 = vmatpush1.xpose.msra.mxu0 0.0
    %462 = vmatprep.subr.mxu0 0.0
    %463 = vmatpush1.xpose.msra.mxu0 0.0
    %464 = vmatprep.subr.mxu0 0.0
    %465 = vmatpush1.xpose.msra.mxu0 0.0
    %466 = vmatprep.subr.mxu0 0.0
    %467 = vmatpush1.xpose.msra.mxu0 0.0
    %468 = vmatprep.mubr.f32.mxu0 0.0
    %469 = vmatmul.mubr.f32.gmra.mrb[0].mxu0 %v400
    %v470 = vpop.f32.mrb[0].mxu0
    %v471 = vadd.f32 %v176, %v470
    %v472 = vpop.f32.mrb[0].mxu0
    %473 = vdwg.mxu0
    %v474 = vsel %vm320, %v393, -inf
    %475 = vmax.xlane.f32.xlu0 %v474
    %v476 = vpop.xlane.xlu0 %475
    %v477 = vsel %vm320, %v471, -inf
    %478 = vmax.xlane.f32.xlu0 %v477
    %v479 = vpop.xlane.xlu0 %478
    %v480 = vsub.f32 %v393, %v476
    %v481 = vsub.f32 %v471, %v479
    %v482 = vmul.f32 %v480, 1.442695
    %v483 = vpow.pop %v482
    %v484 = vmul.f32 %v481, 1.442695
    %v485 = vpow.pop %v484
    %v486 = vsel %vm320, %v483, 0.0
    %487 = vadd.xlane.f32.xlu0 %v486
    %v488 = vpop.xlane.xlu0 %487
    %v489 = vsel %vm320, %v485, 0.0
    %490 = vadd.xlane.f32.xlu0 %v489
    %v491 = vpop.xlane.xlu0 %490
    %v492 = vrcp.pop %v488
    %v493 = vmul.f32 %v483, %v492
    %v494 = vrcp.pop %v491
    %v495 = vmul.f32 %v485, %v494
    %496 = vrot.lane.b32.xlu0 %v307, 64
    %v497 = vpop.permute.xlu0 %496
    %v500 = vsel %vm320, %v493, 0
    %502 = vmatprep.subr.mxu0 0.0
    %503 = vmatpush1.msra.mxu0 %v497
    %504 = vmatprep.subr.mxu0 0.0
    %505 = vmatpush1.msra.mxu0 0.0
    %506 = vmatprep.subr.mxu0 0.0
    %507 = vmatpush1.msra.mxu0 0.0
    %508 = vmatprep.subr.mxu0 0.0
    %509 = vmatpush1.msra.mxu0 0.0
    %510 = vmatprep.subr.mxu0 0.0
    %511 = vmatpush1.msra.mxu0 0.0
    %512 = vmatprep.subr.mxu0 0.0
    %513 = vmatpush1.msra.mxu0 0.0
    %514 = vmatprep.subr.mxu0 0.0
    %515 = vmatpush1.msra.mxu0 0.0
    %516 = vmatprep.subr.mxu0 0.0
    %517 = vmatpush1.msra.mxu0 0.0
    %518 = vmatprep.subr.mxu0 0.0
    %519 = vmatpush1.msra.mxu0 0.0
    %520 = vmatprep.subr.mxu0 0.0
    %521 = vmatpush1.msra.mxu0 0.0
    %522 = vmatprep.subr.mxu0 0.0
    %523 = vmatpush1.msra.mxu0 0.0
    %524 = vmatprep.subr.mxu0 0.0
    %525 = vmatpush1.msra.mxu0 0.0
    %526 = vmatprep.subr.mxu0 0.0
    %527 = vmatpush1.msra.mxu0 0.0
    %528 = vmatprep.subr.mxu0 0.0
    %529 = vmatpush1.msra.mxu0 0.0
    %530 = vmatprep.subr.mxu0 0.0
    %531 = vmatpush1.msra.mxu0 0.0
    %532 = vmatprep.subr.mxu0 0.0
    %533 = vmatpush1.msra.mxu0 0.0
    %534 = vmatprep.subr.mxu0 0.0
    %535 = vmatpush1.msra.mxu0 0.0
    %536 = vmatprep.subr.mxu0 0.0
    %537 = vmatpush1.msra.mxu0 0.0
    %538 = vmatprep.subr.mxu0 0.0
    %539 = vmatpush1.msra.mxu0 0.0
    %540 = vmatprep.subr.mxu0 0.0
    %541 = vmatpush1.msra.mxu0 0.0
    %542 = vmatprep.subr.mxu0 0.0
    %543 = vmatpush1.msra.mxu0 0.0
    %544 = vmatprep.subr.mxu0 0.0
    %545 = vmatpush1.msra.mxu0 0.0
    %546 = vmatprep.subr.mxu0 0.0
    %547 = vmatpush1.msra.mxu0 0.0
    %548 = vmatprep.subr.mxu0 0.0
    %549 = vmatpush1.msra.mxu0 0.0
    %550 = vmatprep.subr.mxu0 0.0
    %551 = vmatpush1.msra.mxu0 0.0
    %552 = vmatprep.subr.mxu0 0.0
    %553 = vmatpush1.msra.mxu0 0.0
    %554 = vmatprep.subr.mxu0 0.0
    %555 = vmatpush1.msra.mxu0 0.0
    %556 = vmatprep.subr.mxu0 0.0
    %557 = vmatpush1.msra.mxu0 0.0
    %558 = vmatprep.subr.mxu0 0.0
    %559 = vmatpush1.msra.mxu0 0.0
    %560 = vmatprep.subr.mxu0 0.0
    %561 = vmatpush1.msra.mxu0 0.0
    %562 = vmatprep.subr.mxu0 0.0
    %563 = vmatpush1.msra.mxu0 0.0
    %564 = vmatprep.subr.mxu0 0.0
    %565 = vmatpush1.msra.mxu0 0.0
    %566 = vmatprep.mubr.f32.mxu0 0.0
    %567 = vmatmul.mubr.f32.gmra.mrb[0].mxu0 %v500
    %v568 = vpop.f32.mrb[0].mxu0
    %v569 = vadd.f32 0.0, %v568
    %v570 = vpop.f32.mrb[0].mxu0
    %571 = vdwg.mxu0
    %572 = vrot.lane.b32.xlu0 %v312, 64
    %v573 = vpop.permute.xlu0 %572
    %v576 = vsel %vm320, %v495, 0
    %578 = vmatprep.subr.mxu0 0.0
    %579 = vmatpush1.msra.mxu0 %v573
    %580 = vmatprep.subr.mxu0 0.0
    %581 = vmatpush1.msra.mxu0 0.0
    %582 = vmatprep.subr.mxu0 0.0
    %583 = vmatpush1.msra.mxu0 0.0
    %584 = vmatprep.subr.mxu0 0.0
    %585 = vmatpush1.msra.mxu0 0.0
    %586 = vmatprep.subr.mxu0 0.0
    %587 = vmatpush1.msra.mxu0 0.0
    %588 = vmatprep.subr.mxu0 0.0
    %589 = vmatpush1.msra.mxu0 0.0
    %590 = vmatprep.subr.mxu0 0.0
    %591 = vmatpush1.msra.mxu0 0.0
    %592 = vmatprep.subr.mxu0 0.0
    %593 = vmatpush1.msra.mxu0 0.0
    %594 = vmatprep.subr.mxu0 0.0
    %595 = vmatpush1.msra.mxu0 0.0
    %596 = vmatprep.subr.mxu0 0.0
    %597 = vmatpush1.msra.mxu0 0.0
    %598 = vmatprep.subr.mxu0 0.0
    %599 = vmatpush1.msra.mxu0 0.0
    %600 = vmatprep.subr.mxu0 0.0
    %601 = vmatpush1.msra.mxu0 0.0
    %602 = vmatprep.subr.mxu0 0.0
    %603 = vmatpush1.msra.mxu0 0.0
    %604 = vmatprep.subr.mxu0 0.0
    %605 = vmatpush1.msra.mxu0 0.0
    %606 = vmatprep.subr.mxu0 0.0
    %607 = vmatpush1.msra.mxu0 0.0
    %608 = vmatprep.subr.mxu0 0.0
    %609 = vmatpush1.msra.mxu0 0.0
    %610 = vmatprep.subr.mxu0 0.0
    %611 = vmatpush1.msra.mxu0 0.0
    %612 = vmatprep.subr.mxu0 0.0
    %613 = vmatpush1.msra.mxu0 0.0
    %614 = vmatprep.subr.mxu0 0.0
    %615 = vmatpush1.msra.mxu0 0.0
    %616 = vmatprep.subr.mxu0 0.0
    %617 = vmatpush1.msra.mxu0 0.0
    %618 = vmatprep.subr.mxu0 0.0
    %619 = vmatpush1.msra.mxu0 0.0
    %620 = vmatprep.subr.mxu0 0.0
    %621 = vmatpush1.msra.mxu0 0.0
    %622 = vmatprep.subr.mxu0 0.0
    %623 = vmatpush1.msra.mxu0 0.0
    %624 = vmatprep.subr.mxu0 0.0
    %625 = vmatpush1.msra.mxu0 0.0
    %626 = vmatprep.subr.mxu0 0.0
    %627 = vmatpush1.msra.mxu0 0.0
    %628 = vmatprep.subr.mxu0 0.0
    %629 = vmatpush1.msra.mxu0 0.0
    %630 = vmatprep.subr.mxu0 0.0
    %631 = vmatpush1.msra.mxu0 0.0
    %632 = vmatprep.subr.mxu0 0.0
    %633 = vmatpush1.msra.mxu0 0.0
    %634 = vmatprep.subr.mxu0 0.0
    %635 = vmatpush1.msra.mxu0 0.0
    %636 = vmatprep.subr.mxu0 0.0
    %637 = vmatpush1.msra.mxu0 0.0
    %638 = vmatprep.subr.mxu0 0.0
    %639 = vmatpush1.msra.mxu0 0.0
    %640 = vmatprep.subr.mxu0 0.0
    %641 = vmatpush1.msra.mxu0 0.0
    %642 = vmatprep.mubr.f32.mxu0 0.0
    %643 = vmatmul.mubr.f32.gmra.mrb[0].mxu0 %v576
    %v644 = vpop.f32.mrb[0].mxu0
    %v645 = vadd.f32 0.0, %v644
    %v646 = vpop.f32.mrb[0].mxu0
    %647 = vdwg.mxu0
    %648 = vrot.lane.b32.xlu0 %v315, 120
    %v649 = vpop.permute.xlu0 %648
    %650 = vrot.lane.b32.xlu0 %v307, 88
    %v651 = vpop.permute.xlu0 %650
    %v652 = vsel %vm320, %v649, 0
    %v654 = vsel %vm320, %v651, 0
    %656 = vmatprep.subr.mxu0 0.0
    %657 = vmatpush1.xpose.msra.mxu0 %v654
    %658 = vmatprep.subr.mxu0 0.0
    %659 = vmatpush1.xpose.msra.mxu0 0.0
    %660 = vmatprep.subr.mxu0 0.0
    %661 = vmatpush1.xpose.msra.mxu0 0.0
    %662 = vmatprep.subr.mxu0 0.0
    %663 = vmatpush1.xpose.msra.mxu0 0.0
    %664 = vmatprep.subr.mxu0 0.0
    %665 = vmatpush1.xpose.msra.mxu0 0.0
    %666 = vmatprep.subr.mxu0 0.0
    %667 = vmatpush1.xpose.msra.mxu0 0.0
    %668 = vmatprep.subr.mxu0 0.0
    %669 = vmatpush1.xpose.msra.mxu0 0.0
    %670 = vmatprep.subr.mxu0 0.0
    %671 = vmatpush1.xpose.msra.mxu0 0.0
    %672 = vmatprep.subr.mxu0 0.0
    %673 = vmatpush1.xpose.msra.mxu0 0.0
    %674 = vmatprep.subr.mxu0 0.0
    %675 = vmatpush1.xpose.msra.mxu0 0.0
    %676 = vmatprep.subr.mxu0 0.0
    %677 = vmatpush1.xpose.msra.mxu0 0.0
    %678 = vmatprep.subr.mxu0 0.0
    %679 = vmatpush1.xpose.msra.mxu0 0.0
    %680 = vmatprep.subr.mxu0 0.0
    %681 = vmatpush1.xpose.msra.mxu0 0.0
    %682 = vmatprep.subr.mxu0 0.0
    %683 = vmatpush1.xpose.msra.mxu0 0.0
    %684 = vmatprep.subr.mxu0 0.0
    %685 = vmatpush1.xpose.msra.mxu0 0.0
    %686 = vmatprep.subr.mxu0 0.0
    %687 = vmatpush1.xpose.msra.mxu0 0.0
    %688 = vmatprep.subr.mxu0 0.0
    %689 = vmatpush1.xpose.msra.mxu0 0.0
    %690 = vmatprep.subr.mxu0 0.0
    %691 = vmatpush1.xpose.msra.mxu0 0.0
    %692 = vmatprep.subr.mxu0 0.0
    %693 = vmatpush1.xpose.msra.mxu0 0.0
    %694 = vmatprep.subr.mxu0 0.0
    %695 = vmatpush1.xpose.msra.mxu0 0.0
    %696 = vmatprep.subr.mxu0 0.0
    %697 = vmatpush1.xpose.msra.mxu0 0.0
    %698 = vmatprep.subr.mxu0 0.0
    %699 = vmatpush1.xpose.msra.mxu0 0.0
    %700 = vmatprep.subr.mxu0 0.0
    %701 = vmatpush1.xpose.msra.mxu0 0.0
    %702 = vmatprep.subr.mxu0 0.0
    %703 = vmatpush1.xpose.msra.mxu0 0.0
    %704 = vmatprep.subr.mxu0 0.0
    %705 = vmatpush1.xpose.msra.mxu0 0.0
    %706 = vmatprep.subr.mxu0 0.0
    %707 = vmatpush1.xpose.msra.mxu0 0.0
    %708 = vmatprep.subr.mxu0 0.0
    %709 = vmatpush1.xpose.msra.mxu0 0.0
    %710 = vmatprep.subr.mxu0 0.0
    %711 = vmatpush1.xpose.msra.mxu0 0.0
    %712 = vmatprep.subr.mxu0 0.0
    %713 = vmatpush1.xpose.msra.mxu0 0.0
    %714 = vmatprep.subr.mxu0 0.0
    %715 = vmatpush1.xpose.msra.mxu0 0.0
    %716 = vmatprep.subr.mxu0 0.0
    %717 = vmatpush1.xpose.msra.mxu0 0.0
    %718 = vmatprep.subr.mxu0 0.0
    %719 = vmatpush1.xpose.msra.mxu0 0.0
    %720 = vmatprep.mubr.f32.mxu0 0.0
    %721 = vmatmul.mubr.f32.gmra.mrb[0].mxu0 %v652
    %v722 = vpop.f32.mrb[0].mxu0
    %v723 = vadd.f32 %v176, %v722
    %v724 = vpop.f32.mrb[0].mxu0
    %725 = vdwg.mxu0
    %726 = vrot.lane.b32.xlu0 %v316, 120
    %v727 = vpop.permute.xlu0 %726
    %728 = vrot.lane.b32.xlu0 %v312, 88
    %v729 = vpop.permute.xlu0 %728
    %v730 = vsel %vm320, %v727, 0
    %v732 = vsel %vm320, %v729, 0
    %734 = vmatprep.subr.mxu0 0.0
    %735 = vmatpush1.xpose.msra.mxu0 %v732
    %736 = vmatprep.subr.mxu0 0.0
    %737 = vmatpush1.xpose.msra.mxu0 0.0
    %738 = vmatprep.subr.mxu0 0.0
    %739 = vmatpush1.xpose.msra.mxu0 0.0
    %740 = vmatprep.subr.mxu0 0.0
    %741 = vmatpush1.xpose.msra.mxu0 0.0
    %742 = vmatprep.subr.mxu0 0.0
    %743 = vmatpush1.xpose.msra.mxu0 0.0
    %744 = vmatprep.subr.mxu0 0.0
    %745 = vmatpush1.xpose.msra.mxu0 0.0
    %746 = vmatprep.subr.mxu0 0.0
    %747 = vmatpush1.xpose.msra.mxu0 0.0
    %748 = vmatprep.subr.mxu0 0.0
    %749 = vmatpush1.xpose.msra.mxu0 0.0
    %750 = vmatprep.subr.mxu0 0.0
    %751 = vmatpush1.xpose.msra.mxu0 0.0
    %752 = vmatprep.subr.mxu0 0.0
    %753 = vmatpush1.xpose.msra.mxu0 0.0
    %754 = vmatprep.subr.mxu0 0.0
    %755 = vmatpush1.xpose.msra.mxu0 0.0
    %756 = vmatprep.subr.mxu0 0.0
    %757 = vmatpush1.xpose.msra.mxu0 0.0
    %758 = vmatprep.subr.mxu0 0.0
    %759 = vmatpush1.xpose.msra.mxu0 0.0
    %760 = vmatprep.subr.mxu0 0.0
    %761 = vmatpush1.xpose.msra.mxu0 0.0
    %762 = vmatprep.subr.mxu0 0.0
    %763 = vmatpush1.xpose.msra.mxu0 0.0
    %764 = vmatprep.subr.mxu0 0.0
    %765 = vmatpush1.xpose.msra.mxu0 0.0
    %766 = vmatprep.subr.mxu0 0.0
    %767 = vmatpush1.xpose.msra.mxu0 0.0
    %768 = vmatprep.subr.mxu0 0.0
    %769 = vmatpush1.xpose.msra.mxu0 0.0
    %770 = vmatprep.subr.mxu0 0.0
    %771 = vmatpush1.xpose.msra.mxu0 0.0
    %772 = vmatprep.subr.mxu0 0.0
    %773 = vmatpush1.xpose.msra.mxu0 0.0
    %774 = vmatprep.subr.mxu0 0.0
    %775 = vmatpush1.xpose.msra.mxu0 0.0
    %776 = vmatprep.subr.mxu0 0.0
    %777 = vmatpush1.xpose.msra.mxu0 0.0
    %778 = vmatprep.subr.mxu0 0.0
    %779 = vmatpush1.xpose.msra.mxu0 0.0
    %780 = vmatprep.subr.mxu0 0.0
    %781 = vmatpush1.xpose.msra.mxu0 0.0
    %782 = vmatprep.subr.mxu0 0.0
    %783 = vmatpush1.xpose.msra.mxu0 0.0
    %784 = vmatprep.subr.mxu0 0.0
    %785 = vmatpush1.xpose.msra.mxu0 0.0
    %786 = vmatprep.subr.mxu0 0.0
    %787 = vmatpush1.xpose.msra.mxu0 0.0
    %788 = vmatprep.subr.mxu0 0.0
    %789 = vmatpush1.xpose.msra.mxu0 0.0
    %790 = vmatprep.subr.mxu0 0.0
    %791 = vmatpush1.xpose.msra.mxu0 0.0
    %792 = vmatprep.subr.mxu0 0.0
    %793 = vmatpush1.xpose.msra.mxu0 0.0
    %794 = vmatprep.subr.mxu0 0.0
    %795 = vmatpush1.xpose.msra.mxu0 0.0
    %796 = vmatprep.subr.mxu0 0.0
    %797 = vmatpush1.xpose.msra.mxu0 0.0
    %798 = vmatprep.mubr.f32.mxu0 0.0
    %799 = vmatmul.mubr.f32.gmra.mrb[0].mxu0 %v730
    %v800 = vpop.f32.mrb[0].mxu0
    %v801 = vadd.f32 %v176, %v800
    %v802 = vpop.f32.mrb[0].mxu0
    %803 = vdwg.mxu0
    %v804 = vsel %vm320, %v723, -inf
    %805 = vmax.xlane.f32.xlu0 %v804
    %v806 = vpop.xlane.xlu0 %805
    %v807 = vsel %vm320, %v801, -inf
    %808 = vmax.xlane.f32.xlu0 %v807
    %v809 = vpop.xlane.xlu0 %808
    %v810 = vsub.f32 %v723, %v806
    %v811 = vsub.f32 %v801, %v809
    %v812 = vmul.f32 %v810, 1.442695
    %v813 = vpow.pop %v812
    %v814 = vmul.f32 %v811, 1.442695
    %v815 = vpow.pop %v814
    %v816 = vsel %vm320, %v813, 0.0
    %817 = vadd.xlane.f32.xlu0 %v816
    %v818 = vpop.xlane.xlu0 %817
    %v819 = vsel %vm320, %v815, 0.0
    %820 = vadd.xlane.f32.xlu0 %v819
    %v821 = vpop.xlane.xlu0 %820
    %v822 = vrcp.pop %v818
    %v823 = vmul.f32 %v813, %v822
    %v824 = vrcp.pop %v821
    %v825 = vmul.f32 %v815, %v824
    %826 = vrot.lane.b32.xlu0 %v307, 56
    %v827 = vpop.permute.xlu0 %826
    %v830 = vsel %vm320, %v823, 0
    %832 = vmatprep.subr.mxu0 0.0
    %833 = vmatpush1.msra.mxu0 %v827
    %834 = vmatprep.subr.mxu0 0.0
    %835 = vmatpush1.msra.mxu0 0.0
    %836 = vmatprep.subr.mxu0 0.0
    %837 = vmatpush1.msra.mxu0 0.0
    %838 = vmatprep.subr.mxu0 0.0
    %839 = vmatpush1.msra.mxu0 0.0
    %840 = vmatprep.subr.mxu0 0.0
    %841 = vmatpush1.msra.mxu0 0.0
    %842 = vmatprep.subr.mxu0 0.0
    %843 = vmatpush1.msra.mxu0 0.0
    %844 = vmatprep.subr.mxu0 0.0
    %845 = vmatpush1.msra.mxu0 0.0
    %846 = vmatprep.subr.mxu0 0.0
    %847 = vmatpush1.msra.mxu0 0.0
    %848 = vmatprep.subr.mxu0 0.0
    %849 = vmatpush1.msra.mxu0 0.0
    %850 = vmatprep.subr.mxu0 0.0
    %851 = vmatpush1.msra.mxu0 0.0
    %852 = vmatprep.subr.mxu0 0.0
    %853 = vmatpush1.msra.mxu0 0.0
    %854 = vmatprep.subr.mxu0 0.0
    %855 = vmatpush1.msra.mxu0 0.0
    %856 = vmatprep.subr.mxu0 0.0
    %857 = vmatpush1.msra.mxu0 0.0
    %858 = vmatprep.subr.mxu0 0.0
    %859 = vmatpush1.msra.mxu0 0.0
    %860 = vmatprep.subr.mxu0 0.0
    %861 = vmatpush1.msra.mxu0 0.0
    %862 = vmatprep.subr.mxu0 0.0
    %863 = vmatpush1.msra.mxu0 0.0
    %864 = vmatprep.subr.mxu0 0.0
    %865 = vmatpush1.msra.mxu0 0.0
    %866 = vmatprep.subr.mxu0 0.0
    %867 = vmatpush1.msra.mxu0 0.0
    %868 = vmatprep.subr.mxu0 0.0
    %869 = vmatpush1.msra.mxu0 0.0
    %870 = vmatprep.subr.mxu0 0.0
    %871 = vmatpush1.msra.mxu0 0.0
    %872 = vmatprep.subr.mxu0 0.0
    %873 = vmatpush1.msra.mxu0 0.0
    %874 = vmatprep.subr.mxu0 0.0
    %875 = vmatpush1.msra.mxu0 0.0
    %876 = vmatprep.subr.mxu0 0.0
    %877 = vmatpush1.msra.mxu0 0.0
    %878 = vmatprep.subr.mxu0 0.0
    %879 = vmatpush1.msra.mxu0 0.0
    %880 = vmatprep.subr.mxu0 0.0
    %881 = vmatpush1.msra.mxu0 0.0
    %882 = vmatprep.subr.mxu0 0.0
    %883 = vmatpush1.msra.mxu0 0.0
    %884 = vmatprep.subr.mxu0 0.0
    %885 = vmatpush1.msra.mxu0 0.0
    %886 = vmatprep.subr.mxu0 0.0
    %887 = vmatpush1.msra.mxu0 0.0
    %888 = vmatprep.subr.mxu0 0.0
    %889 = vmatpush1.msra.mxu0 0.0
    %890 = vmatprep.subr.mxu0 0.0
    %891 = vmatpush1.msra.mxu0 0.0
    %892 = vmatprep.subr.mxu0 0.0
    %893 = vmatpush1.msra.mxu0 0.0
    %894 = vmatprep.subr.mxu0 0.0
    %895 = vmatpush1.msra.mxu0 0.0
    %896 = vmatprep.mubr.f32.mxu0 0.0
    %897 = vmatmul.mubr.f32.gmra.mrb[0].mxu0 %v830
    %v898 = vpop.f32.mrb[0].mxu0
    %v899 = vadd.f32 0.0, %v898
    %v900 = vpop.f32.mrb[0].mxu0
    %901 = vdwg.mxu0
    %902 = vrot.lane.b32.xlu0 %v312, 56
    %v903 = vpop.permute.xlu0 %902
    %v906 = vsel %vm320, %v825, 0
    %908 = vmatprep.subr.mxu0 0.0
    %909 = vmatpush1.msra.mxu0 %v903
    %910 = vmatprep.subr.mxu0 0.0
    %911 = vmatpush1.msra.mxu0 0.0
    %912 = vmatprep.subr.mxu0 0.0
    %913 = vmatpush1.msra.mxu0 0.0
    %914 = vmatprep.subr.mxu0 0.0
    %915 = vmatpush1.msra.mxu0 0.0
    %916 = vmatprep.subr.mxu0 0.0
    %917 = vmatpush1.msra.mxu0 0.0
    %918 = vmatprep.subr.mxu0 0.0
    %919 = vmatpush1.msra.mxu0 0.0
    %920 = vmatprep.subr.mxu0 0.0
    %921 = vmatpush1.msra.mxu0 0.0
    %922 = vmatprep.subr.mxu0 0.0
    %923 = vmatpush1.msra.mxu0 0.0
    %924 = vmatprep.subr.mxu0 0.0
    %925 = vmatpush1.msra.mxu0 0.0
    %926 = vmatprep.subr.mxu0 0.0
    %927 = vmatpush1.msra.mxu0 0.0
    %928 = vmatprep.subr.mxu0 0.0
    %929 = vmatpush1.msra.mxu0 0.0
    %930 = vmatprep.subr.mxu0 0.0
    %931 = vmatpush1.msra.mxu0 0.0
    %932 = vmatprep.subr.mxu0 0.0
    %933 = vmatpush1.msra.mxu0 0.0
    %934 = vmatprep.subr.mxu0 0.0
    %935 = vmatpush1.msra.mxu0 0.0
    %936 = vmatprep.subr.mxu0 0.0
    %937 = vmatpush1.msra.mxu0 0.0
    %938 = vmatprep.subr.mxu0 0.0
    %939 = vmatpush1.msra.mxu0 0.0
    %940 = vmatprep.subr.mxu0 0.0
    %941 = vmatpush1.msra.mxu0 0.0
    %942 = vmatprep.subr.mxu0 0.0
    %943 = vmatpush1.msra.mxu0 0.0
    %944 = vmatprep.subr.mxu0 0.0
    %945 = vmatpush1.msra.mxu0 0.0
    %946 = vmatprep.subr.mxu0 0.0
    %947 = vmatpush1.msra.mxu0 0.0
    %948 = vmatprep.subr.mxu0 0.0
    %949 = vmatpush1.msra.mxu0 0.0
    %950 = vmatprep.subr.mxu0 0.0
    %951 = vmatpush1.msra.mxu0 0.0
    %952 = vmatprep.subr.mxu0 0.0
    %953 = vmatpush1.msra.mxu0 0.0
    %954 = vmatprep.subr.mxu0 0.0
    %955 = vmatpush1.msra.mxu0 0.0
    %956 = vmatprep.subr.mxu0 0.0
    %957 = vmatpush1.msra.mxu0 0.0
    %958 = vmatprep.subr.mxu0 0.0
    %959 = vmatpush1.msra.mxu0 0.0
    %960 = vmatprep.subr.mxu0 0.0
    %961 = vmatpush1.msra.mxu0 0.0
    %962 = vmatprep.subr.mxu0 0.0
    %963 = vmatpush1.msra.mxu0 0.0
    %964 = vmatprep.subr.mxu0 0.0
    %965 = vmatpush1.msra.mxu0 0.0
    %966 = vmatprep.subr.mxu0 0.0
    %967 = vmatpush1.msra.mxu0 0.0
    %968 = vmatprep.subr.mxu0 0.0
    %969 = vmatpush1.msra.mxu0 0.0
    %970 = vmatprep.subr.mxu0 0.0
    %971 = vmatpush1.msra.mxu0 0.0
    %972 = vmatprep.mubr.f32.mxu0 0.0
    %973 = vmatmul.mubr.f32.gmra.mrb[0].mxu0 %v906
    %v974 = vpop.f32.mrb[0].mxu0
    %v975 = vadd.f32 0.0, %v974
    %v976 = vpop.f32.mrb[0].mxu0
    %977 = vdwg.mxu0
    %978 = vrot.lane.b32.xlu0 %v315, 112
    %v979 = vpop.permute.xlu0 %978
    %980 = vrot.lane.b32.xlu0 %v307, 80
    %v981 = vpop.permute.xlu0 %980
    %v982 = vsel %vm320, %v979, 0
    %v984 = vsel %vm320, %v981, 0
    %986 = vmatprep.subr.mxu0 0.0
    %987 = vmatpush1.xpose.msra.mxu0 %v984
    %988 = vmatprep.subr.mxu0 0.0
    %989 = vmatpush1.xpose.msra.mxu0 0.0
    %990 = vmatprep.subr.mxu0 0.0
    %991 = vmatpush1.xpose.msra.mxu0 0.0
    %992 = vmatprep.subr.mxu0 0.0
    %993 = vmatpush1.xpose.msra.mxu0 0.0
    %994 = vmatprep.subr.mxu0 0.0
    %995 = vmatpush1.xpose.msra.mxu0 0.0
    %996 = vmatprep.subr.mxu0 0.0
    %997 = vmatpush1.xpose.msra.mxu0 0.0
    %998 = vmatprep.subr.mxu0 0.0
    %999 = vmatpush1.xpose.msra.mxu0 0.0
    %1000 = vmatprep.subr.mxu0 0.0
    %1001 = vmatpush1.xpose.msra.mxu0 0.0
    %1002 = vmatprep.subr.mxu0 0.0
    %1003 = vmatpush1.xpose.msra.mxu0 0.0
    %1004 = vmatprep.subr.mxu0 0.0
    %1005 = vmatpush1.xpose.msra.mxu0 0.0
    %1006 = vmatprep.subr.mxu0 0.0
    %1007 = vmatpush1.xpose.msra.mxu0 0.0
    %1008 = vmatprep.subr.mxu0 0.0
    %1009 = vmatpush1.xpose.msra.mxu0 0.0
    %1010 = vmatprep.subr.mxu0 0.0
    %1011 = vmatpush1.xpose.msra.mxu0 0.0
    %1012 = vmatprep.subr.mxu0 0.0
    %1013 = vmatpush1.xpose.msra.mxu0 0.0
    %1014 = vmatprep.subr.mxu0 0.0
    %1015 = vmatpush1.xpose.msra.mxu0 0.0
    %1016 = vmatprep.subr.mxu0 0.0
    %1017 = vmatpush1.xpose.msra.mxu0 0.0
    %1018 = vmatprep.subr.mxu0 0.0
    %1019 = vmatpush1.xpose.msra.mxu0 0.0
    %1020 = vmatprep.subr.mxu0 0.0
    %1021 = vmatpush1.xpose.msra.mxu0 0.0
    %1022 = vmatprep.subr.mxu0 0.0
    %1023 = vmatpush1.xpose.msra.mxu0 0.0
    %1024 = vmatprep.subr.mxu0 0.0
    %1025 = vmatpush1.xpose.msra.mxu0 0.0
    %1026 = vmatprep.subr.mxu0 0.0
    %1027 = vmatpush1.xpose.msra.mxu0 0.0
    %1028 = vmatprep.subr.mxu0 0.0
    %1029 = vmatpush1.xpose.msra.mxu0 0.0
    %1030 = vmatprep.subr.mxu0 0.0
    %1031 = vmatpush1.xpose.msra.mxu0 0.0
    %1032 = vmatprep.subr.mxu0 0.0
    %1033 = vmatpush1.xpose.msra.mxu0 0.0
    %1034 = vmatprep.subr.mxu0 0.0
    %1035 = vmatpush1.xpose.msra.mxu0 0.0
    %1036 = vmatprep.subr.mxu0 0.0
    %1037 = vmatpush1.xpose.msra.mxu0 0.0
    %1038 = vmatprep.subr.mxu0 0.0
    %1039 = vmatpush1.xpose.msra.mxu0 0.0
    %1040 = vmatprep.subr.mxu0 0.0
    %1041 = vmatpush1.xpose.msra.mxu0 0.0
    %1042 = vmatprep.subr.mxu0 0.0
    %1043 = vmatpush1.xpose.msra.mxu0 0.0
    %1044 = vmatprep.subr.mxu0 0.0
    %1045 = vmatpush1.xpose.msra.mxu0 0.0
    %1046 = vmatprep.subr.mxu0 0.0
    %1047 = vmatpush1.xpose.msra.mxu0 0.0
    %1048 = vmatprep.subr.mxu0 0.0
    %1049 = vmatpush1.xpose.msra.mxu0 0.0
    %1050 = vmatprep.mubr.f32.mxu0 0.0
    %1051 = vmatmul.mubr.f32.gmra.mrb[0].mxu0 %v982
    %v1052 = vpop.f32.mrb[0].mxu0
    %v1053 = vadd.f32 %v176, %v1052
    %v1054 = vpop.f32.mrb[0].mxu0
    %1055 = vdwg.mxu0
    %1056 = vrot.lane.b32.xlu0 %v316, 112
    %v1057 = vpop.permute.xlu0 %1056
    %1058 = vrot.lane.b32.xlu0 %v312, 80
    %v1059 = vpop.permute.xlu0 %1058
    %v1060 = vsel %vm320, %v1057, 0
    %v1062 = vsel %vm320, %v1059, 0
    %1064 = vmatprep.subr.mxu0 0.0
    %1065 = vmatpush1.xpose.msra.mxu0 %v1062
    %1066 = vmatprep.subr.mxu0 0.0
    %1067 = vmatpush1.xpose.msra.mxu0 0.0
    %1068 = vmatprep.subr.mxu0 0.0
    %1069 = vmatpush1.xpose.msra.mxu0 0.0
    %1070 = vmatprep.subr.mxu0 0.0
    %1071 = vmatpush1.xpose.msra.mxu0 0.0
    %1072 = vmatprep.subr.mxu0 0.0
    %1073 = vmatpush1.xpose.msra.mxu0 0.0
    %1074 = vmatprep.subr.mxu0 0.0
    %1075 = vmatpush1.xpose.msra.mxu0 0.0
    %1076 = vmatprep.subr.mxu0 0.0
    %1077 = vmatpush1.xpose.msra.mxu0 0.0
    %1078 = vmatprep.subr.mxu0 0.0
    %1079 = vmatpush1.xpose.msra.mxu0 0.0
    %1080 = vmatprep.subr.mxu0 0.0
    %1081 = vmatpush1.xpose.msra.mxu0 0.0
    %1082 = vmatprep.subr.mxu0 0.0
    %1083 = vmatpush1.xpose.msra.mxu0 0.0
    %1084 = vmatprep.subr.mxu0 0.0
    %1085 = vmatpush1.xpose.msra.mxu0 0.0
    %1086 = vmatprep.subr.mxu0 0.0
    %1087 = vmatpush1.xpose.msra.mxu0 0.0
    %1088 = vmatprep.subr.mxu0 0.0
    %1089 = vmatpush1.xpose.msra.mxu0 0.0
    %1090 = vmatprep.subr.mxu0 0.0
    %1091 = vmatpush1.xpose.msra.mxu0 0.0
    %1092 = vmatprep.subr.mxu0 0.0
    %1093 = vmatpush1.xpose.msra.mxu0 0.0
    %1094 = vmatprep.subr.mxu0 0.0
    %1095 = vmatpush1.xpose.msra.mxu0 0.0
    %1096 = vmatprep.subr.mxu0 0.0
    %1097 = vmatpush1.xpose.msra.mxu0 0.0
    %1098 = vmatprep.subr.mxu0 0.0
    %1099 = vmatpush1.xpose.msra.mxu0 0.0
    %1100 = vmatprep.subr.mxu0 0.0
    %1101 = vmatpush1.xpose.msra.mxu0 0.0
    %1102 = vmatprep.subr.mxu0 0.0
    %1103 = vmatpush1.xpose.msra.mxu0 0.0
    %1104 = vmatprep.subr.mxu0 0.0
    %1105 = vmatpush1.xpose.msra.mxu0 0.0
    %1106 = vmatprep.subr.mxu0 0.0
    %1107 = vmatpush1.xpose.msra.mxu0 0.0
    %1108 = vmatprep.subr.mxu0 0.0
    %1109 = vmatpush1.xpose.msra.mxu0 0.0
    %1110 = vmatprep.subr.mxu0 0.0
    %1111 = vmatpush1.xpose.msra.mxu0 0.0
    %1112 = vmatprep.subr.mxu0 0.0
    %1113 = vmatpush1.xpose.msra.mxu0 0.0
    %1114 = vmatprep.subr.mxu0 0.0
    %1115 = vmatpush1.xpose.msra.mxu0 0.0
    %1116 = vmatprep.subr.mxu0 0.0
    %1117 = vmatpush1.xpose.msra.mxu0 0.0
    %1118 = vmatprep.subr.mxu0 0.0
    %1119 = vmatpush1.xpose.msra.mxu0 0.0
    %1120 = vmatprep.subr.mxu0 0.0
    %1121 = vmatpush1.xpose.msra.mxu0 0.0
    %1122 = vmatprep.subr.mxu0 0.0
    %1123 = vmatpush1.xpose.msra.mxu0 0.0
    %1124 = vmatprep.subr.mxu0 0.0
    %1125 = vmatpush1.xpose.msra.mxu0 0.0
    %1126 = vmatprep.subr.mxu0 0.0
    %1127 = vmatpush1.xpose.msra.mxu0 0.0
    %1128 = vmatprep.mubr.f32.mxu0 0.0
    %1129 = vmatmul.mubr.f32.gmra.mrb[0].mxu0 %v1060
    %v1130 = vpop.f32.mrb[0].mxu0
    %v1131 = vadd.f32 %v176, %v1130
    %v1132 = vpop.f32.mrb[0].mxu0
    %1133 = vdwg.mxu0
    %v1134 = vsel %vm320, %v1053, -inf
    %1135 = vmax.xlane.f32.xlu0 %v1134
    %v1136 = vpop.xlane.xlu0 %1135
    %v1137 = vsel %vm320, %v1131, -inf
    %1138 = vmax.xlane.f32.xlu0 %v1137
    %v1139 = vpop.xlane.xlu0 %1138
    %v1140 = vsub.f32 %v1053, %v1136
    %v1141 = vsub.f32 %v1131, %v1139
    %v1142 = vmul.f32 %v1140, 1.442695
    %v1143 = vpow.pop %v1142
    %v1144 = vmul.f32 %v1141, 1.442695
    %v1145 = vpow.pop %v1144
    %v1146 = vsel %vm320, %v1143, 0.0
    %1147 = vadd.xlane.f32.xlu0 %v1146
    %v1148 = vpop.xlane.xlu0 %1147
    %v1149 = vsel %vm320, %v1145, 0.0
    %1150 = vadd.xlane.f32.xlu0 %v1149
    %v1151 = vpop.xlane.xlu0 %1150
    %v1152 = vrcp.pop %v1148
    %v1153 = vmul.f32 %v1143, %v1152
    %v1154 = vrcp.pop %v1151
    %v1155 = vmul.f32 %v1145, %v1154
    %1156 = vrot.lane.b32.xlu0 %v307, 48
    %v1157 = vpop.permute.xlu0 %1156
    %v1160 = vsel %vm320, %v1153, 0
    %1162 = vmatprep.subr.mxu0 0.0
    %1163 = vmatpush1.msra.mxu0 %v1157
    %1164 = vmatprep.subr.mxu0 0.0
    %1165 = vmatpush1.msra.mxu0 0.0
    %1166 = vmatprep.subr.mxu0 0.0
    %1167 = vmatpush1.msra.mxu0 0.0
    %1168 = vmatprep.subr.mxu0 0.0
    %1169 = vmatpush1.msra.mxu0 0.0
    %1170 = vmatprep.subr.mxu0 0.0
    %1171 = vmatpush1.msra.mxu0 0.0
    %1172 = vmatprep.subr.mxu0 0.0
    %1173 = vmatpush1.msra.mxu0 0.0
    %1174 = vmatprep.subr.mxu0 0.0
    %1175 = vmatpush1.msra.mxu0 0.0
    %1176 = vmatprep.subr.mxu0 0.0
    %1177 = vmatpush1.msra.mxu0 0.0
    %1178 = vmatprep.subr.mxu0 0.0
    %1179 = vmatpush1.msra.mxu0 0.0
    %1180 = vmatprep.subr.mxu0 0.0
    %1181 = vmatpush1.msra.mxu0 0.0
    %1182 = vmatprep.subr.mxu0 0.0
    %1183 = vmatpush1.msra.mxu0 0.0
    %1184 = vmatprep.subr.mxu0 0.0
    %1185 = vmatpush1.msra.mxu0 0.0
    %1186 = vmatprep.subr.mxu0 0.0
    %1187 = vmatpush1.msra.mxu0 0.0
    %1188 = vmatprep.subr.mxu0 0.0
    %1189 = vmatpush1.msra.mxu0 0.0
    %1190 = vmatprep.subr.mxu0 0.0
    %1191 = vmatpush1.msra.mxu0 0.0
    %1192 = vmatprep.subr.mxu0 0.0
    %1193 = vmatpush1.msra.mxu0 0.0
    %1194 = vmatprep.subr.mxu0 0.0
    %1195 = vmatpush1.msra.mxu0 0.0
    %1196 = vmatprep.subr.mxu0 0.0
    %1197 = vmatpush1.msra.mxu0 0.0
    %1198 = vmatprep.subr.mxu0 0.0
    %1199 = vmatpush1.msra.mxu0 0.0
    %1200 = vmatprep.subr.mxu0 0.0
    %1201 = vmatpush1.msra.mxu0 0.0
    %1202 = vmatprep.subr.mxu0 0.0
    %1203 = vmatpush1.msra.mxu0 0.0
    %1204 = vmatprep.subr.mxu0 0.0
    %1205 = vmatpush1.msra.mxu0 0.0
    %1206 = vmatprep.subr.mxu0 0.0
    %1207 = vmatpush1.msra.mxu0 0.0
    %1208 = vmatprep.subr.mxu0 0.0
    %1209 = vmatpush1.msra.mxu0 0.0
    %1210 = vmatprep.subr.mxu0 0.0
    %1211 = vmatpush1.msra.mxu0 0.0
    %1212 = vmatprep.subr.mxu0 0.0
    %1213 = vmatpush1.msra.mxu0 0.0
    %1214 = vmatprep.subr.mxu0 0.0
    %1215 = vmatpush1.msra.mxu0 0.0
    %1216 = vmatprep.subr.mxu0 0.0
    %1217 = vmatpush1.msra.mxu0 0.0
    %1218 = vmatprep.subr.mxu0 0.0
    %1219 = vmatpush1.msra.mxu0 0.0
    %1220 = vmatprep.subr.mxu0 0.0
    %1221 = vmatpush1.msra.mxu0 0.0
    %1222 = vmatprep.subr.mxu0 0.0
    %1223 = vmatpush1.msra.mxu0 0.0
    %1224 = vmatprep.subr.mxu0 0.0
    %1225 = vmatpush1.msra.mxu0 0.0
    %1226 = vmatprep.mubr.f32.mxu0 0.0
    %1227 = vmatmul.mubr.f32.gmra.mrb[0].mxu0 %v1160
    %v1228 = vpop.f32.mrb[0].mxu0
    %v1229 = vadd.f32 0.0, %v1228
    %v1230 = vpop.f32.mrb[0].mxu0
    %1231 = vdwg.mxu0
    %1232 = vrot.lane.b32.xlu0 %v312, 48
    %v1233 = vpop.permute.xlu0 %1232
    %v1236 = vsel %vm320, %v1155, 0
    %1238 = vmatprep.subr.mxu0 0.0
    %1239 = vmatpush1.msra.mxu0 %v1233
    %1240 = vmatprep.subr.mxu0 0.0
    %1241 = vmatpush1.msra.mxu0 0.0
    %1242 = vmatprep.subr.mxu0 0.0
    %1243 = vmatpush1.msra.mxu0 0.0
    %1244 = vmatprep.subr.mxu0 0.0
    %1245 = vmatpush1.msra.mxu0 0.0
    %1246 = vmatprep.subr.mxu0 0.0
    %1247 = vmatpush1.msra.mxu0 0.0
    %1248 = vmatprep.subr.mxu0 0.0
    %1249 = vmatpush1.msra.mxu0 0.0
    %1250 = vmatprep.subr.mxu0 0.0
    %1251 = vmatpush1.msra.mxu0 0.0
    %1252 = vmatprep.subr.mxu0 0.0
    %1253 = vmatpush1.msra.mxu0 0.0
    %1254 = vmatprep.subr.mxu0 0.0
    %1255 = vmatpush1.msra.mxu0 0.0
    %1256 = vmatprep.subr.mxu0 0.0
    %1257 = vmatpush1.msra.mxu0 0.0
    %1258 = vmatprep.subr.mxu0 0.0
    %1259 = vmatpush1.msra.mxu0 0.0
    %1260 = vmatprep.subr.mxu0 0.0
    %1261 = vmatpush1.msra.mxu0 0.0
    %1262 = vmatprep.subr.mxu0 0.0
    %1263 = vmatpush1.msra.mxu0 0.0
    %1264 = vmatprep.subr.mxu0 0.0
    %1265 = vmatpush1.msra.mxu0 0.0
    %1266 = vmatprep.subr.mxu0 0.0
    %1267 = vmatpush1.msra.mxu0 0.0
    %1268 = vmatprep.subr.mxu0 0.0
    %1269 = vmatpush1.msra.mxu0 0.0
    %1270 = vmatprep.subr.mxu0 0.0
    %1271 = vmatpush1.msra.mxu0 0.0
    %1272 = vmatprep.subr.mxu0 0.0
    %1273 = vmatpush1.msra.mxu0 0.0
    %1274 = vmatprep.subr.mxu0 0.0
    %1275 = vmatpush1.msra.mxu0 0.0
    %1276 = vmatprep.subr.mxu0 0.0
    %1277 = vmatpush1.msra.mxu0 0.0
    %1278 = vmatprep.subr.mxu0 0.0
    %1279 = vmatpush1.msra.mxu0 0.0
    %1280 = vmatprep.subr.mxu0 0.0
    %1281 = vmatpush1.msra.mxu0 0.0
    %1282 = vmatprep.subr.mxu0 0.0
    %1283 = vmatpush1.msra.mxu0 0.0
    %1284 = vmatprep.subr.mxu0 0.0
    %1285 = vmatpush1.msra.mxu0 0.0
    %1286 = vmatprep.subr.mxu0 0.0
    %1287 = vmatpush1.msra.mxu0 0.0
    %1288 = vmatprep.subr.mxu0 0.0
    %1289 = vmatpush1.msra.mxu0 0.0
    %1290 = vmatprep.subr.mxu0 0.0
    %1291 = vmatpush1.msra.mxu0 0.0
    %1292 = vmatprep.subr.mxu0 0.0
    %1293 = vmatpush1.msra.mxu0 0.0
    %1294 = vmatprep.subr.mxu0 0.0
    %1295 = vmatpush1.msra.mxu0 0.0
    %1296 = vmatprep.subr.mxu0 0.0
    %1297 = vmatpush1.msra.mxu0 0.0
    %1298 = vmatprep.subr.mxu0 0.0
    %1299 = vmatpush1.msra.mxu0 0.0
    %1300 = vmatprep.subr.mxu0 0.0
    %1301 = vmatpush1.msra.mxu0 0.0
    %1302 = vmatprep.mubr.f32.mxu0 0.0
    %1303 = vmatmul.mubr.f32.gmra.mrb[0].mxu0 %v1236
    %v1304 = vpop.f32.mrb[0].mxu0
    %v1305 = vadd.f32 0.0, %v1304
    %v1306 = vpop.f32.mrb[0].mxu0
    %1307 = vdwg.mxu0
    %1308 = vrot.lane.b32.xlu0 %v315, 104
    %v1309 = vpop.permute.xlu0 %1308
    %1310 = vrot.lane.b32.xlu0 %v307, 72
    %v1311 = vpop.permute.xlu0 %1310
    %v1312 = vsel %vm320, %v1309, 0
    %v1314 = vsel %vm320, %v1311, 0
    %1316 = vmatprep.subr.mxu0 0.0
    %1317 = vmatpush1.xpose.msra.mxu0 %v1314
    %1318 = vmatprep.subr.mxu0 0.0
    %1319 = vmatpush1.xpose.msra.mxu0 0.0
    %1320 = vmatprep.subr.mxu0 0.0
    %1321 = vmatpush1.xpose.msra.mxu0 0.0
    %1322 = vmatprep.subr.mxu0 0.0
    %1323 = vmatpush1.xpose.msra.mxu0 0.0
    %1324 = vmatprep.subr.mxu0 0.0
    %1325 = vmatpush1.xpose.msra.mxu0 0.0
    %1326 = vmatprep.subr.mxu0 0.0
    %1327 = vmatpush1.xpose.msra.mxu0 0.0
    %1328 = vmatprep.subr.mxu0 0.0
    %1329 = vmatpush1.xpose.msra.mxu0 0.0
    %1330 = vmatprep.subr.mxu0 0.0
    %1331 = vmatpush1.xpose.msra.mxu0 0.0
    %1332 = vmatprep.subr.mxu0 0.0
    %1333 = vmatpush1.xpose.msra.mxu0 0.0
    %1334 = vmatprep.subr.mxu0 0.0
    %1335 = vmatpush1.xpose.msra.mxu0 0.0
    %1336 = vmatprep.subr.mxu0 0.0
    %1337 = vmatpush1.xpose.msra.mxu0 0.0
    %1338 = vmatprep.subr.mxu0 0.0
    %1339 = vmatpush1.xpose.msra.mxu0 0.0
    %1340 = vmatprep.subr.mxu0 0.0
    %1341 = vmatpush1.xpose.msra.mxu0 0.0
    %1342 = vmatprep.subr.mxu0 0.0
    %1343 = vmatpush1.xpose.msra.mxu0 0.0
    %1344 = vmatprep.subr.mxu0 0.0
    %1345 = vmatpush1.xpose.msra.mxu0 0.0
    %1346 = vmatprep.subr.mxu0 0.0
    %1347 = vmatpush1.xpose.msra.mxu0 0.0
    %1348 = vmatprep.subr.mxu0 0.0
    %1349 = vmatpush1.xpose.msra.mxu0 0.0
    %1350 = vmatprep.subr.mxu0 0.0
    %1351 = vmatpush1.xpose.msra.mxu0 0.0
    %1352 = vmatprep.subr.mxu0 0.0
    %1353 = vmatpush1.xpose.msra.mxu0 0.0
    %1354 = vmatprep.subr.mxu0 0.0
    %1355 = vmatpush1.xpose.msra.mxu0 0.0
    %1356 = vmatprep.subr.mxu0 0.0
    %1357 = vmatpush1.xpose.msra.mxu0 0.0
    %1358 = vmatprep.subr.mxu0 0.0
    %1359 = vmatpush1.xpose.msra.mxu0 0.0
    %1360 = vmatprep.subr.mxu0 0.0
    %1361 = vmatpush1.xpose.msra.mxu0 0.0
    %1362 = vmatprep.subr.mxu0 0.0
    %1363 = vmatpush1.xpose.msra.mxu0 0.0
    %1364 = vmatprep.subr.mxu0 0.0
    %1365 = vmatpush1.xpose.msra.mxu0 0.0
    %1366 = vmatprep.subr.mxu0 0.0
    %1367 = vmatpush1.xpose.msra.mxu0 0.0
    %1368 = vmatprep.subr.mxu0 0.0
    %1369 = vmatpush1.xpose.msra.mxu0 0.0
    %1370 = vmatprep.subr.mxu0 0.0
    %1371 = vmatpush1.xpose.msra.mxu0 0.0
    %1372 = vmatprep.subr.mxu0 0.0
    %1373 = vmatpush1.xpose.msra.mxu0 0.0
    %1374 = vmatprep.subr.mxu0 0.0
    %1375 = vmatpush1.xpose.msra.mxu0 0.0
    %1376 = vmatprep.subr.mxu0 0.0
    %1377 = vmatpush1.xpose.msra.mxu0 0.0
    %1378 = vmatprep.subr.mxu0 0.0
    %1379 = vmatpush1.xpose.msra.mxu0 0.0
    %1380 = vmatprep.mubr.f32.mxu0 0.0
    %1381 = vmatmul.mubr.f32.gmra.mrb[0].mxu0 %v1312
    %v1382 = vpop.f32.mrb[0].mxu0
    %v1383 = vadd.f32 %v176, %v1382
    %v1384 = vpop.f32.mrb[0].mxu0
    %1385 = vdwg.mxu0
    %1386 = vrot.lane.b32.xlu0 %v316, 104
    %v1387 = vpop.permute.xlu0 %1386
    %1388 = vrot.lane.b32.xlu0 %v312, 72
    %v1389 = vpop.permute.xlu0 %1388
    %v1390 = vsel %vm320, %v1387, 0
    %v1392 = vsel %vm320, %v1389, 0
    %1394 = vmatprep.subr.mxu0 0.0
    %1395 = vmatpush1.xpose.msra.mxu0 %v1392
    %1396 = vmatprep.subr.mxu0 0.0
    %1397 = vmatpush1.xpose.msra.mxu0 0.0
    %1398 = vmatprep.subr.mxu0 0.0
    %1399 = vmatpush1.xpose.msra.mxu0 0.0
    %1400 = vmatprep.subr.mxu0 0.0
    %1401 = vmatpush1.xpose.msra.mxu0 0.0
    %1402 = vmatprep.subr.mxu0 0.0
    %1403 = vmatpush1.xpose.msra.mxu0 0.0
    %1404 = vmatprep.subr.mxu0 0.0
    %1405 = vmatpush1.xpose.msra.mxu0 0.0
    %1406 = vmatprep.subr.mxu0 0.0
    %1407 = vmatpush1.xpose.msra.mxu0 0.0
    %1408 = vmatprep.subr.mxu0 0.0
    %1409 = vmatpush1.xpose.msra.mxu0 0.0
    %1410 = vmatprep.subr.mxu0 0.0
    %1411 = vmatpush1.xpose.msra.mxu0 0.0
    %1412 = vmatprep.subr.mxu0 0.0
    %1413 = vmatpush1.xpose.msra.mxu0 0.0
    %1414 = vmatprep.subr.mxu0 0.0
    %1415 = vmatpush1.xpose.msra.mxu0 0.0
    %1416 = vmatprep.subr.mxu0 0.0
    %1417 = vmatpush1.xpose.msra.mxu0 0.0
    %1418 = vmatprep.subr.mxu0 0.0
    %1419 = vmatpush1.xpose.msra.mxu0 0.0
    %1420 = vmatprep.subr.mxu0 0.0
    %1421 = vmatpush1.xpose.msra.mxu0 0.0
    %1422 = vmatprep.subr.mxu0 0.0
    %1423 = vmatpush1.xpose.msra.mxu0 0.0
    %1424 = vmatprep.subr.mxu0 0.0
    %1425 = vmatpush1.xpose.msra.mxu0 0.0
    %1426 = vmatprep.subr.mxu0 0.0
    %1427 = vmatpush1.xpose.msra.mxu0 0.0
    %1428 = vmatprep.subr.mxu0 0.0
    %1429 = vmatpush1.xpose.msra.mxu0 0.0
    %1430 = vmatprep.subr.mxu0 0.0
    %1431 = vmatpush1.xpose.msra.mxu0 0.0
    %1432 = vmatprep.subr.mxu0 0.0
    %1433 = vmatpush1.xpose.msra.mxu0 0.0
    %1434 = vmatprep.subr.mxu0 0.0
    %1435 = vmatpush1.xpose.msra.mxu0 0.0
    %1436 = vmatprep.subr.mxu0 0.0
    %1437 = vmatpush1.xpose.msra.mxu0 0.0
    %1438 = vmatprep.subr.mxu0 0.0
    %1439 = vmatpush1.xpose.msra.mxu0 0.0
    %1440 = vmatprep.subr.mxu0 0.0
    %1441 = vmatpush1.xpose.msra.mxu0 0.0
    %1442 = vmatprep.subr.mxu0 0.0
    %1443 = vmatpush1.xpose.msra.mxu0 0.0
    %1444 = vmatprep.subr.mxu0 0.0
    %1445 = vmatpush1.xpose.msra.mxu0 0.0
    %1446 = vmatprep.subr.mxu0 0.0
    %1447 = vmatpush1.xpose.msra.mxu0 0.0
    %1448 = vmatprep.subr.mxu0 0.0
    %1449 = vmatpush1.xpose.msra.mxu0 0.0
    %1450 = vmatprep.subr.mxu0 0.0
    %1451 = vmatpush1.xpose.msra.mxu0 0.0
    %1452 = vmatprep.subr.mxu0 0.0
    %1453 = vmatpush1.xpose.msra.mxu0 0.0
    %1454 = vmatprep.subr.mxu0 0.0
    %1455 = vmatpush1.xpose.msra.mxu0 0.0
    %1456 = vmatprep.subr.mxu0 0.0
    %1457 = vmatpush1.xpose.msra.mxu0 0.0
    %1458 = vmatprep.mubr.f32.mxu0 0.0
    %1459 = vmatmul.mubr.f32.gmra.mrb[0].mxu0 %v1390
    %v1460 = vpop.f32.mrb[0].mxu0
    %v1461 = vadd.f32 %v176, %v1460
    %v1462 = vpop.f32.mrb[0].mxu0
    %1463 = vdwg.mxu0
    %v1464 = vsel %vm320, %v1383, -inf
    %1465 = vmax.xlane.f32.xlu0 %v1464
    %v1466 = vpop.xlane.xlu0 %1465
    %v1467 = vsel %vm320, %v1461, -inf
    %1468 = vmax.xlane.f32.xlu0 %v1467
    %v1469 = vpop.xlane.xlu0 %1468
    %v1470 = vsub.f32 %v1383, %v1466
    %v1471 = vsub.f32 %v1461, %v1469
    %v1472 = vmul.f32 %v1470, 1.442695
    %v1473 = vpow.pop %v1472
    %v1474 = vmul.f32 %v1471, 1.442695
    %v1475 = vpow.pop %v1474
    %v1476 = vsel %vm320, %v1473, 0.0
    %1477 = vadd.xlane.f32.xlu0 %v1476
    %v1478 = vpop.xlane.xlu0 %1477
    %v1479 = vsel %vm320, %v1475, 0.0
    %1480 = vadd.xlane.f32.xlu0 %v1479
    %v1481 = vpop.xlane.xlu0 %1480
    %v1482 = vrcp.pop %v1478
    %v1483 = vmul.f32 %v1473, %v1482
    %v1484 = vrcp.pop %v1481
    %v1485 = vmul.f32 %v1475, %v1484
    %1486 = vrot.lane.b32.xlu0 %v307, 40
    %v1487 = vpop.permute.xlu0 %1486
    %v1490 = vsel %vm320, %v1483, 0
    %1492 = vmatprep.subr.mxu0 0.0
    %1493 = vmatpush1.msra.mxu0 %v1487
    %1494 = vmatprep.subr.mxu0 0.0
    %1495 = vmatpush1.msra.mxu0 0.0
    %1496 = vmatprep.subr.mxu0 0.0
    %1497 = vmatpush1.msra.mxu0 0.0
    %1498 = vmatprep.subr.mxu0 0.0
    %1499 = vmatpush1.msra.mxu0 0.0
    %1500 = vmatprep.subr.mxu0 0.0
    %1501 = vmatpush1.msra.mxu0 0.0
    %1502 = vmatprep.subr.mxu0 0.0
    %1503 = vmatpush1.msra.mxu0 0.0
    %1504 = vmatprep.subr.mxu0 0.0
    %1505 = vmatpush1.msra.mxu0 0.0
    %1506 = vmatprep.subr.mxu0 0.0
    %1507 = vmatpush1.msra.mxu0 0.0
    %1508 = vmatprep.subr.mxu0 0.0
    %1509 = vmatpush1.msra.mxu0 0.0
    %1510 = vmatprep.subr.mxu0 0.0
    %1511 = vmatpush1.msra.mxu0 0.0
    %1512 = vmatprep.subr.mxu0 0.0
    %1513 = vmatpush1.msra.mxu0 0.0
    %1514 = vmatprep.subr.mxu0 0.0
    %1515 = vmatpush1.msra.mxu0 0.0
    %1516 = vmatprep.subr.mxu0 0.0
    %1517 = vmatpush1.msra.mxu0 0.0
    %1518 = vmatprep.subr.mxu0 0.0
    %1519 = vmatpush1.msra.mxu0 0.0
    %1520 = vmatprep.subr.mxu0 0.0
    %1521 = vmatpush1.msra.mxu0 0.0
    %1522 = vmatprep.subr.mxu0 0.0
    %1523 = vmatpush1.msra.mxu0 0.0
    %1524 = vmatprep.subr.mxu0 0.0
    %1525 = vmatpush1.msra.mxu0 0.0
    %1526 = vmatprep.subr.mxu0 0.0
    %1527 = vmatpush1.msra.mxu0 0.0
    %1528 = vmatprep.subr.mxu0 0.0
    %1529 = vmatpush1.msra.mxu0 0.0
    %1530 = vmatprep.subr.mxu0 0.0
    %1531 = vmatpush1.msra.mxu0 0.0
    %1532 = vmatprep.subr.mxu0 0.0
    %1533 = vmatpush1.msra.mxu0 0.0
    %1534 = vmatprep.subr.mxu0 0.0
    %1535 = vmatpush1.msra.mxu0 0.0
    %1536 = vmatprep.subr.mxu0 0.0
    %1537 = vmatpush1.msra.mxu0 0.0
    %1538 = vmatprep.subr.mxu0 0.0
    %1539 = vmatpush1.msra.mxu0 0.0
    %1540 = vmatprep.subr.mxu0 0.0
    %1541 = vmatpush1.msra.mxu0 0.0
    %1542 = vmatprep.subr.mxu0 0.0
    %1543 = vmatpush1.msra.mxu0 0.0
    %1544 = vmatprep.subr.mxu0 0.0
    %1545 = vmatpush1.msra.mxu0 0.0
    %1546 = vmatprep.subr.mxu0 0.0
    %1547 = vmatpush1.msra.mxu0 0.0
    %1548 = vmatprep.subr.mxu0 0.0
    %1549 = vmatpush1.msra.mxu0 0.0
    %1550 = vmatprep.subr.mxu0 0.0
    %1551 = vmatpush1.msra.mxu0 0.0
    %1552 = vmatprep.subr.mxu0 0.0
    %1553 = vmatpush1.msra.mxu0 0.0
    %1554 = vmatprep.subr.mxu0 0.0
    %1555 = vmatpush1.msra.mxu0 0.0
    %1556 = vmatprep.mubr.f32.mxu0 0.0
    %1557 = vmatmul.mubr.f32.gmra.mrb[0].mxu0 %v1490
    %v1558 = vpop.f32.mrb[0].mxu0
    %v1559 = vadd.f32 0.0, %v1558
    %v1560 = vpop.f32.mrb[0].mxu0
    %1561 = vdwg.mxu0
    %1562 = vrot.lane.b32.xlu0 %v312, 40
    %v1563 = vpop.permute.xlu0 %1562
    %v1566 = vsel %vm320, %v1485, 0
    %1568 = vmatprep.subr.mxu0 0.0
    %1569 = vmatpush1.msra.mxu0 %v1563
    %1570 = vmatprep.subr.mxu0 0.0
    %1571 = vmatpush1.msra.mxu0 0.0
    %1572 = vmatprep.subr.mxu0 0.0
    %1573 = vmatpush1.msra.mxu0 0.0
    %1574 = vmatprep.subr.mxu0 0.0
    %1575 = vmatpush1.msra.mxu0 0.0
    %1576 = vmatprep.subr.mxu0 0.0
    %1577 = vmatpush1.msra.mxu0 0.0
    %1578 = vmatprep.subr.mxu0 0.0
    %1579 = vmatpush1.msra.mxu0 0.0
    %1580 = vmatprep.subr.mxu0 0.0
    %1581 = vmatpush1.msra.mxu0 0.0
    %1582 = vmatprep.subr.mxu0 0.0
    %1583 = vmatpush1.msra.mxu0 0.0
    %1584 = vmatprep.subr.mxu0 0.0
    %1585 = vmatpush1.msra.mxu0 0.0
    %1586 = vmatprep.subr.mxu0 0.0
    %1587 = vmatpush1.msra.mxu0 0.0
    %1588 = vmatprep.subr.mxu0 0.0
    %1589 = vmatpush1.msra.mxu0 0.0
    %1590 = vmatprep.subr.mxu0 0.0
    %1591 = vmatpush1.msra.mxu0 0.0
    %1592 = vmatprep.subr.mxu0 0.0
    %1593 = vmatpush1.msra.mxu0 0.0
    %1594 = vmatprep.subr.mxu0 0.0
    %1595 = vmatpush1.msra.mxu0 0.0
    %1596 = vmatprep.subr.mxu0 0.0
    %1597 = vmatpush1.msra.mxu0 0.0
    %1598 = vmatprep.subr.mxu0 0.0
    %1599 = vmatpush1.msra.mxu0 0.0
    %1600 = vmatprep.subr.mxu0 0.0
    %1601 = vmatpush1.msra.mxu0 0.0
    %1602 = vmatprep.subr.mxu0 0.0
    %1603 = vmatpush1.msra.mxu0 0.0
    %1604 = vmatprep.subr.mxu0 0.0
    %1605 = vmatpush1.msra.mxu0 0.0
    %1606 = vmatprep.subr.mxu0 0.0
    %1607 = vmatpush1.msra.mxu0 0.0
    %1608 = vmatprep.subr.mxu0 0.0
    %1609 = vmatpush1.msra.mxu0 0.0
    %1610 = vmatprep.subr.mxu0 0.0
    %1611 = vmatpush1.msra.mxu0 0.0
    %1612 = vmatprep.subr.mxu0 0.0
    %1613 = vmatpush1.msra.mxu0 0.0
    %1614 = vmatprep.subr.mxu0 0.0
    %1615 = vmatpush1.msra.mxu0 0.0
    %1616 = vmatprep.subr.mxu0 0.0
    %1617 = vmatpush1.msra.mxu0 0.0
    %1618 = vmatprep.subr.mxu0 0.0
    %1619 = vmatpush1.msra.mxu0 0.0
    %1620 = vmatprep.subr.mxu0 0.0
    %1621 = vmatpush1.msra.mxu0 0.0
    %1622 = vmatprep.subr.mxu0 0.0
    %1623 = vmatpush1.msra.mxu0 0.0
    %1624 = vmatprep.subr.mxu0 0.0
    %1625 = vmatpush1.msra.mxu0 0.0
    %1626 = vmatprep.subr.mxu0 0.0
    %1627 = vmatpush1.msra.mxu0 0.0
    %1628 = vmatprep.subr.mxu0 0.0
    %1629 = vmatpush1.msra.mxu0 0.0
    %1630 = vmatprep.subr.mxu0 0.0
    %1631 = vmatpush1.msra.mxu0 0.0
    %1632 = vmatprep.mubr.f32.mxu0 0.0
    %1633 = vmatmul.mubr.f32.gmra.mrb[0].mxu0 %v1566
    %v1634 = vpop.f32.mrb[0].mxu0
    %v1635 = vadd.f32 0.0, %v1634
    %v1636 = vpop.f32.mrb[0].mxu0
    %1637 = vdwg.mxu0
    %1640 = vrot.lane.b32.xlu0 %v899, 8
    %v1641 = vpop.permute.xlu0 %1640
    %1642 = vrot.lane.b32.xlu0 %v975, 8
    %v1643 = vpop.permute.xlu0 %1642
    %1648 = vrot.lane.b32.xlu0 %v1229, 16
    %v1649 = vpop.permute.xlu0 %1648
    %1650 = vrot.lane.b32.xlu0 %v1305, 16
    %v1651 = vpop.permute.xlu0 %1650
    %1656 = vrot.lane.b32.xlu0 %v1559, 24
    %v1657 = vpop.permute.xlu0 %1656
    %1658 = vrot.lane.b32.xlu0 %v1635, 24
    %v1659 = vpop.permute.xlu0 %1658
    %v1662 = vsel %vm320, %v569, %v1641
    %v1663 = vsel %vm320, %v645, %v1643
    %vm1664 = vcmask 130048
    %v1665 = vsel %vm1664, %v1662, %v1649
    %v1666 = vsel %vm1664, %v1663, %v1651
    %vm1667 = vcmask 195584
    %v1668 = vsel %vm1667, %v1665, %v1657
    %v1669 = vsel %vm1667, %v1666, %v1659
    %v1670 = vld [vmem:[%s7] sm:$0xff]
    %v1671 = vld [vmem:[%s7 + $0x8] sm:$0xff]
    %v1672 = vld [vmem:[%s7 + $0x10] sm:$0xff]
    %v1673 = vld [vmem:[%s7 + $0x18] sm:$0xff]
    %v1675 = vsel %vm179, %v1668, 0
    %v1678 = vsel %vm179, %v1669, 0
    %1680 = vmatprep.subr.mxu0 0.0
    %1681 = vmatpush1.msra.mxu0 %v1670
    %1682 = vmatprep.subr.mxu0 0.0
    %1683 = vmatpush1.msra.mxu0 %v1671
    %1684 = vmatprep.subr.mxu0 0.0
    %1685 = vmatpush1.msra.mxu0 %v1672
    %1686 = vmatprep.subr.mxu0 0.0
    %1687 = vmatpush1.msra.mxu0 %v1673
    %1688 = vmatprep.subr.mxu0 0.0
    %1689 = vmatpush1.msra.mxu0 0.0
    %1690 = vmatprep.subr.mxu0 0.0
    %1691 = vmatpush1.msra.mxu0 0.0
    %1692 = vmatprep.subr.mxu0 0.0
    %1693 = vmatpush1.msra.mxu0 0.0
    %1694 = vmatprep.subr.mxu0 0.0
    %1695 = vmatpush1.msra.mxu0 0.0
    %1696 = vmatprep.subr.mxu0 0.0
    %1697 = vmatpush1.msra.mxu0 0.0
    %1698 = vmatprep.subr.mxu0 0.0
    %1699 = vmatpush1.msra.mxu0 0.0
    %1700 = vmatprep.subr.mxu0 0.0
    %1701 = vmatpush1.msra.mxu0 0.0
    %1702 = vmatprep.subr.mxu0 0.0
    %1703 = vmatpush1.msra.mxu0 0.0
    %1704 = vmatprep.subr.mxu0 0.0
    %1705 = vmatpush1.msra.mxu0 0.0
    %1706 = vmatprep.subr.mxu0 0.0
    %1707 = vmatpush1.msra.mxu0 0.0
    %1708 = vmatprep.subr.mxu0 0.0
    %1709 = vmatpush1.msra.mxu0 0.0
    %1710 = vmatprep.subr.mxu0 0.0
    %1711 = vmatpush1.msra.mxu0 0.0
    %1712 = vmatprep.subr.mxu0 0.0
    %1713 = vmatpush1.msra.mxu0 0.0
    %1714 = vmatprep.subr.mxu0 0.0
    %1715 = vmatpush1.msra.mxu0 0.0
    %1716 = vmatprep.subr.mxu0 0.0
    %1717 = vmatpush1.msra.mxu0 0.0
    %1718 = vmatprep.subr.mxu0 0.0
    %1719 = vmatpush1.msra.mxu0 0.0
    %1720 = vmatprep.subr.mxu0 0.0
    %1721 = vmatpush1.msra.mxu0 0.0
    %1722 = vmatprep.subr.mxu0 0.0
    %1723 = vmatpush1.msra.mxu0 0.0
    %1724 = vmatprep.subr.mxu0 0.0
    %1725 = vmatpush1.msra.mxu0 0.0
    %1726 = vmatprep.subr.mxu0 0.0
    %1727 = vmatpush1.msra.mxu0 0.0
    %1728 = vmatprep.subr.mxu0 0.0
    %1729 = vmatpush1.msra.mxu0 0.0
    %1730 = vmatprep.subr.mxu0 0.0
    %1731 = vmatpush1.msra.mxu0 0.0
    %1732 = vmatprep.subr.mxu0 0.0
    %1733 = vmatpush1.msra.mxu0 0.0
    %1734 = vmatprep.subr.mxu0 0.0
    %1735 = vmatpush1.msra.mxu0 0.0
    %1736 = vmatprep.subr.mxu0 0.0
    %1737 = vmatpush1.msra.mxu0 0.0
    %1738 = vmatprep.subr.mxu0 0.0
    %1739 = vmatpush1.msra.mxu0 0.0
    %1740 = vmatprep.subr.mxu0 0.0
    %1741 = vmatpush1.msra.mxu0 0.0
    %1742 = vmatprep.subr.mxu0 0.0
    %1743 = vmatpush1.msra.mxu0 0.0
    %1744 = vmatprep.mubr.f32.mxu0 0.0
    %1745 = vmatmul.mubr.f32.gmra.mrb[0].mxu0 %v1675
    %v1746 = vpop.f32.mrb[0].mxu0
    %v1747 = vadd.f32 0.0, %v1746
    %v1748 = vpop.f32.mrb[0].mxu0
    %1749 = vmatprep.mubr.f32.mxu0 0.0
    %1750 = vmatmul.mubr.f32.gmra.mrb[0].mxu0 %v1678
    %v1751 = vpop.f32.mrb[0].mxu0
    %v1752 = vadd.f32 0.0, %v1751
    %v1753 = vpop.f32.mrb[0].mxu0
    %1754 = vdwg.mxu0
    %v1755 = vadd.f32 %v171, %v1747
    %v1756 = vadd.f32 %v172, %v1752
    %v1757 = vld [vmem:[%s8] sm:$0x1]
    %v1759 = vlaneseq
    %v1760 = vshrl.u32 %v1759, 7
    %v1761 = vsub.s32 0, %v1760
    %v1762 = vrot.slane %v1757, %v1761
    %v1764 = vadd.f32 %v1755, %v1762
    %v1765 = vadd.f32 %v1756, %v1762
    %v1766 = vld [vmem:[%s9] sm:$0x1]
    %v1767 = vld [vmem:[%s10] sm:$0x1]
    %v1768 = vsel %vm179, %v1764, 0.0
    %1769 = vadd.xlane.f32.xlu0 %v1768
    %v1770 = vpop.xlane.xlu0 %1769
    %v1771 = vsel %vm179, %v1765, 0.0
    %1772 = vadd.xlane.f32.xlu0 %v1771
    %v1773 = vpop.xlane.xlu0 %1772
    %v1774 = vmul.f32 %v1770, %v186
    %v1775 = vmul.f32 %v1773, %v186
    %v1776 = vsub.f32 %v1764, %v1774
    %v1777 = vsub.f32 %v1765, %v1775
    %v1778 = vmul.f32 %v1776, %v1776
    %v1779 = vmul.f32 %v1777, %v1777
    %v1780 = vsel %vm179, %v1778, 0.0
    %1781 = vadd.xlane.f32.xlu0 %v1780
    %v1782 = vpop.xlane.xlu0 %1781
    %v1783 = vsel %vm179, %v1779, 0.0
    %1784 = vadd.xlane.f32.xlu0 %v1783
    %v1785 = vpop.xlane.xlu0 %1784
    %v1786 = vmul.f32 %v1782, %v186
    %v1787 = vmul.f32 %v1785, %v186
    %v1788 = vadd.f32 %v1786, 1e-05
    %v1789 = vadd.f32 %v1787, 1e-05
    %v1790 = vrsqrt.pop %v1788
    %v1791 = vrsqrt.pop %v1789
    %v1792 = vmul.f32 %v1776, %v1790
    %v1793 = vmul.f32 %v1777, %v1791
    %v1795 = vlaneseq
    %v1796 = vshrl.u32 %v1795, 7
    %v1797 = vsub.s32 0, %v1796
    %v1798 = vrot.slane %v1766, %v1797
    %v1800 = vmul.f32 %v1792, %v1798
    %v1801 = vmul.f32 %v1793, %v1798
    %v1803 = vlaneseq
    %v1804 = vshrl.u32 %v1803, 7
    %v1805 = vsub.s32 0, %v1804
    %v1806 = vrot.slane %v1767, %v1805
    %v1808 = vadd.f32 %v1800, %v1806
    %v1809 = vadd.f32 %v1801, %v1806
    %v1810 = vld [vmem:[%s11] sm:$0xff]
    %v1811 = vld [vmem:[%s11 + $0x8] sm:$0xff]
    %v1812 = vld [vmem:[%s11 + $0x10] sm:$0xff]
    %v1813 = vld [vmem:[%s11 + $0x18] sm:$0xff]
    %v1814 = vld [vmem:[%s12] sm:$0x1]
    %v1816 = vlaneseq
    %v1817 = vshrl.u32 %v1816, 7
    %v1818 = vsub.s32 0, %v1817
    %v1819 = vrot.slane %v1814, %v1818
    %v1822 = vsel %vm179, %v1808, 0
    %v1825 = vsel %vm179, %v1809, 0
    %1827 = vmatprep.subr.mxu0 0.0
    %1828 = vmatpush1.msra.mxu0 %v1810
    %1829 = vmatprep.subr.mxu0 0.0
    %1830 = vmatpush1.msra.mxu0 %v1811
    %1831 = vmatprep.subr.mxu0 0.0
    %1832 = vmatpush1.msra.mxu0 %v1812
    %1833 = vmatprep.subr.mxu0 0.0
    %1834 = vmatpush1.msra.mxu0 %v1813
    %1835 = vmatprep.subr.mxu0 0.0
    %1836 = vmatpush1.msra.mxu0 0.0
    %1837 = vmatprep.subr.mxu0 0.0
    %1838 = vmatpush1.msra.mxu0 0.0
    %1839 = vmatprep.subr.mxu0 0.0
    %1840 = vmatpush1.msra.mxu0 0.0
    %1841 = vmatprep.subr.mxu0 0.0
    %1842 = vmatpush1.msra.mxu0 0.0
    %1843 = vmatprep.subr.mxu0 0.0
    %1844 = vmatpush1.msra.mxu0 0.0
    %1845 = vmatprep.subr.mxu0 0.0
    %1846 = vmatpush1.msra.mxu0 0.0
    %1847 = vmatprep.subr.mxu0 0.0
    %1848 = vmatpush1.msra.mxu0 0.0
    %1849 = vmatprep.subr.mxu0 0.0
    %1850 = vmatpush1.msra.mxu0 0.0
    %1851 = vmatprep.subr.mxu0 0.0
    %1852 = vmatpush1.msra.mxu0 0.0
    %1853 = vmatprep.subr.mxu0 0.0
    %1854 = vmatpush1.msra.mxu0 0.0
    %1855 = vmatprep.subr.mxu0 0.0
    %1856 = vmatpush1.msra.mxu0 0.0
    %1857 = vmatprep.subr.mxu0 0.0
    %1858 = vmatpush1.msra.mxu0 0.0
    %1859 = vmatprep.subr.mxu0 0.0
    %1860 = vmatpush1.msra.mxu0 0.0
    %1861 = vmatprep.subr.mxu0 0.0
    %1862 = vmatpush1.msra.mxu0 0.0
    %1863 = vmatprep.subr.mxu0 0.0
    %1864 = vmatpush1.msra.mxu0 0.0
    %1865 = vmatprep.subr.mxu0 0.0
    %1866 = vmatpush1.msra.mxu0 0.0
    %1867 = vmatprep.subr.mxu0 0.0
    %1868 = vmatpush1.msra.mxu0 0.0
    %1869 = vmatprep.subr.mxu0 0.0
    %1870 = vmatpush1.msra.mxu0 0.0
    %1871 = vmatprep.subr.mxu0 0.0
    %1872 = vmatpush1.msra.mxu0 0.0
    %1873 = vmatprep.subr.mxu0 0.0
    %1874 = vmatpush1.msra.mxu0 0.0
    %1875 = vmatprep.subr.mxu0 0.0
    %1876 = vmatpush1.msra.mxu0 0.0
    %1877 = vmatprep.subr.mxu0 0.0
    %1878 = vmatpush1.msra.mxu0 0.0
    %1879 = vmatprep.subr.mxu0 0.0
    %1880 = vmatpush1.msra.mxu0 0.0
    %1881 = vmatprep.subr.mxu0 0.0
    %1882 = vmatpush1.msra.mxu0 0.0
    %1883 = vmatprep.subr.mxu0 0.0
    %1884 = vmatpush1.msra.mxu0 0.0
    %1885 = vmatprep.subr.mxu0 0.0
    %1886 = vmatpush1.msra.mxu0 0.0
    %1887 = vmatprep.subr.mxu0 0.0
    %1888 = vmatpush1.msra.mxu0 0.0
    %1889 = vmatprep.subr.mxu0 0.0
    %1890 = vmatpush1.msra.mxu0 0.0
    %1891 = vmatprep.mubr.f32.mxu0 0.0
    %1892 = vmatmul.mubr.f32.gmra.mrb[0].mxu0 %v1822
    %v1893 = vpop.f32.mrb[0].mxu0
    %v1894 = vadd.f32 %v1819, %v1893
    %v1895 = vpop.f32.mrb[0].mxu0
    %1896 = vmatprep.mubr.f32.mxu0 0.0
    %1897 = vmatmul.mubr.f32.gmra.mrb[0].mxu0 %v1825
    %v1898 = vpop.f32.mrb[0].mxu0
    %v1899 = vadd.f32 %v1819, %v1898
    %v1900 = vpop.f32.mrb[0].mxu0
    %1901 = vdwg.mxu0
    %v1902 = vmax.f32 %v1894, 0.0
    %v1903 = vmax.f32 %v1899, 0.0
    %v1904 = vld [vmem:[%s13] sm:$0xff]
    %v1905 = vld [vmem:[%s13 + $0x8] sm:$0xff]
    %v1906 = vld [vmem:[%s13 + $0x10] sm:$0xff]
    %v1907 = vld [vmem:[%s13 + $0x18] sm:$0xff]
    %v1908 = vld [vmem:[%s13 + $0x20] sm:$0xff]
    %v1909 = vld [vmem:[%s13 + $0x28] sm:$0xff]
    %v1910 = vld [vmem:[%s13 + $0x30] sm:$0xff]
    %v1911 = vld [vmem:[%s13 + $0x38] sm:$0xff]
    %v1912 = vld [vmem:[%s13 + $0x40] sm:$0xff]
    %v1913 = vld [vmem:[%s13 + $0x48] sm:$0xff]
    %v1914 = vld [vmem:[%s13 + $0x50] sm:$0xff]
    %v1915 = vld [vmem:[%s13 + $0x58] sm:$0xff]
    %v1916 = vld [vmem:[%s13 + $0x60] sm:$0xff]
    %v1917 = vld [vmem:[%s13 + $0x68] sm:$0xff]
    %v1918 = vld [vmem:[%s13 + $0x70] sm:$0xff]
    %v1919 = vld [vmem:[%s13 + $0x78] sm:$0xff]
    %1920 = vmatprep.subr.mxu0 0.0
    %1921 = vmatpush1.msra.mxu0 %v1904
    %1922 = vmatprep.subr.mxu0 0.0
    %1923 = vmatpush1.msra.mxu0 %v1905
    %1924 = vmatprep.subr.mxu0 0.0
    %1925 = vmatpush1.msra.mxu0 %v1906
    %1926 = vmatprep.subr.mxu0 0.0
    %1927 = vmatpush1.msra.mxu0 %v1907
    %1928 = vmatprep.subr.mxu0 0.0
    %1929 = vmatpush1.msra.mxu0 %v1908
    %1930 = vmatprep.subr.mxu0 0.0
    %1931 = vmatpush1.msra.mxu0 %v1909
    %1932 = vmatprep.subr.mxu0 0.0
    %1933 = vmatpush1.msra.mxu0 %v1910
    %1934 = vmatprep.subr.mxu0 0.0
    %1935 = vmatpush1.msra.mxu0 %v1911
    %1936 = vmatprep.subr.mxu0 0.0
    %1937 = vmatpush1.msra.mxu0 %v1912
    %1938 = vmatprep.subr.mxu0 0.0
    %1939 = vmatpush1.msra.mxu0 %v1913
    %1940 = vmatprep.subr.mxu0 0.0
    %1941 = vmatpush1.msra.mxu0 %v1914
    %1942 = vmatprep.subr.mxu0 0.0
    %1943 = vmatpush1.msra.mxu0 %v1915
    %1944 = vmatprep.subr.mxu0 0.0
    %1945 = vmatpush1.msra.mxu0 %v1916
    %1946 = vmatprep.subr.mxu0 0.0
    %1947 = vmatpush1.msra.mxu0 %v1917
    %1948 = vmatprep.subr.mxu0 0.0
    %1949 = vmatpush1.msra.mxu0 %v1918
    %1950 = vmatprep.subr.mxu0 0.0
    %1951 = vmatpush1.msra.mxu0 %v1919
    %1952 = vmatprep.subr.mxu0 0.0
    %1953 = vmatpush1.msra.mxu0 0.0
    %1954 = vmatprep.subr.mxu0 0.0
    %1955 = vmatpush1.msra.mxu0 0.0
    %1956 = vmatprep.subr.mxu0 0.0
    %1957 = vmatpush1.msra.mxu0 0.0
    %1958 = vmatprep.subr.mxu0 0.0
    %1959 = vmatpush1.msra.mxu0 0.0
    %1960 = vmatprep.subr.mxu0 0.0
    %1961 = vmatpush1.msra.mxu0 0.0
    %1962 = vmatprep.subr.mxu0 0.0
    %1963 = vmatpush1.msra.mxu0 0.0
    %1964 = vmatprep.subr.mxu0 0.0
    %1965 = vmatpush1.msra.mxu0 0.0
    %1966 = vmatprep.subr.mxu0 0.0
    %1967 = vmatpush1.msra.mxu0 0.0
    %1968 = vmatprep.subr.mxu0 0.0
    %1969 = vmatpush1.msra.mxu0 0.0
    %1970 = vmatprep.subr.mxu0 0.0
    %1971 = vmatpush1.msra.mxu0 0.0
    %1972 = vmatprep.subr.mxu0 0.0
    %1973 = vmatpush1.msra.mxu0 0.0
    %1974 = vmatprep.subr.mxu0 0.0
    %1975 = vmatpush1.msra.mxu0 0.0
    %1976 = vmatprep.subr.mxu0 0.0
    %1977 = vmatpush1.msra.mxu0 0.0
    %1978 = vmatprep.subr.mxu0 0.0
    %1979 = vmatpush1.msra.mxu0 0.0
    %1980 = vmatprep.subr.mxu0 0.0
    %1981 = vmatpush1.msra.mxu0 0.0
    %1982 = vmatprep.subr.mxu0 0.0
    %1983 = vmatpush1.msra.mxu0 0.0
    %1984 = vmatprep.mubr.f32.mxu0 0.0
    %1985 = vmatmul.mubr.f32.gmra.mrb[0].mxu0 %v1902
    %v1986 = vpop.f32.mrb[0].mxu0
    %v1987 = vadd.f32 0.0, %v1986
    %v1988 = vpop.f32.mrb[0].mxu0
    %1989 = vmatprep.mubr.f32.mxu0 0.0
    %1990 = vmatmul.mubr.f32.gmra.mrb[0].mxu0 %v1903
    %v1991 = vpop.f32.mrb[0].mxu0
    %v1992 = vadd.f32 0.0, %v1991
    %v1993 = vpop.f32.mrb[0].mxu0
    %1994 = vdwg.mxu0
    %v1995 = vadd.f32 %v1764, %v1987
    %v1996 = vadd.f32 %v1765, %v1992
    %v1997 = vld [vmem:[%s14] sm:$0x1]
    %v1999 = vlaneseq
    %v2000 = vshrl.u32 %v1999, 7
    %v2001 = vsub.s32 0, %v2000
    %v2002 = vrot.slane %v1997, %v2001
    %v2004 = vadd.f32 %v1995, %v2002
    %v2005 = vadd.f32 %v1996, %v2002
    %s2006 = scalar_lea.vmem %s3, 1
    %v2007 = vld [vmem:[%s2006] sm:$0x1]
    %s2008 = scalar_lea.vmem %s4, 1
    %v2009 = vld [vmem:[%s2008] sm:$0x1]
    %v2010 = vsel %vm179, %v2004, 0.0
    %2011 = vadd.xlane.f32.xlu0 %v2010
    %v2012 = vpop.xlane.xlu0 %2011
    %v2013 = vsel %vm179, %v2005, 0.0
    %2014 = vadd.xlane.f32.xlu0 %v2013
    %v2015 = vpop.xlane.xlu0 %2014
    %v2016 = vmul.f32 %v2012, %v186
    %v2017 = vmul.f32 %v2015, %v186
    %v2018 = vsub.f32 %v2004, %v2016
    %v2019 = vsub.f32 %v2005, %v2017
    %v2020 = vmul.f32 %v2018, %v2018
    %v2021 = vmul.f32 %v2019, %v2019
    %v2022 = vsel %vm179, %v2020, 0.0
    %2023 = vadd.xlane.f32.xlu0 %v2022
    %v2024 = vpop.xlane.xlu0 %2023
    %v2025 = vsel %vm179, %v2021, 0.0
    %2026 = vadd.xlane.f32.xlu0 %v2025
    %v2027 = vpop.xlane.xlu0 %2026
    %v2028 = vmul.f32 %v2024, %v186
    %v2029 = vmul.f32 %v2027, %v186
    %v2030 = vadd.f32 %v2028, 1e-05
    %v2031 = vadd.f32 %v2029, 1e-05
    %v2032 = vrsqrt.pop %v2030
    %v2033 = vrsqrt.pop %v2031
    %v2034 = vmul.f32 %v2018, %v2032
    %v2035 = vmul.f32 %v2019, %v2033
    %v2037 = vlaneseq
    %v2038 = vshrl.u32 %v2037, 7
    %v2039 = vsub.s32 0, %v2038
    %v2040 = vrot.slane %v2007, %v2039
    %v2042 = vmul.f32 %v2034, %v2040
    %v2043 = vmul.f32 %v2035, %v2040
    %v2045 = vlaneseq
    %v2046 = vshrl.u32 %v2045, 7
    %v2047 = vsub.s32 0, %v2046
    %v2048 = vrot.slane %v2009, %v2047
    %v2050 = vadd.f32 %v2042, %v2048
    %v2051 = vadd.f32 %v2043, %v2048
    %s2052 = scalar_lea.vmem %s5, 32
    %v2053 = vld [vmem:[%s2052] sm:$0xff]
    %v2054 = vld [vmem:[%s2052 + $0x8] sm:$0xff]
    %v2055 = vld [vmem:[%s2052 + $0x10] sm:$0xff]
    %v2056 = vld [vmem:[%s2052 + $0x18] sm:$0xff]
    %s2057 = scalar_lea.vmem %s6, 1
    %v2058 = vld [vmem:[%s2057] sm:$0x1]
    %v2060 = vlaneseq
    %v2061 = vshrl.u32 %v2060, 7
    %v2062 = vsub.s32 0, %v2061
    %v2063 = vrot.slane %v2058, %v2062
    %v2066 = vsel %vm179, %v2050, 0
    %v2069 = vsel %vm179, %v2051, 0
    %2071 = vmatprep.subr.mxu0 0.0
    %2072 = vmatpush1.msra.mxu0 %v2053
    %2073 = vmatprep.subr.mxu0 0.0
    %2074 = vmatpush1.msra.mxu0 %v2054
    %2075 = vmatprep.subr.mxu0 0.0
    %2076 = vmatpush1.msra.mxu0 %v2055
    %2077 = vmatprep.subr.mxu0 0.0
    %2078 = vmatpush1.msra.mxu0 %v2056
    %2079 = vmatprep.subr.mxu0 0.0
    %2080 = vmatpush1.msra.mxu0 0.0
    %2081 = vmatprep.subr.mxu0 0.0
    %2082 = vmatpush1.msra.mxu0 0.0
    %2083 = vmatprep.subr.mxu0 0.0
    %2084 = vmatpush1.msra.mxu0 0.0
    %2085 = vmatprep.subr.mxu0 0.0
    %2086 = vmatpush1.msra.mxu0 0.0
    %2087 = vmatprep.subr.mxu0 0.0
    %2088 = vmatpush1.msra.mxu0 0.0
    %2089 = vmatprep.subr.mxu0 0.0
    %2090 = vmatpush1.msra.mxu0 0.0
    %2091 = vmatprep.subr.mxu0 0.0
    %2092 = vmatpush1.msra.mxu0 0.0
    %2093 = vmatprep.subr.mxu0 0.0
    %2094 = vmatpush1.msra.mxu0 0.0
    %2095 = vmatprep.subr.mxu0 0.0
    %2096 = vmatpush1.msra.mxu0 0.0
    %2097 = vmatprep.subr.mxu0 0.0
    %2098 = vmatpush1.msra.mxu0 0.0
    %2099 = vmatprep.subr.mxu0 0.0
    %2100 = vmatpush1.msra.mxu0 0.0
    %2101 = vmatprep.subr.mxu0 0.0
    %2102 = vmatpush1.msra.mxu0 0.0
    %2103 = vmatprep.subr.mxu0 0.0
    %2104 = vmatpush1.msra.mxu0 0.0
    %2105 = vmatprep.subr.mxu0 0.0
    %2106 = vmatpush1.msra.mxu0 0.0
    %2107 = vmatprep.subr.mxu0 0.0
    %2108 = vmatpush1.msra.mxu0 0.0
    %2109 = vmatprep.subr.mxu0 0.0
    %2110 = vmatpush1.msra.mxu0 0.0
    %2111 = vmatprep.subr.mxu0 0.0
    %2112 = vmatpush1.msra.mxu0 0.0
    %2113 = vmatprep.subr.mxu0 0.0
    %2114 = vmatpush1.msra.mxu0 0.0
    %2115 = vmatprep.subr.mxu0 0.0
    %2116 = vmatpush1.msra.mxu0 0.0
    %2117 = vmatprep.subr.mxu0 0.0
    %2118 = vmatpush1.msra.mxu0 0.0
    %2119 = vmatprep.subr.mxu0 0.0
    %2120 = vmatpush1.msra.mxu0 0.0
    %2121 = vmatprep.subr.mxu0 0.0
    %2122 = vmatpush1.msra.mxu0 0.0
    %2123 = vmatprep.subr.mxu0 0.0
    %2124 = vmatpush1.msra.mxu0 0.0
    %2125 = vmatprep.subr.mxu0 0.0
    %2126 = vmatpush1.msra.mxu0 0.0
    %2127 = vmatprep.subr.mxu0 0.0
    %2128 = vmatpush1.msra.mxu0 0.0
    %2129 = vmatprep.subr.mxu0 0.0
    %2130 = vmatpush1.msra.mxu0 0.0
    %2131 = vmatprep.subr.mxu0 0.0
    %2132 = vmatpush1.msra.mxu0 0.0
    %2133 = vmatprep.subr.mxu0 0.0
    %2134 = vmatpush1.msra.mxu0 0.0
    %2135 = vmatprep.mubr.f32.mxu0 0.0
    %2136 = vmatmul.mubr.f32.gmra.mrb[0].mxu0 %v2066
    %v2137 = vpop.f32.mrb[0].mxu0
    %v2138 = vadd.f32 %v2063, %v2137
    %v2139 = vpop.f32.mrb[0].mxu0
    %2140 = vmatprep.mubr.f32.mxu0 0.0
    %2141 = vmatmul.mubr.f32.gmra.mrb[0].mxu0 %v2069
    %v2142 = vpop.f32.mrb[0].mxu0
    %v2143 = vadd.f32 %v2063, %v2142
    %v2144 = vpop.f32.mrb[0].mxu0
    %2145 = vdwg.mxu0
    %v2146 = vmul.f32 %v2138, 0.17677669
    %v2147 = vmul.f32 %v2143, 0.17677669
    %2149 = vrot.lane.b32.xlu0 %v2138, 96
    %v2150 = vpop.permute.xlu0 %2149
    %v2152 = vsel %vm320, %v2146, 0
    %v2154 = vsel %vm320, %v2150, 0
    %2156 = vmatprep.subr.mxu0 0.0
    %2157 = vmatpush1.xpose.msra.mxu0 %v2154
    %2158 = vmatprep.subr.mxu0 0.0
    %2159 = vmatpush1.xpose.msra.mxu0 0.0
    %2160 = vmatprep.subr.mxu0 0.0
    %2161 = vmatpush1.xpose.msra.mxu0 0.0
    %2162 = vmatprep.subr.mxu0 0.0
    %2163 = vmatpush1.xpose.msra.mxu0 0.0
    %2164 = vmatprep.subr.mxu0 0.0
    %2165 = vmatpush1.xpose.msra.mxu0 0.0
    %2166 = vmatprep.subr.mxu0 0.0
    %2167 = vmatpush1.xpose.msra.mxu0 0.0
    %2168 = vmatprep.subr.mxu0 0.0
    %2169 = vmatpush1.xpose.msra.mxu0 0.0
    %2170 = vmatprep.subr.mxu0 0.0
    %2171 = vmatpush1.xpose.msra.mxu0 0.0
    %2172 = vmatprep.subr.mxu0 0.0
    %2173 = vmatpush1.xpose.msra.mxu0 0.0
    %2174 = vmatprep.subr.mxu0 0.0
    %2175 = vmatpush1.xpose.msra.mxu0 0.0
    %2176 = vmatprep.subr.mxu0 0.0
    %2177 = vmatpush1.xpose.msra.mxu0 0.0
    %2178 = vmatprep.subr.mxu0 0.0
    %2179 = vmatpush1.xpose.msra.mxu0 0.0
    %2180 = vmatprep.subr.mxu0 0.0
    %2181 = vmatpush1.xpose.msra.mxu0 0.0
    %2182 = vmatprep.subr.mxu0 0.0
    %2183 = vmatpush1.xpose.msra.mxu0 0.0
    %2184 = vmatprep.subr.mxu0 0.0
    %2185 = vmatpush1.xpose.msra.mxu0 0.0
    %2186 = vmatprep.subr.mxu0 0.0
    %2187 = vmatpush1.xpose.msra.mxu0 0.0
    %2188 = vmatprep.subr.mxu0 0.0
    %2189 = vmatpush1.xpose.msra.mxu0 0.0
    %2190 = vmatprep.subr.mxu0 0.0
    %2191 = vmatpush1.xpose.msra.mxu0 0.0
    %2192 = vmatprep.subr.mxu0 0.0
    %2193 = vmatpush1.xpose.msra.mxu0 0.0
    %2194 = vmatprep.subr.mxu0 0.0
    %2195 = vmatpush1.xpose.msra.mxu0 0.0
    %2196 = vmatprep.subr.mxu0 0.0
    %2197 = vmatpush1.xpose.msra.mxu0 0.0
    %2198 = vmatprep.subr.mxu0 0.0
    %2199 = vmatpush1.xpose.msra.mxu0 0.0
    %2200 = vmatprep.subr.mxu0 0.0
    %2201 = vmatpush1.xpose.msra.mxu0 0.0
    %2202 = vmatprep.subr.mxu0 0.0
    %2203 = vmatpush1.xpose.msra.mxu0 0.0
    %2204 = vmatprep.subr.mxu0 0.0
    %2205 = vmatpush1.xpose.msra.mxu0 0.0
    %2206 = vmatprep.subr.mxu0 0.0
    %2207 = vmatpush1.xpose.msra.mxu0 0.0
    %2208 = vmatprep.subr.mxu0 0.0
    %2209 = vmatpush1.xpose.msra.mxu0 0.0
    %2210 = vmatprep.subr.mxu0 0.0
    %2211 = vmatpush1.xpose.msra.mxu0 0.0
    %2212 = vmatprep.subr.mxu0 0.0
    %2213 = vmatpush1.xpose.msra.mxu0 0.0
    %2214 = vmatprep.subr.mxu0 0.0
    %2215 = vmatpush1.xpose.msra.mxu0 0.0
    %2216 = vmatprep.subr.mxu0 0.0
    %2217 = vmatpush1.xpose.msra.mxu0 0.0
    %2218 = vmatprep.subr.mxu0 0.0
    %2219 = vmatpush1.xpose.msra.mxu0 0.0
    %2220 = vmatprep.mubr.f32.mxu0 0.0
    %2221 = vmatmul.mubr.f32.gmra.mrb[0].mxu0 %v2152
    %v2222 = vpop.f32.mrb[0].mxu0
    %v2223 = vadd.f32 %v176, %v2222
    %v2224 = vpop.f32.mrb[0].mxu0
    %2225 = vdwg.mxu0
    %2227 = vrot.lane.b32.xlu0 %v2143, 96
    %v2228 = vpop.permute.xlu0 %2227
    %v2230 = vsel %vm320, %v2147, 0
    %v2232 = vsel %vm320, %v2228, 0
    %2234 = vmatprep.subr.mxu0 0.0
    %2235 = vmatpush1.xpose.msra.mxu0 %v2232
    %2236 = vmatprep.subr.mxu0 0.0
    %2237 = vmatpush1.xpose.msra.mxu0 0.0
    %2238 = vmatprep.subr.mxu0 0.0
    %2239 = vmatpush1.xpose.msra.mxu0 0.0
    %2240 = vmatprep.subr.mxu0 0.0
    %2241 = vmatpush1.xpose.msra.mxu0 0.0
    %2242 = vmatprep.subr.mxu0 0.0
    %2243 = vmatpush1.xpose.msra.mxu0 0.0
    %2244 = vmatprep.subr.mxu0 0.0
    %2245 = vmatpush1.xpose.msra.mxu0 0.0
    %2246 = vmatprep.subr.mxu0 0.0
    %2247 = vmatpush1.xpose.msra.mxu0 0.0
    %2248 = vmatprep.subr.mxu0 0.0
    %2249 = vmatpush1.xpose.msra.mxu0 0.0
    %2250 = vmatprep.subr.mxu0 0.0
    %2251 = vmatpush1.xpose.msra.mxu0 0.0
    %2252 = vmatprep.subr.mxu0 0.0
    %2253 = vmatpush1.xpose.msra.mxu0 0.0
    %2254 = vmatprep.subr.mxu0 0.0
    %2255 = vmatpush1.xpose.msra.mxu0 0.0
    %2256 = vmatprep.subr.mxu0 0.0
    %2257 = vmatpush1.xpose.msra.mxu0 0.0
    %2258 = vmatprep.subr.mxu0 0.0
    %2259 = vmatpush1.xpose.msra.mxu0 0.0
    %2260 = vmatprep.subr.mxu0 0.0
    %2261 = vmatpush1.xpose.msra.mxu0 0.0
    %2262 = vmatprep.subr.mxu0 0.0
    %2263 = vmatpush1.xpose.msra.mxu0 0.0
    %2264 = vmatprep.subr.mxu0 0.0
    %2265 = vmatpush1.xpose.msra.mxu0 0.0
    %2266 = vmatprep.subr.mxu0 0.0
    %2267 = vmatpush1.xpose.msra.mxu0 0.0
    %2268 = vmatprep.subr.mxu0 0.0
    %2269 = vmatpush1.xpose.msra.mxu0 0.0
    %2270 = vmatprep.subr.mxu0 0.0
    %2271 = vmatpush1.xpose.msra.mxu0 0.0
    %2272 = vmatprep.subr.mxu0 0.0
    %2273 = vmatpush1.xpose.msra.mxu0 0.0
    %2274 = vmatprep.subr.mxu0 0.0
    %2275 = vmatpush1.xpose.msra.mxu0 0.0
    %2276 = vmatprep.subr.mxu0 0.0
    %2277 = vmatpush1.xpose.msra.mxu0 0.0
    %2278 = vmatprep.subr.mxu0 0.0
    %2279 = vmatpush1.xpose.msra.mxu0 0.0
    %2280 = vmatprep.subr.mxu0 0.0
    %2281 = vmatpush1.xpose.msra.mxu0 0.0
    %2282 = vmatprep.subr.mxu0 0.0
    %2283 = vmatpush1.xpose.msra.mxu0 0.0
    %2284 = vmatprep.subr.mxu0 0.0
    %2285 = vmatpush1.xpose.msra.mxu0 0.0
    %2286 = vmatprep.subr.mxu0 0.0
    %2287 = vmatpush1.xpose.msra.mxu0 0.0
    %2288 = vmatprep.subr.mxu0 0.0
    %2289 = vmatpush1.xpose.msra.mxu0 0.0
    %2290 = vmatprep.subr.mxu0 0.0
    %2291 = vmatpush1.xpose.msra.mxu0 0.0
    %2292 = vmatprep.subr.mxu0 0.0
    %2293 = vmatpush1.xpose.msra.mxu0 0.0
    %2294 = vmatprep.subr.mxu0 0.0
    %2295 = vmatpush1.xpose.msra.mxu0 0.0
    %2296 = vmatprep.subr.mxu0 0.0
    %2297 = vmatpush1.xpose.msra.mxu0 0.0
    %2298 = vmatprep.mubr.f32.mxu0 0.0
    %2299 = vmatmul.mubr.f32.gmra.mrb[0].mxu0 %v2230
    %v2300 = vpop.f32.mrb[0].mxu0
    %v2301 = vadd.f32 %v176, %v2300
    %v2302 = vpop.f32.mrb[0].mxu0
    %2303 = vdwg.mxu0
    %v2304 = vsel %vm320, %v2223, -inf
    %2305 = vmax.xlane.f32.xlu0 %v2304
    %v2306 = vpop.xlane.xlu0 %2305
    %v2307 = vsel %vm320, %v2301, -inf
    %2308 = vmax.xlane.f32.xlu0 %v2307
    %v2309 = vpop.xlane.xlu0 %2308
    %v2310 = vsub.f32 %v2223, %v2306
    %v2311 = vsub.f32 %v2301, %v2309
    %v2312 = vmul.f32 %v2310, 1.442695
    %v2313 = vpow.pop %v2312
    %v2314 = vmul.f32 %v2311, 1.442695
    %v2315 = vpow.pop %v2314
    %v2316 = vsel %vm320, %v2313, 0.0
    %2317 = vadd.xlane.f32.xlu0 %v2316
    %v2318 = vpop.xlane.xlu0 %2317
    %v2319 = vsel %vm320, %v2315, 0.0
    %2320 = vadd.xlane.f32.xlu0 %v2319
    %v2321 = vpop.xlane.xlu0 %2320
    %v2322 = vrcp.pop %v2318
    %v2323 = vmul.f32 %v2313, %v2322
    %v2324 = vrcp.pop %v2321
    %v2325 = vmul.f32 %v2315, %v2324
    %2326 = vrot.lane.b32.xlu0 %v2138, 64
    %v2327 = vpop.permute.xlu0 %2326
    %v2330 = vsel %vm320, %v2323, 0
    %2332 = vmatprep.subr.mxu0 0.0
    %2333 = vmatpush1.msra.mxu0 %v2327
    %2334 = vmatprep.subr.mxu0 0.0
    %2335 = vmatpush1.msra.mxu0 0.0
    %2336 = vmatprep.subr.mxu0 0.0
    %2337 = vmatpush1.msra.mxu0 0.0
    %2338 = vmatprep.subr.mxu0 0.0
    %2339 = vmatpush1.msra.mxu0 0.0
    %2340 = vmatprep.subr.mxu0 0.0
    %2341 = vmatpush1.msra.mxu0 0.0
    %2342 = vmatprep.subr.mxu0 0.0
    %2343 = vmatpush1.msra.mxu0 0.0
    %2344 = vmatprep.subr.mxu0 0.0
    %2345 = vmatpush1.msra.mxu0 0.0
    %2346 = vmatprep.subr.mxu0 0.0
    %2347 = vmatpush1.msra.mxu0 0.0
    %2348 = vmatprep.subr.mxu0 0.0
    %2349 = vmatpush1.msra.mxu0 0.0
    %2350 = vmatprep.subr.mxu0 0.0
    %2351 = vmatpush1.msra.mxu0 0.0
    %2352 = vmatprep.subr.mxu0 0.0
    %2353 = vmatpush1.msra.mxu0 0.0
    %2354 = vmatprep.subr.mxu0 0.0
    %2355 = vmatpush1.msra.mxu0 0.0
    %2356 = vmatprep.subr.mxu0 0.0
    %2357 = vmatpush1.msra.mxu0 0.0
    %2358 = vmatprep.subr.mxu0 0.0
    %2359 = vmatpush1.msra.mxu0 0.0
    %2360 = vmatprep.subr.mxu0 0.0
    %2361 = vmatpush1.msra.mxu0 0.0
    %2362 = vmatprep.subr.mxu0 0.0
    %2363 = vmatpush1.msra.mxu0 0.0
    %2364 = vmatprep.subr.mxu0 0.0
    %2365 = vmatpush1.msra.mxu0 0.0
    %2366 = vmatprep.subr.mxu0 0.0
    %2367 = vmatpush1.msra.mxu0 0.0
    %2368 = vmatprep.subr.mxu0 0.0
    %2369 = vmatpush1.msra.mxu0 0.0
    %2370 = vmatprep.subr.mxu0 0.0
    %2371 = vmatpush1.msra.mxu0 0.0
    %2372 = vmatprep.subr.mxu0 0.0
    %2373 = vmatpush1.msra.mxu0 0.0
    %2374 = vmatprep.subr.mxu0 0.0
    %2375 = vmatpush1.msra.mxu0 0.0
    %2376 = vmatprep.subr.mxu0 0.0
    %2377 = vmatpush1.msra.mxu0 0.0
    %2378 = vmatprep.subr.mxu0 0.0
    %2379 = vmatpush1.msra.mxu0 0.0
    %2380 = vmatprep.subr.mxu0 0.0
    %2381 = vmatpush1.msra.mxu0 0.0
    %2382 = vmatprep.subr.mxu0 0.0
    %2383 = vmatpush1.msra.mxu0 0.0
    %2384 = vmatprep.subr.mxu0 0.0
    %2385 = vmatpush1.msra.mxu0 0.0
    %2386 = vmatprep.subr.mxu0 0.0
    %2387 = vmatpush1.msra.mxu0 0.0
    %2388 = vmatprep.subr.mxu0 0.0
    %2389 = vmatpush1.msra.mxu0 0.0
    %2390 = vmatprep.subr.mxu0 0.0
    %2391 = vmatpush1.msra.mxu0 0.0
    %2392 = vmatprep.subr.mxu0 0.0
    %2393 = vmatpush1.msra.mxu0 0.0
    %2394 = vmatprep.subr.mxu0 0.0
    %2395 = vmatpush1.msra.mxu0 0.0
    %2396 = vmatprep.mubr.f32.mxu0 0.0
    %2397 = vmatmul.mubr.f32.gmra.mrb[0].mxu0 %v2330
    %v2398 = vpop.f32.mrb[0].mxu0
    %v2399 = vadd.f32 0.0, %v2398
    %v2400 = vpop.f32.mrb[0].mxu0
    %2401 = vdwg.mxu0
    %2402 = vrot.lane.b32.xlu0 %v2143, 64
    %v2403 = vpop.permute.xlu0 %2402
    %v2406 = vsel %vm320, %v2325, 0
    %2408 = vmatprep.subr.mxu0 0.0
    %2409 = vmatpush1.msra.mxu0 %v2403
    %2410 = vmatprep.subr.mxu0 0.0
    %2411 = vmatpush1.msra.mxu0 0.0
    %2412 = vmatprep.subr.mxu0 0.0
    %2413 = vmatpush1.msra.mxu0 0.0
    %2414 = vmatprep.subr.mxu0 0.0
    %2415 = vmatpush1.msra.mxu0 0.0
    %2416 = vmatprep.subr.mxu0 0.0
    %2417 = vmatpush1.msra.mxu0 0.0
    %2418 = vmatprep.subr.mxu0 0.0
    %2419 = vmatpush1.msra.mxu0 0.0
    %2420 = vmatprep.subr.mxu0 0.0
    %2421 = vmatpush1.msra.mxu0 0.0
    %2422 = vmatprep.subr.mxu0 0.0
    %2423 = vmatpush1.msra.mxu0 0.0
    %2424 = vmatprep.subr.mxu0 0.0
    %2425 = vmatpush1.msra.mxu0 0.0
    %2426 = vmatprep.subr.mxu0 0.0
    %2427 = vmatpush1.msra.mxu0 0.0
    %2428 = vmatprep.subr.mxu0 0.0
    %2429 = vmatpush1.msra.mxu0 0.0
    %2430 = vmatprep.subr.mxu0 0.0
    %2431 = vmatpush1.msra.mxu0 0.0
    %2432 = vmatprep.subr.mxu0 0.0
    %2433 = vmatpush1.msra.mxu0 0.0
    %2434 = vmatprep.subr.mxu0 0.0
    %2435 = vmatpush1.msra.mxu0 0.0
    %2436 = vmatprep.subr.mxu0 0.0
    %2437 = vmatpush1.msra.mxu0 0.0
    %2438 = vmatprep.subr.mxu0 0.0
    %2439 = vmatpush1.msra.mxu0 0.0
    %2440 = vmatprep.subr.mxu0 0.0
    %2441 = vmatpush1.msra.mxu0 0.0
    %2442 = vmatprep.subr.mxu0 0.0
    %2443 = vmatpush1.msra.mxu0 0.0
    %2444 = vmatprep.subr.mxu0 0.0
    %2445 = vmatpush1.msra.mxu0 0.0
    %2446 = vmatprep.subr.mxu0 0.0
    %2447 = vmatpush1.msra.mxu0 0.0
    %2448 = vmatprep.subr.mxu0 0.0
    %2449 = vmatpush1.msra.mxu0 0.0
    %2450 = vmatprep.subr.mxu0 0.0
    %2451 = vmatpush1.msra.mxu0 0.0
    %2452 = vmatprep.subr.mxu0 0.0
    %2453 = vmatpush1.msra.mxu0 0.0
    %2454 = vmatprep.subr.mxu0 0.0
    %2455 = vmatpush1.msra.mxu0 0.0
    %2456 = vmatprep.subr.mxu0 0.0
    %2457 = vmatpush1.msra.mxu0 0.0
    %2458 = vmatprep.subr.mxu0 0.0
    %2459 = vmatpush1.msra.mxu0 0.0
    %2460 = vmatprep.subr.mxu0 0.0
    %2461 = vmatpush1.msra.mxu0 0.0
    %2462 = vmatprep.subr.mxu0 0.0
    %2463 = vmatpush1.msra.mxu0 0.0
    %2464 = vmatprep.subr.mxu0 0.0
    %2465 = vmatpush1.msra.mxu0 0.0
    %2466 = vmatprep.subr.mxu0 0.0
    %2467 = vmatpush1.msra.mxu0 0.0
    %2468 = vmatprep.subr.mxu0 0.0
    %2469 = vmatpush1.msra.mxu0 0.0
    %2470 = vmatprep.subr.mxu0 0.0
    %2471 = vmatpush1.msra.mxu0 0.0
    %2472 = vmatprep.mubr.f32.mxu0 0.0
    %2473 = vmatmul.mubr.f32.gmra.mrb[0].mxu0 %v2406
    %v2474 = vpop.f32.mrb[0].mxu0
    %v2475 = vadd.f32 0.0, %v2474
    %v2476 = vpop.f32.mrb[0].mxu0
    %2477 = vdwg.mxu0
    %2478 = vrot.lane.b32.xlu0 %v2146, 120
    %v2479 = vpop.permute.xlu0 %2478
    %2480 = vrot.lane.b32.xlu0 %v2138, 88
    %v2481 = vpop.permute.xlu0 %2480
    %v2482 = vsel %vm320, %v2479, 0
    %v2484 = vsel %vm320, %v2481, 0
    %2486 = vmatprep.subr.mxu0 0.0
    %2487 = vmatpush1.xpose.msra.mxu0 %v2484
    %2488 = vmatprep.subr.mxu0 0.0
    %2489 = vmatpush1.xpose.msra.mxu0 0.0
    %2490 = vmatprep.subr.mxu0 0.0
    %2491 = vmatpush1.xpose.msra.mxu0 0.0
    %2492 = vmatprep.subr.mxu0 0.0
    %2493 = vmatpush1.xpose.msra.mxu0 0.0
    %2494 = vmatprep.subr.mxu0 0.0
    %2495 = vmatpush1.xpose.msra.mxu0 0.0
    %2496 = vmatprep.subr.mxu0 0.0
    %2497 = vmatpush1.xpose.msra.mxu0 0.0
    %2498 = vmatprep.subr.mxu0 0.0
    %2499 = vmatpush1.xpose.msra.mxu0 0.0
    %2500 = vmatprep.subr.mxu0 0.0
    %2501 = vmatpush1.xpose.msra.mxu0 0.0
    %2502 = vmatprep.subr.mxu0 0.0
    %2503 = vmatpush1.xpose.msra.mxu0 0.0
    %2504 = vmatprep.subr.mxu0 0.0
    %2505 = vmatpush1.xpose.msra.mxu0 0.0
    %2506 = vmatprep.subr.mxu0 0.0
    %2507 = vmatpush1.xpose.msra.mxu0 0.0
    %2508 = vmatprep.subr.mxu0 0.0
    %2509 = vmatpush1.xpose.msra.mxu0 0.0
    %2510 = vmatprep.subr.mxu0 0.0
    %2511 = vmatpush1.xpose.msra.mxu0 0.0
    %2512 = vmatprep.subr.mxu0 0.0
    %2513 = vmatpush1.xpose.msra.mxu0 0.0
    %2514 = vmatprep.subr.mxu0 0.0
    %2515 = vmatpush1.xpose.msra.mxu0 0.0
    %2516 = vmatprep.subr.mxu0 0.0
    %2517 = vmatpush1.xpose.msra.mxu0 0.0
    %2518 = vmatprep.subr.mxu0 0.0
    %2519 = vmatpush1.xpose.msra.mxu0 0.0
    %2520 = vmatprep.subr.mxu0 0.0
    %2521 = vmatpush1.xpose.msra.mxu0 0.0
    %2522 = vmatprep.subr.mxu0 0.0
    %2523 = vmatpush1.xpose.msra.mxu0 0.0
    %2524 = vmatprep.subr.mxu0 0.0
    %2525 = vmatpush1.xpose.msra.mxu0 0.0
    %2526 = vmatprep.subr.mxu0 0.0
    %2527 = vmatpush1.xpose.msra.mxu0 0.0
    %2528 = vmatprep.subr.mxu0 0.0
    %2529 = vmatpush1.xpose.msra.mxu0 0.0
    %2530 = vmatprep.subr.mxu0 0.0
    %2531 = vmatpush1.xpose.msra.mxu0 0.0
    %2532 = vmatprep.subr.mxu0 0.0
    %2533 = vmatpush1.xpose.msra.mxu0 0.0
    %2534 = vmatprep.subr.mxu0 0.0
    %2535 = vmatpush1.xpose.msra.mxu0 0.0
    %2536 = vmatprep.subr.mxu0 0.0
    %2537 = vmatpush1.xpose.msra.mxu0 0.0
    %2538 = vmatprep.subr.mxu0 0.0
    %2539 = vmatpush1.xpose.msra.mxu0 0.0
    %2540 = vmatprep.subr.mxu0 0.0
    %2541 = vmatpush1.xpose.msra.mxu0 0.0
    %2542 = vmatprep.subr.mxu0 0.0
    %2543 = vmatpush1.xpose.msra.mxu0 0.0
    %2544 = vmatprep.subr.mxu0 0.0
    %2545 = vmatpush1.xpose.msra.mxu0 0.0
    %2546 = vmatprep.subr.mxu0 0.0
    %2547 = vmatpush1.xpose.msra.mxu0 0.0
    %2548 = vmatprep.subr.mxu0 0.0
    %2549 = vmatpush1.xpose.msra.mxu0 0.0
    %2550 = vmatprep.mubr.f32.mxu0 0.0
    %2551 = vmatmul.mubr.f32.gmra.mrb[0].mxu0 %v2482
    %v2552 = vpop.f32.mrb[0].mxu0
    %v2553 = vadd.f32 %v176, %v2552
    %v2554 = vpop.f32.mrb[0].mxu0
    %2555 = vdwg.mxu0
    %2556 = vrot.lane.b32.xlu0 %v2147, 120
    %v2557 = vpop.permute.xlu0 %2556
    %2558 = vrot.lane.b32.xlu0 %v2143, 88
    %v2559 = vpop.permute.xlu0 %2558
    %v2560 = vsel %vm320, %v2557, 0
    %v2562 = vsel %vm320, %v2559, 0
    %2564 = vmatprep.subr.mxu0 0.0
    %2565 = vmatpush1.xpose.msra.mxu0 %v2562
    %2566 = vmatprep.subr.mxu0 0.0
    %2567 = vmatpush1.xpose.msra.mxu0 0.0
    %2568 = vmatprep.subr.mxu0 0.0
    %2569 = vmatpush1.xpose.msra.mxu0 0.0
    %2570 = vmatprep.subr.mxu0 0.0
    %2571 = vmatpush1.xpose.msra.mxu0 0.0
    %2572 = vmatprep.subr.mxu0 0.0
    %2573 = vmatpush1.xpose.msra.mxu0 0.0
    %2574 = vmatprep.subr.mxu0 0.0
    %2575 = vmatpush1.xpose.msra.mxu0 0.0
    %2576 = vmatprep.subr.mxu0 0.0
    %2577 = vmatpush1.xpose.msra.mxu0 0.0
    %2578 = vmatprep.subr.mxu0 0.0
    %2579 = vmatpush1.xpose.msra.mxu0 0.0
    %2580 = vmatprep.subr.mxu0 0.0
    %2581 = vmatpush1.xpose.msra.mxu0 0.0
    %2582 = vmatprep.subr.mxu0 0.0
    %2583 = vmatpush1.xpose.msra.mxu0 0.0
    %2584 = vmatprep.subr.mxu0 0.0
    %2585 = vmatpush1.xpose.msra.mxu0 0.0
    %2586 = vmatprep.subr.mxu0 0.0
    %2587 = vmatpush1.xpose.msra.mxu0 0.0
    %2588 = vmatprep.subr.mxu0 0.0
    %2589 = vmatpush1.xpose.msra.mxu0 0.0
    %2590 = vmatprep.subr.mxu0 0.0
    %2591 = vmatpush1.xpose.msra.mxu0 0.0
    %2592 = vmatprep.subr.mxu0 0.0
    %2593 = vmatpush1.xpose.msra.mxu0 0.0
    %2594 = vmatprep.subr.mxu0 0.0
    %2595 = vmatpush1.xpose.msra.mxu0 0.0
    %2596 = vmatprep.subr.mxu0 0.0
    %2597 = vmatpush1.xpose.msra.mxu0 0.0
    %2598 = vmatprep.subr.mxu0 0.0
    %2599 = vmatpush1.xpose.msra.mxu0 0.0
    %2600 = vmatprep.subr.mxu0 0.0
    %2601 = vmatpush1.xpose.msra.mxu0 0.0
    %2602 = vmatprep.subr.mxu0 0.0
    %2603 = vmatpush1.xpose.msra.mxu0 0.0
    %2604 = vmatprep.subr.mxu0 0.0
    %2605 = vmatpush1.xpose.msra.mxu0 0.0
    %2606 = vmatprep.subr.mxu0 0.0
    %2607 = vmatpush1.xpose.msra.mxu0 0.0
    %2608 = vmatprep.subr.mxu0 0.0
    %2609 = vmatpush1.xpose.msra.mxu0 0.0
    %2610 = vmatprep.subr.mxu0 0.0
    %2611 = vmatpush1.xpose.msra.mxu0 0.0
    %2612 = vmatprep.subr.mxu0 0.0
    %2613 = vmatpush1.xpose.msra.mxu0 0.0
    %2614 = vmatprep.subr.mxu0 0.0
    %2615 = vmatpush1.xpose.msra.mxu0 0.0
    %2616 = vmatprep.subr.mxu0 0.0
    %2617 = vmatpush1.xpose.msra.mxu0 0.0
    %2618 = vmatprep.subr.mxu0 0.0
    %2619 = vmatpush1.xpose.msra.mxu0 0.0
    %2620 = vmatprep.subr.mxu0 0.0
    %2621 = vmatpush1.xpose.msra.mxu0 0.0
    %2622 = vmatprep.subr.mxu0 0.0
    %2623 = vmatpush1.xpose.msra.mxu0 0.0
    %2624 = vmatprep.subr.mxu0 0.0
    %2625 = vmatpush1.xpose.msra.mxu0 0.0
    %2626 = vmatprep.subr.mxu0 0.0
    %2627 = vmatpush1.xpose.msra.mxu0 0.0
    %2628 = vmatprep.mubr.f32.mxu0 0.0
    %2629 = vmatmul.mubr.f32.gmra.mrb[0].mxu0 %v2560
    %v2630 = vpop.f32.mrb[0].mxu0
    %v2631 = vadd.f32 %v176, %v2630
    %v2632 = vpop.f32.mrb[0].mxu0
    %2633 = vdwg.mxu0
    %v2634 = vsel %vm320, %v2553, -inf
    %2635 = vmax.xlane.f32.xlu0 %v2634
    %v2636 = vpop.xlane.xlu0 %2635
    %v2637 = vsel %vm320, %v2631, -inf
    %2638 = vmax.xlane.f32.xlu0 %v2637
    %v2639 = vpop.xlane.xlu0 %2638
    %v2640 = vsub.f32 %v2553, %v2636
    %v2641 = vsub.f32 %v2631, %v2639
    %v2642 = vmul.f32 %v2640, 1.442695
    %v2643 = vpow.pop %v2642
    %v2644 = vmul.f32 %v2641, 1.442695
    %v2645 = vpow.pop %v2644
    %v2646 = vsel %vm320, %v2643, 0.0
    %2647 = vadd.xlane.f32.xlu0 %v2646
    %v2648 = vpop.xlane.xlu0 %2647
    %v2649 = vsel %vm320, %v2645, 0.0
    %2650 = vadd.xlane.f32.xlu0 %v2649
    %v2651 = vpop.xlane.xlu0 %2650
    %v2652 = vrcp.pop %v2648
    %v2653 = vmul.f32 %v2643, %v2652
    %v2654 = vrcp.pop %v2651
    %v2655 = vmul.f32 %v2645, %v2654
    %2656 = vrot.lane.b32.xlu0 %v2138, 56
    %v2657 = vpop.permute.xlu0 %2656
    %v2660 = vsel %vm320, %v2653, 0
    %2662 = vmatprep.subr.mxu0 0.0
    %2663 = vmatpush1.msra.mxu0 %v2657
    %2664 = vmatprep.subr.mxu0 0.0
    %2665 = vmatpush1.msra.mxu0 0.0
    %2666 = vmatprep.subr.mxu0 0.0
    %2667 = vmatpush1.msra.mxu0 0.0
    %2668 = vmatprep.subr.mxu0 0.0
    %2669 = vmatpush1.msra.mxu0 0.0
    %2670 = vmatprep.subr.mxu0 0.0
    %2671 = vmatpush1.msra.mxu0 0.0
    %2672 = vmatprep.subr.mxu0 0.0
    %2673 = vmatpush1.msra.mxu0 0.0
    %2674 = vmatprep.subr.mxu0 0.0
    %2675 = vmatpush1.msra.mxu0 0.0
    %2676 = vmatprep.subr.mxu0 0.0
    %2677 = vmatpush1.msra.mxu0 0.0
    %2678 = vmatprep.subr.mxu0 0.0
    %2679 = vmatpush1.msra.mxu0 0.0
    %2680 = vmatprep.subr.mxu0 0.0
    %2681 = vmatpush1.msra.mxu0 0.0
    %2682 = vmatprep.subr.mxu0 0.0
    %2683 = vmatpush1.msra.mxu0 0.0
    %2684 = vmatprep.subr.mxu0 0.0
    %2685 = vmatpush1.msra.mxu0 0.0
    %2686 = vmatprep.subr.mxu0 0.0
    %2687 = vmatpush1.msra.mxu0 0.0
    %2688 = vmatprep.subr.mxu0 0.0
    %2689 = vmatpush1.msra.mxu0 0.0
    %2690 = vmatprep.subr.mxu0 0.0
    %2691 = vmatpush1.msra.mxu0 0.0
    %2692 = vmatprep.subr.mxu0 0.0
    %2693 = vmatpush1.msra.mxu0 0.0
    %2694 = vmatprep.subr.mxu0 0.0
    %2695 = vmatpush1.msra.mxu0 0.0
    %2696 = vmatprep.subr.mxu0 0.0
    %2697 = vmatpush1.msra.mxu0 0.0
    %2698 = vmatprep.subr.mxu0 0.0
    %2699 = vmatpush1.msra.mxu0 0.0
    %2700 = vmatprep.subr.mxu0 0.0
    %2701 = vmatpush1.msra.mxu0 0.0
    %2702 = vmatprep.subr.mxu0 0.0
    %2703 = vmatpush1.msra.mxu0 0.0
    %2704 = vmatprep.subr.mxu0 0.0
    %2705 = vmatpush1.msra.mxu0 0.0
    %2706 = vmatprep.subr.mxu0 0.0
    %2707 = vmatpush1.msra.mxu0 0.0
    %2708 = vmatprep.subr.mxu0 0.0
    %2709 = vmatpush1.msra.mxu0 0.0
    %2710 = vmatprep.subr.mxu0 0.0
    %2711 = vmatpush1.msra.mxu0 0.0
    %2712 = vmatprep.subr.mxu0 0.0
    %2713 = vmatpush1.msra.mxu0 0.0
    %2714 = vmatprep.subr.mxu0 0.0
    %2715 = vmatpush1.msra.mxu0 0.0
    %2716 = vmatprep.subr.mxu0 0.0
    %2717 = vmatpush1.msra.mxu0 0.0
    %2718 = vmatprep.subr.mxu0 0.0
    %2719 = vmatpush1.msra.mxu0 0.0
    %2720 = vmatprep.subr.mxu0 0.0
    %2721 = vmatpush1.msra.mxu0 0.0
    %2722 = vmatprep.subr.mxu0 0.0
    %2723 = vmatpush1.msra.mxu0 0.0
    %2724 = vmatprep.subr.mxu0 0.0
    %2725 = vmatpush1.msra.mxu0 0.0
    %2726 = vmatprep.mubr.f32.mxu0 0.0
    %2727 = vmatmul.mubr.f32.gmra.mrb[0].mxu0 %v2660
    %v2728 = vpop.f32.mrb[0].mxu0
    %v2729 = vadd.f32 0.0, %v2728
    %v2730 = vpop.f32.mrb[0].mxu0
    %2731 = vdwg.mxu0
    %2732 = vrot.lane.b32.xlu0 %v2143, 56
    %v2733 = vpop.permute.xlu0 %2732
    %v2736 = vsel %vm320, %v2655, 0
    %2738 = vmatprep.subr.mxu0 0.0
    %2739 = vmatpush1.msra.mxu0 %v2733
    %2740 = vmatprep.subr.mxu0 0.0
    %2741 = vmatpush1.msra.mxu0 0.0
    %2742 = vmatprep.subr.mxu0 0.0
    %2743 = vmatpush1.msra.mxu0 0.0
    %2744 = vmatprep.subr.mxu0 0.0
    %2745 = vmatpush1.msra.mxu0 0.0
    %2746 = vmatprep.subr.mxu0 0.0
    %2747 = vmatpush1.msra.mxu0 0.0
    %2748 = vmatprep.subr.mxu0 0.0
    %2749 = vmatpush1.msra.mxu0 0.0
    %2750 = vmatprep.subr.mxu0 0.0
    %2751 = vmatpush1.msra.mxu0 0.0
    %2752 = vmatprep.subr.mxu0 0.0
    %2753 = vmatpush1.msra.mxu0 0.0
    %2754 = vmatprep.subr.mxu0 0.0
    %2755 = vmatpush1.msra.mxu0 0.0
    %2756 = vmatprep.subr.mxu0 0.0
    %2757 = vmatpush1.msra.mxu0 0.0
    %2758 = vmatprep.subr.mxu0 0.0
    %2759 = vmatpush1.msra.mxu0 0.0
    %2760 = vmatprep.subr.mxu0 0.0
    %2761 = vmatpush1.msra.mxu0 0.0
    %2762 = vmatprep.subr.mxu0 0.0
    %2763 = vmatpush1.msra.mxu0 0.0
    %2764 = vmatprep.subr.mxu0 0.0
    %2765 = vmatpush1.msra.mxu0 0.0
    %2766 = vmatprep.subr.mxu0 0.0
    %2767 = vmatpush1.msra.mxu0 0.0
    %2768 = vmatprep.subr.mxu0 0.0
    %2769 = vmatpush1.msra.mxu0 0.0
    %2770 = vmatprep.subr.mxu0 0.0
    %2771 = vmatpush1.msra.mxu0 0.0
    %2772 = vmatprep.subr.mxu0 0.0
    %2773 = vmatpush1.msra.mxu0 0.0
    %2774 = vmatprep.subr.mxu0 0.0
    %2775 = vmatpush1.msra.mxu0 0.0
    %2776 = vmatprep.subr.mxu0 0.0
    %2777 = vmatpush1.msra.mxu0 0.0
    %2778 = vmatprep.subr.mxu0 0.0
    %2779 = vmatpush1.msra.mxu0 0.0
    %2780 = vmatprep.subr.mxu0 0.0
    %2781 = vmatpush1.msra.mxu0 0.0
    %2782 = vmatprep.subr.mxu0 0.0
    %2783 = vmatpush1.msra.mxu0 0.0
    %2784 = vmatprep.subr.mxu0 0.0
    %2785 = vmatpush1.msra.mxu0 0.0
    %2786 = vmatprep.subr.mxu0 0.0
    %2787 = vmatpush1.msra.mxu0 0.0
    %2788 = vmatprep.subr.mxu0 0.0
    %2789 = vmatpush1.msra.mxu0 0.0
    %2790 = vmatprep.subr.mxu0 0.0
    %2791 = vmatpush1.msra.mxu0 0.0
    %2792 = vmatprep.subr.mxu0 0.0
    %2793 = vmatpush1.msra.mxu0 0.0
    %2794 = vmatprep.subr.mxu0 0.0
    %2795 = vmatpush1.msra.mxu0 0.0
    %2796 = vmatprep.subr.mxu0 0.0
    %2797 = vmatpush1.msra.mxu0 0.0
    %2798 = vmatprep.subr.mxu0 0.0
    %2799 = vmatpush1.msra.mxu0 0.0
    %2800 = vmatprep.subr.mxu0 0.0
    %2801 = vmatpush1.msra.mxu0 0.0
    %2802 = vmatprep.mubr.f32.mxu0 0.0
    %2803 = vmatmul.mubr.f32.gmra.mrb[0].mxu0 %v2736
    %v2804 = vpop.f32.mrb[0].mxu0
    %v2805 = vadd.f32 0.0, %v2804
    %v2806 = vpop.f32.mrb[0].mxu0
    %2807 = vdwg.mxu0
    %2808 = vrot.lane.b32.xlu0 %v2146, 112
    %v2809 = vpop.permute.xlu0 %2808
    %2810 = vrot.lane.b32.xlu0 %v2138, 80
    %v2811 = vpop.permute.xlu0 %2810
    %v2812 = vsel %vm320, %v2809, 0
    %v2814 = vsel %vm320, %v2811, 0
    %2816 = vmatprep.subr.mxu0 0.0
    %2817 = vmatpush1.xpose.msra.mxu0 %v2814
    %2818 = vmatprep.subr.mxu0 0.0
    %2819 = vmatpush1.xpose.msra.mxu0 0.0
    %2820 = vmatprep.subr.mxu0 0.0
    %2821 = vmatpush1.xpose.msra.mxu0 0.0
    %2822 = vmatprep.subr.mxu0 0.0
    %2823 = vmatpush1.xpose.msra.mxu0 0.0
    %2824 = vmatprep.subr.mxu0 0.0
    %2825 = vmatpush1.xpose.msra.mxu0 0.0
    %2826 = vmatprep.subr.mxu0 0.0
    %2827 = vmatpush1.xpose.msra.mxu0 0.0
    %2828 = vmatprep.subr.mxu0 0.0
    %2829 = vmatpush1.xpose.msra.mxu0 0.0
    %2830 = vmatprep.subr.mxu0 0.0
    %2831 = vmatpush1.xpose.msra.mxu0 0.0
    %2832 = vmatprep.subr.mxu0 0.0
    %2833 = vmatpush1.xpose.msra.mxu0 0.0
    %2834 = vmatprep.subr.mxu0 0.0
    %2835 = vmatpush1.xpose.msra.mxu0 0.0
    %2836 = vmatprep.subr.mxu0 0.0
    %2837 = vmatpush1.xpose.msra.mxu0 0.0
    %2838 = vmatprep.subr.mxu0 0.0
    %2839 = vmatpush1.xpose.msra.mxu0 0.0
    %2840 = vmatprep.subr.mxu0 0.0
    %2841 = vmatpush1.xpose.msra.mxu0 0.0
    %2842 = vmatprep.subr.mxu0 0.0
    %2843 = vmatpush1.xpose.msra.mxu0 0.0
    %2844 = vmatprep.subr.mxu0 0.0
    %2845 = vmatpush1.xpose.msra.mxu0 0.0
    %2846 = vmatprep.subr.mxu0 0.0
    %2847 = vmatpush1.xpose.msra.mxu0 0.0
    %2848 = vmatprep.subr.mxu0 0.0
    %2849 = vmatpush1.xpose.msra.mxu0 0.0
    %2850 = vmatprep.subr.mxu0 0.0
    %2851 = vmatpush1.xpose.msra.mxu0 0.0
    %2852 = vmatprep.subr.mxu0 0.0
    %2853 = vmatpush1.xpose.msra.mxu0 0.0
    %2854 = vmatprep.subr.mxu0 0.0
    %2855 = vmatpush1.xpose.msra.mxu0 0.0
    %2856 = vmatprep.subr.mxu0 0.0
    %2857 = vmatpush1.xpose.msra.mxu0 0.0
    %2858 = vmatprep.subr.mxu0 0.0
    %2859 = vmatpush1.xpose.msra.mxu0 0.0
    %2860 = vmatprep.subr.mxu0 0.0
    %2861 = vmatpush1.xpose.msra.mxu0 0.0
    %2862 = vmatprep.subr.mxu0 0.0
    %2863 = vmatpush1.xpose.msra.mxu0 0.0
    %2864 = vmatprep.subr.mxu0 0.0
    %2865 = vmatpush1.xpose.msra.mxu0 0.0
    %2866 = vmatprep.subr.mxu0 0.0
    %2867 = vmatpush1.xpose.msra.mxu0 0.0
    %2868 = vmatprep.subr.mxu0 0.0
    %2869 = vmatpush1.xpose.msra.mxu0 0.0
    %2870 = vmatprep.subr.mxu0 0.0
    %2871 = vmatpush1.xpose.msra.mxu0 0.0
    %2872 = vmatprep.subr.mxu0 0.0
    %2873 = vmatpush1.xpose.msra.mxu0 0.0
    %2874 = vmatprep.subr.mxu0 0.0
    %2875 = vmatpush1.xpose.msra.mxu0 0.0
    %2876 = vmatprep.subr.mxu0 0.0
    %2877 = vmatpush1.xpose.msra.mxu0 0.0
    %2878 = vmatprep.subr.mxu0 0.0
    %2879 = vmatpush1.xpose.msra.mxu0 0.0
    %2880 = vmatprep.mubr.f32.mxu0 0.0
    %2881 = vmatmul.mubr.f32.gmra.mrb[0].mxu0 %v2812
    %v2882 = vpop.f32.mrb[0].mxu0
    %v2883 = vadd.f32 %v176, %v2882
    %v2884 = vpop.f32.mrb[0].mxu0
    %2885 = vdwg.mxu0
    %2886 = vrot.lane.b32.xlu0 %v2147, 112
    %v2887 = vpop.permute.xlu0 %2886
    %2888 = vrot.lane.b32.xlu0 %v2143, 80
    %v2889 = vpop.permute.xlu0 %2888
    %v2890 = vsel %vm320, %v2887, 0
    %v2892 = vsel %vm320, %v2889, 0
    %2894 = vmatprep.subr.mxu0 0.0
    %2895 = vmatpush1.xpose.msra.mxu0 %v2892
    %2896 = vmatprep.subr.mxu0 0.0
    %2897 = vmatpush1.xpose.msra.mxu0 0.0
    %2898 = vmatprep.subr.mxu0 0.0
    %2899 = vmatpush1.xpose.msra.mxu0 0.0
    %2900 = vmatprep.subr.mxu0 0.0
    %2901 = vmatpush1.xpose.msra.mxu0 0.0
    %2902 = vmatprep.subr.mxu0 0.0
    %2903 = vmatpush1.xpose.msra.mxu0 0.0
    %2904 = vmatprep.subr.mxu0 0.0
    %2905 = vmatpush1.xpose.msra.mxu0 0.0
    %2906 = vmatprep.subr.mxu0 0.0
    %2907 = vmatpush1.xpose.msra.mxu0 0.0
    %2908 = vmatprep.subr.mxu0 0.0
    %2909 = vmatpush1.xpose.msra.mxu0 0.0
    %2910 = vmatprep.subr.mxu0 0.0
    %2911 = vmatpush1.xpose.msra.mxu0 0.0
    %2912 = vmatprep.subr.mxu0 0.0
    %2913 = vmatpush1.xpose.msra.mxu0 0.0
    %2914 = vmatprep.subr.mxu0 0.0
    %2915 = vmatpush1.xpose.msra.mxu0 0.0
    %2916 = vmatprep.subr.mxu0 0.0
    %2917 = vmatpush1.xpose.msra.mxu0 0.0
    %2918 = vmatprep.subr.mxu0 0.0
    %2919 = vmatpush1.xpose.msra.mxu0 0.0
    %2920 = vmatprep.subr.mxu0 0.0
    %2921 = vmatpush1.xpose.msra.mxu0 0.0
    %2922 = vmatprep.subr.mxu0 0.0
    %2923 = vmatpush1.xpose.msra.mxu0 0.0
    %2924 = vmatprep.subr.mxu0 0.0
    %2925 = vmatpush1.xpose.msra.mxu0 0.0
    %2926 = vmatprep.subr.mxu0 0.0
    %2927 = vmatpush1.xpose.msra.mxu0 0.0
    %2928 = vmatprep.subr.mxu0 0.0
    %2929 = vmatpush1.xpose.msra.mxu0 0.0
    %2930 = vmatprep.subr.mxu0 0.0
    %2931 = vmatpush1.xpose.msra.mxu0 0.0
    %2932 = vmatprep.subr.mxu0 0.0
    %2933 = vmatpush1.xpose.msra.mxu0 0.0
    %2934 = vmatprep.subr.mxu0 0.0
    %2935 = vmatpush1.xpose.msra.mxu0 0.0
    %2936 = vmatprep.subr.mxu0 0.0
    %2937 = vmatpush1.xpose.msra.mxu0 0.0
    %2938 = vmatprep.subr.mxu0 0.0
    %2939 = vmatpush1.xpose.msra.mxu0 0.0
    %2940 = vmatprep.subr.mxu0 0.0
    %2941 = vmatpush1.xpose.msra.mxu0 0.0
    %2942 = vmatprep.subr.mxu0 0.0
    %2943 = vmatpush1.xpose.msra.mxu0 0.0
    %2944 = vmatprep.subr.mxu0 0.0
    %2945 = vmatpush1.xpose.msra.mxu0 0.0
    %2946 = vmatprep.subr.mxu0 0.0
    %2947 = vmatpush1.xpose.msra.mxu0 0.0
    %2948 = vmatprep.subr.mxu0 0.0
    %2949 = vmatpush1.xpose.msra.mxu0 0.0
    %2950 = vmatprep.subr.mxu0 0.0
    %2951 = vmatpush1.xpose.msra.mxu0 0.0
    %2952 = vmatprep.subr.mxu0 0.0
    %2953 = vmatpush1.xpose.msra.mxu0 0.0
    %2954 = vmatprep.subr.mxu0 0.0
    %2955 = vmatpush1.xpose.msra.mxu0 0.0
    %2956 = vmatprep.subr.mxu0 0.0
    %2957 = vmatpush1.xpose.msra.mxu0 0.0
    %2958 = vmatprep.mubr.f32.mxu0 0.0
    %2959 = vmatmul.mubr.f32.gmra.mrb[0].mxu0 %v2890
    %v2960 = vpop.f32.mrb[0].mxu0
    %v2961 = vadd.f32 %v176, %v2960
    %v2962 = vpop.f32.mrb[0].mxu0
    %2963 = vdwg.mxu0
    %v2964 = vsel %vm320, %v2883, -inf
    %2965 = vmax.xlane.f32.xlu0 %v2964
    %v2966 = vpop.xlane.xlu0 %2965
    %v2967 = vsel %vm320, %v2961, -inf
    %2968 = vmax.xlane.f32.xlu0 %v2967
    %v2969 = vpop.xlane.xlu0 %2968
    %v2970 = vsub.f32 %v2883, %v2966
    %v2971 = vsub.f32 %v2961, %v2969
    %v2972 = vmul.f32 %v2970, 1.442695
    %v2973 = vpow.pop %v2972
    %v2974 = vmul.f32 %v2971, 1.442695
    %v2975 = vpow.pop %v2974
    %v2976 = vsel %vm320, %v2973, 0.0
    %2977 = vadd.xlane.f32.xlu0 %v2976
    %v2978 = vpop.xlane.xlu0 %2977
    %v2979 = vsel %vm320, %v2975, 0.0
    %2980 = vadd.xlane.f32.xlu0 %v2979
    %v2981 = vpop.xlane.xlu0 %2980
    %v2982 = vrcp.pop %v2978
    %v2983 = vmul.f32 %v2973, %v2982
    %v2984 = vrcp.pop %v2981
    %v2985 = vmul.f32 %v2975, %v2984
    %2986 = vrot.lane.b32.xlu0 %v2138, 48
    %v2987 = vpop.permute.xlu0 %2986
    %v2990 = vsel %vm320, %v2983, 0
    %2992 = vmatprep.subr.mxu0 0.0
    %2993 = vmatpush1.msra.mxu0 %v2987
    %2994 = vmatprep.subr.mxu0 0.0
    %2995 = vmatpush1.msra.mxu0 0.0
    %2996 = vmatprep.subr.mxu0 0.0
    %2997 = vmatpush1.msra.mxu0 0.0
    %2998 = vmatprep.subr.mxu0 0.0
    %2999 = vmatpush1.msra.mxu0 0.0
    %3000 = vmatprep.subr.mxu0 0.0
    %3001 = vmatpush1.msra.mxu0 0.0
    %3002 = vmatprep.subr.mxu0 0.0
    %3003 = vmatpush1.msra.mxu0 0.0
    %3004 = vmatprep.subr.mxu0 0.0
    %3005 = vmatpush1.msra.mxu0 0.0
    %3006 = vmatprep.subr.mxu0 0.0
    %3007 = vmatpush1.msra.mxu0 0.0
    %3008 = vmatprep.subr.mxu0 0.0
    %3009 = vmatpush1.msra.mxu0 0.0
    %3010 = vmatprep.subr.mxu0 0.0
    %3011 = vmatpush1.msra.mxu0 0.0
    %3012 = vmatprep.subr.mxu0 0.0
    %3013 = vmatpush1.msra.mxu0 0.0
    %3014 = vmatprep.subr.mxu0 0.0
    %3015 = vmatpush1.msra.mxu0 0.0
    %3016 = vmatprep.subr.mxu0 0.0
    %3017 = vmatpush1.msra.mxu0 0.0
    %3018 = vmatprep.subr.mxu0 0.0
    %3019 = vmatpush1.msra.mxu0 0.0
    %3020 = vmatprep.subr.mxu0 0.0
    %3021 = vmatpush1.msra.mxu0 0.0
    %3022 = vmatprep.subr.mxu0 0.0
    %3023 = vmatpush1.msra.mxu0 0.0
    %3024 = vmatprep.subr.mxu0 0.0
    %3025 = vmatpush1.msra.mxu0 0.0
    %3026 = vmatprep.subr.mxu0 0.0
    %3027 = vmatpush1.msra.mxu0 0.0
    %3028 = vmatprep.subr.mxu0 0.0
    %3029 = vmatpush1.msra.mxu0 0.0
    %3030 = vmatprep.subr.mxu0 0.0
    %3031 = vmatpush1.msra.mxu0 0.0
    %3032 = vmatprep.subr.mxu0 0.0
    %3033 = vmatpush1.msra.mxu0 0.0
    %3034 = vmatprep.subr.mxu0 0.0
    %3035 = vmatpush1.msra.mxu0 0.0
    %3036 = vmatprep.subr.mxu0 0.0
    %3037 = vmatpush1.msra.mxu0 0.0
    %3038 = vmatprep.subr.mxu0 0.0
    %3039 = vmatpush1.msra.mxu0 0.0
    %3040 = vmatprep.subr.mxu0 0.0
    %3041 = vmatpush1.msra.mxu0 0.0
    %3042 = vmatprep.subr.mxu0 0.0
    %3043 = vmatpush1.msra.mxu0 0.0
    %3044 = vmatprep.subr.mxu0 0.0
    %3045 = vmatpush1.msra.mxu0 0.0
    %3046 = vmatprep.subr.mxu0 0.0
    %3047 = vmatpush1.msra.mxu0 0.0
    %3048 = vmatprep.subr.mxu0 0.0
    %3049 = vmatpush1.msra.mxu0 0.0
    %3050 = vmatprep.subr.mxu0 0.0
    %3051 = vmatpush1.msra.mxu0 0.0
    %3052 = vmatprep.subr.mxu0 0.0
    %3053 = vmatpush1.msra.mxu0 0.0
    %3054 = vmatprep.subr.mxu0 0.0
    %3055 = vmatpush1.msra.mxu0 0.0
    %3056 = vmatprep.mubr.f32.mxu0 0.0
    %3057 = vmatmul.mubr.f32.gmra.mrb[0].mxu0 %v2990
    %v3058 = vpop.f32.mrb[0].mxu0
    %v3059 = vadd.f32 0.0, %v3058
    %v3060 = vpop.f32.mrb[0].mxu0
    %3061 = vdwg.mxu0
    %3062 = vrot.lane.b32.xlu0 %v2143, 48
    %v3063 = vpop.permute.xlu0 %3062
    %v3066 = vsel %vm320, %v2985, 0
    %3068 = vmatprep.subr.mxu0 0.0
    %3069 = vmatpush1.msra.mxu0 %v3063
    %3070 = vmatprep.subr.mxu0 0.0
    %3071 = vmatpush1.msra.mxu0 0.0
    %3072 = vmatprep.subr.mxu0 0.0
    %3073 = vmatpush1.msra.mxu0 0.0
    %3074 = vmatprep.subr.mxu0 0.0
    %3075 = vmatpush1.msra.mxu0 0.0
    %3076 = vmatprep.subr.mxu0 0.0
    %3077 = vmatpush1.msra.mxu0 0.0
    %3078 = vmatprep.subr.mxu0 0.0
    %3079 = vmatpush1.msra.mxu0 0.0
    %3080 = vmatprep.subr.mxu0 0.0
    %3081 = vmatpush1.msra.mxu0 0.0
    %3082 = vmatprep.subr.mxu0 0.0
    %3083 = vmatpush1.msra.mxu0 0.0
    %3084 = vmatprep.subr.mxu0 0.0
    %3085 = vmatpush1.msra.mxu0 0.0
    %3086 = vmatprep.subr.mxu0 0.0
    %3087 = vmatpush1.msra.mxu0 0.0
    %3088 = vmatprep.subr.mxu0 0.0
    %3089 = vmatpush1.msra.mxu0 0.0
    %3090 = vmatprep.subr.mxu0 0.0
    %3091 = vmatpush1.msra.mxu0 0.0
    %3092 = vmatprep.subr.mxu0 0.0
    %3093 = vmatpush1.msra.mxu0 0.0
    %3094 = vmatprep.subr.mxu0 0.0
    %3095 = vmatpush1.msra.mxu0 0.0
    %3096 = vmatprep.subr.mxu0 0.0
    %3097 = vmatpush1.msra.mxu0 0.0
    %3098 = vmatprep.subr.mxu0 0.0
    %3099 = vmatpush1.msra.mxu0 0.0
    %3100 = vmatprep.subr.mxu0 0.0
    %3101 = vmatpush1.msra.mxu0 0.0
    %3102 = vmatprep.subr.mxu0 0.0
    %3103 = vmatpush1.msra.mxu0 0.0
    %3104 = vmatprep.subr.mxu0 0.0
    %3105 = vmatpush1.msra.mxu0 0.0
    %3106 = vmatprep.subr.mxu0 0.0
    %3107 = vmatpush1.msra.mxu0 0.0
    %3108 = vmatprep.subr.mxu0 0.0
    %3109 = vmatpush1.msra.mxu0 0.0
    %3110 = vmatprep.subr.mxu0 0.0
    %3111 = vmatpush1.msra.mxu0 0.0
    %3112 = vmatprep.subr.mxu0 0.0
    %3113 = vmatpush1.msra.mxu0 0.0
    %3114 = vmatprep.subr.mxu0 0.0
    %3115 = vmatpush1.msra.mxu0 0.0
    %3116 = vmatprep.subr.mxu0 0.0
    %3117 = vmatpush1.msra.mxu0 0.0
    %3118 = vmatprep.subr.mxu0 0.0
    %3119 = vmatpush1.msra.mxu0 0.0
    %3120 = vmatprep.subr.mxu0 0.0
    %3121 = vmatpush1.msra.mxu0 0.0
    %3122 = vmatprep.subr.mxu0 0.0
    %3123 = vmatpush1.msra.mxu0 0.0
    %3124 = vmatprep.subr.mxu0 0.0
    %3125 = vmatpush1.msra.mxu0 0.0
    %3126 = vmatprep.subr.mxu0 0.0
    %3127 = vmatpush1.msra.mxu0 0.0
    %3128 = vmatprep.subr.mxu0 0.0
    %3129 = vmatpush1.msra.mxu0 0.0
    %3130 = vmatprep.subr.mxu0 0.0
    %3131 = vmatpush1.msra.mxu0 0.0
    %3132 = vmatprep.mubr.f32.mxu0 0.0
    %3133 = vmatmul.mubr.f32.gmra.mrb[0].mxu0 %v3066
    %v3134 = vpop.f32.mrb[0].mxu0
    %v3135 = vadd.f32 0.0, %v3134
    %v3136 = vpop.f32.mrb[0].mxu0
    %3137 = vdwg.mxu0
    %3138 = vrot.lane.b32.xlu0 %v2146, 104
    %v3139 = vpop.permute.xlu0 %3138
    %3140 = vrot.lane.b32.xlu0 %v2138, 72
    %v3141 = vpop.permute.xlu0 %3140
    %v3142 = vsel %vm320, %v3139, 0
    %v3144 = vsel %vm320, %v3141, 0
    %3146 = vmatprep.subr.mxu0 0.0
    %3147 = vmatpush1.xpose.msra.mxu0 %v3144
    %3148 = vmatprep.subr.mxu0 0.0
    %3149 = vmatpush1.xpose.msra.mxu0 0.0
    %3150 = vmatprep.subr.mxu0 0.0
    %3151 = vmatpush1.xpose.msra.mxu0 0.0
    %3152 = vmatprep.subr.mxu0 0.0
    %3153 = vmatpush1.xpose.msra.mxu0 0.0
    %3154 = vmatprep.subr.mxu0 0.0
    %3155 = vmatpush1.xpose.msra.mxu0 0.0
    %3156 = vmatprep.subr.mxu0 0.0
    %3157 = vmatpush1.xpose.msra.mxu0 0.0
    %3158 = vmatprep.subr.mxu0 0.0
    %3159 = vmatpush1.xpose.msra.mxu0 0.0
    %3160 = vmatprep.subr.mxu0 0.0
    %3161 = vmatpush1.xpose.msra.mxu0 0.0
    %3162 = vmatprep.subr.mxu0 0.0
    %3163 = vmatpush1.xpose.msra.mxu0 0.0
    %3164 = vmatprep.subr.mxu0 0.0
    %3165 = vmatpush1.xpose.msra.mxu0 0.0
    %3166 = vmatprep.subr.mxu0 0.0
    %3167 = vmatpush1.xpose.msra.mxu0 0.0
    %3168 = vmatprep.subr.mxu0 0.0
    %3169 = vmatpush1.xpose.msra.mxu0 0.0
    %3170 = vmatprep.subr.mxu0 0.0
    %3171 = vmatpush1.xpose.msra.mxu0 0.0
    %3172 = vmatprep.subr.mxu0 0.0
    %3173 = vmatpush1.xpose.msra.mxu0 0.0
    %3174 = vmatprep.subr.mxu0 0.0
    %3175 = vmatpush1.xpose.msra.mxu0 0.0
    %3176 = vmatprep.subr.mxu0 0.0
    %3177 = vmatpush1.xpose.msra.mxu0 0.0
    %3178 = vmatprep.subr.mxu0 0.0
    %3179 = vmatpush1.xpose.msra.mxu0 0.0
    %3180 = vmatprep.subr.mxu0 0.0
    %3181 = vmatpush1.xpose.msra.mxu0 0.0
    %3182 = vmatprep.subr.mxu0 0.0
    %3183 = vmatpush1.xpose.msra.mxu0 0.0
    %3184 = vmatprep.subr.mxu0 0.0
    %3185 = vmatpush1.xpose.msra.mxu0 0.0
    %3186 = vmatprep.subr.mxu0 0.0
    %3187 = vmatpush1.xpose.msra.mxu0 0.0
    %3188 = vmatprep.subr.mxu0 0.0
    %3189 = vmatpush1.xpose.msra.mxu0 0.0
    %3190 = vmatprep.subr.mxu0 0.0
    %3191 = vmatpush1.xpose.msra.mxu0 0.0
    %3192 = vmatprep.subr.mxu0 0.0
    %3193 = vmatpush1.xpose.msra.mxu0 0.0
    %3194 = vmatprep.subr.mxu0 0.0
    %3195 = vmatpush1.xpose.msra.mxu0 0.0
    %3196 = vmatprep.subr.mxu0 0.0
    %3197 = vmatpush1.xpose.msra.mxu0 0.0
    %3198 = vmatprep.subr.mxu0 0.0
    %3199 = vmatpush1.xpose.msra.mxu0 0.0
    %3200 = vmatprep.subr.mxu0 0.0
    %3201 = vmatpush1.xpose.msra.mxu0 0.0
    %3202 = vmatprep.subr.mxu0 0.0
    %3203 = vmatpush1.xpose.msra.mxu0 0.0
    %3204 = vmatprep.subr.mxu0 0.0
    %3205 = vmatpush1.xpose.msra.mxu0 0.0
    %3206 = vmatprep.subr.mxu0 0.0
    %3207 = vmatpush1.xpose.msra.mxu0 0.0
    %3208 = vmatprep.subr.mxu0 0.0
    %3209 = vmatpush1.xpose.msra.mxu0 0.0
    %3210 = vmatprep.mubr.f32.mxu0 0.0
    %3211 = vmatmul.mubr.f32.gmra.mrb[0].mxu0 %v3142
    %v3212 = vpop.f32.mrb[0].mxu0
    %v3213 = vadd.f32 %v176, %v3212
    %v3214 = vpop.f32.mrb[0].mxu0
    %3215 = vdwg.mxu0
    %3216 = vrot.lane.b32.xlu0 %v2147, 104
    %v3217 = vpop.permute.xlu0 %3216
    %3218 = vrot.lane.b32.xlu0 %v2143, 72
    %v3219 = vpop.permute.xlu0 %3218
    %v3220 = vsel %vm320, %v3217, 0
    %v3222 = vsel %vm320, %v3219, 0
    %3224 = vmatprep.subr.mxu0 0.0
    %3225 = vmatpush1.xpose.msra.mxu0 %v3222
    %3226 = vmatprep.subr.mxu0 0.0
    %3227 = vmatpush1.xpose.msra.mxu0 0.0
    %3228 = vmatprep.subr.mxu0 0.0
    %3229 = vmatpush1.xpose.msra.mxu0 0.0
    %3230 = vmatprep.subr.mxu0 0.0
    %3231 = vmatpush1.xpose.msra.mxu0 0.0
    %3232 = vmatprep.subr.mxu0 0.0
    %3233 = vmatpush1.xpose.msra.mxu0 0.0
    %3234 = vmatprep.subr.mxu0 0.0
    %3235 = vmatpush1.xpose.msra.mxu0 0.0
    %3236 = vmatprep.subr.mxu0 0.0
    %3237 = vmatpush1.xpose.msra.mxu0 0.0
    %3238 = vmatprep.subr.mxu0 0.0
    %3239 = vmatpush1.xpose.msra.mxu0 0.0
    %3240 = vmatprep.subr.mxu0 0.0
    %3241 = vmatpush1.xpose.msra.mxu0 0.0
    %3242 = vmatprep.subr.mxu0 0.0
    %3243 = vmatpush1.xpose.msra.mxu0 0.0
    %3244 = vmatprep.subr.mxu0 0.0
    %3245 = vmatpush1.xpose.msra.mxu0 0.0
    %3246 = vmatprep.subr.mxu0 0.0
    %3247 = vmatpush1.xpose.msra.mxu0 0.0
    %3248 = vmatprep.subr.mxu0 0.0
    %3249 = vmatpush1.xpose.msra.mxu0 0.0
    %3250 = vmatprep.subr.mxu0 0.0
    %3251 = vmatpush1.xpose.msra.mxu0 0.0
    %3252 = vmatprep.subr.mxu0 0.0
    %3253 = vmatpush1.xpose.msra.mxu0 0.0
    %3254 = vmatprep.subr.mxu0 0.0
    %3255 = vmatpush1.xpose.msra.mxu0 0.0
    %3256 = vmatprep.subr.mxu0 0.0
    %3257 = vmatpush1.xpose.msra.mxu0 0.0
    %3258 = vmatprep.subr.mxu0 0.0
    %3259 = vmatpush1.xpose.msra.mxu0 0.0
    %3260 = vmatprep.subr.mxu0 0.0
    %3261 = vmatpush1.xpose.msra.mxu0 0.0
    %3262 = vmatprep.subr.mxu0 0.0
    %3263 = vmatpush1.xpose.msra.mxu0 0.0
    %3264 = vmatprep.subr.mxu0 0.0
    %3265 = vmatpush1.xpose.msra.mxu0 0.0
    %3266 = vmatprep.subr.mxu0 0.0
    %3267 = vmatpush1.xpose.msra.mxu0 0.0
    %3268 = vmatprep.subr.mxu0 0.0
    %3269 = vmatpush1.xpose.msra.mxu0 0.0
    %3270 = vmatprep.subr.mxu0 0.0
    %3271 = vmatpush1.xpose.msra.mxu0 0.0
    %3272 = vmatprep.subr.mxu0 0.0
    %3273 = vmatpush1.xpose.msra.mxu0 0.0
    %3274 = vmatprep.subr.mxu0 0.0
    %3275 = vmatpush1.xpose.msra.mxu0 0.0
    %3276 = vmatprep.subr.mxu0 0.0
    %3277 = vmatpush1.xpose.msra.mxu0 0.0
    %3278 = vmatprep.subr.mxu0 0.0
    %3279 = vmatpush1.xpose.msra.mxu0 0.0
    %3280 = vmatprep.subr.mxu0 0.0
    %3281 = vmatpush1.xpose.msra.mxu0 0.0
    %3282 = vmatprep.subr.mxu0 0.0
    %3283 = vmatpush1.xpose.msra.mxu0 0.0
    %3284 = vmatprep.subr.mxu0 0.0
    %3285 = vmatpush1.xpose.msra.mxu0 0.0
    %3286 = vmatprep.subr.mxu0 0.0
    %3287 = vmatpush1.xpose.msra.mxu0 0.0
    %3288 = vmatprep.mubr.f32.mxu0 0.0
    %3289 = vmatmul.mubr.f32.gmra.mrb[0].mxu0 %v3220
    %v3290 = vpop.f32.mrb[0].mxu0
    %v3291 = vadd.f32 %v176, %v3290
    %v3292 = vpop.f32.mrb[0].mxu0
    %3293 = vdwg.mxu0
    %v3294 = vsel %vm320, %v3213, -inf
    %3295 = vmax.xlane.f32.xlu0 %v3294
    %v3296 = vpop.xlane.xlu0 %3295
    %v3297 = vsel %vm320, %v3291, -inf
    %3298 = vmax.xlane.f32.xlu0 %v3297
    %v3299 = vpop.xlane.xlu0 %3298
    %v3300 = vsub.f32 %v3213, %v3296
    %v3301 = vsub.f32 %v3291, %v3299
    %v3302 = vmul.f32 %v3300, 1.442695
    %v3303 = vpow.pop %v3302
    %v3304 = vmul.f32 %v3301, 1.442695
    %v3305 = vpow.pop %v3304
    %v3306 = vsel %vm320, %v3303, 0.0
    %3307 = vadd.xlane.f32.xlu0 %v3306
    %v3308 = vpop.xlane.xlu0 %3307
    %v3309 = vsel %vm320, %v3305, 0.0
    %3310 = vadd.xlane.f32.xlu0 %v3309
    %v3311 = vpop.xlane.xlu0 %3310
    %v3312 = vrcp.pop %v3308
    %v3313 = vmul.f32 %v3303, %v3312
    %v3314 = vrcp.pop %v3311
    %v3315 = vmul.f32 %v3305, %v3314
    %3316 = vrot.lane.b32.xlu0 %v2138, 40
    %v3317 = vpop.permute.xlu0 %3316
    %v3320 = vsel %vm320, %v3313, 0
    %3322 = vmatprep.subr.mxu0 0.0
    %3323 = vmatpush1.msra.mxu0 %v3317
    %3324 = vmatprep.subr.mxu0 0.0
    %3325 = vmatpush1.msra.mxu0 0.0
    %3326 = vmatprep.subr.mxu0 0.0
    %3327 = vmatpush1.msra.mxu0 0.0
    %3328 = vmatprep.subr.mxu0 0.0
    %3329 = vmatpush1.msra.mxu0 0.0
    %3330 = vmatprep.subr.mxu0 0.0
    %3331 = vmatpush1.msra.mxu0 0.0
    %3332 = vmatprep.subr.mxu0 0.0
    %3333 = vmatpush1.msra.mxu0 0.0
    %3334 = vmatprep.subr.mxu0 0.0
    %3335 = vmatpush1.msra.mxu0 0.0
    %3336 = vmatprep.subr.mxu0 0.0
    %3337 = vmatpush1.msra.mxu0 0.0
    %3338 = vmatprep.subr.mxu0 0.0
    %3339 = vmatpush1.msra.mxu0 0.0
    %3340 = vmatprep.subr.mxu0 0.0
    %3341 = vmatpush1.msra.mxu0 0.0
    %3342 = vmatprep.subr.mxu0 0.0
    %3343 = vmatpush1.msra.mxu0 0.0
    %3344 = vmatprep.subr.mxu0 0.0
    %3345 = vmatpush1.msra.mxu0 0.0
    %3346 = vmatprep.subr.mxu0 0.0
    %3347 = vmatpush1.msra.mxu0 0.0
    %3348 = vmatprep.subr.mxu0 0.0
    %3349 = vmatpush1.msra.mxu0 0.0
    %3350 = vmatprep.subr.mxu0 0.0
    %3351 = vmatpush1.msra.mxu0 0.0
    %3352 = vmatprep.subr.mxu0 0.0
    %3353 = vmatpush1.msra.mxu0 0.0
    %3354 = vmatprep.subr.mxu0 0.0
    %3355 = vmatpush1.msra.mxu0 0.0
    %3356 = vmatprep.subr.mxu0 0.0
    %3357 = vmatpush1.msra.mxu0 0.0
    %3358 = vmatprep.subr.mxu0 0.0
    %3359 = vmatpush1.msra.mxu0 0.0
    %3360 = vmatprep.subr.mxu0 0.0
    %3361 = vmatpush1.msra.mxu0 0.0
    %3362 = vmatprep.subr.mxu0 0.0
    %3363 = vmatpush1.msra.mxu0 0.0
    %3364 = vmatprep.subr.mxu0 0.0
    %3365 = vmatpush1.msra.mxu0 0.0
    %3366 = vmatprep.subr.mxu0 0.0
    %3367 = vmatpush1.msra.mxu0 0.0
    %3368 = vmatprep.subr.mxu0 0.0
    %3369 = vmatpush1.msra.mxu0 0.0
    %3370 = vmatprep.subr.mxu0 0.0
    %3371 = vmatpush1.msra.mxu0 0.0
    %3372 = vmatprep.subr.mxu0 0.0
    %3373 = vmatpush1.msra.mxu0 0.0
    %3374 = vmatprep.subr.mxu0 0.0
    %3375 = vmatpush1.msra.mxu0 0.0
    %3376 = vmatprep.subr.mxu0 0.0
    %3377 = vmatpush1.msra.mxu0 0.0
    %3378 = vmatprep.subr.mxu0 0.0
    %3379 = vmatpush1.msra.mxu0 0.0
    %3380 = vmatprep.subr.mxu0 0.0
    %3381 = vmatpush1.msra.mxu0 0.0
    %3382 = vmatprep.subr.mxu0 0.0
    %3383 = vmatpush1.msra.mxu0 0.0
    %3384 = vmatprep.subr.mxu0 0.0
    %3385 = vmatpush1.msra.mxu0 0.0
    %3386 = vmatprep.mubr.f32.mxu0 0.0
    %3387 = vmatmul.mubr.f32.gmra.mrb[0].mxu0 %v3320
    %v3388 = vpop.f32.mrb[0].mxu0
    %v3389 = vadd.f32 0.0, %v3388
    %v3390 = vpop.f32.mrb[0].mxu0
    %3391 = vdwg.mxu0
    %3392 = vrot.lane.b32.xlu0 %v2143, 40
    %v3393 = vpop.permute.xlu0 %3392
    %v3396 = vsel %vm320, %v3315, 0
    %3398 = vmatprep.subr.mxu0 0.0
    %3399 = vmatpush1.msra.mxu0 %v3393
    %3400 = vmatprep.subr.mxu0 0.0
    %3401 = vmatpush1.msra.mxu0 0.0
    %3402 = vmatprep.subr.mxu0 0.0
    %3403 = vmatpush1.msra.mxu0 0.0
    %3404 = vmatprep.subr.mxu0 0.0
    %3405 = vmatpush1.msra.mxu0 0.0
    %3406 = vmatprep.subr.mxu0 0.0
    %3407 = vmatpush1.msra.mxu0 0.0
    %3408 = vmatprep.subr.mxu0 0.0
    %3409 = vmatpush1.msra.mxu0 0.0
    %3410 = vmatprep.subr.mxu0 0.0
    %3411 = vmatpush1.msra.mxu0 0.0
    %3412 = vmatprep.subr.mxu0 0.0
    %3413 = vmatpush1.msra.mxu0 0.0
    %3414 = vmatprep.subr.mxu0 0.0
    %3415 = vmatpush1.msra.mxu0 0.0
    %3416 = vmatprep.subr.mxu0 0.0
    %3417 = vmatpush1.msra.mxu0 0.0
    %3418 = vmatprep.subr.mxu0 0.0
    %3419 = vmatpush1.msra.mxu0 0.0
    %3420 = vmatprep.subr.mxu0 0.0
    %3421 = vmatpush1.msra.mxu0 0.0
    %3422 = vmatprep.subr.mxu0 0.0
    %3423 = vmatpush1.msra.mxu0 0.0
    %3424 = vmatprep.subr.mxu0 0.0
    %3425 = vmatpush1.msra.mxu0 0.0
    %3426 = vmatprep.subr.mxu0 0.0
    %3427 = vmatpush1.msra.mxu0 0.0
    %3428 = vmatprep.subr.mxu0 0.0
    %3429 = vmatpush1.msra.mxu0 0.0
    %3430 = vmatprep.subr.mxu0 0.0
    %3431 = vmatpush1.msra.mxu0 0.0
    %3432 = vmatprep.subr.mxu0 0.0
    %3433 = vmatpush1.msra.mxu0 0.0
    %3434 = vmatprep.subr.mxu0 0.0
    %3435 = vmatpush1.msra.mxu0 0.0
    %3436 = vmatprep.subr.mxu0 0.0
    %3437 = vmatpush1.msra.mxu0 0.0
    %3438 = vmatprep.subr.mxu0 0.0
    %3439 = vmatpush1.msra.mxu0 0.0
    %3440 = vmatprep.subr.mxu0 0.0
    %3441 = vmatpush1.msra.mxu0 0.0
    %3442 = vmatprep.subr.mxu0 0.0
    %3443 = vmatpush1.msra.mxu0 0.0
    %3444 = vmatprep.subr.mxu0 0.0
    %3445 = vmatpush1.msra.mxu0 0.0
    %3446 = vmatprep.subr.mxu0 0.0
    %3447 = vmatpush1.msra.mxu0 0.0
    %3448 = vmatprep.subr.mxu0 0.0
    %3449 = vmatpush1.msra.mxu0 0.0
    %3450 = vmatprep.subr.mxu0 0.0
    %3451 = vmatpush1.msra.mxu0 0.0
    %3452 = vmatprep.subr.mxu0 0.0
    %3453 = vmatpush1.msra.mxu0 0.0
    %3454 = vmatprep.subr.mxu0 0.0
    %3455 = vmatpush1.msra.mxu0 0.0
    %3456 = vmatprep.subr.mxu0 0.0
    %3457 = vmatpush1.msra.mxu0 0.0
    %3458 = vmatprep.subr.mxu0 0.0
    %3459 = vmatpush1.msra.mxu0 0.0
    %3460 = vmatprep.subr.mxu0 0.0
    %3461 = vmatpush1.msra.mxu0 0.0
    %3462 = vmatprep.mubr.f32.mxu0 0.0
    %3463 = vmatmul.mubr.f32.gmra.mrb[0].mxu0 %v3396
    %v3464 = vpop.f32.mrb[0].mxu0
    %v3465 = vadd.f32 0.0, %v3464
    %v3466 = vpop.f32.mrb[0].mxu0
    %3467 = vdwg.mxu0
    %3470 = vrot.lane.b32.xlu0 %v2729, 8
    %v3471 = vpop.permute.xlu0 %3470
    %3472 = vrot.lane.b32.xlu0 %v2805, 8
    %v3473 = vpop.permute.xlu0 %3472
    %3478 = vrot.lane.b32.xlu0 %v3059, 16
    %v3479 = vpop.permute.xlu0 %3478
    %3480 = vrot.lane.b32.xlu0 %v3135, 16
    %v3481 = vpop.permute.xlu0 %3480
    %3486 = vrot.lane.b32.xlu0 %v3389, 24
    %v3487 = vpop.permute.xlu0 %3486
    %3488 = vrot.lane.b32.xlu0 %v3465, 24
    %v3489 = vpop.permute.xlu0 %3488
    %v3492 = vsel %vm320, %v2399, %v3471
    %v3493 = vsel %vm320, %v2475, %v3473
    %v3494 = vsel %vm1664, %v3492, %v3479
    %v3495 = vsel %vm1664, %v3493, %v3481
    %v3496 = vsel %vm1667, %v3494, %v3487
    %v3497 = vsel %vm1667, %v3495, %v3489
    %s3498 = scalar_lea.vmem %s7, 32
    %v3499 = vld [vmem:[%s3498] sm:$0xff]
    %v3500 = vld [vmem:[%s3498 + $0x8] sm:$0xff]
    %v3501 = vld [vmem:[%s3498 + $0x10] sm:$0xff]
    %v3502 = vld [vmem:[%s3498 + $0x18] sm:$0xff]
    %v3504 = vsel %vm179, %v3496, 0
    %v3507 = vsel %vm179, %v3497, 0
    %3509 = vmatprep.subr.mxu0 0.0
    %3510 = vmatpush1.msra.mxu0 %v3499
    %3511 = vmatprep.subr.mxu0 0.0
    %3512 = vmatpush1.msra.mxu0 %v3500
    %3513 = vmatprep.subr.mxu0 0.0
    %3514 = vmatpush1.msra.mxu0 %v3501
    %3515 = vmatprep.subr.mxu0 0.0
    %3516 = vmatpush1.msra.mxu0 %v3502
    %3517 = vmatprep.subr.mxu0 0.0
    %3518 = vmatpush1.msra.mxu0 0.0
    %3519 = vmatprep.subr.mxu0 0.0
    %3520 = vmatpush1.msra.mxu0 0.0
    %3521 = vmatprep.subr.mxu0 0.0
    %3522 = vmatpush1.msra.mxu0 0.0
    %3523 = vmatprep.subr.mxu0 0.0
    %3524 = vmatpush1.msra.mxu0 0.0
    %3525 = vmatprep.subr.mxu0 0.0
    %3526 = vmatpush1.msra.mxu0 0.0
    %3527 = vmatprep.subr.mxu0 0.0
    %3528 = vmatpush1.msra.mxu0 0.0
    %3529 = vmatprep.subr.mxu0 0.0
    %3530 = vmatpush1.msra.mxu0 0.0
    %3531 = vmatprep.subr.mxu0 0.0
    %3532 = vmatpush1.msra.mxu0 0.0
    %3533 = vmatprep.subr.mxu0 0.0
    %3534 = vmatpush1.msra.mxu0 0.0
    %3535 = vmatprep.subr.mxu0 0.0
    %3536 = vmatpush1.msra.mxu0 0.0
    %3537 = vmatprep.subr.mxu0 0.0
    %3538 = vmatpush1.msra.mxu0 0.0
    %3539 = vmatprep.subr.mxu0 0.0
    %3540 = vmatpush1.msra.mxu0 0.0
    %3541 = vmatprep.subr.mxu0 0.0
    %3542 = vmatpush1.msra.mxu0 0.0
    %3543 = vmatprep.subr.mxu0 0.0
    %3544 = vmatpush1.msra.mxu0 0.0
    %3545 = vmatprep.subr.mxu0 0.0
    %3546 = vmatpush1.msra.mxu0 0.0
    %3547 = vmatprep.subr.mxu0 0.0
    %3548 = vmatpush1.msra.mxu0 0.0
    %3549 = vmatprep.subr.mxu0 0.0
    %3550 = vmatpush1.msra.mxu0 0.0
    %3551 = vmatprep.subr.mxu0 0.0
    %3552 = vmatpush1.msra.mxu0 0.0
    %3553 = vmatprep.subr.mxu0 0.0
    %3554 = vmatpush1.msra.mxu0 0.0
    %3555 = vmatprep.subr.mxu0 0.0
    %3556 = vmatpush1.msra.mxu0 0.0
    %3557 = vmatprep.subr.mxu0 0.0
    %3558 = vmatpush1.msra.mxu0 0.0
    %3559 = vmatprep.subr.mxu0 0.0
    %3560 = vmatpush1.msra.mxu0 0.0
    %3561 = vmatprep.subr.mxu0 0.0
    %3562 = vmatpush1.msra.mxu0 0.0
    %3563 = vmatprep.subr.mxu0 0.0
    %3564 = vmatpush1.msra.mxu0 0.0
    %3565 = vmatprep.subr.mxu0 0.0
    %3566 = vmatpush1.msra.mxu0 0.0
    %3567 = vmatprep.subr.mxu0 0.0
    %3568 = vmatpush1.msra.mxu0 0.0
    %3569 = vmatprep.subr.mxu0 0.0
    %3570 = vmatpush1.msra.mxu0 0.0
    %3571 = vmatprep.subr.mxu0 0.0
    %3572 = vmatpush1.msra.mxu0 0.0
    %3573 = vmatprep.mubr.f32.mxu0 0.0
    %3574 = vmatmul.mubr.f32.gmra.mrb[0].mxu0 %v3504
    %v3575 = vpop.f32.mrb[0].mxu0
    %v3576 = vadd.f32 0.0, %v3575
    %v3577 = vpop.f32.mrb[0].mxu0
    %3578 = vmatprep.mubr.f32.mxu0 0.0
    %3579 = vmatmul.mubr.f32.gmra.mrb[0].mxu0 %v3507
    %v3580 = vpop.f32.mrb[0].mxu0
    %v3581 = vadd.f32 0.0, %v3580
    %v3582 = vpop.f32.mrb[0].mxu0
    %3583 = vdwg.mxu0
    %v3584 = vadd.f32 %v2004, %v3576
    %v3585 = vadd.f32 %v2005, %v3581
    %s3586 = scalar_lea.vmem %s8, 1
    %v3587 = vld [vmem:[%s3586] sm:$0x1]
    %v3589 = vlaneseq
    %v3590 = vshrl.u32 %v3589, 7
    %v3591 = vsub.s32 0, %v3590
    %v3592 = vrot.slane %v3587, %v3591
    %v3594 = vadd.f32 %v3584, %v3592
    %v3595 = vadd.f32 %v3585, %v3592
    %s3596 = scalar_lea.vmem %s9, 1
    %v3597 = vld [vmem:[%s3596] sm:$0x1]
    %s3598 = scalar_lea.vmem %s10, 1
    %v3599 = vld [vmem:[%s3598] sm:$0x1]
    %v3600 = vsel %vm179, %v3594, 0.0
    %3601 = vadd.xlane.f32.xlu0 %v3600
    %v3602 = vpop.xlane.xlu0 %3601
    %v3603 = vsel %vm179, %v3595, 0.0
    %3604 = vadd.xlane.f32.xlu0 %v3603
    %v3605 = vpop.xlane.xlu0 %3604
    %v3606 = vmul.f32 %v3602, %v186
    %v3607 = vmul.f32 %v3605, %v186
    %v3608 = vsub.f32 %v3594, %v3606
    %v3609 = vsub.f32 %v3595, %v3607
    %v3610 = vmul.f32 %v3608, %v3608
    %v3611 = vmul.f32 %v3609, %v3609
    %v3612 = vsel %vm179, %v3610, 0.0
    %3613 = vadd.xlane.f32.xlu0 %v3612
    %v3614 = vpop.xlane.xlu0 %3613
    %v3615 = vsel %vm179, %v3611, 0.0
    %3616 = vadd.xlane.f32.xlu0 %v3615
    %v3617 = vpop.xlane.xlu0 %3616
    %v3618 = vmul.f32 %v3614, %v186
    %v3619 = vmul.f32 %v3617, %v186
    %v3620 = vadd.f32 %v3618, 1e-05
    %v3621 = vadd.f32 %v3619, 1e-05
    %v3622 = vrsqrt.pop %v3620
    %v3623 = vrsqrt.pop %v3621
    %v3624 = vmul.f32 %v3608, %v3622
    %v3625 = vmul.f32 %v3609, %v3623
    %v3627 = vlaneseq
    %v3628 = vshrl.u32 %v3627, 7
    %v3629 = vsub.s32 0, %v3628
    %v3630 = vrot.slane %v3597, %v3629
    %v3632 = vmul.f32 %v3624, %v3630
    %v3633 = vmul.f32 %v3625, %v3630
    %v3635 = vlaneseq
    %v3636 = vshrl.u32 %v3635, 7
    %v3637 = vsub.s32 0, %v3636
    %v3638 = vrot.slane %v3599, %v3637
    %v3640 = vadd.f32 %v3632, %v3638
    %v3641 = vadd.f32 %v3633, %v3638
    %s3642 = scalar_lea.vmem %s11, 32
    %v3643 = vld [vmem:[%s3642] sm:$0xff]
    %v3644 = vld [vmem:[%s3642 + $0x8] sm:$0xff]
    %v3645 = vld [vmem:[%s3642 + $0x10] sm:$0xff]
    %v3646 = vld [vmem:[%s3642 + $0x18] sm:$0xff]
    %s3647 = scalar_lea.vmem %s12, 1
    %v3648 = vld [vmem:[%s3647] sm:$0x1]
    %v3650 = vlaneseq
    %v3651 = vshrl.u32 %v3650, 7
    %v3652 = vsub.s32 0, %v3651
    %v3653 = vrot.slane %v3648, %v3652
    %v3656 = vsel %vm179, %v3640, 0
    %v3659 = vsel %vm179, %v3641, 0
    %3661 = vmatprep.subr.mxu0 0.0
    %3662 = vmatpush1.msra.mxu0 %v3643
    %3663 = vmatprep.subr.mxu0 0.0
    %3664 = vmatpush1.msra.mxu0 %v3644
    %3665 = vmatprep.subr.mxu0 0.0
    %3666 = vmatpush1.msra.mxu0 %v3645
    %3667 = vmatprep.subr.mxu0 0.0
    %3668 = vmatpush1.msra.mxu0 %v3646
    %3669 = vmatprep.subr.mxu0 0.0
    %3670 = vmatpush1.msra.mxu0 0.0
    %3671 = vmatprep.subr.mxu0 0.0
    %3672 = vmatpush1.msra.mxu0 0.0
    %3673 = vmatprep.subr.mxu0 0.0
    %3674 = vmatpush1.msra.mxu0 0.0
    %3675 = vmatprep.subr.mxu0 0.0
    %3676 = vmatpush1.msra.mxu0 0.0
    %3677 = vmatprep.subr.mxu0 0.0
    %3678 = vmatpush1.msra.mxu0 0.0
    %3679 = vmatprep.subr.mxu0 0.0
    %3680 = vmatpush1.msra.mxu0 0.0
    %3681 = vmatprep.subr.mxu0 0.0
    %3682 = vmatpush1.msra.mxu0 0.0
    %3683 = vmatprep.subr.mxu0 0.0
    %3684 = vmatpush1.msra.mxu0 0.0
    %3685 = vmatprep.subr.mxu0 0.0
    %3686 = vmatpush1.msra.mxu0 0.0
    %3687 = vmatprep.subr.mxu0 0.0
    %3688 = vmatpush1.msra.mxu0 0.0
    %3689 = vmatprep.subr.mxu0 0.0
    %3690 = vmatpush1.msra.mxu0 0.0
    %3691 = vmatprep.subr.mxu0 0.0
    %3692 = vmatpush1.msra.mxu0 0.0
    %3693 = vmatprep.subr.mxu0 0.0
    %3694 = vmatpush1.msra.mxu0 0.0
    %3695 = vmatprep.subr.mxu0 0.0
    %3696 = vmatpush1.msra.mxu0 0.0
    %3697 = vmatprep.subr.mxu0 0.0
    %3698 = vmatpush1.msra.mxu0 0.0
    %3699 = vmatprep.subr.mxu0 0.0
    %3700 = vmatpush1.msra.mxu0 0.0
    %3701 = vmatprep.subr.mxu0 0.0
    %3702 = vmatpush1.msra.mxu0 0.0
    %3703 = vmatprep.subr.mxu0 0.0
    %3704 = vmatpush1.msra.mxu0 0.0
    %3705 = vmatprep.subr.mxu0 0.0
    %3706 = vmatpush1.msra.mxu0 0.0
    %3707 = vmatprep.subr.mxu0 0.0
    %3708 = vmatpush1.msra.mxu0 0.0
    %3709 = vmatprep.subr.mxu0 0.0
    %3710 = vmatpush1.msra.mxu0 0.0
    %3711 = vmatprep.subr.mxu0 0.0
    %3712 = vmatpush1.msra.mxu0 0.0
    %3713 = vmatprep.subr.mxu0 0.0
    %3714 = vmatpush1.msra.mxu0 0.0
    %3715 = vmatprep.subr.mxu0 0.0
    %3716 = vmatpush1.msra.mxu0 0.0
    %3717 = vmatprep.subr.mxu0 0.0
    %3718 = vmatpush1.msra.mxu0 0.0
    %3719 = vmatprep.subr.mxu0 0.0
    %3720 = vmatpush1.msra.mxu0 0.0
    %3721 = vmatprep.subr.mxu0 0.0
    %3722 = vmatpush1.msra.mxu0 0.0
    %3723 = vmatprep.subr.mxu0 0.0
    %3724 = vmatpush1.msra.mxu0 0.0
    %3725 = vmatprep.mubr.f32.mxu0 0.0
    %3726 = vmatmul.mubr.f32.gmra.mrb[0].mxu0 %v3656
    %v3727 = vpop.f32.mrb[0].mxu0
    %v3728 = vadd.f32 %v3653, %v3727
    %v3729 = vpop.f32.mrb[0].mxu0
    %3730 = vmatprep.mubr.f32.mxu0 0.0
    %3731 = vmatmul.mubr.f32.gmra.mrb[0].mxu0 %v3659
    %v3732 = vpop.f32.mrb[0].mxu0
    %v3733 = vadd.f32 %v3653, %v3732
    %v3734 = vpop.f32.mrb[0].mxu0
    %3735 = vdwg.mxu0
    %v3736 = vmax.f32 %v3728, 0.0
    %v3737 = vmax.f32 %v3733, 0.0
    %s3738 = scalar_lea.vmem %s13, 128
    %v3739 = vld [vmem:[%s3738] sm:$0xff]
    %v3740 = vld [vmem:[%s3738 + $0x8] sm:$0xff]
    %v3741 = vld [vmem:[%s3738 + $0x10] sm:$0xff]
    %v3742 = vld [vmem:[%s3738 + $0x18] sm:$0xff]
    %v3743 = vld [vmem:[%s3738 + $0x20] sm:$0xff]
    %v3744 = vld [vmem:[%s3738 + $0x28] sm:$0xff]
    %v3745 = vld [vmem:[%s3738 + $0x30] sm:$0xff]
    %v3746 = vld [vmem:[%s3738 + $0x38] sm:$0xff]
    %v3747 = vld [vmem:[%s3738 + $0x40] sm:$0xff]
    %v3748 = vld [vmem:[%s3738 + $0x48] sm:$0xff]
    %v3749 = vld [vmem:[%s3738 + $0x50] sm:$0xff]
    %v3750 = vld [vmem:[%s3738 + $0x58] sm:$0xff]
    %v3751 = vld [vmem:[%s3738 + $0x60] sm:$0xff]
    %v3752 = vld [vmem:[%s3738 + $0x68] sm:$0xff]
    %v3753 = vld [vmem:[%s3738 + $0x70] sm:$0xff]
    %v3754 = vld [vmem:[%s3738 + $0x78] sm:$0xff]
    %3755 = vmatprep.subr.mxu0 0.0
    %3756 = vmatpush1.msra.mxu0 %v3739
    %3757 = vmatprep.subr.mxu0 0.0
    %3758 = vmatpush1.msra.mxu0 %v3740
    %3759 = vmatprep.subr.mxu0 0.0
    %3760 = vmatpush1.msra.mxu0 %v3741
    %3761 = vmatprep.subr.mxu0 0.0
    %3762 = vmatpush1.msra.mxu0 %v3742
    %3763 = vmatprep.subr.mxu0 0.0
    %3764 = vmatpush1.msra.mxu0 %v3743
    %3765 = vmatprep.subr.mxu0 0.0
    %3766 = vmatpush1.msra.mxu0 %v3744
    %3767 = vmatprep.subr.mxu0 0.0
    %3768 = vmatpush1.msra.mxu0 %v3745
    %3769 = vmatprep.subr.mxu0 0.0
    %3770 = vmatpush1.msra.mxu0 %v3746
    %3771 = vmatprep.subr.mxu0 0.0
    %3772 = vmatpush1.msra.mxu0 %v3747
    %3773 = vmatprep.subr.mxu0 0.0
    %3774 = vmatpush1.msra.mxu0 %v3748
    %3775 = vmatprep.subr.mxu0 0.0
    %3776 = vmatpush1.msra.mxu0 %v3749
    %3777 = vmatprep.subr.mxu0 0.0
    %3778 = vmatpush1.msra.mxu0 %v3750
    %3779 = vmatprep.subr.mxu0 0.0
    %3780 = vmatpush1.msra.mxu0 %v3751
    %3781 = vmatprep.subr.mxu0 0.0
    %3782 = vmatpush1.msra.mxu0 %v3752
    %3783 = vmatprep.subr.mxu0 0.0
    %3784 = vmatpush1.msra.mxu0 %v3753
    %3785 = vmatprep.subr.mxu0 0.0
    %3786 = vmatpush1.msra.mxu0 %v3754
    %3787 = vmatprep.subr.mxu0 0.0
    %3788 = vmatpush1.msra.mxu0 0.0
    %3789 = vmatprep.subr.mxu0 0.0
    %3790 = vmatpush1.msra.mxu0 0.0
    %3791 = vmatprep.subr.mxu0 0.0
    %3792 = vmatpush1.msra.mxu0 0.0
    %3793 = vmatprep.subr.mxu0 0.0
    %3794 = vmatpush1.msra.mxu0 0.0
    %3795 = vmatprep.subr.mxu0 0.0
    %3796 = vmatpush1.msra.mxu0 0.0
    %3797 = vmatprep.subr.mxu0 0.0
    %3798 = vmatpush1.msra.mxu0 0.0
    %3799 = vmatprep.subr.mxu0 0.0
    %3800 = vmatpush1.msra.mxu0 0.0
    %3801 = vmatprep.subr.mxu0 0.0
    %3802 = vmatpush1.msra.mxu0 0.0
    %3803 = vmatprep.subr.mxu0 0.0
    %3804 = vmatpush1.msra.mxu0 0.0
    %3805 = vmatprep.subr.mxu0 0.0
    %3806 = vmatpush1.msra.mxu0 0.0
    %3807 = vmatprep.subr.mxu0 0.0
    %3808 = vmatpush1.msra.mxu0 0.0
    %3809 = vmatprep.subr.mxu0 0.0
    %3810 = vmatpush1.msra.mxu0 0.0
    %3811 = vmatprep.subr.mxu0 0.0
    %3812 = vmatpush1.msra.mxu0 0.0
    %3813 = vmatprep.subr.mxu0 0.0
    %3814 = vmatpush1.msra.mxu0 0.0
    %3815 = vmatprep.subr.mxu0 0.0
    %3816 = vmatpush1.msra.mxu0 0.0
    %3817 = vmatprep.subr.mxu0 0.0
    %3818 = vmatpush1.msra.mxu0 0.0
    %3819 = vmatprep.mubr.f32.mxu0 0.0
    %3820 = vmatmul.mubr.f32.gmra.mrb[0].mxu0 %v3736
    %v3821 = vpop.f32.mrb[0].mxu0
    %v3822 = vadd.f32 0.0, %v3821
    %v3823 = vpop.f32.mrb[0].mxu0
    %3824 = vmatprep.mubr.f32.mxu0 0.0
    %3825 = vmatmul.mubr.f32.gmra.mrb[0].mxu0 %v3737
    %v3826 = vpop.f32.mrb[0].mxu0
    %v3827 = vadd.f32 0.0, %v3826
    %v3828 = vpop.f32.mrb[0].mxu0
    %3829 = vdwg.mxu0
    %v3830 = vadd.f32 %v3594, %v3822
    %v3831 = vadd.f32 %v3595, %v3827
    %s3832 = scalar_lea.vmem %s14, 1
    %v3833 = vld [vmem:[%s3832] sm:$0x1]
    %v3835 = vlaneseq
    %v3836 = vshrl.u32 %v3835, 7
    %v3837 = vsub.s32 0, %v3836
    %v3838 = vrot.slane %v3833, %v3837
    %v3840 = vadd.f32 %v3830, %v3838
    %v3841 = vadd.f32 %v3831, %v3838
    %s3842 = scalar_lea.vmem %s3, 2
    %v3843 = vld [vmem:[%s3842] sm:$0x1]
    %s3844 = scalar_lea.vmem %s4, 2
    %v3845 = vld [vmem:[%s3844] sm:$0x1]
    %v3846 = vsel %vm179, %v3840, 0.0
    %3847 = vadd.xlane.f32.xlu0 %v3846
    %v3848 = vpop.xlane.xlu0 %3847
    %v3849 = vsel %vm179, %v3841, 0.0
    %3850 = vadd.xlane.f32.xlu0 %v3849
    %v3851 = vpop.xlane.xlu0 %3850
    %v3852 = vmul.f32 %v3848, %v186
    %v3853 = vmul.f32 %v3851, %v186
    %v3854 = vsub.f32 %v3840, %v3852
    %v3855 = vsub.f32 %v3841, %v3853
    %v3856 = vmul.f32 %v3854, %v3854
    %v3857 = vmul.f32 %v3855, %v3855
    %v3858 = vsel %vm179, %v3856, 0.0
    %3859 = vadd.xlane.f32.xlu0 %v3858
    %v3860 = vpop.xlane.xlu0 %3859
    %v3861 = vsel %vm179, %v3857, 0.0
    %3862 = vadd.xlane.f32.xlu0 %v3861
    %v3863 = vpop.xlane.xlu0 %3862
    %v3864 = vmul.f32 %v3860, %v186
    %v3865 = vmul.f32 %v3863, %v186
    %v3866 = vadd.f32 %v3864, 1e-05
    %v3867 = vadd.f32 %v3865, 1e-05
    %v3868 = vrsqrt.pop %v3866
    %v3869 = vrsqrt.pop %v3867
    %v3870 = vmul.f32 %v3854, %v3868
    %v3871 = vmul.f32 %v3855, %v3869
    %v3873 = vlaneseq
    %v3874 = vshrl.u32 %v3873, 7
    %v3875 = vsub.s32 0, %v3874
    %v3876 = vrot.slane %v3843, %v3875
    %v3878 = vmul.f32 %v3870, %v3876
    %v3879 = vmul.f32 %v3871, %v3876
    %v3881 = vlaneseq
    %v3882 = vshrl.u32 %v3881, 7
    %v3883 = vsub.s32 0, %v3882
    %v3884 = vrot.slane %v3845, %v3883
    %v3886 = vadd.f32 %v3878, %v3884
    %v3887 = vadd.f32 %v3879, %v3884
    %s3888 = scalar_lea.vmem %s5, 64
    %v3889 = vld [vmem:[%s3888] sm:$0xff]
    %v3890 = vld [vmem:[%s3888 + $0x8] sm:$0xff]
    %v3891 = vld [vmem:[%s3888 + $0x10] sm:$0xff]
    %v3892 = vld [vmem:[%s3888 + $0x18] sm:$0xff]
    %s3893 = scalar_lea.vmem %s6, 2
    %v3894 = vld [vmem:[%s3893] sm:$0x1]
    %v3896 = vlaneseq
    %v3897 = vshrl.u32 %v3896, 7
    %v3898 = vsub.s32 0, %v3897
    %v3899 = vrot.slane %v3894, %v3898
    %v3902 = vsel %vm179, %v3886, 0
    %v3905 = vsel %vm179, %v3887, 0
    %3907 = vmatprep.subr.mxu0 0.0
    %3908 = vmatpush1.msra.mxu0 %v3889
    %3909 = vmatprep.subr.mxu0 0.0
    %3910 = vmatpush1.msra.mxu0 %v3890
    %3911 = vmatprep.subr.mxu0 0.0
    %3912 = vmatpush1.msra.mxu0 %v3891
    %3913 = vmatprep.subr.mxu0 0.0
    %3914 = vmatpush1.msra.mxu0 %v3892
    %3915 = vmatprep.subr.mxu0 0.0
    %3916 = vmatpush1.msra.mxu0 0.0
    %3917 = vmatprep.subr.mxu0 0.0
    %3918 = vmatpush1.msra.mxu0 0.0
    %3919 = vmatprep.subr.mxu0 0.0
    %3920 = vmatpush1.msra.mxu0 0.0
    %3921 = vmatprep.subr.mxu0 0.0
    %3922 = vmatpush1.msra.mxu0 0.0
    %3923 = vmatprep.subr.mxu0 0.0
    %3924 = vmatpush1.msra.mxu0 0.0
    %3925 = vmatprep.subr.mxu0 0.0
    %3926 = vmatpush1.msra.mxu0 0.0
    %3927 = vmatprep.subr.mxu0 0.0
    %3928 = vmatpush1.msra.mxu0 0.0
    %3929 = vmatprep.subr.mxu0 0.0
    %3930 = vmatpush1.msra.mxu0 0.0
    %3931 = vmatprep.subr.mxu0 0.0
    %3932 = vmatpush1.msra.mxu0 0.0
    %3933 = vmatprep.subr.mxu0 0.0
    %3934 = vmatpush1.msra.mxu0 0.0
    %3935 = vmatprep.subr.mxu0 0.0
    %3936 = vmatpush1.msra.mxu0 0.0
    %3937 = vmatprep.subr.mxu0 0.0
    %3938 = vmatpush1.msra.mxu0 0.0
    %3939 = vmatprep.subr.mxu0 0.0
    %3940 = vmatpush1.msra.mxu0 0.0
    %3941 = vmatprep.subr.mxu0 0.0
    %3942 = vmatpush1.msra.mxu0 0.0
    %3943 = vmatprep.subr.mxu0 0.0
    %3944 = vmatpush1.msra.mxu0 0.0
    %3945 = vmatprep.subr.mxu0 0.0
    %3946 = vmatpush1.msra.mxu0 0.0
    %3947 = vmatprep.subr.mxu0 0.0
    %3948 = vmatpush1.msra.mxu0 0.0
    %3949 = vmatprep.subr.mxu0 0.0
    %3950 = vmatpush1.msra.mxu0 0.0
    %3951 = vmatprep.subr.mxu0 0.0
    %3952 = vmatpush1.msra.mxu0 0.0
    %3953 = vmatprep.subr.mxu0 0.0
    %3954 = vmatpush1.msra.mxu0 0.0
    %3955 = vmatprep.subr.mxu0 0.0
    %3956 = vmatpush1.msra.mxu0 0.0
    %3957 = vmatprep.subr.mxu0 0.0
    %3958 = vmatpush1.msra.mxu0 0.0
    %3959 = vmatprep.subr.mxu0 0.0
    %3960 = vmatpush1.msra.mxu0 0.0
    %3961 = vmatprep.subr.mxu0 0.0
    %3962 = vmatpush1.msra.mxu0 0.0
    %3963 = vmatprep.subr.mxu0 0.0
    %3964 = vmatpush1.msra.mxu0 0.0
    %3965 = vmatprep.subr.mxu0 0.0
    %3966 = vmatpush1.msra.mxu0 0.0
    %3967 = vmatprep.subr.mxu0 0.0
    %3968 = vmatpush1.msra.mxu0 0.0
    %3969 = vmatprep.subr.mxu0 0.0
    %3970 = vmatpush1.msra.mxu0 0.0
    %3971 = vmatprep.mubr.f32.mxu0 0.0
    %3972 = vmatmul.mubr.f32.gmra.mrb[0].mxu0 %v3902
    %v3973 = vpop.f32.mrb[0].mxu0
    %v3974 = vadd.f32 %v3899, %v3973
    %v3975 = vpop.f32.mrb[0].mxu0
    %3976 = vmatprep.mubr.f32.mxu0 0.0
    %3977 = vmatmul.mubr.f32.gmra.mrb[0].mxu0 %v3905
    %v3978 = vpop.f32.mrb[0].mxu0
    %v3979 = vadd.f32 %v3899, %v3978
    %v3980 = vpop.f32.mrb[0].mxu0
    %3981 = vdwg.mxu0
    %v3982 = vmul.f32 %v3974, 0.17677669
    %v3983 = vmul.f32 %v3979, 0.17677669
    %3985 = vrot.lane.b32.xlu0 %v3974, 96
    %v3986 = vpop.permute.xlu0 %3985
    %v3988 = vsel %vm320, %v3982, 0
    %v3990 = vsel %vm320, %v3986, 0
    %3992 = vmatprep.subr.mxu0 0.0
    %3993 = vmatpush1.xpose.msra.mxu0 %v3990
    %3994 = vmatprep.subr.mxu0 0.0
    %3995 = vmatpush1.xpose.msra.mxu0 0.0
    %3996 = vmatprep.subr.mxu0 0.0
    %3997 = vmatpush1.xpose.msra.mxu0 0.0
    %3998 = vmatprep.subr.mxu0 0.0
    %3999 = vmatpush1.xpose.msra.mxu0 0.0
    %4000 = vmatprep.subr.mxu0 0.0
    %4001 = vmatpush1.xpose.msra.mxu0 0.0
    %4002 = vmatprep.subr.mxu0 0.0
    %4003 = vmatpush1.xpose.msra.mxu0 0.0
    %4004 = vmatprep.subr.mxu0 0.0
    %4005 = vmatpush1.xpose.msra.mxu0 0.0
    %4006 = vmatprep.subr.mxu0 0.0
    %4007 = vmatpush1.xpose.msra.mxu0 0.0
    %4008 = vmatprep.subr.mxu0 0.0
    %4009 = vmatpush1.xpose.msra.mxu0 0.0
    %4010 = vmatprep.subr.mxu0 0.0
    %4011 = vmatpush1.xpose.msra.mxu0 0.0
    %4012 = vmatprep.subr.mxu0 0.0
    %4013 = vmatpush1.xpose.msra.mxu0 0.0
    %4014 = vmatprep.subr.mxu0 0.0
    %4015 = vmatpush1.xpose.msra.mxu0 0.0
    %4016 = vmatprep.subr.mxu0 0.0
    %4017 = vmatpush1.xpose.msra.mxu0 0.0
    %4018 = vmatprep.subr.mxu0 0.0
    %4019 = vmatpush1.xpose.msra.mxu0 0.0
    %4020 = vmatprep.subr.mxu0 0.0
    %4021 = vmatpush1.xpose.msra.mxu0 0.0
    %4022 = vmatprep.subr.mxu0 0.0
    %4023 = vmatpush1.xpose.msra.mxu0 0.0
    %4024 = vmatprep.subr.mxu0 0.0
    %4025 = vmatpush1.xpose.msra.mxu0 0.0
    %4026 = vmatprep.subr.mxu0 0.0
    %4027 = vmatpush1.xpose.msra.mxu0 0.0
    %4028 = vmatprep.subr.mxu0 0.0
    %4029 = vmatpush1.xpose.msra.mxu0 0.0
    %4030 = vmatprep.subr.mxu0 0.0
    %4031 = vmatpush1.xpose.msra.mxu0 0.0
    %4032 = vmatprep.subr.mxu0 0.0
    %4033 = vmatpush1.xpose.msra.mxu0 0.0
    %4034 = vmatprep.subr.mxu0 0.0
    %4035 = vmatpush1.xpose.msra.mxu0 0.0
    %4036 = vmatprep.subr.mxu0 0.0
    %4037 = vmatpush1.xpose.msra.mxu0 0.0
    %4038 = vmatprep.subr.mxu0 0.0
    %4039 = vmatpush1.xpose.msra.mxu0 0.0
    %4040 = vmatprep.subr.mxu0 0.0
    %4041 = vmatpush1.xpose.msra.mxu0 0.0
    %4042 = vmatprep.subr.mxu0 0.0
    %4043 = vmatpush1.xpose.msra.mxu0 0.0
    %4044 = vmatprep.subr.mxu0 0.0
    %4045 = vmatpush1.xpose.msra.mxu0 0.0
    %4046 = vmatprep.subr.mxu0 0.0
    %4047 = vmatpush1.xpose.msra.mxu0 0.0
    %4048 = vmatprep.subr.mxu0 0.0
    %4049 = vmatpush1.xpose.msra.mxu0 0.0
    %4050 = vmatprep.subr.mxu0 0.0
    %4051 = vmatpush1.xpose.msra.mxu0 0.0
    %4052 = vmatprep.subr.mxu0 0.0
    %4053 = vmatpush1.xpose.msra.mxu0 0.0
    %4054 = vmatprep.subr.mxu0 0.0
    %4055 = vmatpush1.xpose.msra.mxu0 0.0
    %4056 = vmatprep.mubr.f32.mxu0 0.0
    %4057 = vmatmul.mubr.f32.gmra.mrb[0].mxu0 %v3988
    %v4058 = vpop.f32.mrb[0].mxu0
    %v4059 = vadd.f32 %v176, %v4058
    %v4060 = vpop.f32.mrb[0].mxu0
    %4061 = vdwg.mxu0
    %4063 = vrot.lane.b32.xlu0 %v3979, 96
    %v4064 = vpop.permute.xlu0 %4063
    %v4066 = vsel %vm320, %v3983, 0
    %v4068 = vsel %vm320, %v4064, 0
    %4070 = vmatprep.subr.mxu0 0.0
    %4071 = vmatpush1.xpose.msra.mxu0 %v4068
    %4072 = vmatprep.subr.mxu0 0.0
    %4073 = vmatpush1.xpose.msra.mxu0 0.0
    %4074 = vmatprep.subr.mxu0 0.0
    %4075 = vmatpush1.xpose.msra.mxu0 0.0
    %4076 = vmatprep.subr.mxu0 0.0
    %4077 = vmatpush1.xpose.msra.mxu0 0.0
    %4078 = vmatprep.subr.mxu0 0.0
    %4079 = vmatpush1.xpose.msra.mxu0 0.0
    %4080 = vmatprep.subr.mxu0 0.0
    %4081 = vmatpush1.xpose.msra.mxu0 0.0
    %4082 = vmatprep.subr.mxu0 0.0
    %4083 = vmatpush1.xpose.msra.mxu0 0.0
    %4084 = vmatprep.subr.mxu0 0.0
    %4085 = vmatpush1.xpose.msra.mxu0 0.0
    %4086 = vmatprep.subr.mxu0 0.0
    %4087 = vmatpush1.xpose.msra.mxu0 0.0
    %4088 = vmatprep.subr.mxu0 0.0
    %4089 = vmatpush1.xpose.msra.mxu0 0.0
    %4090 = vmatprep.subr.mxu0 0.0
    %4091 = vmatpush1.xpose.msra.mxu0 0.0
    %4092 = vmatprep.subr.mxu0 0.0
    %4093 = vmatpush1.xpose.msra.mxu0 0.0
    %4094 = vmatprep.subr.mxu0 0.0
    %4095 = vmatpush1.xpose.msra.mxu0 0.0
    %4096 = vmatprep.subr.mxu0 0.0
    %4097 = vmatpush1.xpose.msra.mxu0 0.0
    %4098 = vmatprep.subr.mxu0 0.0
    %4099 = vmatpush1.xpose.msra.mxu0 0.0
    %4100 = vmatprep.subr.mxu0 0.0
    %4101 = vmatpush1.xpose.msra.mxu0 0.0
    %4102 = vmatprep.subr.mxu0 0.0
    %4103 = vmatpush1.xpose.msra.mxu0 0.0
    %4104 = vmatprep.subr.mxu0 0.0
    %4105 = vmatpush1.xpose.msra.mxu0 0.0
    %4106 = vmatprep.subr.mxu0 0.0
    %4107 = vmatpush1.xpose.msra.mxu0 0.0
    %4108 = vmatprep.subr.mxu0 0.0
    %4109 = vmatpush1.xpose.msra.mxu0 0.0
    %4110 = vmatprep.subr.mxu0 0.0
    %4111 = vmatpush1.xpose.msra.mxu0 0.0
    %4112 = vmatprep.subr.mxu0 0.0
    %4113 = vmatpush1.xpose.msra.mxu0 0.0
    %4114 = vmatprep.subr.mxu0 0.0
    %4115 = vmatpush1.xpose.msra.mxu0 0.0
    %4116 = vmatprep.subr.mxu0 0.0
    %4117 = vmatpush1.xpose.msra.mxu0 0.0
    %4118 = vmatprep.subr.mxu0 0.0
    %4119 = vmatpush1.xpose.msra.mxu0 0.0
    %4120 = vmatprep.subr.mxu0 0.0
    %4121 = vmatpush1.xpose.msra.mxu0 0.0
    %4122 = vmatprep.subr.mxu0 0.0
    %4123 = vmatpush1.xpose.msra.mxu0 0.0
    %4124 = vmatprep.subr.mxu0 0.0
    %4125 = vmatpush1.xpose.msra.mxu0 0.0
    %4126 = vmatprep.subr.mxu0 0.0
    %4127 = vmatpush1.xpose.msra.mxu0 0.0
    %4128 = vmatprep.subr.mxu0 0.0
    %4129 = vmatpush1.xpose.msra.mxu0 0.0
    %4130 = vmatprep.subr.mxu0 0.0
    %4131 = vmatpush1.xpose.msra.mxu0 0.0
    %4132 = vmatprep.subr.mxu0 0.0
    %4133 = vmatpush1.xpose.msra.mxu0 0.0
    %4134 = vmatprep.mubr.f32.mxu0 0.0
    %4135 = vmatmul.mubr.f32.gmra.mrb[0].mxu0 %v4066
    %v4136 = vpop.f32.mrb[0].mxu0
    %v4137 = vadd.f32 %v176, %v4136
    %v4138 = vpop.f32.mrb[0].mxu0
    %4139 = vdwg.mxu0
    %v4140 = vsel %vm320, %v4059, -inf
    %4141 = vmax.xlane.f32.xlu0 %v4140
    %v4142 = vpop.xlane.xlu0 %4141
    %v4143 = vsel %vm320, %v4137, -inf
    %4144 = vmax.xlane.f32.xlu0 %v4143
    %v4145 = vpop.xlane.xlu0 %4144
    %v4146 = vsub.f32 %v4059, %v4142
    %v4147 = vsub.f32 %v4137, %v4145
    %v4148 = vmul.f32 %v4146, 1.442695
    %v4149 = vpow.pop %v4148
    %v4150 = vmul.f32 %v4147, 1.442695
    %v4151 = vpow.pop %v4150
    %v4152 = vsel %vm320, %v4149, 0.0
    %4153 = vadd.xlane.f32.xlu0 %v4152
    %v4154 = vpop.xlane.xlu0 %4153
    %v4155 = vsel %vm320, %v4151, 0.0
    %4156 = vadd.xlane.f32.xlu0 %v4155
    %v4157 = vpop.xlane.xlu0 %4156
    %v4158 = vrcp.pop %v4154
    %v4159 = vmul.f32 %v4149, %v4158
    %v4160 = vrcp.pop %v4157
    %v4161 = vmul.f32 %v4151, %v4160
    %4162 = vrot.lane.b32.xlu0 %v3974, 64
    %v4163 = vpop.permute.xlu0 %4162
    %v4166 = vsel %vm320, %v4159, 0
    %4168 = vmatprep.subr.mxu0 0.0
    %4169 = vmatpush1.msra.mxu0 %v4163
    %4170 = vmatprep.subr.mxu0 0.0
    %4171 = vmatpush1.msra.mxu0 0.0
    %4172 = vmatprep.subr.mxu0 0.0
    %4173 = vmatpush1.msra.mxu0 0.0
    %4174 = vmatprep.subr.mxu0 0.0
    %4175 = vmatpush1.msra.mxu0 0.0
    %4176 = vmatprep.subr.mxu0 0.0
    %4177 = vmatpush1.msra.mxu0 0.0
    %4178 = vmatprep.subr.mxu0 0.0
    %4179 = vmatpush1.msra.mxu0 0.0
    %4180 = vmatprep.subr.mxu0 0.0
    %4181 = vmatpush1.msra.mxu0 0.0
    %4182 = vmatprep.subr.mxu0 0.0
    %4183 = vmatpush1.msra.mxu0 0.0
    %4184 = vmatprep.subr.mxu0 0.0
    %4185 = vmatpush1.msra.mxu0 0.0
    %4186 = vmatprep.subr.mxu0 0.0
    %4187 = vmatpush1.msra.mxu0 0.0
    %4188 = vmatprep.subr.mxu0 0.0
    %4189 = vmatpush1.msra.mxu0 0.0
    %4190 = vmatprep.subr.mxu0 0.0
    %4191 = vmatpush1.msra.mxu0 0.0
    %4192 = vmatprep.subr.mxu0 0.0
    %4193 = vmatpush1.msra.mxu0 0.0
    %4194 = vmatprep.subr.mxu0 0.0
    %4195 = vmatpush1.msra.mxu0 0.0
    %4196 = vmatprep.subr.mxu0 0.0
    %4197 = vmatpush1.msra.mxu0 0.0
    %4198 = vmatprep.subr.mxu0 0.0
    %4199 = vmatpush1.msra.mxu0 0.0
    %4200 = vmatprep.subr.mxu0 0.0
    %4201 = vmatpush1.msra.mxu0 0.0
    %4202 = vmatprep.subr.mxu0 0.0
    %4203 = vmatpush1.msra.mxu0 0.0
    %4204 = vmatprep.subr.mxu0 0.0
    %4205 = vmatpush1.msra.mxu0 0.0
    %4206 = vmatprep.subr.mxu0 0.0
    %4207 = vmatpush1.msra.mxu0 0.0
    %4208 = vmatprep.subr.mxu0 0.0
    %4209 = vmatpush1.msra.mxu0 0.0
    %4210 = vmatprep.subr.mxu0 0.0
    %4211 = vmatpush1.msra.mxu0 0.0
    %4212 = vmatprep.subr.mxu0 0.0
    %4213 = vmatpush1.msra.mxu0 0.0
    %4214 = vmatprep.subr.mxu0 0.0
    %4215 = vmatpush1.msra.mxu0 0.0
    %4216 = vmatprep.subr.mxu0 0.0
    %4217 = vmatpush1.msra.mxu0 0.0
    %4218 = vmatprep.subr.mxu0 0.0
    %4219 = vmatpush1.msra.mxu0 0.0
    %4220 = vmatprep.subr.mxu0 0.0
    %4221 = vmatpush1.msra.mxu0 0.0
    %4222 = vmatprep.subr.mxu0 0.0
    %4223 = vmatpush1.msra.mxu0 0.0
    %4224 = vmatprep.subr.mxu0 0.0
    %4225 = vmatpush1.msra.mxu0 0.0
    %4226 = vmatprep.subr.mxu0 0.0
    %4227 = vmatpush1.msra.mxu0 0.0
    %4228 = vmatprep.subr.mxu0 0.0
    %4229 = vmatpush1.msra.mxu0 0.0
    %4230 = vmatprep.subr.mxu0 0.0
    %4231 = vmatpush1.msra.mxu0 0.0
    %4232 = vmatprep.mubr.f32.mxu0 0.0
    %4233 = vmatmul.mubr.f32.gmra.mrb[0].mxu0 %v4166
    %v4234 = vpop.f32.mrb[0].mxu0
    %v4235 = vadd.f32 0.0, %v4234
    %v4236 = vpop.f32.mrb[0].mxu0
    %4237 = vdwg.mxu0
    %4238 = vrot.lane.b32.xlu0 %v3979, 64
    %v4239 = vpop.permute.xlu0 %4238
    %v4242 = vsel %vm320, %v4161, 0
    %4244 = vmatprep.subr.mxu0 0.0
    %4245 = vmatpush1.msra.mxu0 %v4239
    %4246 = vmatprep.subr.mxu0 0.0
    %4247 = vmatpush1.msra.mxu0 0.0
    %4248 = vmatprep.subr.mxu0 0.0
    %4249 = vmatpush1.msra.mxu0 0.0
    %4250 = vmatprep.subr.mxu0 0.0
    %4251 = vmatpush1.msra.mxu0 0.0
    %4252 = vmatprep.subr.mxu0 0.0
    %4253 = vmatpush1.msra.mxu0 0.0
    %4254 = vmatprep.subr.mxu0 0.0
    %4255 = vmatpush1.msra.mxu0 0.0
    %4256 = vmatprep.subr.mxu0 0.0
    %4257 = vmatpush1.msra.mxu0 0.0
    %4258 = vmatprep.subr.mxu0 0.0
    %4259 = vmatpush1.msra.mxu0 0.0
    %4260 = vmatprep.subr.mxu0 0.0
    %4261 = vmatpush1.msra.mxu0 0.0
    %4262 = vmatprep.subr.mxu0 0.0
    %4263 = vmatpush1.msra.mxu0 0.0
    %4264 = vmatprep.subr.mxu0 0.0
    %4265 = vmatpush1.msra.mxu0 0.0
    %4266 = vmatprep.subr.mxu0 0.0
    %4267 = vmatpush1.msra.mxu0 0.0
    %4268 = vmatprep.subr.mxu0 0.0
    %4269 = vmatpush1.msra.mxu0 0.0
    %4270 = vmatprep.subr.mxu0 0.0
    %4271 = vmatpush1.msra.mxu0 0.0
    %4272 = vmatprep.subr.mxu0 0.0
    %4273 = vmatpush1.msra.mxu0 0.0
    %4274 = vmatprep.subr.mxu0 0.0
    %4275 = vmatpush1.msra.mxu0 0.0
    %4276 = vmatprep.subr.mxu0 0.0
    %4277 = vmatpush1.msra.mxu0 0.0
    %4278 = vmatprep.subr.mxu0 0.0
    %4279 = vmatpush1.msra.mxu0 0.0
    %4280 = vmatprep.subr.mxu0 0.0
    %4281 = vmatpush1.msra.mxu0 0.0
    %4282 = vmatprep.subr.mxu0 0.0
    %4283 = vmatpush1.msra.mxu0 0.0
    %4284 = vmatprep.subr.mxu0 0.0
    %4285 = vmatpush1.msra.mxu0 0.0
    %4286 = vmatprep.subr.mxu0 0.0
    %4287 = vmatpush1.msra.mxu0 0.0
    %4288 = vmatprep.subr.mxu0 0.0
    %4289 = vmatpush1.msra.mxu0 0.0
    %4290 = vmatprep.subr.mxu0 0.0
    %4291 = vmatpush1.msra.mxu0 0.0
    %4292 = vmatprep.subr.mxu0 0.0
    %4293 = vmatpush1.msra.mxu0 0.0
    %4294 = vmatprep.subr.mxu0 0.0
    %4295 = vmatpush1.msra.mxu0 0.0
    %4296 = vmatprep.subr.mxu0 0.0
    %4297 = vmatpush1.msra.mxu0 0.0
    %4298 = vmatprep.subr.mxu0 0.0
    %4299 = vmatpush1.msra.mxu0 0.0
    %4300 = vmatprep.subr.mxu0 0.0
    %4301 = vmatpush1.msra.mxu0 0.0
    %4302 = vmatprep.subr.mxu0 0.0
    %4303 = vmatpush1.msra.mxu0 0.0
    %4304 = vmatprep.subr.mxu0 0.0
    %4305 = vmatpush1.msra.mxu0 0.0
    %4306 = vmatprep.subr.mxu0 0.0
    %4307 = vmatpush1.msra.mxu0 0.0
    %4308 = vmatprep.mubr.f32.mxu0 0.0
    %4309 = vmatmul.mubr.f32.gmra.mrb[0].mxu0 %v4242
    %v4310 = vpop.f32.mrb[0].mxu0
    %v4311 = vadd.f32 0.0, %v4310
    %v4312 = vpop.f32.mrb[0].mxu0
    %4313 = vdwg.mxu0
    %4314 = vrot.lane.b32.xlu0 %v3982, 120
    %v4315 = vpop.permute.xlu0 %4314
    %4316 = vrot.lane.b32.xlu0 %v3974, 88
    %v4317 = vpop.permute.xlu0 %4316
    %v4318 = vsel %vm320, %v4315, 0
    %v4320 = vsel %vm320, %v4317, 0
    %4322 = vmatprep.subr.mxu0 0.0
    %4323 = vmatpush1.xpose.msra.mxu0 %v4320
    %4324 = vmatprep.subr.mxu0 0.0
    %4325 = vmatpush1.xpose.msra.mxu0 0.0
    %4326 = vmatprep.subr.mxu0 0.0
    %4327 = vmatpush1.xpose.msra.mxu0 0.0
    %4328 = vmatprep.subr.mxu0 0.0
    %4329 = vmatpush1.xpose.msra.mxu0 0.0
    %4330 = vmatprep.subr.mxu0 0.0
    %4331 = vmatpush1.xpose.msra.mxu0 0.0
    %4332 = vmatprep.subr.mxu0 0.0
    %4333 = vmatpush1.xpose.msra.mxu0 0.0
    %4334 = vmatprep.subr.mxu0 0.0
    %4335 = vmatpush1.xpose.msra.mxu0 0.0
    %4336 = vmatprep.subr.mxu0 0.0
    %4337 = vmatpush1.xpose.msra.mxu0 0.0
    %4338 = vmatprep.subr.mxu0 0.0
    %4339 = vmatpush1.xpose.msra.mxu0 0.0
    %4340 = vmatprep.subr.mxu0 0.0
    %4341 = vmatpush1.xpose.msra.mxu0 0.0
    %4342 = vmatprep.subr.mxu0 0.0
    %4343 = vmatpush1.xpose.msra.mxu0 0.0
    %4344 = vmatprep.subr.mxu0 0.0
    %4345 = vmatpush1.xpose.msra.mxu0 0.0
    %4346 = vmatprep.subr.mxu0 0.0
    %4347 = vmatpush1.xpose.msra.mxu0 0.0
    %4348 = vmatprep.subr.mxu0 0.0
    %4349 = vmatpush1.xpose.msra.mxu0 0.0
    %4350 = vmatprep.subr.mxu0 0.0
    %4351 = vmatpush1.xpose.msra.mxu0 0.0
    %4352 = vmatprep.subr.mxu0 0.0
    %4353 = vmatpush1.xpose.msra.mxu0 0.0
    %4354 = vmatprep.subr.mxu0 0.0
    %4355 = vmatpush1.xpose.msra.mxu0 0.0
    %4356 = vmatprep.subr.mxu0 0.0
    %4357 = vmatpush1.xpose.msra.mxu0 0.0
    %4358 = vmatprep.subr.mxu0 0.0
    %4359 = vmatpush1.xpose.msra.mxu0 0.0
    %4360 = vmatprep.subr.mxu0 0.0
    %4361 = vmatpush1.xpose.msra.mxu0 0.0
    %4362 = vmatprep.subr.mxu0 0.0
    %4363 = vmatpush1.xpose.msra.mxu0 0.0
    %4364 = vmatprep.subr.mxu0 0.0
    %4365 = vmatpush1.xpose.msra.mxu0 0.0
    %4366 = vmatprep.subr.mxu0 0.0
    %4367 = vmatpush1.xpose.msra.mxu0 0.0
    %4368 = vmatprep.subr.mxu0 0.0
    %4369 = vmatpush1.xpose.msra.mxu0 0.0
    %4370 = vmatprep.subr.mxu0 0.0
    %4371 = vmatpush1.xpose.msra.mxu0 0.0
    %4372 = vmatprep.subr.mxu0 0.0
    %4373 = vmatpush1.xpose.msra.mxu0 0.0
    %4374 = vmatprep.subr.mxu0 0.0
    %4375 = vmatpush1.xpose.msra.mxu0 0.0
    %4376 = vmatprep.subr.mxu0 0.0
    %4377 = vmatpush1.xpose.msra.mxu0 0.0
    %4378 = vmatprep.subr.mxu0 0.0
    %4379 = vmatpush1.xpose.msra.mxu0 0.0
    %4380 = vmatprep.subr.mxu0 0.0
    %4381 = vmatpush1.xpose.msra.mxu0 0.0
    %4382 = vmatprep.subr.mxu0 0.0
    %4383 = vmatpush1.xpose.msra.mxu0 0.0
    %4384 = vmatprep.subr.mxu0 0.0
    %4385 = vmatpush1.xpose.msra.mxu0 0.0
    %4386 = vmatprep.mubr.f32.mxu0 0.0
    %4387 = vmatmul.mubr.f32.gmra.mrb[0].mxu0 %v4318
    %v4388 = vpop.f32.mrb[0].mxu0
    %v4389 = vadd.f32 %v176, %v4388
    %v4390 = vpop.f32.mrb[0].mxu0
    %4391 = vdwg.mxu0
    %4392 = vrot.lane.b32.xlu0 %v3983, 120
    %v4393 = vpop.permute.xlu0 %4392
    %4394 = vrot.lane.b32.xlu0 %v3979, 88
    %v4395 = vpop.permute.xlu0 %4394
    %v4396 = vsel %vm320, %v4393, 0
    %v4398 = vsel %vm320, %v4395, 0
    %4400 = vmatprep.subr.mxu0 0.0
    %4401 = vmatpush1.xpose.msra.mxu0 %v4398
    %4402 = vmatprep.subr.mxu0 0.0
    %4403 = vmatpush1.xpose.msra.mxu0 0.0
    %4404 = vmatprep.subr.mxu0 0.0
    %4405 = vmatpush1.xpose.msra.mxu0 0.0
    %4406 = vmatprep.subr.mxu0 0.0
    %4407 = vmatpush1.xpose.msra.mxu0 0.0
    %4408 = vmatprep.subr.mxu0 0.0
    %4409 = vmatpush1.xpose.msra.mxu0 0.0
    %4410 = vmatprep.subr.mxu0 0.0
    %4411 = vmatpush1.xpose.msra.mxu0 0.0
    %4412 = vmatprep.subr.mxu0 0.0
    %4413 = vmatpush1.xpose.msra.mxu0 0.0
    %4414 = vmatprep.subr.mxu0 0.0
    %4415 = vmatpush1.xpose.msra.mxu0 0.0
    %4416 = vmatprep.subr.mxu0 0.0
    %4417 = vmatpush1.xpose.msra.mxu0 0.0
    %4418 = vmatprep.subr.mxu0 0.0
    %4419 = vmatpush1.xpose.msra.mxu0 0.0
    %4420 = vmatprep.subr.mxu0 0.0
    %4421 = vmatpush1.xpose.msra.mxu0 0.0
    %4422 = vmatprep.subr.mxu0 0.0
    %4423 = vmatpush1.xpose.msra.mxu0 0.0
    %4424 = vmatprep.subr.mxu0 0.0
    %4425 = vmatpush1.xpose.msra.mxu0 0.0
    %4426 = vmatprep.subr.mxu0 0.0
    %4427 = vmatpush1.xpose.msra.mxu0 0.0
    %4428 = vmatprep.subr.mxu0 0.0
    %4429 = vmatpush1.xpose.msra.mxu0 0.0
    %4430 = vmatprep.subr.mxu0 0.0
    %4431 = vmatpush1.xpose.msra.mxu0 0.0
    %4432 = vmatprep.subr.mxu0 0.0
    %4433 = vmatpush1.xpose.msra.mxu0 0.0
    %4434 = vmatprep.subr.mxu0 0.0
    %4435 = vmatpush1.xpose.msra.mxu0 0.0
    %4436 = vmatprep.subr.mxu0 0.0
    %4437 = vmatpush1.xpose.msra.mxu0 0.0
    %4438 = vmatprep.subr.mxu0 0.0
    %4439 = vmatpush1.xpose.msra.mxu0 0.0
    %4440 = vmatprep.subr.mxu0 0.0
    %4441 = vmatpush1.xpose.msra.mxu0 0.0
    %4442 = vmatprep.subr.mxu0 0.0
    %4443 = vmatpush1.xpose.msra.mxu0 0.0
    %4444 = vmatprep.subr.mxu0 0.0
    %4445 = vmatpush1.xpose.msra.mxu0 0.0
    %4446 = vmatprep.subr.mxu0 0.0
    %4447 = vmatpush1.xpose.msra.mxu0 0.0
    %4448 = vmatprep.subr.mxu0 0.0
    %4449 = vmatpush1.xpose.msra.mxu0 0.0
    %4450 = vmatprep.subr.mxu0 0.0
    %4451 = vmatpush1.xpose.msra.mxu0 0.0
    %4452 = vmatprep.subr.mxu0 0.0
    %4453 = vmatpush1.xpose.msra.mxu0 0.0
    %4454 = vmatprep.subr.mxu0 0.0
    %4455 = vmatpush1.xpose.msra.mxu0 0.0
    %4456 = vmatprep.subr.mxu0 0.0
    %4457 = vmatpush1.xpose.msra.mxu0 0.0
    %4458 = vmatprep.subr.mxu0 0.0
    %4459 = vmatpush1.xpose.msra.mxu0 0.0
    %4460 = vmatprep.subr.mxu0 0.0
    %4461 = vmatpush1.xpose.msra.mxu0 0.0
    %4462 = vmatprep.subr.mxu0 0.0
    %4463 = vmatpush1.xpose.msra.mxu0 0.0
    %4464 = vmatprep.mubr.f32.mxu0 0.0
    %4465 = vmatmul.mubr.f32.gmra.mrb[0].mxu0 %v4396
    %v4466 = vpop.f32.mrb[0].mxu0
    %v4467 = vadd.f32 %v176, %v4466
    %v4468 = vpop.f32.mrb[0].mxu0
    %4469 = vdwg.mxu0
    %v4470 = vsel %vm320, %v4389, -inf
    %4471 = vmax.xlane.f32.xlu0 %v4470
    %v4472 = vpop.xlane.xlu0 %4471
    %v4473 = vsel %vm320, %v4467, -inf
    %4474 = vmax.xlane.f32.xlu0 %v4473
    %v4475 = vpop.xlane.xlu0 %4474
    %v4476 = vsub.f32 %v4389, %v4472
    %v4477 = vsub.f32 %v4467, %v4475
    %v4478 = vmul.f32 %v4476, 1.442695
    %v4479 = vpow.pop %v4478
    %v4480 = vmul.f32 %v4477, 1.442695
    %v4481 = vpow.pop %v4480
    %v4482 = vsel %vm320, %v4479, 0.0
    %4483 = vadd.xlane.f32.xlu0 %v4482
    %v4484 = vpop.xlane.xlu0 %4483
    %v4485 = vsel %vm320, %v4481, 0.0
    %4486 = vadd.xlane.f32.xlu0 %v4485
    %v4487 = vpop.xlane.xlu0 %4486
    %v4488 = vrcp.pop %v4484
    %v4489 = vmul.f32 %v4479, %v4488
    %v4490 = vrcp.pop %v4487
    %v4491 = vmul.f32 %v4481, %v4490
    %4492 = vrot.lane.b32.xlu0 %v3974, 56
    %v4493 = vpop.permute.xlu0 %4492
    %v4496 = vsel %vm320, %v4489, 0
    %4498 = vmatprep.subr.mxu0 0.0
    %4499 = vmatpush1.msra.mxu0 %v4493
    %4500 = vmatprep.subr.mxu0 0.0
    %4501 = vmatpush1.msra.mxu0 0.0
    %4502 = vmatprep.subr.mxu0 0.0
    %4503 = vmatpush1.msra.mxu0 0.0
    %4504 = vmatprep.subr.mxu0 0.0
    %4505 = vmatpush1.msra.mxu0 0.0
    %4506 = vmatprep.subr.mxu0 0.0
    %4507 = vmatpush1.msra.mxu0 0.0
    %4508 = vmatprep.subr.mxu0 0.0
    %4509 = vmatpush1.msra.mxu0 0.0
    %4510 = vmatprep.subr.mxu0 0.0
    %4511 = vmatpush1.msra.mxu0 0.0
    %4512 = vmatprep.subr.mxu0 0.0
    %4513 = vmatpush1.msra.mxu0 0.0
    %4514 = vmatprep.subr.mxu0 0.0
    %4515 = vmatpush1.msra.mxu0 0.0
    %4516 = vmatprep.subr.mxu0 0.0
    %4517 = vmatpush1.msra.mxu0 0.0
    %4518 = vmatprep.subr.mxu0 0.0
    %4519 = vmatpush1.msra.mxu0 0.0
    %4520 = vmatprep.subr.mxu0 0.0
    %4521 = vmatpush1.msra.mxu0 0.0
    %4522 = vmatprep.subr.mxu0 0.0
    %4523 = vmatpush1.msra.mxu0 0.0
    %4524 = vmatprep.subr.mxu0 0.0
    %4525 = vmatpush1.msra.mxu0 0.0
    %4526 = vmatprep.subr.mxu0 0.0
    %4527 = vmatpush1.msra.mxu0 0.0
    %4528 = vmatprep.subr.mxu0 0.0
    %4529 = vmatpush1.msra.mxu0 0.0
    %4530 = vmatprep.subr.mxu0 0.0
    %4531 = vmatpush1.msra.mxu0 0.0
    %4532 = vmatprep.subr.mxu0 0.0
    %4533 = vmatpush1.msra.mxu0 0.0
    %4534 = vmatprep.subr.mxu0 0.0
    %4535 = vmatpush1.msra.mxu0 0.0
    %4536 = vmatprep.subr.mxu0 0.0
    %4537 = vmatpush1.msra.mxu0 0.0
    %4538 = vmatprep.subr.mxu0 0.0
    %4539 = vmatpush1.msra.mxu0 0.0
    %4540 = vmatprep.subr.mxu0 0.0
    %4541 = vmatpush1.msra.mxu0 0.0
    %4542 = vmatprep.subr.mxu0 0.0
    %4543 = vmatpush1.msra.mxu0 0.0
    %4544 = vmatprep.subr.mxu0 0.0
    %4545 = vmatpush1.msra.mxu0 0.0
    %4546 = vmatprep.subr.mxu0 0.0
    %4547 = vmatpush1.msra.mxu0 0.0
    %4548 = vmatprep.subr.mxu0 0.0
    %4549 = vmatpush1.msra.mxu0 0.0
    %4550 = vmatprep.subr.mxu0 0.0
    %4551 = vmatpush1.msra.mxu0 0.0
    %4552 = vmatprep.subr.mxu0 0.0
    %4553 = vmatpush1.msra.mxu0 0.0
    %4554 = vmatprep.subr.mxu0 0.0
    %4555 = vmatpush1.msra.mxu0 0.0
    %4556 = vmatprep.subr.mxu0 0.0
    %4557 = vmatpush1.msra.mxu0 0.0
    %4558 = vmatprep.subr.mxu0 0.0
    %4559 = vmatpush1.msra.mxu0 0.0
    %4560 = vmatprep.subr.mxu0 0.0
    %4561 = vmatpush1.msra.mxu0 0.0
    %4562 = vmatprep.mubr.f32.mxu0 0.0
    %4563 = vmatmul.mubr.f32.gmra.mrb[0].mxu0 %v4496
    %v4564 = vpop.f32.mrb[0].mxu0
    %v4565 = vadd.f32 0.0, %v4564
    %v4566 = vpop.f32.mrb[0].mxu0
    %4567 = vdwg.mxu0
    %4568 = vrot.lane.b32.xlu0 %v3979, 56
    %v4569 = vpop.permute.xlu0 %4568
    %v4572 = vsel %vm320, %v4491, 0
    %4574 = vmatprep.subr.mxu0 0.0
    %4575 = vmatpush1.msra.mxu0 %v4569
    %4576 = vmatprep.subr.mxu0 0.0
    %4577 = vmatpush1.msra.mxu0 0.0
    %4578 = vmatprep.subr.mxu0 0.0
    %4579 = vmatpush1.msra.mxu0 0.0
    %4580 = vmatprep.subr.mxu0 0.0
    %4581 = vmatpush1.msra.mxu0 0.0
    %4582 = vmatprep.subr.mxu0 0.0
    %4583 = vmatpush1.msra.mxu0 0.0
    %4584 = vmatprep.subr.mxu0 0.0
    %4585 = vmatpush1.msra.mxu0 0.0
    %4586 = vmatprep.subr.mxu0 0.0
    %4587 = vmatpush1.msra.mxu0 0.0
    %4588 = vmatprep.subr.mxu0 0.0
    %4589 = vmatpush1.msra.mxu0 0.0
    %4590 = vmatprep.subr.mxu0 0.0
    %4591 = vmatpush1.msra.mxu0 0.0
    %4592 = vmatprep.subr.mxu0 0.0
    %4593 = vmatpush1.msra.mxu0 0.0
    %4594 = vmatprep.subr.mxu0 0.0
    %4595 = vmatpush1.msra.mxu0 0.0
    %4596 = vmatprep.subr.mxu0 0.0
    %4597 = vmatpush1.msra.mxu0 0.0
    %4598 = vmatprep.subr.mxu0 0.0
    %4599 = vmatpush1.msra.mxu0 0.0
    %4600 = vmatprep.subr.mxu0 0.0
    %4601 = vmatpush1.msra.mxu0 0.0
    %4602 = vmatprep.subr.mxu0 0.0
    %4603 = vmatpush1.msra.mxu0 0.0
    %4604 = vmatprep.subr.mxu0 0.0
    %4605 = vmatpush1.msra.mxu0 0.0
    %4606 = vmatprep.subr.mxu0 0.0
    %4607 = vmatpush1.msra.mxu0 0.0
    %4608 = vmatprep.subr.mxu0 0.0
    %4609 = vmatpush1.msra.mxu0 0.0
    %4610 = vmatprep.subr.mxu0 0.0
    %4611 = vmatpush1.msra.mxu0 0.0
    %4612 = vmatprep.subr.mxu0 0.0
    %4613 = vmatpush1.msra.mxu0 0.0
    %4614 = vmatprep.subr.mxu0 0.0
    %4615 = vmatpush1.msra.mxu0 0.0
    %4616 = vmatprep.subr.mxu0 0.0
    %4617 = vmatpush1.msra.mxu0 0.0
    %4618 = vmatprep.subr.mxu0 0.0
    %4619 = vmatpush1.msra.mxu0 0.0
    %4620 = vmatprep.subr.mxu0 0.0
    %4621 = vmatpush1.msra.mxu0 0.0
    %4622 = vmatprep.subr.mxu0 0.0
    %4623 = vmatpush1.msra.mxu0 0.0
    %4624 = vmatprep.subr.mxu0 0.0
    %4625 = vmatpush1.msra.mxu0 0.0
    %4626 = vmatprep.subr.mxu0 0.0
    %4627 = vmatpush1.msra.mxu0 0.0
    %4628 = vmatprep.subr.mxu0 0.0
    %4629 = vmatpush1.msra.mxu0 0.0
    %4630 = vmatprep.subr.mxu0 0.0
    %4631 = vmatpush1.msra.mxu0 0.0
    %4632 = vmatprep.subr.mxu0 0.0
    %4633 = vmatpush1.msra.mxu0 0.0
    %4634 = vmatprep.subr.mxu0 0.0
    %4635 = vmatpush1.msra.mxu0 0.0
    %4636 = vmatprep.subr.mxu0 0.0
    %4637 = vmatpush1.msra.mxu0 0.0
    %4638 = vmatprep.mubr.f32.mxu0 0.0
    %4639 = vmatmul.mubr.f32.gmra.mrb[0].mxu0 %v4572
    %v4640 = vpop.f32.mrb[0].mxu0
    %v4641 = vadd.f32 0.0, %v4640
    %v4642 = vpop.f32.mrb[0].mxu0
    %4643 = vdwg.mxu0
    %4644 = vrot.lane.b32.xlu0 %v3982, 112
    %v4645 = vpop.permute.xlu0 %4644
    %4646 = vrot.lane.b32.xlu0 %v3974, 80
    %v4647 = vpop.permute.xlu0 %4646
    %v4648 = vsel %vm320, %v4645, 0
    %v4650 = vsel %vm320, %v4647, 0
    %4652 = vmatprep.subr.mxu0 0.0
    %4653 = vmatpush1.xpose.msra.mxu0 %v4650
    %4654 = vmatprep.subr.mxu0 0.0
    %4655 = vmatpush1.xpose.msra.mxu0 0.0
    %4656 = vmatprep.subr.mxu0 0.0
    %4657 = vmatpush1.xpose.msra.mxu0 0.0
    %4658 = vmatprep.subr.mxu0 0.0
    %4659 = vmatpush1.xpose.msra.mxu0 0.0
    %4660 = vmatprep.subr.mxu0 0.0
    %4661 = vmatpush1.xpose.msra.mxu0 0.0
    %4662 = vmatprep.subr.mxu0 0.0
    %4663 = vmatpush1.xpose.msra.mxu0 0.0
    %4664 = vmatprep.subr.mxu0 0.0
    %4665 = vmatpush1.xpose.msra.mxu0 0.0
    %4666 = vmatprep.subr.mxu0 0.0
    %4667 = vmatpush1.xpose.msra.mxu0 0.0
    %4668 = vmatprep.subr.mxu0 0.0
    %4669 = vmatpush1.xpose.msra.mxu0 0.0
    %4670 = vmatprep.subr.mxu0 0.0
    %4671 = vmatpush1.xpose.msra.mxu0 0.0
    %4672 = vmatprep.subr.mxu0 0.0
    %4673 = vmatpush1.xpose.msra.mxu0 0.0
    %4674 = vmatprep.subr.mxu0 0.0
    %4675 = vmatpush1.xpose.msra.mxu0 0.0
    %4676 = vmatprep.subr.mxu0 0.0
    %4677 = vmatpush1.xpose.msra.mxu0 0.0
    %4678 = vmatprep.subr.mxu0 0.0
    %4679 = vmatpush1.xpose.msra.mxu0 0.0
    %4680 = vmatprep.subr.mxu0 0.0
    %4681 = vmatpush1.xpose.msra.mxu0 0.0
    %4682 = vmatprep.subr.mxu0 0.0
    %4683 = vmatpush1.xpose.msra.mxu0 0.0
    %4684 = vmatprep.subr.mxu0 0.0
    %4685 = vmatpush1.xpose.msra.mxu0 0.0
    %4686 = vmatprep.subr.mxu0 0.0
    %4687 = vmatpush1.xpose.msra.mxu0 0.0
    %4688 = vmatprep.subr.mxu0 0.0
    %4689 = vmatpush1.xpose.msra.mxu0 0.0
    %4690 = vmatprep.subr.mxu0 0.0
    %4691 = vmatpush1.xpose.msra.mxu0 0.0
    %4692 = vmatprep.subr.mxu0 0.0
    %4693 = vmatpush1.xpose.msra.mxu0 0.0
    %4694 = vmatprep.subr.mxu0 0.0
    %4695 = vmatpush1.xpose.msra.mxu0 0.0
    %4696 = vmatprep.subr.mxu0 0.0
    %4697 = vmatpush1.xpose.msra.mxu0 0.0
    %4698 = vmatprep.subr.mxu0 0.0
    %4699 = vmatpush1.xpose.msra.mxu0 0.0
    %4700 = vmatprep.subr.mxu0 0.0
    %4701 = vmatpush1.xpose.msra.mxu0 0.0
    %4702 = vmatprep.subr.mxu0 0.0
    %4703 = vmatpush1.xpose.msra.mxu0 0.0
    %4704 = vmatprep.subr.mxu0 0.0
    %4705 = vmatpush1.xpose.msra.mxu0 0.0
    %4706 = vmatprep.subr.mxu0 0.0
    %4707 = vmatpush1.xpose.msra.mxu0 0.0
    %4708 = vmatprep.subr.mxu0 0.0
    %4709 = vmatpush1.xpose.msra.mxu0 0.0
    %4710 = vmatprep.subr.mxu0 0.0
    %4711 = vmatpush1.xpose.msra.mxu0 0.0
    %4712 = vmatprep.subr.mxu0 0.0
    %4713 = vmatpush1.xpose.msra.mxu0 0.0
    %4714 = vmatprep.subr.mxu0 0.0
    %4715 = vmatpush1.xpose.msra.mxu0 0.0
    %4716 = vmatprep.mubr.f32.mxu0 0.0
    %4717 = vmatmul.mubr.f32.gmra.mrb[0].mxu0 %v4648
    %v4718 = vpop.f32.mrb[0].mxu0
    %v4719 = vadd.f32 %v176, %v4718
    %v4720 = vpop.f32.mrb[0].mxu0
    %4721 = vdwg.mxu0
    %4722 = vrot.lane.b32.xlu0 %v3983, 112
    %v4723 = vpop.permute.xlu0 %4722
    %4724 = vrot.lane.b32.xlu0 %v3979, 80
    %v4725 = vpop.permute.xlu0 %4724
    %v4726 = vsel %vm320, %v4723, 0
    %v4728 = vsel %vm320, %v4725, 0
    %4730 = vmatprep.subr.mxu0 0.0
    %4731 = vmatpush1.xpose.msra.mxu0 %v4728
    %4732 = vmatprep.subr.mxu0 0.0
    %4733 = vmatpush1.xpose.msra.mxu0 0.0
    %4734 = vmatprep.subr.mxu0 0.0
    %4735 = vmatpush1.xpose.msra.mxu0 0.0
    %4736 = vmatprep.subr.mxu0 0.0
    %4737 = vmatpush1.xpose.msra.mxu0 0.0
    %4738 = vmatprep.subr.mxu0 0.0
    %4739 = vmatpush1.xpose.msra.mxu0 0.0
    %4740 = vmatprep.subr.mxu0 0.0
    %4741 = vmatpush1.xpose.msra.mxu0 0.0
    %4742 = vmatprep.subr.mxu0 0.0
    %4743 = vmatpush1.xpose.msra.mxu0 0.0
    %4744 = vmatprep.subr.mxu0 0.0
    %4745 = vmatpush1.xpose.msra.mxu0 0.0
    %4746 = vmatprep.subr.mxu0 0.0
    %4747 = vmatpush1.xpose.msra.mxu0 0.0
    %4748 = vmatprep.subr.mxu0 0.0
    %4749 = vmatpush1.xpose.msra.mxu0 0.0
    %4750 = vmatprep.subr.mxu0 0.0
    %4751 = vmatpush1.xpose.msra.mxu0 0.0
    %4752 = vmatprep.subr.mxu0 0.0
    %4753 = vmatpush1.xpose.msra.mxu0 0.0
    %4754 = vmatprep.subr.mxu0 0.0
    %4755 = vmatpush1.xpose.msra.mxu0 0.0
    %4756 = vmatprep.subr.mxu0 0.0
    %4757 = vmatpush1.xpose.msra.mxu0 0.0
    %4758 = vmatprep.subr.mxu0 0.0
    %4759 = vmatpush1.xpose.msra.mxu0 0.0
    %4760 = vmatprep.subr.mxu0 0.0
    %4761 = vmatpush1.xpose.msra.mxu0 0.0
    %4762 = vmatprep.subr.mxu0 0.0
    %4763 = vmatpush1.xpose.msra.mxu0 0.0
    %4764 = vmatprep.subr.mxu0 0.0
    %4765 = vmatpush1.xpose.msra.mxu0 0.0
    %4766 = vmatprep.subr.mxu0 0.0
    %4767 = vmatpush1.xpose.msra.mxu0 0.0
    %4768 = vmatprep.subr.mxu0 0.0
    %4769 = vmatpush1.xpose.msra.mxu0 0.0
    %4770 = vmatprep.subr.mxu0 0.0
    %4771 = vmatpush1.xpose.msra.mxu0 0.0
    %4772 = vmatprep.subr.mxu0 0.0
    %4773 = vmatpush1.xpose.msra.mxu0 0.0
    %4774 = vmatprep.subr.mxu0 0.0
    %4775 = vmatpush1.xpose.msra.mxu0 0.0
    %4776 = vmatprep.subr.mxu0 0.0
    %4777 = vmatpush1.xpose.msra.mxu0 0.0
    %4778 = vmatprep.subr.mxu0 0.0
    %4779 = vmatpush1.xpose.msra.mxu0 0.0
    %4780 = vmatprep.subr.mxu0 0.0
    %4781 = vmatpush1.xpose.msra.mxu0 0.0
    %4782 = vmatprep.subr.mxu0 0.0
    %4783 = vmatpush1.xpose.msra.mxu0 0.0
    %4784 = vmatprep.subr.mxu0 0.0
    %4785 = vmatpush1.xpose.msra.mxu0 0.0
    %4786 = vmatprep.subr.mxu0 0.0
    %4787 = vmatpush1.xpose.msra.mxu0 0.0
    %4788 = vmatprep.subr.mxu0 0.0
    %4789 = vmatpush1.xpose.msra.mxu0 0.0
    %4790 = vmatprep.subr.mxu0 0.0
    %4791 = vmatpush1.xpose.msra.mxu0 0.0
    %4792 = vmatprep.subr.mxu0 0.0
    %4793 = vmatpush1.xpose.msra.mxu0 0.0
    %4794 = vmatprep.mubr.f32.mxu0 0.0
    %4795 = vmatmul.mubr.f32.gmra.mrb[0].mxu0 %v4726
    %v4796 = vpop.f32.mrb[0].mxu0
    %v4797 = vadd.f32 %v176, %v4796
    %v4798 = vpop.f32.mrb[0].mxu0
    %4799 = vdwg.mxu0
    %v4800 = vsel %vm320, %v4719, -inf
    %4801 = vmax.xlane.f32.xlu0 %v4800
    %v4802 = vpop.xlane.xlu0 %4801
    %v4803 = vsel %vm320, %v4797, -inf
    %4804 = vmax.xlane.f32.xlu0 %v4803
    %v4805 = vpop.xlane.xlu0 %4804
    %v4806 = vsub.f32 %v4719, %v4802
    %v4807 = vsub.f32 %v4797, %v4805
    %v4808 = vmul.f32 %v4806, 1.442695
    %v4809 = vpow.pop %v4808
    %v4810 = vmul.f32 %v4807, 1.442695
    %v4811 = vpow.pop %v4810
    %v4812 = vsel %vm320, %v4809, 0.0
    %4813 = vadd.xlane.f32.xlu0 %v4812
    %v4814 = vpop.xlane.xlu0 %4813
    %v4815 = vsel %vm320, %v4811, 0.0
    %4816 = vadd.xlane.f32.xlu0 %v4815
    %v4817 = vpop.xlane.xlu0 %4816
    %v4818 = vrcp.pop %v4814
    %v4819 = vmul.f32 %v4809, %v4818
    %v4820 = vrcp.pop %v4817
    %v4821 = vmul.f32 %v4811, %v4820
    %4822 = vrot.lane.b32.xlu0 %v3974, 48
    %v4823 = vpop.permute.xlu0 %4822
    %v4826 = vsel %vm320, %v4819, 0
    %4828 = vmatprep.subr.mxu0 0.0
    %4829 = vmatpush1.msra.mxu0 %v4823
    %4830 = vmatprep.subr.mxu0 0.0
    %4831 = vmatpush1.msra.mxu0 0.0
    %4832 = vmatprep.subr.mxu0 0.0
    %4833 = vmatpush1.msra.mxu0 0.0
    %4834 = vmatprep.subr.mxu0 0.0
    %4835 = vmatpush1.msra.mxu0 0.0
    %4836 = vmatprep.subr.mxu0 0.0
    %4837 = vmatpush1.msra.mxu0 0.0
    %4838 = vmatprep.subr.mxu0 0.0
    %4839 = vmatpush1.msra.mxu0 0.0
    %4840 = vmatprep.subr.mxu0 0.0
    %4841 = vmatpush1.msra.mxu0 0.0
    %4842 = vmatprep.subr.mxu0 0.0
    %4843 = vmatpush1.msra.mxu0 0.0
    %4844 = vmatprep.subr.mxu0 0.0
    %4845 = vmatpush1.msra.mxu0 0.0
    %4846 = vmatprep.subr.mxu0 0.0
    %4847 = vmatpush1.msra.mxu0 0.0
    %4848 = vmatprep.subr.mxu0 0.0
    %4849 = vmatpush1.msra.mxu0 0.0
    %4850 = vmatprep.subr.mxu0 0.0
    %4851 = vmatpush1.msra.mxu0 0.0
    %4852 = vmatprep.subr.mxu0 0.0
    %4853 = vmatpush1.msra.mxu0 0.0
    %4854 = vmatprep.subr.mxu0 0.0
    %4855 = vmatpush1.msra.mxu0 0.0
    %4856 = vmatprep.subr.mxu0 0.0
    %4857 = vmatpush1.msra.mxu0 0.0
    %4858 = vmatprep.subr.mxu0 0.0
    %4859 = vmatpush1.msra.mxu0 0.0
    %4860 = vmatprep.subr.mxu0 0.0
    %4861 = vmatpush1.msra.mxu0 0.0
    %4862 = vmatprep.subr.mxu0 0.0
    %4863 = vmatpush1.msra.mxu0 0.0
    %4864 = vmatprep.subr.mxu0 0.0
    %4865 = vmatpush1.msra.mxu0 0.0
    %4866 = vmatprep.subr.mxu0 0.0
    %4867 = vmatpush1.msra.mxu0 0.0
    %4868 = vmatprep.subr.mxu0 0.0
    %4869 = vmatpush1.msra.mxu0 0.0
    %4870 = vmatprep.subr.mxu0 0.0
    %4871 = vmatpush1.msra.mxu0 0.0
    %4872 = vmatprep.subr.mxu0 0.0
    %4873 = vmatpush1.msra.mxu0 0.0
    %4874 = vmatprep.subr.mxu0 0.0
    %4875 = vmatpush1.msra.mxu0 0.0
    %4876 = vmatprep.subr.mxu0 0.0
    %4877 = vmatpush1.msra.mxu0 0.0
    %4878 = vmatprep.subr.mxu0 0.0
    %4879 = vmatpush1.msra.mxu0 0.0
    %4880 = vmatprep.subr.mxu0 0.0
    %4881 = vmatpush1.msra.mxu0 0.0
    %4882 = vmatprep.subr.mxu0 0.0
    %4883 = vmatpush1.msra.mxu0 0.0
    %4884 = vmatprep.subr.mxu0 0.0
    %4885 = vmatpush1.msra.mxu0 0.0
    %4886 = vmatprep.subr.mxu0 0.0
    %4887 = vmatpush1.msra.mxu0 0.0
    %4888 = vmatprep.subr.mxu0 0.0
    %4889 = vmatpush1.msra.mxu0 0.0
    %4890 = vmatprep.subr.mxu0 0.0
    %4891 = vmatpush1.msra.mxu0 0.0
    %4892 = vmatprep.mubr.f32.mxu0 0.0
    %4893 = vmatmul.mubr.f32.gmra.mrb[0].mxu0 %v4826
    %v4894 = vpop.f32.mrb[0].mxu0
    %v4895 = vadd.f32 0.0, %v4894
    %v4896 = vpop.f32.mrb[0].mxu0
    %4897 = vdwg.mxu0
    %4898 = vrot.lane.b32.xlu0 %v3979, 48
    %v4899 = vpop.permute.xlu0 %4898
    %v4902 = vsel %vm320, %v4821, 0
    %4904 = vmatprep.subr.mxu0 0.0
    %4905 = vmatpush1.msra.mxu0 %v4899
    %4906 = vmatprep.subr.mxu0 0.0
    %4907 = vmatpush1.msra.mxu0 0.0
    %4908 = vmatprep.subr.mxu0 0.0
    %4909 = vmatpush1.msra.mxu0 0.0
    %4910 = vmatprep.subr.mxu0 0.0
    %4911 = vmatpush1.msra.mxu0 0.0
    %4912 = vmatprep.subr.mxu0 0.0
    %4913 = vmatpush1.msra.mxu0 0.0
    %4914 = vmatprep.subr.mxu0 0.0
    %4915 = vmatpush1.msra.mxu0 0.0
    %4916 = vmatprep.subr.mxu0 0.0
    %4917 = vmatpush1.msra.mxu0 0.0
    %4918 = vmatprep.subr.mxu0 0.0
    %4919 = vmatpush1.msra.mxu0 0.0
    %4920 = vmatprep.subr.mxu0 0.0
    %4921 = vmatpush1.msra.mxu0 0.0
    %4922 = vmatprep.subr.mxu0 0.0
    %4923 = vmatpush1.msra.mxu0 0.0
    %4924 = vmatprep.subr.mxu0 0.0
    %4925 = vmatpush1.msra.mxu0 0.0
    %4926 = vmatprep.subr.mxu0 0.0
    %4927 = vmatpush1.msra.mxu0 0.0
    %4928 = vmatprep.subr.mxu0 0.0
    %4929 = vmatpush1.msra.mxu0 0.0
    %4930 = vmatprep.subr.mxu0 0.0
    %4931 = vmatpush1.msra.mxu0 0.0
    %4932 = vmatprep.subr.mxu0 0.0
    %4933 = vmatpush1.msra.mxu0 0.0
    %4934 = vmatprep.subr.mxu0 0.0
    %4935 = vmatpush1.msra.mxu0 0.0
    %4936 = vmatprep.subr.mxu0 0.0
    %4937 = vmatpush1.msra.mxu0 0.0
    %4938 = vmatprep.subr.mxu0 0.0
    %4939 = vmatpush1.msra.mxu0 0.0
    %4940 = vmatprep.subr.mxu0 0.0
    %4941 = vmatpush1.msra.mxu0 0.0
    %4942 = vmatprep.subr.mxu0 0.0
    %4943 = vmatpush1.msra.mxu0 0.0
    %4944 = vmatprep.subr.mxu0 0.0
    %4945 = vmatpush1.msra.mxu0 0.0
    %4946 = vmatprep.subr.mxu0 0.0
    %4947 = vmatpush1.msra.mxu0 0.0
    %4948 = vmatprep.subr.mxu0 0.0
    %4949 = vmatpush1.msra.mxu0 0.0
    %4950 = vmatprep.subr.mxu0 0.0
    %4951 = vmatpush1.msra.mxu0 0.0
    %4952 = vmatprep.subr.mxu0 0.0
    %4953 = vmatpush1.msra.mxu0 0.0
    %4954 = vmatprep.subr.mxu0 0.0
    %4955 = vmatpush1.msra.mxu0 0.0
    %4956 = vmatprep.subr.mxu0 0.0
    %4957 = vmatpush1.msra.mxu0 0.0
    %4958 = vmatprep.subr.mxu0 0.0
    %4959 = vmatpush1.msra.mxu0 0.0
    %4960 = vmatprep.subr.mxu0 0.0
    %4961 = vmatpush1.msra.mxu0 0.0
    %4962 = vmatprep.subr.mxu0 0.0
    %4963 = vmatpush1.msra.mxu0 0.0
    %4964 = vmatprep.subr.mxu0 0.0
    %4965 = vmatpush1.msra.mxu0 0.0
    %4966 = vmatprep.subr.mxu0 0.0
    %4967 = vmatpush1.msra.mxu0 0.0
    %4968 = vmatprep.mubr.f32.mxu0 0.0
    %4969 = vmatmul.mubr.f32.gmra.mrb[0].mxu0 %v4902
    %v4970 = vpop.f32.mrb[0].mxu0
    %v4971 = vadd.f32 0.0, %v4970
    %v4972 = vpop.f32.mrb[0].mxu0
    %4973 = vdwg.mxu0
    %4974 = vrot.lane.b32.xlu0 %v3982, 104
    %v4975 = vpop.permute.xlu0 %4974
    %4976 = vrot.lane.b32.xlu0 %v3974, 72
    %v4977 = vpop.permute.xlu0 %4976
    %v4978 = vsel %vm320, %v4975, 0
    %v4980 = vsel %vm320, %v4977, 0
    %4982 = vmatprep.subr.mxu0 0.0
    %4983 = vmatpush1.xpose.msra.mxu0 %v4980
    %4984 = vmatprep.subr.mxu0 0.0
    %4985 = vmatpush1.xpose.msra.mxu0 0.0
    %4986 = vmatprep.subr.mxu0 0.0
    %4987 = vmatpush1.xpose.msra.mxu0 0.0
    %4988 = vmatprep.subr.mxu0 0.0
    %4989 = vmatpush1.xpose.msra.mxu0 0.0
    %4990 = vmatprep.subr.mxu0 0.0
    %4991 = vmatpush1.xpose.msra.mxu0 0.0
    %4992 = vmatprep.subr.mxu0 0.0
    %4993 = vmatpush1.xpose.msra.mxu0 0.0
    %4994 = vmatprep.subr.mxu0 0.0
    %4995 = vmatpush1.xpose.msra.mxu0 0.0
    %4996 = vmatprep.subr.mxu0 0.0
    %4997 = vmatpush1.xpose.msra.mxu0 0.0
    %4998 = vmatprep.subr.mxu0 0.0
    %4999 = vmatpush1.xpose.msra.mxu0 0.0
    %5000 = vmatprep.subr.mxu0 0.0
    %5001 = vmatpush1.xpose.msra.mxu0 0.0
    %5002 = vmatprep.subr.mxu0 0.0
    %5003 = vmatpush1.xpose.msra.mxu0 0.0
    %5004 = vmatprep.subr.mxu0 0.0
    %5005 = vmatpush1.xpose.msra.mxu0 0.0
    %5006 = vmatprep.subr.mxu0 0.0
    %5007 = vmatpush1.xpose.msra.mxu0 0.0
    %5008 = vmatprep.subr.mxu0 0.0
    %5009 = vmatpush1.xpose.msra.mxu0 0.0
    %5010 = vmatprep.subr.mxu0 0.0
    %5011 = vmatpush1.xpose.msra.mxu0 0.0
    %5012 = vmatprep.subr.mxu0 0.0
    %5013 = vmatpush1.xpose.msra.mxu0 0.0
    %5014 = vmatprep.subr.mxu0 0.0
    %5015 = vmatpush1.xpose.msra.mxu0 0.0
    %5016 = vmatprep.subr.mxu0 0.0
    %5017 = vmatpush1.xpose.msra.mxu0 0.0
    %5018 = vmatprep.subr.mxu0 0.0
    %5019 = vmatpush1.xpose.msra.mxu0 0.0
    %5020 = vmatprep.subr.mxu0 0.0
    %5021 = vmatpush1.xpose.msra.mxu0 0.0
    %5022 = vmatprep.subr.mxu0 0.0
    %5023 = vmatpush1.xpose.msra.mxu0 0.0
    %5024 = vmatprep.subr.mxu0 0.0
    %5025 = vmatpush1.xpose.msra.mxu0 0.0
    %5026 = vmatprep.subr.mxu0 0.0
    %5027 = vmatpush1.xpose.msra.mxu0 0.0
    %5028 = vmatprep.subr.mxu0 0.0
    %5029 = vmatpush1.xpose.msra.mxu0 0.0
    %5030 = vmatprep.subr.mxu0 0.0
    %5031 = vmatpush1.xpose.msra.mxu0 0.0
    %5032 = vmatprep.subr.mxu0 0.0
    %5033 = vmatpush1.xpose.msra.mxu0 0.0
    %5034 = vmatprep.subr.mxu0 0.0
    %5035 = vmatpush1.xpose.msra.mxu0 0.0
    %5036 = vmatprep.subr.mxu0 0.0
    %5037 = vmatpush1.xpose.msra.mxu0 0.0
    %5038 = vmatprep.subr.mxu0 0.0
    %5039 = vmatpush1.xpose.msra.mxu0 0.0
    %5040 = vmatprep.subr.mxu0 0.0
    %5041 = vmatpush1.xpose.msra.mxu0 0.0
    %5042 = vmatprep.subr.mxu0 0.0
    %5043 = vmatpush1.xpose.msra.mxu0 0.0
    %5044 = vmatprep.subr.mxu0 0.0
    %5045 = vmatpush1.xpose.msra.mxu0 0.0
    %5046 = vmatprep.mubr.f32.mxu0 0.0
    %5047 = vmatmul.mubr.f32.gmra.mrb[0].mxu0 %v4978
    %v5048 = vpop.f32.mrb[0].mxu0
    %v5049 = vadd.f32 %v176, %v5048
    %v5050 = vpop.f32.mrb[0].mxu0
    %5051 = vdwg.mxu0
    %5052 = vrot.lane.b32.xlu0 %v3983, 104
    %v5053 = vpop.permute.xlu0 %5052
    %5054 = vrot.lane.b32.xlu0 %v3979, 72
    %v5055 = vpop.permute.xlu0 %5054
    %v5056 = vsel %vm320, %v5053, 0
    %v5058 = vsel %vm320, %v5055, 0
    %5060 = vmatprep.subr.mxu0 0.0
    %5061 = vmatpush1.xpose.msra.mxu0 %v5058
    %5062 = vmatprep.subr.mxu0 0.0
    %5063 = vmatpush1.xpose.msra.mxu0 0.0
    %5064 = vmatprep.subr.mxu0 0.0
    %5065 = vmatpush1.xpose.msra.mxu0 0.0
    %5066 = vmatprep.subr.mxu0 0.0
    %5067 = vmatpush1.xpose.msra.mxu0 0.0
    %5068 = vmatprep.subr.mxu0 0.0
    %5069 = vmatpush1.xpose.msra.mxu0 0.0
    %5070 = vmatprep.subr.mxu0 0.0
    %5071 = vmatpush1.xpose.msra.mxu0 0.0
    %5072 = vmatprep.subr.mxu0 0.0
    %5073 = vmatpush1.xpose.msra.mxu0 0.0
    %5074 = vmatprep.subr.mxu0 0.0
    %5075 = vmatpush1.xpose.msra.mxu0 0.0
    %5076 = vmatprep.subr.mxu0 0.0
    %5077 = vmatpush1.xpose.msra.mxu0 0.0
    %5078 = vmatprep.subr.mxu0 0.0
    %5079 = vmatpush1.xpose.msra.mxu0 0.0
    %5080 = vmatprep.subr.mxu0 0.0
    %5081 = vmatpush1.xpose.msra.mxu0 0.0
    %5082 = vmatprep.subr.mxu0 0.0
    %5083 = vmatpush1.xpose.msra.mxu0 0.0
    %5084 = vmatprep.subr.mxu0 0.0
    %5085 = vmatpush1.xpose.msra.mxu0 0.0
    %5086 = vmatprep.subr.mxu0 0.0
    %5087 = vmatpush1.xpose.msra.mxu0 0.0
    %5088 = vmatprep.subr.mxu0 0.0
    %5089 = vmatpush1.xpose.msra.mxu0 0.0
    %5090 = vmatprep.subr.mxu0 0.0
    %5091 = vmatpush1.xpose.msra.mxu0 0.0
    %5092 = vmatprep.subr.mxu0 0.0
    %5093 = vmatpush1.xpose.msra.mxu0 0.0
    %5094 = vmatprep.subr.mxu0 0.0
    %5095 = vmatpush1.xpose.msra.mxu0 0.0
    %5096 = vmatprep.subr.mxu0 0.0
    %5097 = vmatpush1.xpose.msra.mxu0 0.0
    %5098 = vmatprep.subr.mxu0 0.0
    %5099 = vmatpush1.xpose.msra.mxu0 0.0
    %5100 = vmatprep.subr.mxu0 0.0
    %5101 = vmatpush1.xpose.msra.mxu0 0.0
    %5102 = vmatprep.subr.mxu0 0.0
    %5103 = vmatpush1.xpose.msra.mxu0 0.0
    %5104 = vmatprep.subr.mxu0 0.0
    %5105 = vmatpush1.xpose.msra.mxu0 0.0
    %5106 = vmatprep.subr.mxu0 0.0
    %5107 = vmatpush1.xpose.msra.mxu0 0.0
    %5108 = vmatprep.subr.mxu0 0.0
    %5109 = vmatpush1.xpose.msra.mxu0 0.0
    %5110 = vmatprep.subr.mxu0 0.0
    %5111 = vmatpush1.xpose.msra.mxu0 0.0
    %5112 = vmatprep.subr.mxu0 0.0
    %5113 = vmatpush1.xpose.msra.mxu0 0.0
    %5114 = vmatprep.subr.mxu0 0.0
    %5115 = vmatpush1.xpose.msra.mxu0 0.0
    %5116 = vmatprep.subr.mxu0 0.0
    %5117 = vmatpush1.xpose.msra.mxu0 0.0
    %5118 = vmatprep.subr.mxu0 0.0
    %5119 = vmatpush1.xpose.msra.mxu0 0.0
    %5120 = vmatprep.subr.mxu0 0.0
    %5121 = vmatpush1.xpose.msra.mxu0 0.0
    %5122 = vmatprep.subr.mxu0 0.0
    %5123 = vmatpush1.xpose.msra.mxu0 0.0
    %5124 = vmatprep.mubr.f32.mxu0 0.0
    %5125 = vmatmul.mubr.f32.gmra.mrb[0].mxu0 %v5056
    %v5126 = vpop.f32.mrb[0].mxu0
    %v5127 = vadd.f32 %v176, %v5126
    %v5128 = vpop.f32.mrb[0].mxu0
    %5129 = vdwg.mxu0
    %v5130 = vsel %vm320, %v5049, -inf
    %5131 = vmax.xlane.f32.xlu0 %v5130
    %v5132 = vpop.xlane.xlu0 %5131
    %v5133 = vsel %vm320, %v5127, -inf
    %5134 = vmax.xlane.f32.xlu0 %v5133
    %v5135 = vpop.xlane.xlu0 %5134
    %v5136 = vsub.f32 %v5049, %v5132
    %v5137 = vsub.f32 %v5127, %v5135
    %v5138 = vmul.f32 %v5136, 1.442695
    %v5139 = vpow.pop %v5138
    %v5140 = vmul.f32 %v5137, 1.442695
    %v5141 = vpow.pop %v5140
    %v5142 = vsel %vm320, %v5139, 0.0
    %5143 = vadd.xlane.f32.xlu0 %v5142
    %v5144 = vpop.xlane.xlu0 %5143
    %v5145 = vsel %vm320, %v5141, 0.0
    %5146 = vadd.xlane.f32.xlu0 %v5145
    %v5147 = vpop.xlane.xlu0 %5146
    %v5148 = vrcp.pop %v5144
    %v5149 = vmul.f32 %v5139, %v5148
    %v5150 = vrcp.pop %v5147
    %v5151 = vmul.f32 %v5141, %v5150
    %5152 = vrot.lane.b32.xlu0 %v3974, 40
    %v5153 = vpop.permute.xlu0 %5152
    %v5156 = vsel %vm320, %v5149, 0
    %5158 = vmatprep.subr.mxu0 0.0
    %5159 = vmatpush1.msra.mxu0 %v5153
    %5160 = vmatprep.subr.mxu0 0.0
    %5161 = vmatpush1.msra.mxu0 0.0
    %5162 = vmatprep.subr.mxu0 0.0
    %5163 = vmatpush1.msra.mxu0 0.0
    %5164 = vmatprep.subr.mxu0 0.0
    %5165 = vmatpush1.msra.mxu0 0.0
    %5166 = vmatprep.subr.mxu0 0.0
    %5167 = vmatpush1.msra.mxu0 0.0
    %5168 = vmatprep.subr.mxu0 0.0
    %5169 = vmatpush1.msra.mxu0 0.0
    %5170 = vmatprep.subr.mxu0 0.0
    %5171 = vmatpush1.msra.mxu0 0.0
    %5172 = vmatprep.subr.mxu0 0.0
    %5173 = vmatpush1.msra.mxu0 0.0
    %5174 = vmatprep.subr.mxu0 0.0
    %5175 = vmatpush1.msra.mxu0 0.0
    %5176 = vmatprep.subr.mxu0 0.0
    %5177 = vmatpush1.msra.mxu0 0.0
    %5178 = vmatprep.subr.mxu0 0.0
    %5179 = vmatpush1.msra.mxu0 0.0
    %5180 = vmatprep.subr.mxu0 0.0
    %5181 = vmatpush1.msra.mxu0 0.0
    %5182 = vmatprep.subr.mxu0 0.0
    %5183 = vmatpush1.msra.mxu0 0.0
    %5184 = vmatprep.subr.mxu0 0.0
    %5185 = vmatpush1.msra.mxu0 0.0
    %5186 = vmatprep.subr.mxu0 0.0
    %5187 = vmatpush1.msra.mxu0 0.0
    %5188 = vmatprep.subr.mxu0 0.0
    %5189 = vmatpush1.msra.mxu0 0.0
    %5190 = vmatprep.subr.mxu0 0.0
    %5191 = vmatpush1.msra.mxu0 0.0
    %5192 = vmatprep.subr.mxu0 0.0
    %5193 = vmatpush1.msra.mxu0 0.0
    %5194 = vmatprep.subr.mxu0 0.0
    %5195 = vmatpush1.msra.mxu0 0.0
    %5196 = vmatprep.subr.mxu0 0.0
    %5197 = vmatpush1.msra.mxu0 0.0
    %5198 = vmatprep.subr.mxu0 0.0
    %5199 = vmatpush1.msra.mxu0 0.0
    %5200 = vmatprep.subr.mxu0 0.0
    %5201 = vmatpush1.msra.mxu0 0.0
    %5202 = vmatprep.subr.mxu0 0.0
    %5203 = vmatpush1.msra.mxu0 0.0
    %5204 = vmatprep.subr.mxu0 0.0
    %5205 = vmatpush1.msra.mxu0 0.0
    %5206 = vmatprep.subr.mxu0 0.0
    %5207 = vmatpush1.msra.mxu0 0.0
    %5208 = vmatprep.subr.mxu0 0.0
    %5209 = vmatpush1.msra.mxu0 0.0
    %5210 = vmatprep.subr.mxu0 0.0
    %5211 = vmatpush1.msra.mxu0 0.0
    %5212 = vmatprep.subr.mxu0 0.0
    %5213 = vmatpush1.msra.mxu0 0.0
    %5214 = vmatprep.subr.mxu0 0.0
    %5215 = vmatpush1.msra.mxu0 0.0
    %5216 = vmatprep.subr.mxu0 0.0
    %5217 = vmatpush1.msra.mxu0 0.0
    %5218 = vmatprep.subr.mxu0 0.0
    %5219 = vmatpush1.msra.mxu0 0.0
    %5220 = vmatprep.subr.mxu0 0.0
    %5221 = vmatpush1.msra.mxu0 0.0
    %5222 = vmatprep.mubr.f32.mxu0 0.0
    %5223 = vmatmul.mubr.f32.gmra.mrb[0].mxu0 %v5156
    %v5224 = vpop.f32.mrb[0].mxu0
    %v5225 = vadd.f32 0.0, %v5224
    %v5226 = vpop.f32.mrb[0].mxu0
    %5227 = vdwg.mxu0
    %5228 = vrot.lane.b32.xlu0 %v3979, 40
    %v5229 = vpop.permute.xlu0 %5228
    %v5232 = vsel %vm320, %v5151, 0
    %5234 = vmatprep.subr.mxu0 0.0
    %5235 = vmatpush1.msra.mxu0 %v5229
    %5236 = vmatprep.subr.mxu0 0.0
    %5237 = vmatpush1.msra.mxu0 0.0
    %5238 = vmatprep.subr.mxu0 0.0
    %5239 = vmatpush1.msra.mxu0 0.0
    %5240 = vmatprep.subr.mxu0 0.0
    %5241 = vmatpush1.msra.mxu0 0.0
    %5242 = vmatprep.subr.mxu0 0.0
    %5243 = vmatpush1.msra.mxu0 0.0
    %5244 = vmatprep.subr.mxu0 0.0
    %5245 = vmatpush1.msra.mxu0 0.0
    %5246 = vmatprep.subr.mxu0 0.0
    %5247 = vmatpush1.msra.mxu0 0.0
    %5248 = vmatprep.subr.mxu0 0.0
    %5249 = vmatpush1.msra.mxu0 0.0
    %5250 = vmatprep.subr.mxu0 0.0
    %5251 = vmatpush1.msra.mxu0 0.0
    %5252 = vmatprep.subr.mxu0 0.0
    %5253 = vmatpush1.msra.mxu0 0.0
    %5254 = vmatprep.subr.mxu0 0.0
    %5255 = vmatpush1.msra.mxu0 0.0
    %5256 = vmatprep.subr.mxu0 0.0
    %5257 = vmatpush1.msra.mxu0 0.0
    %5258 = vmatprep.subr.mxu0 0.0
    %5259 = vmatpush1.msra.mxu0 0.0
    %5260 = vmatprep.subr.mxu0 0.0
    %5261 = vmatpush1.msra.mxu0 0.0
    %5262 = vmatprep.subr.mxu0 0.0
    %5263 = vmatpush1.msra.mxu0 0.0
    %5264 = vmatprep.subr.mxu0 0.0
    %5265 = vmatpush1.msra.mxu0 0.0
    %5266 = vmatprep.subr.mxu0 0.0
    %5267 = vmatpush1.msra.mxu0 0.0
    %5268 = vmatprep.subr.mxu0 0.0
    %5269 = vmatpush1.msra.mxu0 0.0
    %5270 = vmatprep.subr.mxu0 0.0
    %5271 = vmatpush1.msra.mxu0 0.0
    %5272 = vmatprep.subr.mxu0 0.0
    %5273 = vmatpush1.msra.mxu0 0.0
    %5274 = vmatprep.subr.mxu0 0.0
    %5275 = vmatpush1.msra.mxu0 0.0
    %5276 = vmatprep.subr.mxu0 0.0
    %5277 = vmatpush1.msra.mxu0 0.0
    %5278 = vmatprep.subr.mxu0 0.0
    %5279 = vmatpush1.msra.mxu0 0.0
    %5280 = vmatprep.subr.mxu0 0.0
    %5281 = vmatpush1.msra.mxu0 0.0
    %5282 = vmatprep.subr.mxu0 0.0
    %5283 = vmatpush1.msra.mxu0 0.0
    %5284 = vmatprep.subr.mxu0 0.0
    %5285 = vmatpush1.msra.mxu0 0.0
    %5286 = vmatprep.subr.mxu0 0.0
    %5287 = vmatpush1.msra.mxu0 0.0
    %5288 = vmatprep.subr.mxu0 0.0
    %5289 = vmatpush1.msra.mxu0 0.0
    %5290 = vmatprep.subr.mxu0 0.0
    %5291 = vmatpush1.msra.mxu0 0.0
    %5292 = vmatprep.subr.mxu0 0.0
    %5293 = vmatpush1.msra.mxu0 0.0
    %5294 = vmatprep.subr.mxu0 0.0
    %5295 = vmatpush1.msra.mxu0 0.0
    %5296 = vmatprep.subr.mxu0 0.0
    %5297 = vmatpush1.msra.mxu0 0.0
    %5298 = vmatprep.mubr.f32.mxu0 0.0
    %5299 = vmatmul.mubr.f32.gmra.mrb[0].mxu0 %v5232
    %v5300 = vpop.f32.mrb[0].mxu0
    %v5301 = vadd.f32 0.0, %v5300
    %v5302 = vpop.f32.mrb[0].mxu0
    %5303 = vdwg.mxu0
    %5306 = vrot.lane.b32.xlu0 %v4565, 8
    %v5307 = vpop.permute.xlu0 %5306
    %5308 = vrot.lane.b32.xlu0 %v4641, 8
    %v5309 = vpop.permute.xlu0 %5308
    %5314 = vrot.lane.b32.xlu0 %v4895, 16
    %v5315 = vpop.permute.xlu0 %5314
    %5316 = vrot.lane.b32.xlu0 %v4971, 16
    %v5317 = vpop.permute.xlu0 %5316
    %5322 = vrot.lane.b32.xlu0 %v5225, 24
    %v5323 = vpop.permute.xlu0 %5322
    %5324 = vrot.lane.b32.xlu0 %v5301, 24
    %v5325 = vpop.permute.xlu0 %5324
    %v5328 = vsel %vm320, %v4235, %v5307
    %v5329 = vsel %vm320, %v4311, %v5309
    %v5330 = vsel %vm1664, %v5328, %v5315
    %v5331 = vsel %vm1664, %v5329, %v5317
    %v5332 = vsel %vm1667, %v5330, %v5323
    %v5333 = vsel %vm1667, %v5331, %v5325
    %s5334 = scalar_lea.vmem %s7, 64
    %v5335 = vld [vmem:[%s5334] sm:$0xff]
    %v5336 = vld [vmem:[%s5334 + $0x8] sm:$0xff]
    %v5337 = vld [vmem:[%s5334 + $0x10] sm:$0xff]
    %v5338 = vld [vmem:[%s5334 + $0x18] sm:$0xff]
    %v5340 = vsel %vm179, %v5332, 0
    %v5343 = vsel %vm179, %v5333, 0
    %5345 = vmatprep.subr.mxu0 0.0
    %5346 = vmatpush1.msra.mxu0 %v5335
    %5347 = vmatprep.subr.mxu0 0.0
    %5348 = vmatpush1.msra.mxu0 %v5336
    %5349 = vmatprep.subr.mxu0 0.0
    %5350 = vmatpush1.msra.mxu0 %v5337
    %5351 = vmatprep.subr.mxu0 0.0
    %5352 = vmatpush1.msra.mxu0 %v5338
    %5353 = vmatprep.subr.mxu0 0.0
    %5354 = vmatpush1.msra.mxu0 0.0
    %5355 = vmatprep.subr.mxu0 0.0
    %5356 = vmatpush1.msra.mxu0 0.0
    %5357 = vmatprep.subr.mxu0 0.0
    %5358 = vmatpush1.msra.mxu0 0.0
    %5359 = vmatprep.subr.mxu0 0.0
    %5360 = vmatpush1.msra.mxu0 0.0
    %5361 = vmatprep.subr.mxu0 0.0
    %5362 = vmatpush1.msra.mxu0 0.0
    %5363 = vmatprep.subr.mxu0 0.0
    %5364 = vmatpush1.msra.mxu0 0.0
    %5365 = vmatprep.subr.mxu0 0.0
    %5366 = vmatpush1.msra.mxu0 0.0
    %5367 = vmatprep.subr.mxu0 0.0
    %5368 = vmatpush1.msra.mxu0 0.0
    %5369 = vmatprep.subr.mxu0 0.0
    %5370 = vmatpush1.msra.mxu0 0.0
    %5371 = vmatprep.subr.mxu0 0.0
    %5372 = vmatpush1.msra.mxu0 0.0
    %5373 = vmatprep.subr.mxu0 0.0
    %5374 = vmatpush1.msra.mxu0 0.0
    %5375 = vmatprep.subr.mxu0 0.0
    %5376 = vmatpush1.msra.mxu0 0.0
    %5377 = vmatprep.subr.mxu0 0.0
    %5378 = vmatpush1.msra.mxu0 0.0
    %5379 = vmatprep.subr.mxu0 0.0
    %5380 = vmatpush1.msra.mxu0 0.0
    %5381 = vmatprep.subr.mxu0 0.0
    %5382 = vmatpush1.msra.mxu0 0.0
    %5383 = vmatprep.subr.mxu0 0.0
    %5384 = vmatpush1.msra.mxu0 0.0
    %5385 = vmatprep.subr.mxu0 0.0
    %5386 = vmatpush1.msra.mxu0 0.0
    %5387 = vmatprep.subr.mxu0 0.0
    %5388 = vmatpush1.msra.mxu0 0.0
    %5389 = vmatprep.subr.mxu0 0.0
    %5390 = vmatpush1.msra.mxu0 0.0
    %5391 = vmatprep.subr.mxu0 0.0
    %5392 = vmatpush1.msra.mxu0 0.0
    %5393 = vmatprep.subr.mxu0 0.0
    %5394 = vmatpush1.msra.mxu0 0.0
    %5395 = vmatprep.subr.mxu0 0.0
    %5396 = vmatpush1.msra.mxu0 0.0
    %5397 = vmatprep.subr.mxu0 0.0
    %5398 = vmatpush1.msra.mxu0 0.0
    %5399 = vmatprep.subr.mxu0 0.0
    %5400 = vmatpush1.msra.mxu0 0.0
    %5401 = vmatprep.subr.mxu0 0.0
    %5402 = vmatpush1.msra.mxu0 0.0
    %5403 = vmatprep.subr.mxu0 0.0
    %5404 = vmatpush1.msra.mxu0 0.0
    %5405 = vmatprep.subr.mxu0 0.0
    %5406 = vmatpush1.msra.mxu0 0.0
    %5407 = vmatprep.subr.mxu0 0.0
    %5408 = vmatpush1.msra.mxu0 0.0
    %5409 = vmatprep.mubr.f32.mxu0 0.0
    %5410 = vmatmul.mubr.f32.gmra.mrb[0].mxu0 %v5340
    %v5411 = vpop.f32.mrb[0].mxu0
    %v5412 = vadd.f32 0.0, %v5411
    %v5413 = vpop.f32.mrb[0].mxu0
    %5414 = vmatprep.mubr.f32.mxu0 0.0
    %5415 = vmatmul.mubr.f32.gmra.mrb[0].mxu0 %v5343
    %v5416 = vpop.f32.mrb[0].mxu0
    %v5417 = vadd.f32 0.0, %v5416
    %v5418 = vpop.f32.mrb[0].mxu0
    %5419 = vdwg.mxu0
    %v5420 = vadd.f32 %v3840, %v5412
    %v5421 = vadd.f32 %v3841, %v5417
    %s5422 = scalar_lea.vmem %s8, 2
    %v5423 = vld [vmem:[%s5422] sm:$0x1]
    %v5425 = vlaneseq
    %v5426 = vshrl.u32 %v5425, 7
    %v5427 = vsub.s32 0, %v5426
    %v5428 = vrot.slane %v5423, %v5427
    %v5430 = vadd.f32 %v5420, %v5428
    %v5431 = vadd.f32 %v5421, %v5428
    %s5432 = scalar_lea.vmem %s9, 2
    %v5433 = vld [vmem:[%s5432] sm:$0x1]
    %s5434 = scalar_lea.vmem %s10, 2
    %v5435 = vld [vmem:[%s5434] sm:$0x1]
    %v5436 = vsel %vm179, %v5430, 0.0
    %5437 = vadd.xlane.f32.xlu0 %v5436
    %v5438 = vpop.xlane.xlu0 %5437
    %v5439 = vsel %vm179, %v5431, 0.0
    %5440 = vadd.xlane.f32.xlu0 %v5439
    %v5441 = vpop.xlane.xlu0 %5440
    %v5442 = vmul.f32 %v5438, %v186
    %v5443 = vmul.f32 %v5441, %v186
    %v5444 = vsub.f32 %v5430, %v5442
    %v5445 = vsub.f32 %v5431, %v5443
    %v5446 = vmul.f32 %v5444, %v5444
    %v5447 = vmul.f32 %v5445, %v5445
    %v5448 = vsel %vm179, %v5446, 0.0
    %5449 = vadd.xlane.f32.xlu0 %v5448
    %v5450 = vpop.xlane.xlu0 %5449
    %v5451 = vsel %vm179, %v5447, 0.0
    %5452 = vadd.xlane.f32.xlu0 %v5451
    %v5453 = vpop.xlane.xlu0 %5452
    %v5454 = vmul.f32 %v5450, %v186
    %v5455 = vmul.f32 %v5453, %v186
    %v5456 = vadd.f32 %v5454, 1e-05
    %v5457 = vadd.f32 %v5455, 1e-05
    %v5458 = vrsqrt.pop %v5456
    %v5459 = vrsqrt.pop %v5457
    %v5460 = vmul.f32 %v5444, %v5458
    %v5461 = vmul.f32 %v5445, %v5459
    %v5463 = vlaneseq
    %v5464 = vshrl.u32 %v5463, 7
    %v5465 = vsub.s32 0, %v5464
    %v5466 = vrot.slane %v5433, %v5465
    %v5468 = vmul.f32 %v5460, %v5466
    %v5469 = vmul.f32 %v5461, %v5466
    %v5471 = vlaneseq
    %v5472 = vshrl.u32 %v5471, 7
    %v5473 = vsub.s32 0, %v5472
    %v5474 = vrot.slane %v5435, %v5473
    %v5476 = vadd.f32 %v5468, %v5474
    %v5477 = vadd.f32 %v5469, %v5474
    %s5478 = scalar_lea.vmem %s11, 64
    %v5479 = vld [vmem:[%s5478] sm:$0xff]
    %v5480 = vld [vmem:[%s5478 + $0x8] sm:$0xff]
    %v5481 = vld [vmem:[%s5478 + $0x10] sm:$0xff]
    %v5482 = vld [vmem:[%s5478 + $0x18] sm:$0xff]
    %s5483 = scalar_lea.vmem %s12, 2
    %v5484 = vld [vmem:[%s5483] sm:$0x1]
    %v5486 = vlaneseq
    %v5487 = vshrl.u32 %v5486, 7
    %v5488 = vsub.s32 0, %v5487
    %v5489 = vrot.slane %v5484, %v5488
    %v5492 = vsel %vm179, %v5476, 0
    %v5495 = vsel %vm179, %v5477, 0
    %5497 = vmatprep.subr.mxu0 0.0
    %5498 = vmatpush1.msra.mxu0 %v5479
    %5499 = vmatprep.subr.mxu0 0.0
    %5500 = vmatpush1.msra.mxu0 %v5480
    %5501 = vmatprep.subr.mxu0 0.0
    %5502 = vmatpush1.msra.mxu0 %v5481
    %5503 = vmatprep.subr.mxu0 0.0
    %5504 = vmatpush1.msra.mxu0 %v5482
    %5505 = vmatprep.subr.mxu0 0.0
    %5506 = vmatpush1.msra.mxu0 0.0
    %5507 = vmatprep.subr.mxu0 0.0
    %5508 = vmatpush1.msra.mxu0 0.0
    %5509 = vmatprep.subr.mxu0 0.0
    %5510 = vmatpush1.msra.mxu0 0.0
    %5511 = vmatprep.subr.mxu0 0.0
    %5512 = vmatpush1.msra.mxu0 0.0
    %5513 = vmatprep.subr.mxu0 0.0
    %5514 = vmatpush1.msra.mxu0 0.0
    %5515 = vmatprep.subr.mxu0 0.0
    %5516 = vmatpush1.msra.mxu0 0.0
    %5517 = vmatprep.subr.mxu0 0.0
    %5518 = vmatpush1.msra.mxu0 0.0
    %5519 = vmatprep.subr.mxu0 0.0
    %5520 = vmatpush1.msra.mxu0 0.0
    %5521 = vmatprep.subr.mxu0 0.0
    %5522 = vmatpush1.msra.mxu0 0.0
    %5523 = vmatprep.subr.mxu0 0.0
    %5524 = vmatpush1.msra.mxu0 0.0
    %5525 = vmatprep.subr.mxu0 0.0
    %5526 = vmatpush1.msra.mxu0 0.0
    %5527 = vmatprep.subr.mxu0 0.0
    %5528 = vmatpush1.msra.mxu0 0.0
    %5529 = vmatprep.subr.mxu0 0.0
    %5530 = vmatpush1.msra.mxu0 0.0
    %5531 = vmatprep.subr.mxu0 0.0
    %5532 = vmatpush1.msra.mxu0 0.0
    %5533 = vmatprep.subr.mxu0 0.0
    %5534 = vmatpush1.msra.mxu0 0.0
    %5535 = vmatprep.subr.mxu0 0.0
    %5536 = vmatpush1.msra.mxu0 0.0
    %5537 = vmatprep.subr.mxu0 0.0
    %5538 = vmatpush1.msra.mxu0 0.0
    %5539 = vmatprep.subr.mxu0 0.0
    %5540 = vmatpush1.msra.mxu0 0.0
    %5541 = vmatprep.subr.mxu0 0.0
    %5542 = vmatpush1.msra.mxu0 0.0
    %5543 = vmatprep.subr.mxu0 0.0
    %5544 = vmatpush1.msra.mxu0 0.0
    %5545 = vmatprep.subr.mxu0 0.0
    %5546 = vmatpush1.msra.mxu0 0.0
    %5547 = vmatprep.subr.mxu0 0.0
    %5548 = vmatpush1.msra.mxu0 0.0
    %5549 = vmatprep.subr.mxu0 0.0
    %5550 = vmatpush1.msra.mxu0 0.0
    %5551 = vmatprep.subr.mxu0 0.0
    %5552 = vmatpush1.msra.mxu0 0.0
    %5553 = vmatprep.subr.mxu0 0.0
    %5554 = vmatpush1.msra.mxu0 0.0
    %5555 = vmatprep.subr.mxu0 0.0
    %5556 = vmatpush1.msra.mxu0 0.0
    %5557 = vmatprep.subr.mxu0 0.0
    %5558 = vmatpush1.msra.mxu0 0.0
    %5559 = vmatprep.subr.mxu0 0.0
    %5560 = vmatpush1.msra.mxu0 0.0
    %5561 = vmatprep.mubr.f32.mxu0 0.0
    %5562 = vmatmul.mubr.f32.gmra.mrb[0].mxu0 %v5492
    %v5563 = vpop.f32.mrb[0].mxu0
    %v5564 = vadd.f32 %v5489, %v5563
    %v5565 = vpop.f32.mrb[0].mxu0
    %5566 = vmatprep.mubr.f32.mxu0 0.0
    %5567 = vmatmul.mubr.f32.gmra.mrb[0].mxu0 %v5495
    %v5568 = vpop.f32.mrb[0].mxu0
    %v5569 = vadd.f32 %v5489, %v5568
    %v5570 = vpop.f32.mrb[0].mxu0
    %5571 = vdwg.mxu0
    %v5572 = vmax.f32 %v5564, 0.0
    %v5573 = vmax.f32 %v5569, 0.0
    %s5574 = scalar_lea.vmem %s13, 256
    %v5575 = vld [vmem:[%s5574] sm:$0xff]
    %v5576 = vld [vmem:[%s5574 + $0x8] sm:$0xff]
    %v5577 = vld [vmem:[%s5574 + $0x10] sm:$0xff]
    %v5578 = vld [vmem:[%s5574 + $0x18] sm:$0xff]
    %v5579 = vld [vmem:[%s5574 + $0x20] sm:$0xff]
    %v5580 = vld [vmem:[%s5574 + $0x28] sm:$0xff]
    %v5581 = vld [vmem:[%s5574 + $0x30] sm:$0xff]
    %v5582 = vld [vmem:[%s5574 + $0x38] sm:$0xff]
    %v5583 = vld [vmem:[%s5574 + $0x40] sm:$0xff]
    %v5584 = vld [vmem:[%s5574 + $0x48] sm:$0xff]
    %v5585 = vld [vmem:[%s5574 + $0x50] sm:$0xff]
    %v5586 = vld [vmem:[%s5574 + $0x58] sm:$0xff]
    %v5587 = vld [vmem:[%s5574 + $0x60] sm:$0xff]
    %v5588 = vld [vmem:[%s5574 + $0x68] sm:$0xff]
    %v5589 = vld [vmem:[%s5574 + $0x70] sm:$0xff]
    %v5590 = vld [vmem:[%s5574 + $0x78] sm:$0xff]
    %5591 = vmatprep.subr.mxu0 0.0
    %5592 = vmatpush1.msra.mxu0 %v5575
    %5593 = vmatprep.subr.mxu0 0.0
    %5594 = vmatpush1.msra.mxu0 %v5576
    %5595 = vmatprep.subr.mxu0 0.0
    %5596 = vmatpush1.msra.mxu0 %v5577
    %5597 = vmatprep.subr.mxu0 0.0
    %5598 = vmatpush1.msra.mxu0 %v5578
    %5599 = vmatprep.subr.mxu0 0.0
    %5600 = vmatpush1.msra.mxu0 %v5579
    %5601 = vmatprep.subr.mxu0 0.0
    %5602 = vmatpush1.msra.mxu0 %v5580
    %5603 = vmatprep.subr.mxu0 0.0
    %5604 = vmatpush1.msra.mxu0 %v5581
    %5605 = vmatprep.subr.mxu0 0.0
    %5606 = vmatpush1.msra.mxu0 %v5582
    %5607 = vmatprep.subr.mxu0 0.0
    %5608 = vmatpush1.msra.mxu0 %v5583
    %5609 = vmatprep.subr.mxu0 0.0
    %5610 = vmatpush1.msra.mxu0 %v5584
    %5611 = vmatprep.subr.mxu0 0.0
    %5612 = vmatpush1.msra.mxu0 %v5585
    %5613 = vmatprep.subr.mxu0 0.0
    %5614 = vmatpush1.msra.mxu0 %v5586
    %5615 = vmatprep.subr.mxu0 0.0
    %5616 = vmatpush1.msra.mxu0 %v5587
    %5617 = vmatprep.subr.mxu0 0.0
    %5618 = vmatpush1.msra.mxu0 %v5588
    %5619 = vmatprep.subr.mxu0 0.0
    %5620 = vmatpush1.msra.mxu0 %v5589
    %5621 = vmatprep.subr.mxu0 0.0
    %5622 = vmatpush1.msra.mxu0 %v5590
    %5623 = vmatprep.subr.mxu0 0.0
    %5624 = vmatpush1.msra.mxu0 0.0
    %5625 = vmatprep.subr.mxu0 0.0
    %5626 = vmatpush1.msra.mxu0 0.0
    %5627 = vmatprep.subr.mxu0 0.0
    %5628 = vmatpush1.msra.mxu0 0.0
    %5629 = vmatprep.subr.mxu0 0.0
    %5630 = vmatpush1.msra.mxu0 0.0
    %5631 = vmatprep.subr.mxu0 0.0
    %5632 = vmatpush1.msra.mxu0 0.0
    %5633 = vmatprep.subr.mxu0 0.0
    %5634 = vmatpush1.msra.mxu0 0.0
    %5635 = vmatprep.subr.mxu0 0.0
    %5636 = vmatpush1.msra.mxu0 0.0
    %5637 = vmatprep.subr.mxu0 0.0
    %5638 = vmatpush1.msra.mxu0 0.0
    %5639 = vmatprep.subr.mxu0 0.0
    %5640 = vmatpush1.msra.mxu0 0.0
    %5641 = vmatprep.subr.mxu0 0.0
    %5642 = vmatpush1.msra.mxu0 0.0
    %5643 = vmatprep.subr.mxu0 0.0
    %5644 = vmatpush1.msra.mxu0 0.0
    %5645 = vmatprep.subr.mxu0 0.0
    %5646 = vmatpush1.msra.mxu0 0.0
    %5647 = vmatprep.subr.mxu0 0.0
    %5648 = vmatpush1.msra.mxu0 0.0
    %5649 = vmatprep.subr.mxu0 0.0
    %5650 = vmatpush1.msra.mxu0 0.0
    %5651 = vmatprep.subr.mxu0 0.0
    %5652 = vmatpush1.msra.mxu0 0.0
    %5653 = vmatprep.subr.mxu0 0.0
    %5654 = vmatpush1.msra.mxu0 0.0
    %5655 = vmatprep.mubr.f32.mxu0 0.0
    %5656 = vmatmul.mubr.f32.gmra.mrb[0].mxu0 %v5572
    %v5657 = vpop.f32.mrb[0].mxu0
    %v5658 = vadd.f32 0.0, %v5657
    %v5659 = vpop.f32.mrb[0].mxu0
    %5660 = vmatprep.mubr.f32.mxu0 0.0
    %5661 = vmatmul.mubr.f32.gmra.mrb[0].mxu0 %v5573
    %v5662 = vpop.f32.mrb[0].mxu0
    %v5663 = vadd.f32 0.0, %v5662
    %v5664 = vpop.f32.mrb[0].mxu0
    %5665 = vdwg.mxu0
    %v5666 = vadd.f32 %v5430, %v5658
    %v5667 = vadd.f32 %v5431, %v5663
    %s5668 = scalar_lea.vmem %s14, 2
    %v5669 = vld [vmem:[%s5668] sm:$0x1]
    %v5671 = vlaneseq
    %v5672 = vshrl.u32 %v5671, 7
    %v5673 = vsub.s32 0, %v5672
    %v5674 = vrot.slane %v5669, %v5673
    %v5676 = vadd.f32 %v5666, %v5674
    %v5677 = vadd.f32 %v5667, %v5674
    %v5678 = vld [vmem:[%s15] sm:$0x1]
    %v5679 = vld [vmem:[%s16] sm:$0x1]
    %v5680 = vsel %vm179, %v5676, 0.0
    %5681 = vadd.xlane.f32.xlu0 %v5680
    %v5682 = vpop.xlane.xlu0 %5681
    %v5683 = vsel %vm179, %v5677, 0.0
    %5684 = vadd.xlane.f32.xlu0 %v5683
    %v5685 = vpop.xlane.xlu0 %5684
    %v5686 = vmul.f32 %v5682, %v186
    %v5687 = vmul.f32 %v5685, %v186
    %v5688 = vsub.f32 %v5676, %v5686
    %v5689 = vsub.f32 %v5677, %v5687
    %v5690 = vmul.f32 %v5688, %v5688
    %v5691 = vmul.f32 %v5689, %v5689
    %v5692 = vsel %vm179, %v5690, 0.0
    %5693 = vadd.xlane.f32.xlu0 %v5692
    %v5694 = vpop.xlane.xlu0 %5693
    %v5695 = vsel %vm179, %v5691, 0.0
    %5696 = vadd.xlane.f32.xlu0 %v5695
    %v5697 = vpop.xlane.xlu0 %5696
    %v5698 = vmul.f32 %v5694, %v186
    %v5699 = vmul.f32 %v5697, %v186
    %v5700 = vadd.f32 %v5698, 1e-05
    %v5701 = vadd.f32 %v5699, 1e-05
    %v5702 = vrsqrt.pop %v5700
    %v5703 = vrsqrt.pop %v5701
    %v5704 = vmul.f32 %v5688, %v5702
    %v5705 = vmul.f32 %v5689, %v5703
    %v5707 = vlaneseq
    %v5708 = vshrl.u32 %v5707, 7
    %v5709 = vsub.s32 0, %v5708
    %v5710 = vrot.slane %v5678, %v5709
    %v5712 = vmul.f32 %v5704, %v5710
    %v5713 = vmul.f32 %v5705, %v5710
    %v5715 = vlaneseq
    %v5716 = vshrl.u32 %v5715, 7
    %v5717 = vsub.s32 0, %v5716
    %v5718 = vrot.slane %v5679, %v5717
    %v5720 = vadd.f32 %v5712, %v5718
    %v5721 = vadd.f32 %v5713, %v5718
    %v5722 = vld [vmem:[%s17] sm:$0xff]
    %v5723 = vld [vmem:[%s17 + $0x8] sm:$0xff]
    %v5724 = vld [vmem:[%s17 + $0x10] sm:$0xff]
    %v5725 = vld [vmem:[%s17 + $0x18] sm:$0xff]
    %v5726 = vld [vmem:[%s18] sm:$0x1]
    %v5728 = vlaneseq
    %v5729 = vshrl.u32 %v5728, 7
    %v5730 = vsub.s32 0, %v5729
    %v5731 = vrot.slane %v5726, %v5730
    %v5734 = vsel %vm179, %v5720, 0
    %v5737 = vsel %vm179, %v5721, 0
    %5739 = vmatprep.subr.mxu0 0.0
    %5740 = vmatpush1.msra.mxu0 %v5722
    %5741 = vmatprep.subr.mxu0 0.0
    %5742 = vmatpush1.msra.mxu0 %v5723
    %5743 = vmatprep.subr.mxu0 0.0
    %5744 = vmatpush1.msra.mxu0 %v5724
    %5745 = vmatprep.subr.mxu0 0.0
    %5746 = vmatpush1.msra.mxu0 %v5725
    %5747 = vmatprep.subr.mxu0 0.0
    %5748 = vmatpush1.msra.mxu0 0.0
    %5749 = vmatprep.subr.mxu0 0.0
    %5750 = vmatpush1.msra.mxu0 0.0
    %5751 = vmatprep.subr.mxu0 0.0
    %5752 = vmatpush1.msra.mxu0 0.0
    %5753 = vmatprep.subr.mxu0 0.0
    %5754 = vmatpush1.msra.mxu0 0.0
    %5755 = vmatprep.subr.mxu0 0.0
    %5756 = vmatpush1.msra.mxu0 0.0
    %5757 = vmatprep.subr.mxu0 0.0
    %5758 = vmatpush1.msra.mxu0 0.0
    %5759 = vmatprep.subr.mxu0 0.0
    %5760 = vmatpush1.msra.mxu0 0.0
    %5761 = vmatprep.subr.mxu0 0.0
    %5762 = vmatpush1.msra.mxu0 0.0
    %5763 = vmatprep.subr.mxu0 0.0
    %5764 = vmatpush1.msra.mxu0 0.0
    %5765 = vmatprep.subr.mxu0 0.0
    %5766 = vmatpush1.msra.mxu0 0.0
    %5767 = vmatprep.subr.mxu0 0.0
    %5768 = vmatpush1.msra.mxu0 0.0
    %5769 = vmatprep.subr.mxu0 0.0
    %5770 = vmatpush1.msra.mxu0 0.0
    %5771 = vmatprep.subr.mxu0 0.0
    %5772 = vmatpush1.msra.mxu0 0.0
    %5773 = vmatprep.subr.mxu0 0.0
    %5774 = vmatpush1.msra.mxu0 0.0
    %5775 = vmatprep.subr.mxu0 0.0
    %5776 = vmatpush1.msra.mxu0 0.0
    %5777 = vmatprep.subr.mxu0 0.0
    %5778 = vmatpush1.msra.mxu0 0.0
    %5779 = vmatprep.subr.mxu0 0.0
    %5780 = vmatpush1.msra.mxu0 0.0
    %5781 = vmatprep.subr.mxu0 0.0
    %5782 = vmatpush1.msra.mxu0 0.0
    %5783 = vmatprep.subr.mxu0 0.0
    %5784 = vmatpush1.msra.mxu0 0.0
    %5785 = vmatprep.subr.mxu0 0.0
    %5786 = vmatpush1.msra.mxu0 0.0
    %5787 = vmatprep.subr.mxu0 0.0
    %5788 = vmatpush1.msra.mxu0 0.0
    %5789 = vmatprep.subr.mxu0 0.0
    %5790 = vmatpush1.msra.mxu0 0.0
    %5791 = vmatprep.subr.mxu0 0.0
    %5792 = vmatpush1.msra.mxu0 0.0
    %5793 = vmatprep.subr.mxu0 0.0
    %5794 = vmatpush1.msra.mxu0 0.0
    %5795 = vmatprep.subr.mxu0 0.0
    %5796 = vmatpush1.msra.mxu0 0.0
    %5797 = vmatprep.subr.mxu0 0.0
    %5798 = vmatpush1.msra.mxu0 0.0
    %5799 = vmatprep.subr.mxu0 0.0
    %5800 = vmatpush1.msra.mxu0 0.0
    %5801 = vmatprep.subr.mxu0 0.0
    %5802 = vmatpush1.msra.mxu0 0.0
    %5803 = vmatprep.mubr.f32.mxu0 0.0
    %5804 = vmatmul.mubr.f32.gmra.mrb[0].mxu0 %v5734
    %v5805 = vpop.f32.mrb[0].mxu0
    %v5806 = vadd.f32 %v5731, %v5805
    %v5807 = vpop.f32.mrb[0].mxu0
    %5808 = vmatprep.mubr.f32.mxu0 0.0
    %5809 = vmatmul.mubr.f32.gmra.mrb[0].mxu0 %v5737
    %v5810 = vpop.f32.mrb[0].mxu0
    %v5811 = vadd.f32 %v5731, %v5810
    %v5812 = vpop.f32.mrb[0].mxu0
    %5813 = vdwg.mxu0
    %5814 = vst [vmem:[#allocation2] sm:$0xff] %v5806
    %5815 = vst [vmem:[#allocation2 + $0x8] sm:$0xff] %v5811
    // Predicated region
    $region78: #{bigram_forward.1} parent=1 // pred_check
      _
    $region79: #{bigram_forward.1} parent=1 // pred_check_branch
      %5817 = sbr.rel (0) target = $region81
    $region80: #{bigram_forward.1} parent=1 // pred_region
      %s5819 = ssub.s32 256, 256
      %5820 = vsyncadd [#allocation3], %s5819
      %s5821 = sshll.u32 [#allocation2], 4
      %s5822 = int_to_ptr.vmem [resolvable:$true] %s5821
      %5827 = dma.vmem_to_hbm [thread:$0]  %s5822, 256, %s19, [#allocation3], 128, 128, 8
    $region81: #{bigram_forward.1} parent=1 // pred_fallthru
      _
    // Predicated region
    $region82: #{bigram_forward.1} parent=1 // pred_check
      _
    $region83: #{bigram_forward.1} parent=1 // pred_check_branch
      %5829 = sbr.rel (0) target = $region85
    $region84: #{bigram_forward.1} parent=1 // pred_region
      %5830 = dma.done [#allocation3], 256
    $region85: #{bigram_forward.1} parent=1 // pred_fallthru
      _
    %5831 = vsyncpa [#allocation3], 1

</llo_original>
